<compile_context>
chip_gen: v7x
topology: tpu7x:2x2x1
jax: 0.10.0
libtpu: 0.0.40
codegen_flags: <defaults>
</compile_context>

<pallas_src>
import jax
import jax.numpy as jnp
import numpy as np
from jax import lax
from jax.experimental import pallas as pl
from jax.experimental.pallas import tpu as pltpu

BN_EPS = 1e-3
NEG_INF = -1e30


# ------------------------------ fused kernel --------------------------------

def _make_danet_kernel(Himg, Wimg, inter, pad):
    S = Himg * Wimg
    P = pad

    def kernel(cm0_ref, cm2_ref, x_ref,
               w5ac_ref, s5ac_ref, t5ac_ref,
               wqkv_ref, bqkv_ref, wdw_ref, bdw_ref,
               trow_ref, abias_ref, wproj_ref, bproj_ref,
               w51_ref, s51_ref, t51_ref,
               w52_ref, s52_ref, t52_ref,
               w8_ref, b8_ref,
               o_ref,
               padx_ref, padq_ref, pads_ref):
        f32 = jnp.float32
        cm = {0: cm0_ref[...], 2: cm2_ref[...]}          # (1, S) column masks

        def fill(pad_ref, val):
            # zero margins + lane-aligned central store of the operand
            C = pad_ref.shape[0]
            pad_ref[:, 0:P] = jnp.zeros((C, P), f32)
            pad_ref[:, P + S:P + S + P] = jnp.zeros((C, P), f32)
            pad_ref[:, P:P + S] = val

        def tap(pad_ref, k):
            dy, dx = divmod(k, 3)
            off = (dy - 1) * Wimg + (dx - 1)
            return pad_ref[:, P + off:P + off + S], dx

        def mask_cols(val, dx):
            return val if dx == 1 else val * cm[dx]

        def conv3x3(pad_ref, w_ref):
            n_out = w_ref.shape[1]
            acc = jnp.zeros((n_out, S), f32)
            for k in range(9):
                win, dx = tap(pad_ref, k)
                part = jnp.dot(w_ref[k], win, preferred_element_type=f32)
                acc = acc + mask_cols(part, dx)
            return acc

        def dwconv3x3(pad_ref, w_ref):
            n_c = pad_ref.shape[0]
            acc = jnp.zeros((n_c, S), f32)
            for k in range(9):
                win, dx = tap(pad_ref, k)
                acc = acc + mask_cols(w_ref[k] * win, dx)
            return acc

        # ---- conv5a & conv5c (3x3 conv + BN(eval) + ReLU) share the input ----
        fill(padx_ref, x_ref[0].astype(f32))
        y5 = conv3x3(padx_ref, w5ac_ref)
        y5 = jnp.maximum(y5 * s5ac_ref[...] + t5ac_ref[...], 0.0)
        feat1 = y5[0:inter, :]              # conv5a branch
        feat2 = y5[inter:2 * inter, :]      # conv5c branch

        # TODO(synk): MSCASSM is not defined in the provided source -> identity
        #             (the permutes around it cancel).

        # -------------------------------- MDTA --------------------------------
        # TODO(synk): ESAM (self.ES) is not defined in the provided source ->
        #             identity.
        qkv = jnp.dot(wqkv_ref[...], feat2, preferred_element_type=f32)
        qkv = qkv + bqkv_ref[...]
        fill(padq_ref, qkv)
        dw = dwconv3x3(padq_ref, wdw_ref) + bdw_ref[...]

        q = dw[0:inter, :]
        k_ = dw[inter:2 * inter, :]
        v = dw[2 * inter:3 * inter, :]
        qn = q * lax.rsqrt(jnp.maximum(jnp.sum(q * q, -1, keepdims=True), 1e-24))
        kn = k_ * lax.rsqrt(jnp.maximum(jnp.sum(k_ * k_, -1, keepdims=True), 1e-24))

        # all heads at once: block-diagonal bias keeps the softmax per-head
        gram = lax.dot_general(qn, kn, (((1,), (1,)), ((), ())),
                               preferred_element_type=f32)
        logits = gram * trow_ref[...] + abias_ref[...]
        m = jnp.max(logits, axis=-1, keepdims=True)
        e = jnp.exp(logits - m)
        attn = e * pl.reciprocal(jnp.sum(e, axis=-1, keepdims=True), approx=True)
        o_attn = jnp.dot(attn, v, preferred_element_type=f32)
        mdta = jnp.dot(wproj_ref[...], o_attn, preferred_element_type=f32)
        mdta = mdta + bproj_ref[...] + feat2           # project_out + residual

        # --------------------------- conv51 / conv52 ---------------------------
        fill(pads_ref, feat1)
        y51 = conv3x3(pads_ref, w51_ref)
        y51 = jnp.maximum(y51 * s51_ref[...] + t51_ref[...], 0.0)

        fill(pads_ref, mdta)
        y52 = conv3x3(pads_ref, w52_ref)
        y52 = jnp.maximum(y52 * s52_ref[...] + t52_ref[...], 0.0)

        # -------------------------------- conv8 --------------------------------
        # Dropout2d is identity in inference mode.
        feat_sum = y51 + y52
        out = jnp.dot(w8_ref[...], feat_sum, preferred_element_type=f32)
        out = jnp.maximum(out + b8_ref[...], 0.0)
        o_ref[0] = out.astype(o_ref.dtype)

    return kernel


# -------------------------------- wrappers -----------------------------------

def _fold_bn(bn):
    gamma, beta, mean, var = bn
    scale = gamma / jnp.sqrt(var + BN_EPS)
    shift = beta - mean * scale
    return scale[:, None], shift[:, None]


def _taps_oihw(w):
    """(O, I, 3, 3) -> (9, O, I), tap index k = dy*3 + dx."""
    O, I = w.shape[0], w.shape[1]
    return jnp.transpose(w.reshape(O, I, 9), (2, 0, 1))


def danet_forward(x, params, num_heads=4):
    B, Cin, H, W = x.shape
    S = H * W
    inter = params["w5a"].shape[0]
    out_ch = params["w8"].shape[0]
    ch = inter // num_heads
    PAD = 128

    # ---- fold / repack parameters (tiny, weight-side preprocessing) ----
    w5ac = _taps_oihw(jnp.concatenate([params["w5a"], params["w5c"]], axis=0))
    s5a, t5a = _fold_bn(params["bn5a"])
    s5c, t5c = _fold_bn(params["bn5c"])
    s5ac = jnp.concatenate([s5a, s5c], axis=0)
    t5ac = jnp.concatenate([t5a, t5c], axis=0)

    wqkv = params["w_qkv"]
    bqkv = params["b_qkv"][:, None]
    wdw = jnp.transpose(params["w_dw"].reshape(3 * inter, 9), (1, 0))[:, :, None]
    bdw = params["b_dw"][:, None]
    head_id = jnp.arange(inter) // ch
    trow = params["temperature"].reshape(num_heads)[head_id][:, None]
    abias = jnp.where(head_id[:, None] == head_id[None, :], 0.0, NEG_INF
                      ).astype(jnp.float32)
    wproj = params["w_proj"]
    bproj = params["b_proj"][:, None]

    w51 = _taps_oihw(params["w51"]); s51, t51 = _fold_bn(params["bn51"])
    w52 = _taps_oihw(params["w52"]); s52, t52 = _fold_bn(params["bn52"])
    w8 = params["w8"]; b8 = params["b8"][:, None]

    col = jnp.arange(S) % W
    cm0 = (col != 0).astype(jnp.float32)[None, :]        # dx = 0 column mask
    cm2 = (col != W - 1).astype(jnp.float32)[None, :]    # dx = 2 column mask

    x_flat = x.reshape(B, Cin, S)

    def const(*shape):
        return pl.BlockSpec(shape, lambda b: (0,) * len(shape))

    kernel = _make_danet_kernel(H, W, inter, PAD)
    out = pl.pallas_call(
        kernel,
        out_shape=jax.ShapeDtypeStruct((B, out_ch, S), x.dtype),
        grid=(B,),
        in_specs=[
            const(1, S),                                   # cm0
            const(1, S),                                   # cm2
            pl.BlockSpec((1, Cin, S), lambda b: (b, 0, 0)),  # x
            const(9, 2 * inter, Cin),                      # w5ac
            const(2 * inter, 1),                           # s5ac
            const(2 * inter, 1),                           # t5ac
            const(3 * inter, inter),                       # wqkv
            const(3 * inter, 1),                           # bqkv
            const(9, 3 * inter, 1),                        # wdw
            const(3 * inter, 1),                           # bdw
            const(inter, 1),                               # trow (temperature)
            const(inter, inter),                           # abias
            const(inter, inter),                           # wproj
            const(inter, 1),                               # bproj
            const(9, inter, inter),                        # w51
            const(inter, 1),                               # s51
            const(inter, 1),                               # t51
            const(9, inter, inter),                        # w52
            const(inter, 1),                               # s52
            const(inter, 1),                               # t52
            const(out_ch, inter),                          # w8
            const(out_ch, 1),                              # b8
        ],
        out_specs=pl.BlockSpec((1, out_ch, S), lambda b: (b, 0, 0)),
        scratch_shapes=[
            pltpu.VMEM((Cin, S + 2 * PAD), jnp.float32),        # padded x line
            pltpu.VMEM((3 * inter, S + 2 * PAD), jnp.float32),  # padded qkv line
            pltpu.VMEM((inter, S + 2 * PAD), jnp.float32),      # padded feat line
        ],
        compiler_params=pltpu.CompilerParams(
            dimension_semantics=("parallel",),
            vmem_limit_bytes=32 * 1024 * 1024,
        ),
    )(cm0, cm2, x_flat, w5ac, s5ac, t5ac, wqkv, bqkv, wdw, bdw, trow, abias,
      wproj, bproj, w51, s51, t51, w52, s52, t52, w8, b8)
    return out.reshape(B, out_ch, H, W)


# ---------------------------- pure-JAX reference -----------------------------

def reference_forward(x, params, num_heads=4):
    PREC = lax.Precision.HIGHEST

    def bn(y, bnp):
        gamma, beta, mean, var = bnp
        return ((y - mean[None, :, None, None])
                * (gamma / jnp.sqrt(var + BN_EPS))[None, :, None, None]
                + beta[None, :, None, None])

    def conv3(y, w, groups=1):
        return lax.conv_general_dilated(
            y, w, window_strides=(1, 1), padding=((1, 1), (1, 1)),
            dimension_numbers=("NCHW", "OIHW", "NCHW"),
            feature_group_count=groups, precision=PREC)

    def pw(y, w, b):
        return jnp.einsum("oc,bchw->bohw", w, y, precision=PREC) \
            + b[None, :, None, None]

    B, Cin, H, W = x.shape
    feat1 = jax.nn.relu(bn(conv3(x, params["w5a"]), params["bn5a"]))
    feat2 = jax.nn.relu(bn(conv3(x, params["w5c"]), params["bn5c"]))

    # MSCASSM / ESAM: identity (not defined in the provided source).
    C = feat2.shape[1]; S = H * W; ch = C // num_heads
    qkv = pw(feat2, params["w_qkv"], params["b_qkv"])
    dw = conv3(qkv, params["w_dw"], groups=3 * C) \
        + params["b_dw"][None, :, None, None]
    q, k, v = jnp.split(dw, 3, axis=1)
    rs = lambda t: t.reshape(B, num_heads, ch, S)
    q, k, v = rs(q), rs(k), rs(v)
    qn = q / jnp.maximum(jnp.sqrt(jnp.sum(q * q, -1, keepdims=True)), 1e-12)
    kn = k / jnp.maximum(jnp.sqrt(jnp.sum(k * k, -1, keepdims=True)), 1e-12)
    attn = jnp.einsum("bhcs,bhds->bhcd", qn, kn, precision=PREC) \
        * params["temperature"][None]
    attn = jax.nn.softmax(attn, axis=-1)
    o = jnp.einsum("bhcd,bhds->bhcs", attn, v, precision=PREC).reshape(B, C, H, W)
    mdta = pw(o, params["w_proj"], params["b_proj"]) + feat2

    c51 = jax.nn.relu(bn(conv3(feat1, params["w51"]), params["bn51"]))
    c52 = jax.nn.relu(bn(conv3(mdta, params["w52"]), params["bn52"]))
    out = jax.nn.relu(pw(c51 + c52, params["w8"], params["b8"]))
    return out


# ---------------------------------- params -----------------------------------

def init_params(key, in_channels=128, num_heads=4, out_channels=8):
    inter = in_channels // 16
    ks = iter(jax.random.split(key, 32))

    def nrm(shape, s=0.1):
        return s * jax.random.normal(next(ks), shape, jnp.float32)

    def bn_params(c):
        gamma = 1.0 + 0.1 * jax.random.normal(next(ks), (c,), jnp.float32)
        beta = 0.05 * jax.random.normal(next(ks), (c,), jnp.float32)
        mean = 0.05 * jax.random.normal(next(ks), (c,), jnp.float32)
        var = jax.random.uniform(next(ks), (c,), jnp.float32, 0.5, 1.5)
        return (gamma, beta, mean, var)

    return {
        "w5a": nrm((inter, in_channels, 3, 3)), "bn5a": bn_params(inter),
        "w5c": nrm((inter, in_channels, 3, 3)), "bn5c": bn_params(inter),
        "w_qkv": nrm((3 * inter, inter)), "b_qkv": nrm((3 * inter,), 0.05),
        "w_dw": nrm((3 * inter, 1, 3, 3)), "b_dw": nrm((3 * inter,), 0.05),
        "temperature": jax.random.uniform(next(ks), (num_heads, 1, 1),
                                          jnp.float32, 0.5, 1.5),
        "w_proj": nrm((inter, inter)), "b_proj": nrm((inter,), 0.05),
        "w51": nrm((inter, inter, 3, 3)), "bn51": bn_params(inter),
        "w52": nrm((inter, inter, 3, 3)), "bn52": bn_params(inter),
        "w8": nrm((out_channels, inter)), "b8": nrm((out_channels,), 0.05),
    }


# ----------------------------------- main -------------------------------------

if __name__ == "__main__":
    B, in_channels, H, W = 2, 128, 16, 16      # inter_channels = 128 // 16 = 8
    num_heads, out_channels = 4, 8
    key = jax.random.PRNGKey(0)
    kx, kp = jax.random.split(key)
    x = jax.random.normal(kx, (B, in_channels, H, W), jnp.float32)
    params = init_params(kp, in_channels, num_heads, out_channels)

    fwd = jax.jit(danet_forward, static_argnames=("num_heads",))
    out = jax.block_until_ready(fwd(x, params, num_heads=num_heads))

    ref = reference_forward(x, params, num_heads=num_heads)
    np.testing.assert_allclose(np.asarray(out), np.asarray(ref),
                               rtol=3e-3, atol=3e-3)
    print("KERNEL_OK")
</pallas_src>

<mosaic_0001>
module attributes {stable_mosaic.version = 11 : i64} {
  func.func @kernel(%arg0: i32, %arg1: memref<1x256xf32, #tpu.memory_space<vmem>>, %arg2: memref<1x256xf32, #tpu.memory_space<vmem>>, %arg3: memref<1x128x256xf32, #tpu.memory_space<vmem>>, %arg4: memref<9x16x128xf32, #tpu.memory_space<vmem>>, %arg5: memref<16x1xf32, #tpu.memory_space<vmem>>, %arg6: memref<16x1xf32, #tpu.memory_space<vmem>>, %arg7: memref<24x8xf32, #tpu.memory_space<vmem>>, %arg8: memref<24x1xf32, #tpu.memory_space<vmem>>, %arg9: memref<9x24x1xf32, #tpu.memory_space<vmem>>, %arg10: memref<24x1xf32, #tpu.memory_space<vmem>>, %arg11: memref<8x1xf32, #tpu.memory_space<vmem>>, %arg12: memref<8x8xf32, #tpu.memory_space<vmem>>, %arg13: memref<8x8xf32, #tpu.memory_space<vmem>>, %arg14: memref<8x1xf32, #tpu.memory_space<vmem>>, %arg15: memref<9x8x8xf32, #tpu.memory_space<vmem>>, %arg16: memref<8x1xf32, #tpu.memory_space<vmem>>, %arg17: memref<8x1xf32, #tpu.memory_space<vmem>>, %arg18: memref<9x8x8xf32, #tpu.memory_space<vmem>>, %arg19: memref<8x1xf32, #tpu.memory_space<vmem>>, %arg20: memref<8x1xf32, #tpu.memory_space<vmem>>, %arg21: memref<8x8xf32, #tpu.memory_space<vmem>>, %arg22: memref<8x1xf32, #tpu.memory_space<vmem>>, %arg23: memref<1x8x256xf32, #tpu.memory_space<vmem>>, %arg24: memref<128x512xf32, #tpu.memory_space<vmem>>, %arg25: memref<24x512xf32, #tpu.memory_space<vmem>>, %arg26: memref<8x512xf32, #tpu.memory_space<vmem>>) attributes {dimension_semantics = [#tpu.dimension_semantics<parallel>], iteration_bounds = array<i64: 2>, scalar_prefetch = 0 : i64, scratch_operands = 3 : i64, tpu.core_type = #tpu.core_type<tc>, window_params = [{pipeline_mode = #tpu.pipeline_mode<synchronous>, transform_indices = @transform_0, window_bounds = array<i64: 1, 256>}, {pipeline_mode = #tpu.pipeline_mode<synchronous>, transform_indices = @transform_1, window_bounds = array<i64: 1, 256>}, {transform_indices = @transform_2, window_bounds = array<i64: 1, 128, 256>}, {pipeline_mode = #tpu.pipeline_mode<synchronous>, transform_indices = @transform_3, window_bounds = array<i64: 9, 16, 128>}, {pipeline_mode = #tpu.pipeline_mode<synchronous>, transform_indices = @transform_4, window_bounds = array<i64: 16, 1>}, {pipeline_mode = #tpu.pipeline_mode<synchronous>, transform_indices = @transform_5, window_bounds = array<i64: 16, 1>}, {pipeline_mode = #tpu.pipeline_mode<synchronous>, transform_indices = @transform_6, window_bounds = array<i64: 24, 8>}, {pipeline_mode = #tpu.pipeline_mode<synchronous>, transform_indices = @transform_7, window_bounds = array<i64: 24, 1>}, {pipeline_mode = #tpu.pipeline_mode<synchronous>, transform_indices = @transform_8, window_bounds = array<i64: 9, 24, 1>}, {pipeline_mode = #tpu.pipeline_mode<synchronous>, transform_indices = @transform_9, window_bounds = array<i64: 24, 1>}, {pipeline_mode = #tpu.pipeline_mode<synchronous>, transform_indices = @transform_10, window_bounds = array<i64: 8, 1>}, {pipeline_mode = #tpu.pipeline_mode<synchronous>, transform_indices = @transform_11, window_bounds = array<i64: 8, 8>}, {pipeline_mode = #tpu.pipeline_mode<synchronous>, transform_indices = @transform_12, window_bounds = array<i64: 8, 8>}, {pipeline_mode = #tpu.pipeline_mode<synchronous>, transform_indices = @transform_13, window_bounds = array<i64: 8, 1>}, {pipeline_mode = #tpu.pipeline_mode<synchronous>, transform_indices = @transform_14, window_bounds = array<i64: 9, 8, 8>}, {pipeline_mode = #tpu.pipeline_mode<synchronous>, transform_indices = @transform_15, window_bounds = array<i64: 8, 1>}, {pipeline_mode = #tpu.pipeline_mode<synchronous>, transform_indices = @transform_16, window_bounds = array<i64: 8, 1>}, {pipeline_mode = #tpu.pipeline_mode<synchronous>, transform_indices = @transform_17, window_bounds = array<i64: 9, 8, 8>}, {pipeline_mode = #tpu.pipeline_mode<synchronous>, transform_indices = @transform_18, window_bounds = array<i64: 8, 1>}, {pipeline_mode = #tpu.pipeline_mode<synchronous>, transform_indices = @transform_19, window_bounds = array<i64: 8, 1>}, {pipeline_mode = #tpu.pipeline_mode<synchronous>, transform_indices = @transform_20, window_bounds = array<i64: 8, 8>}, {pipeline_mode = #tpu.pipeline_mode<synchronous>, transform_indices = @transform_21, window_bounds = array<i64: 8, 1>}, {transform_indices = @transform_22, window_bounds = array<i64: 1, 8, 256>}]} {
    %c0 = arith.constant 0 : index
    %c0_0 = arith.constant 0 : index
    %0 = vector.load %arg1[%c0, %c0_0] : memref<1x256xf32, #tpu.memory_space<vmem>>, vector<1x256xf32>
    %c0_1 = arith.constant 0 : index
    %c0_2 = arith.constant 0 : index
    %1 = vector.load %arg2[%c0_1, %c0_2] : memref<1x256xf32, #tpu.memory_space<vmem>>, vector<1x256xf32>
    %c0_3 = arith.constant 0 : index
    %c0_4 = arith.constant 0 : index
    %c0_5 = arith.constant 0 : index
    %2 = vector.load %arg3[%c0_3, %c0_4, %c0_5] : memref<1x128x256xf32, #tpu.memory_space<vmem>>, vector<1x128x256xf32>
    %3 = vector.shape_cast %2 : vector<1x128x256xf32> to vector<128x256xf32>
    %cst = arith.constant 0.000000e+00 : f32
    %4 = vector.broadcast %cst : f32 to vector<128x128xf32>
    %c0_6 = arith.constant 0 : index
    %c0_7 = arith.constant 0 : index
    %5 = vector.load %arg24[%c0_6, %c0_7] : memref<128x512xf32, #tpu.memory_space<vmem>>, vector<128x128xf32>
    tpu.vector_store %arg24[%c0_6, %c0_7], %4 {strides = array<i32>} : memref<128x512xf32, #tpu.memory_space<vmem>>, vector<128x128xf32>,
    %cst_8 = arith.constant 0.000000e+00 : f32
    %6 = vector.broadcast %cst_8 : f32 to vector<128x128xf32>
    %c0_9 = arith.constant 0 : index
    %c384 = arith.constant 384 : index
    %7 = vector.load %arg24[%c0_9, %c384] : memref<128x512xf32, #tpu.memory_space<vmem>>, vector<128x128xf32>
    tpu.vector_store %arg24[%c0_9, %c384], %6 {strides = array<i32>} : memref<128x512xf32, #tpu.memory_space<vmem>>, vector<128x128xf32>,
    %c0_10 = arith.constant 0 : index
    %c128 = arith.constant 128 : index
    %8 = vector.load %arg24[%c0_10, %c128] : memref<128x512xf32, #tpu.memory_space<vmem>>, vector<128x256xf32>
    tpu.vector_store %arg24[%c0_10, %c128], %3 {strides = array<i32>} : memref<128x512xf32, #tpu.memory_space<vmem>>, vector<128x256xf32>,
    %cst_11 = arith.constant 0.000000e+00 : f32
    %9 = vector.broadcast %cst_11 : f32 to vector<16x256xf32>
    %c0_12 = arith.constant 0 : index
    %c111 = arith.constant 111 : index
    %10 = vector.load %arg24[%c0_12, %c111] : memref<128x512xf32, #tpu.memory_space<vmem>>, vector<128x256xf32>
    %c0_13 = arith.constant 0 : index
    %c0_14 = arith.constant 0 : index
    %c0_15 = arith.constant 0 : index
    %11 = vector.load %arg4[%c0_13, %c0_14, %c0_15] : memref<9x16x128xf32, #tpu.memory_space<vmem>>, vector<1x16x128xf32>
    %12 = vector.shape_cast %11 : vector<1x16x128xf32> to vector<16x128xf32>
    %cst_16 = arith.constant dense<0.000000e+00> : vector<16x256xf32>
    %13 = tpu.matmul %12, %10, %cst_16 {dimension_numbers = #tpu.dot_dimension_numbers<[1], [0], [0], [1], [0, 0, 1, 1], [], []>} : vector<16x128xf32>, vector<128x256xf32>, vector<16x256xf32> -> vector<16x256xf32>
    %14 = vector.broadcast %0 : vector<1x256xf32> to vector<16x256xf32>
    %15 = arith.mulf %13, %14 : vector<16x256xf32>
    %16 = arith.addf %9, %15 : vector<16x256xf32>
    %c0_17 = arith.constant 0 : index
    %c112 = arith.constant 112 : index
    %17 = vector.load %arg24[%c0_17, %c112] : memref<128x512xf32, #tpu.memory_space<vmem>>, vector<128x256xf32>
    %c1 = arith.constant 1 : index
    %c0_18 = arith.constant 0 : index
    %c0_19 = arith.constant 0 : index
    %18 = vector.load %arg4[%c1, %c0_18, %c0_19] : memref<9x16x128xf32, #tpu.memory_space<vmem>>, vector<1x16x128xf32>
    %19 = vector.shape_cast %18 : vector<1x16x128xf32> to vector<16x128xf32>
    %cst_20 = arith.constant dense<0.000000e+00> : vector<16x256xf32>
    %20 = tpu.matmul %19, %17, %cst_20 {dimension_numbers = #tpu.dot_dimension_numbers<[1], [0], [0], [1], [0, 0, 1, 1], [], []>} : vector<16x128xf32>, vector<128x256xf32>, vector<16x256xf32> -> vector<16x256xf32>
    %21 = arith.addf %16, %20 : vector<16x256xf32>
    %c0_21 = arith.constant 0 : index
    %c113 = arith.constant 113 : index
    %22 = vector.load %arg24[%c0_21, %c113] : memref<128x512xf32, #tpu.memory_space<vmem>>, vector<128x256xf32>
    %c2 = arith.constant 2 : index
    %c0_22 = arith.constant 0 : index
    %c0_23 = arith.constant 0 : index
    %23 = vector.load %arg4[%c2, %c0_22, %c0_23] : memref<9x16x128xf32, #tpu.memory_space<vmem>>, vector<1x16x128xf32>
    %24 = vector.shape_cast %23 : vector<1x16x128xf32> to vector<16x128xf32>
    %cst_24 = arith.constant dense<0.000000e+00> : vector<16x256xf32>
    %25 = tpu.matmul %24, %22, %cst_24 {dimension_numbers = #tpu.dot_dimension_numbers<[1], [0], [0], [1], [0, 0, 1, 1], [], []>} : vector<16x128xf32>, vector<128x256xf32>, vector<16x256xf32> -> vector<16x256xf32>
    %26 = vector.broadcast %1 : vector<1x256xf32> to vector<16x256xf32>
    %27 = arith.mulf %25, %26 : vector<16x256xf32>
    %28 = arith.addf %21, %27 : vector<16x256xf32>
    %c0_25 = arith.constant 0 : index
    %c127 = arith.constant 127 : index
    %29 = vector.load %arg24[%c0_25, %c127] : memref<128x512xf32, #tpu.memory_space<vmem>>, vector<128x256xf32>
    %c3 = arith.constant 3 : index
    %c0_26 = arith.constant 0 : index
    %c0_27 = arith.constant 0 : index
    %30 = vector.load %arg4[%c3, %c0_26, %c0_27] : memref<9x16x128xf32, #tpu.memory_space<vmem>>, vector<1x16x128xf32>
    %31 = vector.shape_cast %30 : vector<1x16x128xf32> to vector<16x128xf32>
    %cst_28 = arith.constant dense<0.000000e+00> : vector<16x256xf32>
    %32 = tpu.matmul %31, %29, %cst_28 {dimension_numbers = #tpu.dot_dimension_numbers<[1], [0], [0], [1], [0, 0, 1, 1], [], []>} : vector<16x128xf32>, vector<128x256xf32>, vector<16x256xf32> -> vector<16x256xf32>
    %33 = vector.broadcast %0 : vector<1x256xf32> to vector<16x256xf32>
    %34 = arith.mulf %32, %33 : vector<16x256xf32>
    %35 = arith.addf %28, %34 : vector<16x256xf32>
    %c0_29 = arith.constant 0 : index
    %c128_30 = arith.constant 128 : index
    %36 = vector.load %arg24[%c0_29, %c128_30] : memref<128x512xf32, #tpu.memory_space<vmem>>, vector<128x256xf32>
    %c4 = arith.constant 4 : index
    %c0_31 = arith.constant 0 : index
    %c0_32 = arith.constant 0 : index
    %37 = vector.load %arg4[%c4, %c0_31, %c0_32] : memref<9x16x128xf32, #tpu.memory_space<vmem>>, vector<1x16x128xf32>
    %38 = vector.shape_cast %37 : vector<1x16x128xf32> to vector<16x128xf32>
    %cst_33 = arith.constant dense<0.000000e+00> : vector<16x256xf32>
    %39 = tpu.matmul %38, %36, %cst_33 {dimension_numbers = #tpu.dot_dimension_numbers<[1], [0], [0], [1], [0, 0, 1, 1], [], []>} : vector<16x128xf32>, vector<128x256xf32>, vector<16x256xf32> -> vector<16x256xf32>
    %40 = arith.addf %35, %39 : vector<16x256xf32>
    %c0_34 = arith.constant 0 : index
    %c129 = arith.constant 129 : index
    %41 = vector.load %arg24[%c0_34, %c129] : memref<128x512xf32, #tpu.memory_space<vmem>>, vector<128x256xf32>
    %c5 = arith.constant 5 : index
    %c0_35 = arith.constant 0 : index
    %c0_36 = arith.constant 0 : index
    %42 = vector.load %arg4[%c5, %c0_35, %c0_36] : memref<9x16x128xf32, #tpu.memory_space<vmem>>, vector<1x16x128xf32>
    %43 = vector.shape_cast %42 : vector<1x16x128xf32> to vector<16x128xf32>
    %cst_37 = arith.constant dense<0.000000e+00> : vector<16x256xf32>
    %44 = tpu.matmul %43, %41, %cst_37 {dimension_numbers = #tpu.dot_dimension_numbers<[1], [0], [0], [1], [0, 0, 1, 1], [], []>} : vector<16x128xf32>, vector<128x256xf32>, vector<16x256xf32> -> vector<16x256xf32>
    %45 = vector.broadcast %1 : vector<1x256xf32> to vector<16x256xf32>
    %46 = arith.mulf %44, %45 : vector<16x256xf32>
    %47 = arith.addf %40, %46 : vector<16x256xf32>
    %c0_38 = arith.constant 0 : index
    %c143 = arith.constant 143 : index
    %48 = vector.load %arg24[%c0_38, %c143] : memref<128x512xf32, #tpu.memory_space<vmem>>, vector<128x256xf32>
    %c6 = arith.constant 6 : index
    %c0_39 = arith.constant 0 : index
    %c0_40 = arith.constant 0 : index
    %49 = vector.load %arg4[%c6, %c0_39, %c0_40] : memref<9x16x128xf32, #tpu.memory_space<vmem>>, vector<1x16x128xf32>
    %50 = vector.shape_cast %49 : vector<1x16x128xf32> to vector<16x128xf32>
    %cst_41 = arith.constant dense<0.000000e+00> : vector<16x256xf32>
    %51 = tpu.matmul %50, %48, %cst_41 {dimension_numbers = #tpu.dot_dimension_numbers<[1], [0], [0], [1], [0, 0, 1, 1], [], []>} : vector<16x128xf32>, vector<128x256xf32>, vector<16x256xf32> -> vector<16x256xf32>
    %52 = vector.broadcast %0 : vector<1x256xf32> to vector<16x256xf32>
    %53 = arith.mulf %51, %52 : vector<16x256xf32>
    %54 = arith.addf %47, %53 : vector<16x256xf32>
    %c0_42 = arith.constant 0 : index
    %c144 = arith.constant 144 : index
    %55 = vector.load %arg24[%c0_42, %c144] : memref<128x512xf32, #tpu.memory_space<vmem>>, vector<128x256xf32>
    %c7 = arith.constant 7 : index
    %c0_43 = arith.constant 0 : index
    %c0_44 = arith.constant 0 : index
    %56 = vector.load %arg4[%c7, %c0_43, %c0_44] : memref<9x16x128xf32, #tpu.memory_space<vmem>>, vector<1x16x128xf32>
    %57 = vector.shape_cast %56 : vector<1x16x128xf32> to vector<16x128xf32>
    %cst_45 = arith.constant dense<0.000000e+00> : vector<16x256xf32>
    %58 = tpu.matmul %57, %55, %cst_45 {dimension_numbers = #tpu.dot_dimension_numbers<[1], [0], [0], [1], [0, 0, 1, 1], [], []>} : vector<16x128xf32>, vector<128x256xf32>, vector<16x256xf32> -> vector<16x256xf32>
    %59 = arith.addf %54, %58 : vector<16x256xf32>
    %c0_46 = arith.constant 0 : index
    %c145 = arith.constant 145 : index
    %60 = vector.load %arg24[%c0_46, %c145] : memref<128x512xf32, #tpu.memory_space<vmem>>, vector<128x256xf32>
    %c8 = arith.constant 8 : index
    %c0_47 = arith.constant 0 : index
    %c0_48 = arith.constant 0 : index
    %61 = vector.load %arg4[%c8, %c0_47, %c0_48] : memref<9x16x128xf32, #tpu.memory_space<vmem>>, vector<1x16x128xf32>
    %62 = vector.shape_cast %61 : vector<1x16x128xf32> to vector<16x128xf32>
    %cst_49 = arith.constant dense<0.000000e+00> : vector<16x256xf32>
    %63 = tpu.matmul %62, %60, %cst_49 {dimension_numbers = #tpu.dot_dimension_numbers<[1], [0], [0], [1], [0, 0, 1, 1], [], []>} : vector<16x128xf32>, vector<128x256xf32>, vector<16x256xf32> -> vector<16x256xf32>
    %64 = vector.broadcast %1 : vector<1x256xf32> to vector<16x256xf32>
    %65 = arith.mulf %63, %64 : vector<16x256xf32>
    %66 = arith.addf %59, %65 : vector<16x256xf32>
    %c0_50 = arith.constant 0 : index
    %c0_51 = arith.constant 0 : index
    %67 = vector.load %arg5[%c0_50, %c0_51] : memref<16x1xf32, #tpu.memory_space<vmem>>, vector<16x1xf32>
    %68 = vector.broadcast %67 : vector<16x1xf32> to vector<16x256xf32>
    %69 = arith.mulf %66, %68 : vector<16x256xf32>
    %c0_52 = arith.constant 0 : index
    %c0_53 = arith.constant 0 : index
    %70 = vector.load %arg6[%c0_52, %c0_53] : memref<16x1xf32, #tpu.memory_space<vmem>>, vector<16x1xf32>
    %71 = vector.broadcast %70 : vector<16x1xf32> to vector<16x256xf32>
    %72 = arith.addf %69, %71 : vector<16x256xf32>
    %cst_54 = arith.constant 0.000000e+00 : f32
    %73 = vector.broadcast %cst_54 : f32 to vector<16x256xf32>
    %74 = arith.maximumf %72, %73 : vector<16x256xf32>
    %75 = vector.extract_strided_slice %74 {offsets = [0, 0], sizes = [8, 256], strides = [1, 1]} : vector<16x256xf32> to vector<8x256xf32>
    %76 = vector.extract_strided_slice %74 {offsets = [8, 0], sizes = [8, 256], strides = [1, 1]} : vector<16x256xf32> to vector<8x256xf32>
    %c0_55 = arith.constant 0 : index
    %c0_56 = arith.constant 0 : index
    %77 = vector.load %arg7[%c0_55, %c0_56] : memref<24x8xf32, #tpu.memory_space<vmem>>, vector<24x8xf32>
    %cst_57 = arith.constant dense<0.000000e+00> : vector<24x256xf32>
    %78 = tpu.matmul %77, %76, %cst_57 {dimension_numbers = #tpu.dot_dimension_numbers<[1], [0], [0], [1], [0, 0, 1, 1], [], []>} : vector<24x8xf32>, vector<8x256xf32>, vector<24x256xf32> -> vector<24x256xf32>
    %c0_58 = arith.constant 0 : index
    %c0_59 = arith.constant 0 : index
    %79 = vector.load %arg8[%c0_58, %c0_59] : memref<24x1xf32, #tpu.memory_space<vmem>>, vector<24x1xf32>
    %80 = vector.broadcast %79 : vector<24x1xf32> to vector<24x256xf32>
    %81 = arith.addf %78, %80 : vector<24x256xf32>
    %cst_60 = arith.constant 0.000000e+00 : f32
    %82 = vector.broadcast %cst_60 : f32 to vector<24x128xf32>
    %c0_61 = arith.constant 0 : index
    %c0_62 = arith.constant 0 : index
    %83 = vector.load %arg25[%c0_61, %c0_62] : memref<24x512xf32, #tpu.memory_space<vmem>>, vector<24x128xf32>
    tpu.vector_store %arg25[%c0_61, %c0_62], %82 {strides = array<i32>} : memref<24x512xf32, #tpu.memory_space<vmem>>, vector<24x128xf32>,
    %cst_63 = arith.constant 0.000000e+00 : f32
    %84 = vector.broadcast %cst_63 : f32 to vector<24x128xf32>
    %c0_64 = arith.constant 0 : index
    %c384_65 = arith.constant 384 : index
    %85 = vector.load %arg25[%c0_64, %c384_65] : memref<24x512xf32, #tpu.memory_space<vmem>>, vector<24x128xf32>
    tpu.vector_store %arg25[%c0_64, %c384_65], %84 {strides = array<i32>} : memref<24x512xf32, #tpu.memory_space<vmem>>, vector<24x128xf32>,
    %c0_66 = arith.constant 0 : index
    %c128_67 = arith.constant 128 : index
    %86 = vector.load %arg25[%c0_66, %c128_67] : memref<24x512xf32, #tpu.memory_space<vmem>>, vector<24x256xf32>
    tpu.vector_store %arg25[%c0_66, %c128_67], %81 {strides = array<i32>} : memref<24x512xf32, #tpu.memory_space<vmem>>, vector<24x256xf32>,
    %cst_68 = arith.constant 0.000000e+00 : f32
    %87 = vector.broadcast %cst_68 : f32 to vector<24x256xf32>
    %c0_69 = arith.constant 0 : index
    %c111_70 = arith.constant 111 : index
    %88 = vector.load %arg25[%c0_69, %c111_70] : memref<24x512xf32, #tpu.memory_space<vmem>>, vector<24x256xf32>
    %c0_71 = arith.constant 0 : index
    %c0_72 = arith.constant 0 : index
    %c0_73 = arith.constant 0 : index
    %89 = vector.load %arg9[%c0_71, %c0_72, %c0_73] : memref<9x24x1xf32, #tpu.memory_space<vmem>>, vector<1x24x1xf32>
    %90 = vector.shape_cast %89 : vector<1x24x1xf32> to vector<24x1xf32>
    %91 = vector.broadcast %90 : vector<24x1xf32> to vector<24x256xf32>
    %92 = arith.mulf %91, %88 : vector<24x256xf32>
    %93 = vector.broadcast %0 : vector<1x256xf32> to vector<24x256xf32>
    %94 = arith.mulf %92, %93 : vector<24x256xf32>
    %95 = arith.addf %87, %94 : vector<24x256xf32>
    %c0_74 = arith.constant 0 : index
    %c112_75 = arith.constant 112 : index
    %96 = vector.load %arg25[%c0_74, %c112_75] : memref<24x512xf32, #tpu.memory_space<vmem>>, vector<24x256xf32>
    %c1_76 = arith.constant 1 : index
    %c0_77 = arith.constant 0 : index
    %c0_78 = arith.constant 0 : index
    %97 = vector.load %arg9[%c1_76, %c0_77, %c0_78] : memref<9x24x1xf32, #tpu.memory_space<vmem>>, vector<1x24x1xf32>
    %98 = vector.shape_cast %97 : vector<1x24x1xf32> to vector<24x1xf32>
    %99 = vector.broadcast %98 : vector<24x1xf32> to vector<24x256xf32>
    %100 = arith.mulf %99, %96 : vector<24x256xf32>
    %101 = arith.addf %95, %100 : vector<24x256xf32>
    %c0_79 = arith.constant 0 : index
    %c113_80 = arith.constant 113 : index
    %102 = vector.load %arg25[%c0_79, %c113_80] : memref<24x512xf32, #tpu.memory_space<vmem>>, vector<24x256xf32>
    %c2_81 = arith.constant 2 : index
    %c0_82 = arith.constant 0 : index
    %c0_83 = arith.constant 0 : index
    %103 = vector.load %arg9[%c2_81, %c0_82, %c0_83] : memref<9x24x1xf32, #tpu.memory_space<vmem>>, vector<1x24x1xf32>
    %104 = vector.shape_cast %103 : vector<1x24x1xf32> to vector<24x1xf32>
    %105 = vector.broadcast %104 : vector<24x1xf32> to vector<24x256xf32>
    %106 = arith.mulf %105, %102 : vector<24x256xf32>
    %107 = vector.broadcast %1 : vector<1x256xf32> to vector<24x256xf32>
    %108 = arith.mulf %106, %107 : vector<24x256xf32>
    %109 = arith.addf %101, %108 : vector<24x256xf32>
    %c0_84 = arith.constant 0 : index
    %c127_85 = arith.constant 127 : index
    %110 = vector.load %arg25[%c0_84, %c127_85] : memref<24x512xf32, #tpu.memory_space<vmem>>, vector<24x256xf32>
    %c3_86 = arith.constant 3 : index
    %c0_87 = arith.constant 0 : index
    %c0_88 = arith.constant 0 : index
    %111 = vector.load %arg9[%c3_86, %c0_87, %c0_88] : memref<9x24x1xf32, #tpu.memory_space<vmem>>, vector<1x24x1xf32>
    %112 = vector.shape_cast %111 : vector<1x24x1xf32> to vector<24x1xf32>
    %113 = vector.broadcast %112 : vector<24x1xf32> to vector<24x256xf32>
    %114 = arith.mulf %113, %110 : vector<24x256xf32>
    %115 = vector.broadcast %0 : vector<1x256xf32> to vector<24x256xf32>
    %116 = arith.mulf %114, %115 : vector<24x256xf32>
    %117 = arith.addf %109, %116 : vector<24x256xf32>
    %c0_89 = arith.constant 0 : index
    %c128_90 = arith.constant 128 : index
    %118 = vector.load %arg25[%c0_89, %c128_90] : memref<24x512xf32, #tpu.memory_space<vmem>>, vector<24x256xf32>
    %c4_91 = arith.constant 4 : index
    %c0_92 = arith.constant 0 : index
    %c0_93 = arith.constant 0 : index
    %119 = vector.load %arg9[%c4_91, %c0_92, %c0_93] : memref<9x24x1xf32, #tpu.memory_space<vmem>>, vector<1x24x1xf32>
    %120 = vector.shape_cast %119 : vector<1x24x1xf32> to vector<24x1xf32>
    %121 = vector.broadcast %120 : vector<24x1xf32> to vector<24x256xf32>
    %122 = arith.mulf %121, %118 : vector<24x256xf32>
    %123 = arith.addf %117, %122 : vector<24x256xf32>
    %c0_94 = arith.constant 0 : index
    %c129_95 = arith.constant 129 : index
    %124 = vector.load %arg25[%c0_94, %c129_95] : memref<24x512xf32, #tpu.memory_space<vmem>>, vector<24x256xf32>
    %c5_96 = arith.constant 5 : index
    %c0_97 = arith.constant 0 : index
    %c0_98 = arith.constant 0 : index
    %125 = vector.load %arg9[%c5_96, %c0_97, %c0_98] : memref<9x24x1xf32, #tpu.memory_space<vmem>>, vector<1x24x1xf32>
    %126 = vector.shape_cast %125 : vector<1x24x1xf32> to vector<24x1xf32>
    %127 = vector.broadcast %126 : vector<24x1xf32> to vector<24x256xf32>
    %128 = arith.mulf %127, %124 : vector<24x256xf32>
    %129 = vector.broadcast %1 : vector<1x256xf32> to vector<24x256xf32>
    %130 = arith.mulf %128, %129 : vector<24x256xf32>
    %131 = arith.addf %123, %130 : vector<24x256xf32>
    %c0_99 = arith.constant 0 : index
    %c143_100 = arith.constant 143 : index
    %132 = vector.load %arg25[%c0_99, %c143_100] : memref<24x512xf32, #tpu.memory_space<vmem>>, vector<24x256xf32>
    %c6_101 = arith.constant 6 : index
    %c0_102 = arith.constant 0 : index
    %c0_103 = arith.constant 0 : index
    %133 = vector.load %arg9[%c6_101, %c0_102, %c0_103] : memref<9x24x1xf32, #tpu.memory_space<vmem>>, vector<1x24x1xf32>
    %134 = vector.shape_cast %133 : vector<1x24x1xf32> to vector<24x1xf32>
    %135 = vector.broadcast %134 : vector<24x1xf32> to vector<24x256xf32>
    %136 = arith.mulf %135, %132 : vector<24x256xf32>
    %137 = vector.broadcast %0 : vector<1x256xf32> to vector<24x256xf32>
    %138 = arith.mulf %136, %137 : vector<24x256xf32>
    %139 = arith.addf %131, %138 : vector<24x256xf32>
    %c0_104 = arith.constant 0 : index
    %c144_105 = arith.constant 144 : index
    %140 = vector.load %arg25[%c0_104, %c144_105] : memref<24x512xf32, #tpu.memory_space<vmem>>, vector<24x256xf32>
    %c7_106 = arith.constant 7 : index
    %c0_107 = arith.constant 0 : index
    %c0_108 = arith.constant 0 : index
    %141 = vector.load %arg9[%c7_106, %c0_107, %c0_108] : memref<9x24x1xf32, #tpu.memory_space<vmem>>, vector<1x24x1xf32>
    %142 = vector.shape_cast %141 : vector<1x24x1xf32> to vector<24x1xf32>
    %143 = vector.broadcast %142 : vector<24x1xf32> to vector<24x256xf32>
    %144 = arith.mulf %143, %140 : vector<24x256xf32>
    %145 = arith.addf %139, %144 : vector<24x256xf32>
    %c0_109 = arith.constant 0 : index
    %c145_110 = arith.constant 145 : index
    %146 = vector.load %arg25[%c0_109, %c145_110] : memref<24x512xf32, #tpu.memory_space<vmem>>, vector<24x256xf32>
    %c8_111 = arith.constant 8 : index
    %c0_112 = arith.constant 0 : index
    %c0_113 = arith.constant 0 : index
    %147 = vector.load %arg9[%c8_111, %c0_112, %c0_113] : memref<9x24x1xf32, #tpu.memory_space<vmem>>, vector<1x24x1xf32>
    %148 = vector.shape_cast %147 : vector<1x24x1xf32> to vector<24x1xf32>
    %149 = vector.broadcast %148 : vector<24x1xf32> to vector<24x256xf32>
    %150 = arith.mulf %149, %146 : vector<24x256xf32>
    %151 = vector.broadcast %1 : vector<1x256xf32> to vector<24x256xf32>
    %152 = arith.mulf %150, %151 : vector<24x256xf32>
    %153 = arith.addf %145, %152 : vector<24x256xf32>
    %c0_114 = arith.constant 0 : index
    %c0_115 = arith.constant 0 : index
    %154 = vector.load %arg10[%c0_114, %c0_115] : memref<24x1xf32, #tpu.memory_space<vmem>>, vector<24x1xf32>
    %155 = vector.broadcast %154 : vector<24x1xf32> to vector<24x256xf32>
    %156 = arith.addf %153, %155 : vector<24x256xf32>
    %157 = vector.extract_strided_slice %156 {offsets = [0, 0], sizes = [8, 256], strides = [1, 1]} : vector<24x256xf32> to vector<8x256xf32>
    %158 = vector.extract_strided_slice %156 {offsets = [8, 0], sizes = [8, 256], strides = [1, 1]} : vector<24x256xf32> to vector<8x256xf32>
    %159 = vector.extract_strided_slice %156 {offsets = [16, 0], sizes = [8, 256], strides = [1, 1]} : vector<24x256xf32> to vector<8x256xf32>
    %160 = arith.mulf %157, %157 : vector<8x256xf32>
    %cst_116 = arith.constant dense<0.000000e+00> : vector<8xf32>
    %161 = vector.multi_reduction <add>, %160, %cst_116 [1] : vector<8x256xf32> to vector<8xf32>
    %162 = vector.shape_cast %161 : vector<8xf32> to vector<8x1xf32>
    %cst_117 = arith.constant 1.000000e-24 : f32
    %163 = vector.broadcast %cst_117 : f32 to vector<8x1xf32>
    %164 = arith.maximumf %162, %163 : vector<8x1xf32>
    %165 = math.rsqrt %164 : vector<8x1xf32>
    %166 = vector.broadcast %165 : vector<8x1xf32> to vector<8x256xf32>
    %167 = arith.mulf %157, %166 : vector<8x256xf32>
    %168 = arith.mulf %158, %158 : vector<8x256xf32>
    %cst_118 = arith.constant dense<0.000000e+00> : vector<8xf32>
    %169 = vector.multi_reduction <add>, %168, %cst_118 [1] : vector<8x256xf32> to vector<8xf32>
    %170 = vector.shape_cast %169 : vector<8xf32> to vector<8x1xf32>
    %cst_119 = arith.constant 1.000000e-24 : f32
    %171 = vector.broadcast %cst_119 : f32 to vector<8x1xf32>
    %172 = arith.maximumf %170, %171 : vector<8x1xf32>
    %173 = math.rsqrt %172 : vector<8x1xf32>
    %174 = vector.broadcast %173 : vector<8x1xf32> to vector<8x256xf32>
    %175 = arith.mulf %158, %174 : vector<8x256xf32>
    %cst_120 = arith.constant dense<0.000000e+00> : vector<8x8xf32>
    %176 = tpu.matmul %167, %175, %cst_120 {dimension_numbers = #tpu.dot_dimension_numbers<[1], [1], [0], [0], [0, 0, 1, 0], [], []>} : vector<8x256xf32>, vector<8x256xf32>, vector<8x8xf32> -> vector<8x8xf32>
    %c0_121 = arith.constant 0 : index
    %c0_122 = arith.constant 0 : index
    %177 = vector.load %arg11[%c0_121, %c0_122] : memref<8x1xf32, #tpu.memory_space<vmem>>, vector<8x1xf32>
    %178 = vector.broadcast %177 : vector<8x1xf32> to vector<8x8xf32>
    %179 = arith.mulf %176, %178 : vector<8x8xf32>
    %c0_123 = arith.constant 0 : index
    %c0_124 = arith.constant 0 : index
    %180 = vector.load %arg12[%c0_123, %c0_124] : memref<8x8xf32, #tpu.memory_space<vmem>>, vector<8x8xf32>
    %181 = arith.addf %179, %180 : vector<8x8xf32>
    %cst_125 = arith.constant dense<0xFF800000> : vector<8xf32>
    %182 = vector.multi_reduction <maximumf>, %181, %cst_125 [1] : vector<8x8xf32> to vector<8xf32>
    %183 = vector.shape_cast %182 : vector<8xf32> to vector<8x1xf32>
    %184 = vector.broadcast %183 : vector<8x1xf32> to vector<8x8xf32>
    %185 = arith.subf %181, %184 : vector<8x8xf32>
    %186 = math.exp %185 : vector<8x8xf32>
    %cst_126 = arith.constant dense<0.000000e+00> : vector<8xf32>
    %187 = vector.multi_reduction <add>, %186, %cst_126 [1] : vector<8x8xf32> to vector<8xf32>
    %188 = vector.shape_cast %187 : vector<8xf32> to vector<8x1xf32>
    %189 = tpu.reciprocal %188 {approx = true} : vector<8x1xf32> -> vector<8x1xf32>
    %190 = vector.broadcast %189 : vector<8x1xf32> to vector<8x8xf32>
    %191 = arith.mulf %186, %190 : vector<8x8xf32>
    %cst_127 = arith.constant dense<0.000000e+00> : vector<8x256xf32>
    %192 = tpu.matmul %191, %159, %cst_127 {dimension_numbers = #tpu.dot_dimension_numbers<[1], [0], [0], [1], [0, 0, 1, 1], [], []>} : vector<8x8xf32>, vector<8x256xf32>, vector<8x256xf32> -> vector<8x256xf32>
    %c0_128 = arith.constant 0 : index
    %c0_129 = arith.constant 0 : index
    %193 = vector.load %arg13[%c0_128, %c0_129] : memref<8x8xf32, #tpu.memory_space<vmem>>, vector<8x8xf32>
    %cst_130 = arith.constant dense<0.000000e+00> : vector<8x256xf32>
    %194 = tpu.matmul %193, %192, %cst_130 {dimension_numbers = #tpu.dot_dimension_numbers<[1], [0], [0], [1], [0, 0, 1, 1], [], []>} : vector<8x8xf32>, vector<8x256xf32>, vector<8x256xf32> -> vector<8x256xf32>
    %c0_131 = arith.constant 0 : index
    %c0_132 = arith.constant 0 : index
    %195 = vector.load %arg14[%c0_131, %c0_132] : memref<8x1xf32, #tpu.memory_space<vmem>>, vector<8x1xf32>
    %196 = vector.broadcast %195 : vector<8x1xf32> to vector<8x256xf32>
    %197 = arith.addf %194, %196 : vector<8x256xf32>
    %198 = arith.addf %197, %76 : vector<8x256xf32>
    %cst_133 = arith.constant 0.000000e+00 : f32
    %199 = vector.broadcast %cst_133 : f32 to vector<8x128xf32>
    %c0_134 = arith.constant 0 : index
    %c0_135 = arith.constant 0 : index
    %200 = vector.load %arg26[%c0_134, %c0_135] : memref<8x512xf32, #tpu.memory_space<vmem>>, vector<8x128xf32>
    tpu.vector_store %arg26[%c0_134, %c0_135], %199 {strides = array<i32>} : memref<8x512xf32, #tpu.memory_space<vmem>>, vector<8x128xf32>,
    %cst_136 = arith.constant 0.000000e+00 : f32
    %201 = vector.broadcast %cst_136 : f32 to vector<8x128xf32>
    %c0_137 = arith.constant 0 : index
    %c384_138 = arith.constant 384 : index
    %202 = vector.load %arg26[%c0_137, %c384_138] : memref<8x512xf32, #tpu.memory_space<vmem>>, vector<8x128xf32>
    tpu.vector_store %arg26[%c0_137, %c384_138], %201 {strides = array<i32>} : memref<8x512xf32, #tpu.memory_space<vmem>>, vector<8x128xf32>,
    %c0_139 = arith.constant 0 : index
    %c128_140 = arith.constant 128 : index
    %203 = vector.load %arg26[%c0_139, %c128_140] : memref<8x512xf32, #tpu.memory_space<vmem>>, vector<8x256xf32>
    tpu.vector_store %arg26[%c0_139, %c128_140], %75 {strides = array<i32>} : memref<8x512xf32, #tpu.memory_space<vmem>>, vector<8x256xf32>,
    %cst_141 = arith.constant 0.000000e+00 : f32
    %204 = vector.broadcast %cst_141 : f32 to vector<8x256xf32>
    %c0_142 = arith.constant 0 : index
    %c111_143 = arith.constant 111 : index
    %205 = vector.load %arg26[%c0_142, %c111_143] : memref<8x512xf32, #tpu.memory_space<vmem>>, vector<8x256xf32>
    %c0_144 = arith.constant 0 : index
    %c0_145 = arith.constant 0 : index
    %c0_146 = arith.constant 0 : index
    %206 = vector.load %arg15[%c0_144, %c0_145, %c0_146] : memref<9x8x8xf32, #tpu.memory_space<vmem>>, vector<1x8x8xf32>
    %207 = vector.shape_cast %206 : vector<1x8x8xf32> to vector<8x8xf32>
    %cst_147 = arith.constant dense<0.000000e+00> : vector<8x256xf32>
    %208 = tpu.matmul %207, %205, %cst_147 {dimension_numbers = #tpu.dot_dimension_numbers<[1], [0], [0], [1], [0, 0, 1, 1], [], []>} : vector<8x8xf32>, vector<8x256xf32>, vector<8x256xf32> -> vector<8x256xf32>
    %209 = vector.broadcast %0 : vector<1x256xf32> to vector<8x256xf32>
    %210 = arith.mulf %208, %209 : vector<8x256xf32>
    %211 = arith.addf %204, %210 : vector<8x256xf32>
    %c0_148 = arith.constant 0 : index
    %c112_149 = arith.constant 112 : index
    %212 = vector.load %arg26[%c0_148, %c112_149] : memref<8x512xf32, #tpu.memory_space<vmem>>, vector<8x256xf32>
    %c1_150 = arith.constant 1 : index
    %c0_151 = arith.constant 0 : index
    %c0_152 = arith.constant 0 : index
    %213 = vector.load %arg15[%c1_150, %c0_151, %c0_152] : memref<9x8x8xf32, #tpu.memory_space<vmem>>, vector<1x8x8xf32>
    %214 = vector.shape_cast %213 : vector<1x8x8xf32> to vector<8x8xf32>
    %cst_153 = arith.constant dense<0.000000e+00> : vector<8x256xf32>
    %215 = tpu.matmul %214, %212, %cst_153 {dimension_numbers = #tpu.dot_dimension_numbers<[1], [0], [0], [1], [0, 0, 1, 1], [], []>} : vector<8x8xf32>, vector<8x256xf32>, vector<8x256xf32> -> vector<8x256xf32>
    %216 = arith.addf %211, %215 : vector<8x256xf32>
    %c0_154 = arith.constant 0 : index
    %c113_155 = arith.constant 113 : index
    %217 = vector.load %arg26[%c0_154, %c113_155] : memref<8x512xf32, #tpu.memory_space<vmem>>, vector<8x256xf32>
    %c2_156 = arith.constant 2 : index
    %c0_157 = arith.constant 0 : index
    %c0_158 = arith.constant 0 : index
    %218 = vector.load %arg15[%c2_156, %c0_157, %c0_158] : memref<9x8x8xf32, #tpu.memory_space<vmem>>, vector<1x8x8xf32>
    %219 = vector.shape_cast %218 : vector<1x8x8xf32> to vector<8x8xf32>
    %cst_159 = arith.constant dense<0.000000e+00> : vector<8x256xf32>
    %220 = tpu.matmul %219, %217, %cst_159 {dimension_numbers = #tpu.dot_dimension_numbers<[1], [0], [0], [1], [0, 0, 1, 1], [], []>} : vector<8x8xf32>, vector<8x256xf32>, vector<8x256xf32> -> vector<8x256xf32>
    %221 = vector.broadcast %1 : vector<1x256xf32> to vector<8x256xf32>
    %222 = arith.mulf %220, %221 : vector<8x256xf32>
    %223 = arith.addf %216, %222 : vector<8x256xf32>
    %c0_160 = arith.constant 0 : index
    %c127_161 = arith.constant 127 : index
    %224 = vector.load %arg26[%c0_160, %c127_161] : memref<8x512xf32, #tpu.memory_space<vmem>>, vector<8x256xf32>
    %c3_162 = arith.constant 3 : index
    %c0_163 = arith.constant 0 : index
    %c0_164 = arith.constant 0 : index
    %225 = vector.load %arg15[%c3_162, %c0_163, %c0_164] : memref<9x8x8xf32, #tpu.memory_space<vmem>>, vector<1x8x8xf32>
    %226 = vector.shape_cast %225 : vector<1x8x8xf32> to vector<8x8xf32>
    %cst_165 = arith.constant dense<0.000000e+00> : vector<8x256xf32>
    %227 = tpu.matmul %226, %224, %cst_165 {dimension_numbers = #tpu.dot_dimension_numbers<[1], [0], [0], [1], [0, 0, 1, 1], [], []>} : vector<8x8xf32>, vector<8x256xf32>, vector<8x256xf32> -> vector<8x256xf32>
    %228 = vector.broadcast %0 : vector<1x256xf32> to vector<8x256xf32>
    %229 = arith.mulf %227, %228 : vector<8x256xf32>
    %230 = arith.addf %223, %229 : vector<8x256xf32>
    %c0_166 = arith.constant 0 : index
    %c128_167 = arith.constant 128 : index
    %231 = vector.load %arg26[%c0_166, %c128_167] : memref<8x512xf32, #tpu.memory_space<vmem>>, vector<8x256xf32>
    %c4_168 = arith.constant 4 : index
    %c0_169 = arith.constant 0 : index
    %c0_170 = arith.constant 0 : index
    %232 = vector.load %arg15[%c4_168, %c0_169, %c0_170] : memref<9x8x8xf32, #tpu.memory_space<vmem>>, vector<1x8x8xf32>
    %233 = vector.shape_cast %232 : vector<1x8x8xf32> to vector<8x8xf32>
    %cst_171 = arith.constant dense<0.000000e+00> : vector<8x256xf32>
    %234 = tpu.matmul %233, %231, %cst_171 {dimension_numbers = #tpu.dot_dimension_numbers<[1], [0], [0], [1], [0, 0, 1, 1], [], []>} : vector<8x8xf32>, vector<8x256xf32>, vector<8x256xf32> -> vector<8x256xf32>
    %235 = arith.addf %230, %234 : vector<8x256xf32>
    %c0_172 = arith.constant 0 : index
    %c129_173 = arith.constant 129 : index
    %236 = vector.load %arg26[%c0_172, %c129_173] : memref<8x512xf32, #tpu.memory_space<vmem>>, vector<8x256xf32>
    %c5_174 = arith.constant 5 : index
    %c0_175 = arith.constant 0 : index
    %c0_176 = arith.constant 0 : index
    %237 = vector.load %arg15[%c5_174, %c0_175, %c0_176] : memref<9x8x8xf32, #tpu.memory_space<vmem>>, vector<1x8x8xf32>
    %238 = vector.shape_cast %237 : vector<1x8x8xf32> to vector<8x8xf32>
    %cst_177 = arith.constant dense<0.000000e+00> : vector<8x256xf32>
    %239 = tpu.matmul %238, %236, %cst_177 {dimension_numbers = #tpu.dot_dimension_numbers<[1], [0], [0], [1], [0, 0, 1, 1], [], []>} : vector<8x8xf32>, vector<8x256xf32>, vector<8x256xf32> -> vector<8x256xf32>
    %240 = vector.broadcast %1 : vector<1x256xf32> to vector<8x256xf32>
    %241 = arith.mulf %239, %240 : vector<8x256xf32>
    %242 = arith.addf %235, %241 : vector<8x256xf32>
    %c0_178 = arith.constant 0 : index
    %c143_179 = arith.constant 143 : index
    %243 = vector.load %arg26[%c0_178, %c143_179] : memref<8x512xf32, #tpu.memory_space<vmem>>, vector<8x256xf32>
    %c6_180 = arith.constant 6 : index
    %c0_181 = arith.constant 0 : index
    %c0_182 = arith.constant 0 : index
    %244 = vector.load %arg15[%c6_180, %c0_181, %c0_182] : memref<9x8x8xf32, #tpu.memory_space<vmem>>, vector<1x8x8xf32>
    %245 = vector.shape_cast %244 : vector<1x8x8xf32> to vector<8x8xf32>
    %cst_183 = arith.constant dense<0.000000e+00> : vector<8x256xf32>
    %246 = tpu.matmul %245, %243, %cst_183 {dimension_numbers = #tpu.dot_dimension_numbers<[1], [0], [0], [1], [0, 0, 1, 1], [], []>} : vector<8x8xf32>, vector<8x256xf32>, vector<8x256xf32> -> vector<8x256xf32>
    %247 = vector.broadcast %0 : vector<1x256xf32> to vector<8x256xf32>
    %248 = arith.mulf %246, %247 : vector<8x256xf32>
    %249 = arith.addf %242, %248 : vector<8x256xf32>
    %c0_184 = arith.constant 0 : index
    %c144_185 = arith.constant 144 : index
    %250 = vector.load %arg26[%c0_184, %c144_185] : memref<8x512xf32, #tpu.memory_space<vmem>>, vector<8x256xf32>
    %c7_186 = arith.constant 7 : index
    %c0_187 = arith.constant 0 : index
    %c0_188 = arith.constant 0 : index
    %251 = vector.load %arg15[%c7_186, %c0_187, %c0_188] : memref<9x8x8xf32, #tpu.memory_space<vmem>>, vector<1x8x8xf32>
    %252 = vector.shape_cast %251 : vector<1x8x8xf32> to vector<8x8xf32>
    %cst_189 = arith.constant dense<0.000000e+00> : vector<8x256xf32>
    %253 = tpu.matmul %252, %250, %cst_189 {dimension_numbers = #tpu.dot_dimension_numbers<[1], [0], [0], [1], [0, 0, 1, 1], [], []>} : vector<8x8xf32>, vector<8x256xf32>, vector<8x256xf32> -> vector<8x256xf32>
    %254 = arith.addf %249, %253 : vector<8x256xf32>
    %c0_190 = arith.constant 0 : index
    %c145_191 = arith.constant 145 : index
    %255 = vector.load %arg26[%c0_190, %c145_191] : memref<8x512xf32, #tpu.memory_space<vmem>>, vector<8x256xf32>
    %c8_192 = arith.constant 8 : index
    %c0_193 = arith.constant 0 : index
    %c0_194 = arith.constant 0 : index
    %256 = vector.load %arg15[%c8_192, %c0_193, %c0_194] : memref<9x8x8xf32, #tpu.memory_space<vmem>>, vector<1x8x8xf32>
    %257 = vector.shape_cast %256 : vector<1x8x8xf32> to vector<8x8xf32>
    %cst_195 = arith.constant dense<0.000000e+00> : vector<8x256xf32>
    %258 = tpu.matmul %257, %255, %cst_195 {dimension_numbers = #tpu.dot_dimension_numbers<[1], [0], [0], [1], [0, 0, 1, 1], [], []>} : vector<8x8xf32>, vector<8x256xf32>, vector<8x256xf32> -> vector<8x256xf32>
    %259 = vector.broadcast %1 : vector<1x256xf32> to vector<8x256xf32>
    %260 = arith.mulf %258, %259 : vector<8x256xf32>
    %261 = arith.addf %254, %260 : vector<8x256xf32>
    %c0_196 = arith.constant 0 : index
    %c0_197 = arith.constant 0 : index
    %262 = vector.load %arg16[%c0_196, %c0_197] : memref<8x1xf32, #tpu.memory_space<vmem>>, vector<8x1xf32>
    %263 = vector.broadcast %262 : vector<8x1xf32> to vector<8x256xf32>
    %264 = arith.mulf %261, %263 : vector<8x256xf32>
    %c0_198 = arith.constant 0 : index
    %c0_199 = arith.constant 0 : index
    %265 = vector.load %arg17[%c0_198, %c0_199] : memref<8x1xf32, #tpu.memory_space<vmem>>, vector<8x1xf32>
    %266 = vector.broadcast %265 : vector<8x1xf32> to vector<8x256xf32>
    %267 = arith.addf %264, %266 : vector<8x256xf32>
    %cst_200 = arith.constant 0.000000e+00 : f32
    %268 = vector.broadcast %cst_200 : f32 to vector<8x256xf32>
    %269 = arith.maximumf %267, %268 : vector<8x256xf32>
    %cst_201 = arith.constant 0.000000e+00 : f32
    %270 = vector.broadcast %cst_201 : f32 to vector<8x128xf32>
    %c0_202 = arith.constant 0 : index
    %c0_203 = arith.constant 0 : index
    %271 = vector.load %arg26[%c0_202, %c0_203] : memref<8x512xf32, #tpu.memory_space<vmem>>, vector<8x128xf32>
    tpu.vector_store %arg26[%c0_202, %c0_203], %270 {strides = array<i32>} : memref<8x512xf32, #tpu.memory_space<vmem>>, vector<8x128xf32>,
    %cst_204 = arith.constant 0.000000e+00 : f32
    %272 = vector.broadcast %cst_204 : f32 to vector<8x128xf32>
    %c0_205 = arith.constant 0 : index
    %c384_206 = arith.constant 384 : index
    %273 = vector.load %arg26[%c0_205, %c384_206] : memref<8x512xf32, #tpu.memory_space<vmem>>, vector<8x128xf32>
    tpu.vector_store %arg26[%c0_205, %c384_206], %272 {strides = array<i32>} : memref<8x512xf32, #tpu.memory_space<vmem>>, vector<8x128xf32>,
    %c0_207 = arith.constant 0 : index
    %c128_208 = arith.constant 128 : index
    %274 = vector.load %arg26[%c0_207, %c128_208] : memref<8x512xf32, #tpu.memory_space<vmem>>, vector<8x256xf32>
    tpu.vector_store %arg26[%c0_207, %c128_208], %198 {strides = array<i32>} : memref<8x512xf32, #tpu.memory_space<vmem>>, vector<8x256xf32>,
    %cst_209 = arith.constant 0.000000e+00 : f32
    %275 = vector.broadcast %cst_209 : f32 to vector<8x256xf32>
    %c0_210 = arith.constant 0 : index
    %c111_211 = arith.constant 111 : index
    %276 = vector.load %arg26[%c0_210, %c111_211] : memref<8x512xf32, #tpu.memory_space<vmem>>, vector<8x256xf32>
    %c0_212 = arith.constant 0 : index
    %c0_213 = arith.constant 0 : index
    %c0_214 = arith.constant 0 : index
    %277 = vector.load %arg18[%c0_212, %c0_213, %c0_214] : memref<9x8x8xf32, #tpu.memory_space<vmem>>, vector<1x8x8xf32>
    %278 = vector.shape_cast %277 : vector<1x8x8xf32> to vector<8x8xf32>
    %cst_215 = arith.constant dense<0.000000e+00> : vector<8x256xf32>
    %279 = tpu.matmul %278, %276, %cst_215 {dimension_numbers = #tpu.dot_dimension_numbers<[1], [0], [0], [1], [0, 0, 1, 1], [], []>} : vector<8x8xf32>, vector<8x256xf32>, vector<8x256xf32> -> vector<8x256xf32>
    %280 = vector.broadcast %0 : vector<1x256xf32> to vector<8x256xf32>
    %281 = arith.mulf %279, %280 : vector<8x256xf32>
    %282 = arith.addf %275, %281 : vector<8x256xf32>
    %c0_216 = arith.constant 0 : index
    %c112_217 = arith.constant 112 : index
    %283 = vector.load %arg26[%c0_216, %c112_217] : memref<8x512xf32, #tpu.memory_space<vmem>>, vector<8x256xf32>
    %c1_218 = arith.constant 1 : index
    %c0_219 = arith.constant 0 : index
    %c0_220 = arith.constant 0 : index
    %284 = vector.load %arg18[%c1_218, %c0_219, %c0_220] : memref<9x8x8xf32, #tpu.memory_space<vmem>>, vector<1x8x8xf32>
    %285 = vector.shape_cast %284 : vector<1x8x8xf32> to vector<8x8xf32>
    %cst_221 = arith.constant dense<0.000000e+00> : vector<8x256xf32>
    %286 = tpu.matmul %285, %283, %cst_221 {dimension_numbers = #tpu.dot_dimension_numbers<[1], [0], [0], [1], [0, 0, 1, 1], [], []>} : vector<8x8xf32>, vector<8x256xf32>, vector<8x256xf32> -> vector<8x256xf32>
    %287 = arith.addf %282, %286 : vector<8x256xf32>
    %c0_222 = arith.constant 0 : index
    %c113_223 = arith.constant 113 : index
    %288 = vector.load %arg26[%c0_222, %c113_223] : memref<8x512xf32, #tpu.memory_space<vmem>>, vector<8x256xf32>
    %c2_224 = arith.constant 2 : index
    %c0_225 = arith.constant 0 : index
    %c0_226 = arith.constant 0 : index
    %289 = vector.load %arg18[%c2_224, %c0_225, %c0_226] : memref<9x8x8xf32, #tpu.memory_space<vmem>>, vector<1x8x8xf32>
    %290 = vector.shape_cast %289 : vector<1x8x8xf32> to vector<8x8xf32>
    %cst_227 = arith.constant dense<0.000000e+00> : vector<8x256xf32>
    %291 = tpu.matmul %290, %288, %cst_227 {dimension_numbers = #tpu.dot_dimension_numbers<[1], [0], [0], [1], [0, 0, 1, 1], [], []>} : vector<8x8xf32>, vector<8x256xf32>, vector<8x256xf32> -> vector<8x256xf32>
    %292 = vector.broadcast %1 : vector<1x256xf32> to vector<8x256xf32>
    %293 = arith.mulf %291, %292 : vector<8x256xf32>
    %294 = arith.addf %287, %293 : vector<8x256xf32>
    %c0_228 = arith.constant 0 : index
    %c127_229 = arith.constant 127 : index
    %295 = vector.load %arg26[%c0_228, %c127_229] : memref<8x512xf32, #tpu.memory_space<vmem>>, vector<8x256xf32>
    %c3_230 = arith.constant 3 : index
    %c0_231 = arith.constant 0 : index
    %c0_232 = arith.constant 0 : index
    %296 = vector.load %arg18[%c3_230, %c0_231, %c0_232] : memref<9x8x8xf32, #tpu.memory_space<vmem>>, vector<1x8x8xf32>
    %297 = vector.shape_cast %296 : vector<1x8x8xf32> to vector<8x8xf32>
    %cst_233 = arith.constant dense<0.000000e+00> : vector<8x256xf32>
    %298 = tpu.matmul %297, %295, %cst_233 {dimension_numbers = #tpu.dot_dimension_numbers<[1], [0], [0], [1], [0, 0, 1, 1], [], []>} : vector<8x8xf32>, vector<8x256xf32>, vector<8x256xf32> -> vector<8x256xf32>
    %299 = vector.broadcast %0 : vector<1x256xf32> to vector<8x256xf32>
    %300 = arith.mulf %298, %299 : vector<8x256xf32>
    %301 = arith.addf %294, %300 : vector<8x256xf32>
    %c0_234 = arith.constant 0 : index
    %c128_235 = arith.constant 128 : index
    %302 = vector.load %arg26[%c0_234, %c128_235] : memref<8x512xf32, #tpu.memory_space<vmem>>, vector<8x256xf32>
    %c4_236 = arith.constant 4 : index
    %c0_237 = arith.constant 0 : index
    %c0_238 = arith.constant 0 : index
    %303 = vector.load %arg18[%c4_236, %c0_237, %c0_238] : memref<9x8x8xf32, #tpu.memory_space<vmem>>, vector<1x8x8xf32>
    %304 = vector.shape_cast %303 : vector<1x8x8xf32> to vector<8x8xf32>
    %cst_239 = arith.constant dense<0.000000e+00> : vector<8x256xf32>
    %305 = tpu.matmul %304, %302, %cst_239 {dimension_numbers = #tpu.dot_dimension_numbers<[1], [0], [0], [1], [0, 0, 1, 1], [], []>} : vector<8x8xf32>, vector<8x256xf32>, vector<8x256xf32> -> vector<8x256xf32>
    %306 = arith.addf %301, %305 : vector<8x256xf32>
    %c0_240 = arith.constant 0 : index
    %c129_241 = arith.constant 129 : index
    %307 = vector.load %arg26[%c0_240, %c129_241] : memref<8x512xf32, #tpu.memory_space<vmem>>, vector<8x256xf32>
    %c5_242 = arith.constant 5 : index
    %c0_243 = arith.constant 0 : index
    %c0_244 = arith.constant 0 : index
    %308 = vector.load %arg18[%c5_242, %c0_243, %c0_244] : memref<9x8x8xf32, #tpu.memory_space<vmem>>, vector<1x8x8xf32>
    %309 = vector.shape_cast %308 : vector<1x8x8xf32> to vector<8x8xf32>
    %cst_245 = arith.constant dense<0.000000e+00> : vector<8x256xf32>
    %310 = tpu.matmul %309, %307, %cst_245 {dimension_numbers = #tpu.dot_dimension_numbers<[1], [0], [0], [1], [0, 0, 1, 1], [], []>} : vector<8x8xf32>, vector<8x256xf32>, vector<8x256xf32> -> vector<8x256xf32>
    %311 = vector.broadcast %1 : vector<1x256xf32> to vector<8x256xf32>
    %312 = arith.mulf %310, %311 : vector<8x256xf32>
    %313 = arith.addf %306, %312 : vector<8x256xf32>
    %c0_246 = arith.constant 0 : index
    %c143_247 = arith.constant 143 : index
    %314 = vector.load %arg26[%c0_246, %c143_247] : memref<8x512xf32, #tpu.memory_space<vmem>>, vector<8x256xf32>
    %c6_248 = arith.constant 6 : index
    %c0_249 = arith.constant 0 : index
    %c0_250 = arith.constant 0 : index
    %315 = vector.load %arg18[%c6_248, %c0_249, %c0_250] : memref<9x8x8xf32, #tpu.memory_space<vmem>>, vector<1x8x8xf32>
    %316 = vector.shape_cast %315 : vector<1x8x8xf32> to vector<8x8xf32>
    %cst_251 = arith.constant dense<0.000000e+00> : vector<8x256xf32>
    %317 = tpu.matmul %316, %314, %cst_251 {dimension_numbers = #tpu.dot_dimension_numbers<[1], [0], [0], [1], [0, 0, 1, 1], [], []>} : vector<8x8xf32>, vector<8x256xf32>, vector<8x256xf32> -> vector<8x256xf32>
    %318 = vector.broadcast %0 : vector<1x256xf32> to vector<8x256xf32>
    %319 = arith.mulf %317, %318 : vector<8x256xf32>
    %320 = arith.addf %313, %319 : vector<8x256xf32>
    %c0_252 = arith.constant 0 : index
    %c144_253 = arith.constant 144 : index
    %321 = vector.load %arg26[%c0_252, %c144_253] : memref<8x512xf32, #tpu.memory_space<vmem>>, vector<8x256xf32>
    %c7_254 = arith.constant 7 : index
    %c0_255 = arith.constant 0 : index
    %c0_256 = arith.constant 0 : index
    %322 = vector.load %arg18[%c7_254, %c0_255, %c0_256] : memref<9x8x8xf32, #tpu.memory_space<vmem>>, vector<1x8x8xf32>
    %323 = vector.shape_cast %322 : vector<1x8x8xf32> to vector<8x8xf32>
    %cst_257 = arith.constant dense<0.000000e+00> : vector<8x256xf32>
    %324 = tpu.matmul %323, %321, %cst_257 {dimension_numbers = #tpu.dot_dimension_numbers<[1], [0], [0], [1], [0, 0, 1, 1], [], []>} : vector<8x8xf32>, vector<8x256xf32>, vector<8x256xf32> -> vector<8x256xf32>
    %325 = arith.addf %320, %324 : vector<8x256xf32>
    %c0_258 = arith.constant 0 : index
    %c145_259 = arith.constant 145 : index
    %326 = vector.load %arg26[%c0_258, %c145_259] : memref<8x512xf32, #tpu.memory_space<vmem>>, vector<8x256xf32>
    %c8_260 = arith.constant 8 : index
    %c0_261 = arith.constant 0 : index
    %c0_262 = arith.constant 0 : index
    %327 = vector.load %arg18[%c8_260, %c0_261, %c0_262] : memref<9x8x8xf32, #tpu.memory_space<vmem>>, vector<1x8x8xf32>
    %328 = vector.shape_cast %327 : vector<1x8x8xf32> to vector<8x8xf32>
    %cst_263 = arith.constant dense<0.000000e+00> : vector<8x256xf32>
    %329 = tpu.matmul %328, %326, %cst_263 {dimension_numbers = #tpu.dot_dimension_numbers<[1], [0], [0], [1], [0, 0, 1, 1], [], []>} : vector<8x8xf32>, vector<8x256xf32>, vector<8x256xf32> -> vector<8x256xf32>
    %330 = vector.broadcast %1 : vector<1x256xf32> to vector<8x256xf32>
    %331 = arith.mulf %329, %330 : vector<8x256xf32>
    %332 = arith.addf %325, %331 : vector<8x256xf32>
    %c0_264 = arith.constant 0 : index
    %c0_265 = arith.constant 0 : index
    %333 = vector.load %arg19[%c0_264, %c0_265] : memref<8x1xf32, #tpu.memory_space<vmem>>, vector<8x1xf32>
    %334 = vector.broadcast %333 : vector<8x1xf32> to vector<8x256xf32>
    %335 = arith.mulf %332, %334 : vector<8x256xf32>
    %c0_266 = arith.constant 0 : index
    %c0_267 = arith.constant 0 : index
    %336 = vector.load %arg20[%c0_266, %c0_267] : memref<8x1xf32, #tpu.memory_space<vmem>>, vector<8x1xf32>
    %337 = vector.broadcast %336 : vector<8x1xf32> to vector<8x256xf32>
    %338 = arith.addf %335, %337 : vector<8x256xf32>
    %cst_268 = arith.constant 0.000000e+00 : f32
    %339 = vector.broadcast %cst_268 : f32 to vector<8x256xf32>
    %340 = arith.maximumf %338, %339 : vector<8x256xf32>
    %341 = arith.addf %269, %340 : vector<8x256xf32>
    %c0_269 = arith.constant 0 : index
    %c0_270 = arith.constant 0 : index
    %342 = vector.load %arg21[%c0_269, %c0_270] : memref<8x8xf32, #tpu.memory_space<vmem>>, vector<8x8xf32>
    %cst_271 = arith.constant dense<0.000000e+00> : vector<8x256xf32>
    %343 = tpu.matmul %342, %341, %cst_271 {dimension_numbers = #tpu.dot_dimension_numbers<[1], [0], [0], [1], [0, 0, 1, 1], [], []>} : vector<8x8xf32>, vector<8x256xf32>, vector<8x256xf32> -> vector<8x256xf32>
    %c0_272 = arith.constant 0 : index
    %c0_273 = arith.constant 0 : index
    %344 = vector.load %arg22[%c0_272, %c0_273] : memref<8x1xf32, #tpu.memory_space<vmem>>, vector<8x1xf32>
    %345 = vector.broadcast %344 : vector<8x1xf32> to vector<8x256xf32>
    %346 = arith.addf %343, %345 : vector<8x256xf32>
    %cst_274 = arith.constant 0.000000e+00 : f32
    %347 = vector.broadcast %cst_274 : f32 to vector<8x256xf32>
    %348 = arith.maximumf %346, %347 : vector<8x256xf32>
    %c0_275 = arith.constant 0 : index
    %c0_276 = arith.constant 0 : index
    %c0_277 = arith.constant 0 : index
    %349 = vector.load %arg23[%c0_275, %c0_276, %c0_277] : memref<1x8x256xf32, #tpu.memory_space<vmem>>, vector<1x8x256xf32>
    %350 = vector.shape_cast %349 : vector<1x8x256xf32> to vector<8x256xf32>
    %351 = vector.shape_cast %348 : vector<8x256xf32> to vector<1x8x256xf32>
    tpu.vector_store %arg23[%c0_275, %c0_276, %c0_277], %351 {strides = array<i32>} : memref<1x8x256xf32, #tpu.memory_space<vmem>>, vector<1x8x256xf32>,
    return
  }
  func.func @transform_0(%arg0: i32) -> (i32, i32) {
    %c0_i32 = arith.constant 0 : i32
    %c0_i32_0 = arith.constant 0 : i32
    %c0_i32_1 = arith.constant 0 : i32
    return %c0_i32, %c0_i32_0 : i32, i32
  }
  func.func @transform_1(%arg0: i32) -> (i32, i32) {
    %c0_i32 = arith.constant 0 : i32
    %c0_i32_0 = arith.constant 0 : i32
    %c0_i32_1 = arith.constant 0 : i32
    return %c0_i32, %c0_i32_0 : i32, i32
  }
  func.func @transform_2(%arg0: i32) -> (i32, i32, i32) {
    %c0_i32 = arith.constant 0 : i32
    %c0_i32_0 = arith.constant 0 : i32
    %c0_i32_1 = arith.constant 0 : i32
    return %arg0, %c0_i32, %c0_i32_0 : i32, i32, i32
  }
  func.func @transform_3(%arg0: i32) -> (i32, i32, i32) {
    %c0_i32 = arith.constant 0 : i32
    %c0_i32_0 = arith.constant 0 : i32
    %c0_i32_1 = arith.constant 0 : i32
    %c0_i32_2 = arith.constant 0 : i32
    return %c0_i32, %c0_i32_0, %c0_i32_1 : i32, i32, i32
  }
  func.func @transform_4(%arg0: i32) -> (i32, i32) {
    %c0_i32 = arith.constant 0 : i32
    %c0_i32_0 = arith.constant 0 : i32
    %c0_i32_1 = arith.constant 0 : i32
    return %c0_i32, %c0_i32_0 : i32, i32
  }
  func.func @transform_5(%arg0: i32) -> (i32, i32) {
    %c0_i32 = arith.constant 0 : i32
    %c0_i32_0 = arith.constant 0 : i32
    %c0_i32_1 = arith.constant 0 : i32
    return %c0_i32, %c0_i32_0 : i32, i32
  }
  func.func @transform_6(%arg0: i32) -> (i32, i32) {
    %c0_i32 = arith.constant 0 : i32
    %c0_i32_0 = arith.constant 0 : i32
    %c0_i32_1 = arith.constant 0 : i32
    return %c0_i32, %c0_i32_0 : i32, i32
  }
  func.func @transform_7(%arg0: i32) -> (i32, i32) {
    %c0_i32 = arith.constant 0 : i32
    %c0_i32_0 = arith.constant 0 : i32
    %c0_i32_1 = arith.constant 0 : i32
    return %c0_i32, %c0_i32_0 : i32, i32
  }
  func.func @transform_8(%arg0: i32) -> (i32, i32, i32) {
    %c0_i32 = arith.constant 0 : i32
    %c0_i32_0 = arith.constant 0 : i32
    %c0_i32_1 = arith.constant 0 : i32
    %c0_i32_2 = arith.constant 0 : i32
    return %c0_i32, %c0_i32_0, %c0_i32_1 : i32, i32, i32
  }
  func.func @transform_9(%arg0: i32) -> (i32, i32) {
    %c0_i32 = arith.constant 0 : i32
    %c0_i32_0 = arith.constant 0 : i32
    %c0_i32_1 = arith.constant 0 : i32
    return %c0_i32, %c0_i32_0 : i32, i32
  }
  func.func @transform_10(%arg0: i32) -> (i32, i32) {
    %c0_i32 = arith.constant 0 : i32
    %c0_i32_0 = arith.constant 0 : i32
    %c0_i32_1 = arith.constant 0 : i32
    return %c0_i32, %c0_i32_0 : i32, i32
  }
  func.func @transform_11(%arg0: i32) -> (i32, i32) {
    %c0_i32 = arith.constant 0 : i32
    %c0_i32_0 = arith.constant 0 : i32
    %c0_i32_1 = arith.constant 0 : i32
    return %c0_i32, %c0_i32_0 : i32, i32
  }
  func.func @transform_12(%arg0: i32) -> (i32, i32) {
    %c0_i32 = arith.constant 0 : i32
    %c0_i32_0 = arith.constant 0 : i32
    %c0_i32_1 = arith.constant 0 : i32
    return %c0_i32, %c0_i32_0 : i32, i32
  }
  func.func @transform_13(%arg0: i32) -> (i32, i32) {
    %c0_i32 = arith.constant 0 : i32
    %c0_i32_0 = arith.constant 0 : i32
    %c0_i32_1 = arith.constant 0 : i32
    return %c0_i32, %c0_i32_0 : i32, i32
  }
  func.func @transform_14(%arg0: i32) -> (i32, i32, i32) {
    %c0_i32 = arith.constant 0 : i32
    %c0_i32_0 = arith.constant 0 : i32
    %c0_i32_1 = arith.constant 0 : i32
    %c0_i32_2 = arith.constant 0 : i32
    return %c0_i32, %c0_i32_0, %c0_i32_1 : i32, i32, i32
  }
  func.func @transform_15(%arg0: i32) -> (i32, i32) {
    %c0_i32 = arith.constant 0 : i32
    %c0_i32_0 = arith.constant 0 : i32
    %c0_i32_1 = arith.constant 0 : i32
    return %c0_i32, %c0_i32_0 : i32, i32
  }
  func.func @transform_16(%arg0: i32) -> (i32, i32) {
    %c0_i32 = arith.constant 0 : i32
    %c0_i32_0 = arith.constant 0 : i32
    %c0_i32_1 = arith.constant 0 : i32
    return %c0_i32, %c0_i32_0 : i32, i32
  }
  func.func @transform_17(%arg0: i32) -> (i32, i32, i32) {
    %c0_i32 = arith.constant 0 : i32
    %c0_i32_0 = arith.constant 0 : i32
    %c0_i32_1 = arith.constant 0 : i32
    %c0_i32_2 = arith.constant 0 : i32
    return %c0_i32, %c0_i32_0, %c0_i32_1 : i32, i32, i32
  }
  func.func @transform_18(%arg0: i32) -> (i32, i32) {
    %c0_i32 = arith.constant 0 : i32
    %c0_i32_0 = arith.constant 0 : i32
    %c0_i32_1 = arith.constant 0 : i32
    return %c0_i32, %c0_i32_0 : i32, i32
  }
  func.func @transform_19(%arg0: i32) -> (i32, i32) {
    %c0_i32 = arith.constant 0 : i32
    %c0_i32_0 = arith.constant 0 : i32
    %c0_i32_1 = arith.constant 0 : i32
    return %c0_i32, %c0_i32_0 : i32, i32
  }
  func.func @transform_20(%arg0: i32) -> (i32, i32) {
    %c0_i32 = arith.constant 0 : i32
    %c0_i32_0 = arith.constant 0 : i32
    %c0_i32_1 = arith.constant 0 : i32
    return %c0_i32, %c0_i32_0 : i32, i32
  }
  func.func @transform_21(%arg0: i32) -> (i32, i32) {
    %c0_i32 = arith.constant 0 : i32
    %c0_i32_0 = arith.constant 0 : i32
    %c0_i32_1 = arith.constant 0 : i32
    return %c0_i32, %c0_i32_0 : i32, i32
  }
  func.func @transform_22(%arg0: i32) -> (i32, i32, i32) {
    %c0_i32 = arith.constant 0 : i32
    %c0_i32_0 = arith.constant 0 : i32
    %c0_i32_1 = arith.constant 0 : i32
    return %arg0, %c0_i32, %c0_i32_0 : i32, i32, i32
  }
}

</mosaic_0001>

<llo_original>
// kernel: danet_forward.1
$region0: #{danet_forward.1}
  #allocation0 [shape = 'u32[]', space=smem, size = 0x4, offset = 0x4, fixed_abs, tag = 'smem constant byte address 0x4 - core index']
  #allocation1 [shape = 'u32[144,128]{1,0:T(1,128)}', space=vmem, size = 0x12000, scoped, tag = 'internal scratch']
  #allocation2 [shape = 'f32[128,512]{1,0:T(8,128)}', space=vmem, size = 0x40000, scoped, tag = 'scratch operand']
  #allocation3 [shape = 'f32[24,512]{1,0:T(8,128)}', space=vmem, size = 0xc000, scoped, tag = 'scratch operand']
  #allocation4 [shape = 'f32[8,512]{1,0:T(8,128)}', space=vmem, size = 0x4000, scoped, tag = 'scratch operand']
  %s0 = inlined_call_operand.vmem [shape: f32[1,256], index: 0, kind: input, shape index: {}]
  %s1 = inlined_call_operand.vmem [shape: f32[1,256], index: 1, kind: input, shape index: {}]
  %s2 = inlined_call_operand.vmem [shape: f32[2,128,256], index: 2, kind: input, shape index: {}]
  %s3 = inlined_call_operand.vmem [shape: f32[9,16,128], index: 3, kind: input, shape index: {}]
  %s4 = inlined_call_operand.vmem [shape: f32[16,1], index: 4, kind: input, shape index: {}]
  %s5 = inlined_call_operand.vmem [shape: f32[16,1], index: 5, kind: input, shape index: {}]
  %s6 = inlined_call_operand.vmem [shape: f32[24,8], index: 6, kind: input, shape index: {}]
  %s7 = inlined_call_operand.vmem [shape: f32[24,1], index: 7, kind: input, shape index: {}]
  %s8 = inlined_call_operand.vmem [shape: f32[9,24,1], index: 8, kind: input, shape index: {}]
  %s9 = inlined_call_operand.vmem [shape: f32[24,1], index: 9, kind: input, shape index: {}]
  %s10 = inlined_call_operand.vmem [shape: f32[8,1], index: 10, kind: input, shape index: {}]
  %s11 = inlined_call_operand.vmem [shape: f32[8,8], index: 11, kind: input, shape index: {}]
  %s12 = inlined_call_operand.vmem [shape: f32[8,8], index: 12, kind: input, shape index: {}]
  %s13 = inlined_call_operand.vmem [shape: f32[8,1], index: 13, kind: input, shape index: {}]
  %s14 = inlined_call_operand.vmem [shape: f32[9,8,8], index: 14, kind: input, shape index: {}]
  %s15 = inlined_call_operand.vmem [shape: f32[8,1], index: 15, kind: input, shape index: {}]
  %s16 = inlined_call_operand.vmem [shape: f32[8,1], index: 16, kind: input, shape index: {}]
  %s17 = inlined_call_operand.vmem [shape: f32[9,8,8], index: 17, kind: input, shape index: {}]
  %s18 = inlined_call_operand.vmem [shape: f32[8,1], index: 18, kind: input, shape index: {}]
  %s19 = inlined_call_operand.vmem [shape: f32[8,1], index: 19, kind: input, shape index: {}]
  %s20 = inlined_call_operand.vmem [shape: f32[8,8], index: 20, kind: input, shape index: {}]
  %s21 = inlined_call_operand.vmem [shape: f32[8,1], index: 21, kind: input, shape index: {}]
  %s22 = inlined_call_operand.vmem [shape: f32[2,8,256], index: 22, kind: output, shape index: {}]
  %s23 = sld [smem:[#allocation0]]
  $region121: #{danet_forward.1} parent=0
    _
  %s25 = ssub.s32 1, %s23
  %s26 = scalar_select 0, %s25, %s23
  loop: start=0, step=1, limit=4
  $region2: #{danet_forward.1} parent=0 // loop_pre_header
    _
  $region3: #{danet_forward.1} parent=0 // loop_header
    %s28 = sphi 0, %s32
    %p29 = scmp.ge.s32.totalorder %s28, 4
    %s36 = sphi 0, %s36
    %s38 = sphi 0, %s36
    %s39 = sphi 0, %s38
    %s53 = sphi 0, %s39
    %s57 = sphi 0, %s57
    %s59 = sphi 0, %s57
    %s60 = sphi 0, %s59
    %s74 = sphi 0, %s60
    %s80 = sphi 0, %s82
    %s83 = sphi 0, %s80
    %s84 = sphi 0, %s83
    %s100 = sphi 0, %s84
    %s104 = sphi 0, %s104
    %s106 = sphi 0, %s104
    %s107 = sphi 0, %s106
    %s121 = sphi 0, %s107
    %s125 = sphi 0, %s125
    %s127 = sphi 0, %s125
    %s128 = sphi 0, %s127
    %s142 = sphi 0, %s128
    %s146 = sphi 0, %s146
    %s148 = sphi 0, %s146
    %s149 = sphi 0, %s148
    %s163 = sphi 0, %s149
    %s167 = sphi 0, %s167
    %s169 = sphi 0, %s167
    %s170 = sphi 0, %s169
    %s184 = sphi 0, %s170
    %s188 = sphi 0, %s188
    %s190 = sphi 0, %s188
    %s191 = sphi 0, %s190
    %s205 = sphi 0, %s191
    %s209 = sphi 0, %s209
    %s211 = sphi 0, %s209
    %s212 = sphi 0, %s211
    %s226 = sphi 0, %s212
    %s230 = sphi 0, %s230
    %s232 = sphi 0, %s230
    %s233 = sphi 0, %s232
    %s247 = sphi 0, %s233
    %s251 = sphi 0, %s251
    %s253 = sphi 0, %s251
    %s254 = sphi 0, %s253
    %s268 = sphi 0, %s254
    %s272 = sphi 0, %s272
    %s274 = sphi 0, %s272
    %s275 = sphi 0, %s274
    %s289 = sphi 0, %s275
    %s293 = sphi 0, %s293
    %s295 = sphi 0, %s293
    %s296 = sphi 0, %s295
    %s310 = sphi 0, %s296
    %s314 = sphi 0, %s314
    %s316 = sphi 0, %s314
    %s317 = sphi 0, %s316
    %s331 = sphi 0, %s317
    %s335 = sphi 0, %s335
    %s337 = sphi 0, %s335
    %s338 = sphi 0, %s337
    %s352 = sphi 0, %s338
    %s356 = sphi 0, %s356
    %s358 = sphi 0, %s356
    %s359 = sphi 0, %s358
    %s373 = sphi 0, %s359
    %s377 = sphi 0, %s377
    %s379 = sphi 0, %s377
    %s380 = sphi 0, %s379
    %s394 = sphi 0, %s380
    %s398 = sphi 0, %s398
    %s400 = sphi 0, %s398
    %s401 = sphi 0, %s400
    %s415 = sphi 0, %s401
    %s419 = sphi 0, %s419
    %s421 = sphi 0, %s419
    %s422 = sphi 0, %s421
    %s436 = sphi 0, %s422
    %s440 = sphi 0, %s440
    %s442 = sphi 0, %s440
    %s443 = sphi 0, %s442
    %s457 = sphi 0, %s443
    %s461 = sphi 0, %s461
    %s463 = sphi 0, %s461
    %s464 = sphi 0, %s463
    %s478 = sphi 0, %s464
    %s482 = sphi 0, %s482
    %s484 = sphi 0, %s482
    %s485 = sphi 0, %s484
    %s499 = sphi 0, %s485
    %s505 = sphi 0, %s507
    %s508 = sphi 0, %s505
    %s509 = sphi 0, %s508
    %s525 = sphi 0, %s509
  $region4: #{danet_forward.1} parent=0 // loop_header_branch
    %31 = sbr.rel (%p29) target = $region8
  $region5: #{danet_forward.1} parent=0 // loop_body
    %s33 = ssub.s32 %s28, 1
    %s34 = ssub.s32 %s28, 2
    %s35 = sadd.s32 %s28, 1
    %s37 = sadd.s32 %s36, 1
    %p40 = scmp.eq.s32.totalorder %s28, 1
    %p41 = scmp.ne.s32.totalorder %s36, %s38
    %p42 = scmp.eq.s32.totalorder %s28, 0
    %p43 = por %p41, %p42
    %p44 = scmp.ne.s32.totalorder %s36, %s38
    %p45 = scmp.eq.s32.totalorder %s33, 1
    %p46 = por %p44, %p45
    %p47 = scmp.ne.s32.totalorder %s38, %s39
    %p48 = scmp.eq.s32.totalorder %s33, 0
    %p49 = por %p47, %p48
    %p50 = scmp.ne.s32.totalorder %s38, %s39
    %p51 = scmp.eq.s32.totalorder %s34, 1
    %p52 = por %p50, %p51
    %p54 = scmp.ne.s32.totalorder %s39, %s53
    %p55 = scmp.eq.s32.totalorder %s34, 0
    %p56 = por %p54, %p55
    %s58 = sadd.s32 %s57, 1
    %p61 = scmp.eq.s32.totalorder %s28, 1
    %p62 = scmp.ne.s32.totalorder %s57, %s59
    %p63 = scmp.eq.s32.totalorder %s28, 0
    %p64 = por %p62, %p63
    %p65 = scmp.ne.s32.totalorder %s57, %s59
    %p66 = scmp.eq.s32.totalorder %s33, 1
    %p67 = por %p65, %p66
    %p68 = scmp.ne.s32.totalorder %s59, %s60
    %p69 = scmp.eq.s32.totalorder %s33, 0
    %p70 = por %p68, %p69
    %p71 = scmp.ne.s32.totalorder %s59, %s60
    %p72 = scmp.eq.s32.totalorder %s34, 1
    %p73 = por %p71, %p72
    %p75 = scmp.ne.s32.totalorder %s60, %s74
    %p76 = scmp.eq.s32.totalorder %s34, 0
    %p77 = por %p75, %p76
    %s78 = ssub.s32 %s28, %s35
    %p79 = scmp.eq.s32.totalorder %s78, 0
    %s81 = sadd.s32 %s80, 1
    %s82 = scalar_select %p79, %s80, %s81
    %p85 = pneg %p79
    %p86 = scmp.eq.s32.totalorder %s28, 1
    %p87 = por %p85, %p86
    %p88 = scmp.ne.s32.totalorder %s80, %s83
    %p89 = scmp.eq.s32.totalorder %s28, 0
    %p90 = por %p88, %p89
    %p91 = scmp.ne.s32.totalorder %s80, %s83
    %p92 = scmp.eq.s32.totalorder %s33, 1
    %p93 = por %p91, %p92
    %p94 = scmp.ne.s32.totalorder %s83, %s84
    %p95 = scmp.eq.s32.totalorder %s33, 0
    %p96 = por %p94, %p95
    %p97 = scmp.ne.s32.totalorder %s83, %s84
    %p98 = scmp.eq.s32.totalorder %s34, 1
    %p99 = por %p97, %p98
    %p101 = scmp.ne.s32.totalorder %s84, %s100
    %p102 = scmp.eq.s32.totalorder %s34, 0
    %p103 = por %p101, %p102
    %s105 = sadd.s32 %s104, 1
    %p108 = scmp.eq.s32.totalorder %s28, 1
    %p109 = scmp.ne.s32.totalorder %s104, %s106
    %p110 = scmp.eq.s32.totalorder %s28, 0
    %p111 = por %p109, %p110
    %p112 = scmp.ne.s32.totalorder %s104, %s106
    %p113 = scmp.eq.s32.totalorder %s33, 1
    %p114 = por %p112, %p113
    %p115 = scmp.ne.s32.totalorder %s106, %s107
    %p116 = scmp.eq.s32.totalorder %s33, 0
    %p117 = por %p115, %p116
    %p118 = scmp.ne.s32.totalorder %s106, %s107
    %p119 = scmp.eq.s32.totalorder %s34, 1
    %p120 = por %p118, %p119
    %p122 = scmp.ne.s32.totalorder %s107, %s121
    %p123 = scmp.eq.s32.totalorder %s34, 0
    %p124 = por %p122, %p123
    %s126 = sadd.s32 %s125, 1
    %p129 = scmp.eq.s32.totalorder %s28, 1
    %p130 = scmp.ne.s32.totalorder %s125, %s127
    %p131 = scmp.eq.s32.totalorder %s28, 0
    %p132 = por %p130, %p131
    %p133 = scmp.ne.s32.totalorder %s125, %s127
    %p134 = scmp.eq.s32.totalorder %s33, 1
    %p135 = por %p133, %p134
    %p136 = scmp.ne.s32.totalorder %s127, %s128
    %p137 = scmp.eq.s32.totalorder %s33, 0
    %p138 = por %p136, %p137
    %p139 = scmp.ne.s32.totalorder %s127, %s128
    %p140 = scmp.eq.s32.totalorder %s34, 1
    %p141 = por %p139, %p140
    %p143 = scmp.ne.s32.totalorder %s128, %s142
    %p144 = scmp.eq.s32.totalorder %s34, 0
    %p145 = por %p143, %p144
    %s147 = sadd.s32 %s146, 1
    %p150 = scmp.eq.s32.totalorder %s28, 1
    %p151 = scmp.ne.s32.totalorder %s146, %s148
    %p152 = scmp.eq.s32.totalorder %s28, 0
    %p153 = por %p151, %p152
    %p154 = scmp.ne.s32.totalorder %s146, %s148
    %p155 = scmp.eq.s32.totalorder %s33, 1
    %p156 = por %p154, %p155
    %p157 = scmp.ne.s32.totalorder %s148, %s149
    %p158 = scmp.eq.s32.totalorder %s33, 0
    %p159 = por %p157, %p158
    %p160 = scmp.ne.s32.totalorder %s148, %s149
    %p161 = scmp.eq.s32.totalorder %s34, 1
    %p162 = por %p160, %p161
    %p164 = scmp.ne.s32.totalorder %s149, %s163
    %p165 = scmp.eq.s32.totalorder %s34, 0
    %p166 = por %p164, %p165
    %s168 = sadd.s32 %s167, 1
    %p171 = scmp.eq.s32.totalorder %s28, 1
    %p172 = scmp.ne.s32.totalorder %s167, %s169
    %p173 = scmp.eq.s32.totalorder %s28, 0
    %p174 = por %p172, %p173
    %p175 = scmp.ne.s32.totalorder %s167, %s169
    %p176 = scmp.eq.s32.totalorder %s33, 1
    %p177 = por %p175, %p176
    %p178 = scmp.ne.s32.totalorder %s169, %s170
    %p179 = scmp.eq.s32.totalorder %s33, 0
    %p180 = por %p178, %p179
    %p181 = scmp.ne.s32.totalorder %s169, %s170
    %p182 = scmp.eq.s32.totalorder %s34, 1
    %p183 = por %p181, %p182
    %p185 = scmp.ne.s32.totalorder %s170, %s184
    %p186 = scmp.eq.s32.totalorder %s34, 0
    %p187 = por %p185, %p186
    %s189 = sadd.s32 %s188, 1
    %p192 = scmp.eq.s32.totalorder %s28, 1
    %p193 = scmp.ne.s32.totalorder %s188, %s190
    %p194 = scmp.eq.s32.totalorder %s28, 0
    %p195 = por %p193, %p194
    %p196 = scmp.ne.s32.totalorder %s188, %s190
    %p197 = scmp.eq.s32.totalorder %s33, 1
    %p198 = por %p196, %p197
    %p199 = scmp.ne.s32.totalorder %s190, %s191
    %p200 = scmp.eq.s32.totalorder %s33, 0
    %p201 = por %p199, %p200
    %p202 = scmp.ne.s32.totalorder %s190, %s191
    %p203 = scmp.eq.s32.totalorder %s34, 1
    %p204 = por %p202, %p203
    %p206 = scmp.ne.s32.totalorder %s191, %s205
    %p207 = scmp.eq.s32.totalorder %s34, 0
    %p208 = por %p206, %p207
    %s210 = sadd.s32 %s209, 1
    %p213 = scmp.eq.s32.totalorder %s28, 1
    %p214 = scmp.ne.s32.totalorder %s209, %s211
    %p215 = scmp.eq.s32.totalorder %s28, 0
    %p216 = por %p214, %p215
    %p217 = scmp.ne.s32.totalorder %s209, %s211
    %p218 = scmp.eq.s32.totalorder %s33, 1
    %p219 = por %p217, %p218
    %p220 = scmp.ne.s32.totalorder %s211, %s212
    %p221 = scmp.eq.s32.totalorder %s33, 0
    %p222 = por %p220, %p221
    %p223 = scmp.ne.s32.totalorder %s211, %s212
    %p224 = scmp.eq.s32.totalorder %s34, 1
    %p225 = por %p223, %p224
    %p227 = scmp.ne.s32.totalorder %s212, %s226
    %p228 = scmp.eq.s32.totalorder %s34, 0
    %p229 = por %p227, %p228
    %s231 = sadd.s32 %s230, 1
    %p234 = scmp.eq.s32.totalorder %s28, 1
    %p235 = scmp.ne.s32.totalorder %s230, %s232
    %p236 = scmp.eq.s32.totalorder %s28, 0
    %p237 = por %p235, %p236
    %p238 = scmp.ne.s32.totalorder %s230, %s232
    %p239 = scmp.eq.s32.totalorder %s33, 1
    %p240 = por %p238, %p239
    %p241 = scmp.ne.s32.totalorder %s232, %s233
    %p242 = scmp.eq.s32.totalorder %s33, 0
    %p243 = por %p241, %p242
    %p244 = scmp.ne.s32.totalorder %s232, %s233
    %p245 = scmp.eq.s32.totalorder %s34, 1
    %p246 = por %p244, %p245
    %p248 = scmp.ne.s32.totalorder %s233, %s247
    %p249 = scmp.eq.s32.totalorder %s34, 0
    %p250 = por %p248, %p249
    %s252 = sadd.s32 %s251, 1
    %p255 = scmp.eq.s32.totalorder %s28, 1
    %p256 = scmp.ne.s32.totalorder %s251, %s253
    %p257 = scmp.eq.s32.totalorder %s28, 0
    %p258 = por %p256, %p257
    %p259 = scmp.ne.s32.totalorder %s251, %s253
    %p260 = scmp.eq.s32.totalorder %s33, 1
    %p261 = por %p259, %p260
    %p262 = scmp.ne.s32.totalorder %s253, %s254
    %p263 = scmp.eq.s32.totalorder %s33, 0
    %p264 = por %p262, %p263
    %p265 = scmp.ne.s32.totalorder %s253, %s254
    %p266 = scmp.eq.s32.totalorder %s34, 1
    %p267 = por %p265, %p266
    %p269 = scmp.ne.s32.totalorder %s254, %s268
    %p270 = scmp.eq.s32.totalorder %s34, 0
    %p271 = por %p269, %p270
    %s273 = sadd.s32 %s272, 1
    %p276 = scmp.eq.s32.totalorder %s28, 1
    %p277 = scmp.ne.s32.totalorder %s272, %s274
    %p278 = scmp.eq.s32.totalorder %s28, 0
    %p279 = por %p277, %p278
    %p280 = scmp.ne.s32.totalorder %s272, %s274
    %p281 = scmp.eq.s32.totalorder %s33, 1
    %p282 = por %p280, %p281
    %p283 = scmp.ne.s32.totalorder %s274, %s275
    %p284 = scmp.eq.s32.totalorder %s33, 0
    %p285 = por %p283, %p284
    %p286 = scmp.ne.s32.totalorder %s274, %s275
    %p287 = scmp.eq.s32.totalorder %s34, 1
    %p288 = por %p286, %p287
    %p290 = scmp.ne.s32.totalorder %s275, %s289
    %p291 = scmp.eq.s32.totalorder %s34, 0
    %p292 = por %p290, %p291
    %s294 = sadd.s32 %s293, 1
    %p297 = scmp.eq.s32.totalorder %s28, 1
    %p298 = scmp.ne.s32.totalorder %s293, %s295
    %p299 = scmp.eq.s32.totalorder %s28, 0
    %p300 = por %p298, %p299
    %p301 = scmp.ne.s32.totalorder %s293, %s295
    %p302 = scmp.eq.s32.totalorder %s33, 1
    %p303 = por %p301, %p302
    %p304 = scmp.ne.s32.totalorder %s295, %s296
    %p305 = scmp.eq.s32.totalorder %s33, 0
    %p306 = por %p304, %p305
    %p307 = scmp.ne.s32.totalorder %s295, %s296
    %p308 = scmp.eq.s32.totalorder %s34, 1
    %p309 = por %p307, %p308
    %p311 = scmp.ne.s32.totalorder %s296, %s310
    %p312 = scmp.eq.s32.totalorder %s34, 0
    %p313 = por %p311, %p312
    %s315 = sadd.s32 %s314, 1
    %p318 = scmp.eq.s32.totalorder %s28, 1
    %p319 = scmp.ne.s32.totalorder %s314, %s316
    %p320 = scmp.eq.s32.totalorder %s28, 0
    %p321 = por %p319, %p320
    %p322 = scmp.ne.s32.totalorder %s314, %s316
    %p323 = scmp.eq.s32.totalorder %s33, 1
    %p324 = por %p322, %p323
    %p325 = scmp.ne.s32.totalorder %s316, %s317
    %p326 = scmp.eq.s32.totalorder %s33, 0
    %p327 = por %p325, %p326
    %p328 = scmp.ne.s32.totalorder %s316, %s317
    %p329 = scmp.eq.s32.totalorder %s34, 1
    %p330 = por %p328, %p329
    %p332 = scmp.ne.s32.totalorder %s317, %s331
    %p333 = scmp.eq.s32.totalorder %s34, 0
    %p334 = por %p332, %p333
    %s336 = sadd.s32 %s335, 1
    %p339 = scmp.eq.s32.totalorder %s28, 1
    %p340 = scmp.ne.s32.totalorder %s335, %s337
    %p341 = scmp.eq.s32.totalorder %s28, 0
    %p342 = por %p340, %p341
    %p343 = scmp.ne.s32.totalorder %s335, %s337
    %p344 = scmp.eq.s32.totalorder %s33, 1
    %p345 = por %p343, %p344
    %p346 = scmp.ne.s32.totalorder %s337, %s338
    %p347 = scmp.eq.s32.totalorder %s33, 0
    %p348 = por %p346, %p347
    %p349 = scmp.ne.s32.totalorder %s337, %s338
    %p350 = scmp.eq.s32.totalorder %s34, 1
    %p351 = por %p349, %p350
    %p353 = scmp.ne.s32.totalorder %s338, %s352
    %p354 = scmp.eq.s32.totalorder %s34, 0
    %p355 = por %p353, %p354
    %s357 = sadd.s32 %s356, 1
    %p360 = scmp.eq.s32.totalorder %s28, 1
    %p361 = scmp.ne.s32.totalorder %s356, %s358
    %p362 = scmp.eq.s32.totalorder %s28, 0
    %p363 = por %p361, %p362
    %p364 = scmp.ne.s32.totalorder %s356, %s358
    %p365 = scmp.eq.s32.totalorder %s33, 1
    %p366 = por %p364, %p365
    %p367 = scmp.ne.s32.totalorder %s358, %s359
    %p368 = scmp.eq.s32.totalorder %s33, 0
    %p369 = por %p367, %p368
    %p370 = scmp.ne.s32.totalorder %s358, %s359
    %p371 = scmp.eq.s32.totalorder %s34, 1
    %p372 = por %p370, %p371
    %p374 = scmp.ne.s32.totalorder %s359, %s373
    %p375 = scmp.eq.s32.totalorder %s34, 0
    %p376 = por %p374, %p375
    %s378 = sadd.s32 %s377, 1
    %p381 = scmp.eq.s32.totalorder %s28, 1
    %p382 = scmp.ne.s32.totalorder %s377, %s379
    %p383 = scmp.eq.s32.totalorder %s28, 0
    %p384 = por %p382, %p383
    %p385 = scmp.ne.s32.totalorder %s377, %s379
    %p386 = scmp.eq.s32.totalorder %s33, 1
    %p387 = por %p385, %p386
    %p388 = scmp.ne.s32.totalorder %s379, %s380
    %p389 = scmp.eq.s32.totalorder %s33, 0
    %p390 = por %p388, %p389
    %p391 = scmp.ne.s32.totalorder %s379, %s380
    %p392 = scmp.eq.s32.totalorder %s34, 1
    %p393 = por %p391, %p392
    %p395 = scmp.ne.s32.totalorder %s380, %s394
    %p396 = scmp.eq.s32.totalorder %s34, 0
    %p397 = por %p395, %p396
    %s399 = sadd.s32 %s398, 1
    %p402 = scmp.eq.s32.totalorder %s28, 1
    %p403 = scmp.ne.s32.totalorder %s398, %s400
    %p404 = scmp.eq.s32.totalorder %s28, 0
    %p405 = por %p403, %p404
    %p406 = scmp.ne.s32.totalorder %s398, %s400
    %p407 = scmp.eq.s32.totalorder %s33, 1
    %p408 = por %p406, %p407
    %p409 = scmp.ne.s32.totalorder %s400, %s401
    %p410 = scmp.eq.s32.totalorder %s33, 0
    %p411 = por %p409, %p410
    %p412 = scmp.ne.s32.totalorder %s400, %s401
    %p413 = scmp.eq.s32.totalorder %s34, 1
    %p414 = por %p412, %p413
    %p416 = scmp.ne.s32.totalorder %s401, %s415
    %p417 = scmp.eq.s32.totalorder %s34, 0
    %p418 = por %p416, %p417
    %s420 = sadd.s32 %s419, 1
    %p423 = scmp.eq.s32.totalorder %s28, 1
    %p424 = scmp.ne.s32.totalorder %s419, %s421
    %p425 = scmp.eq.s32.totalorder %s28, 0
    %p426 = por %p424, %p425
    %p427 = scmp.ne.s32.totalorder %s419, %s421
    %p428 = scmp.eq.s32.totalorder %s33, 1
    %p429 = por %p427, %p428
    %p430 = scmp.ne.s32.totalorder %s421, %s422
    %p431 = scmp.eq.s32.totalorder %s33, 0
    %p432 = por %p430, %p431
    %p433 = scmp.ne.s32.totalorder %s421, %s422
    %p434 = scmp.eq.s32.totalorder %s34, 1
    %p435 = por %p433, %p434
    %p437 = scmp.ne.s32.totalorder %s422, %s436
    %p438 = scmp.eq.s32.totalorder %s34, 0
    %p439 = por %p437, %p438
    %s441 = sadd.s32 %s440, 1
    %p444 = scmp.eq.s32.totalorder %s28, 1
    %p445 = scmp.ne.s32.totalorder %s440, %s442
    %p446 = scmp.eq.s32.totalorder %s28, 0
    %p447 = por %p445, %p446
    %p448 = scmp.ne.s32.totalorder %s440, %s442
    %p449 = scmp.eq.s32.totalorder %s33, 1
    %p450 = por %p448, %p449
    %p451 = scmp.ne.s32.totalorder %s442, %s443
    %p452 = scmp.eq.s32.totalorder %s33, 0
    %p453 = por %p451, %p452
    %p454 = scmp.ne.s32.totalorder %s442, %s443
    %p455 = scmp.eq.s32.totalorder %s34, 1
    %p456 = por %p454, %p455
    %p458 = scmp.ne.s32.totalorder %s443, %s457
    %p459 = scmp.eq.s32.totalorder %s34, 0
    %p460 = por %p458, %p459
    %s462 = sadd.s32 %s461, 1
    %p465 = scmp.eq.s32.totalorder %s28, 1
    %p466 = scmp.ne.s32.totalorder %s461, %s463
    %p467 = scmp.eq.s32.totalorder %s28, 0
    %p468 = por %p466, %p467
    %p469 = scmp.ne.s32.totalorder %s461, %s463
    %p470 = scmp.eq.s32.totalorder %s33, 1
    %p471 = por %p469, %p470
    %p472 = scmp.ne.s32.totalorder %s463, %s464
    %p473 = scmp.eq.s32.totalorder %s33, 0
    %p474 = por %p472, %p473
    %p475 = scmp.ne.s32.totalorder %s463, %s464
    %p476 = scmp.eq.s32.totalorder %s34, 1
    %p477 = por %p475, %p476
    %p479 = scmp.ne.s32.totalorder %s464, %s478
    %p480 = scmp.eq.s32.totalorder %s34, 0
    %p481 = por %p479, %p480
    %s483 = sadd.s32 %s482, 1
    %p486 = scmp.eq.s32.totalorder %s28, 1
    %p487 = scmp.ne.s32.totalorder %s482, %s484
    %p488 = scmp.eq.s32.totalorder %s28, 0
    %p489 = por %p487, %p488
    %p490 = scmp.ne.s32.totalorder %s482, %s484
    %p491 = scmp.eq.s32.totalorder %s33, 1
    %p492 = por %p490, %p491
    %p493 = scmp.ne.s32.totalorder %s484, %s485
    %p494 = scmp.eq.s32.totalorder %s33, 0
    %p495 = por %p493, %p494
    %p496 = scmp.ne.s32.totalorder %s484, %s485
    %p497 = scmp.eq.s32.totalorder %s34, 1
    %p498 = por %p496, %p497
    %p500 = scmp.ne.s32.totalorder %s485, %s499
    %p501 = scmp.eq.s32.totalorder %s34, 0
    %p502 = por %p500, %p501
    %s503 = ssub.s32 %s28, %s35
    %p504 = scmp.eq.s32.totalorder %s503, 0
    %s506 = sadd.s32 %s505, 1
    %s507 = scalar_select %p504, %s505, %s506
    %p510 = pneg %p504
    %p511 = scmp.eq.s32.totalorder %s28, 1
    %p512 = por %p510, %p511
    %p513 = scmp.ne.s32.totalorder %s505, %s508
    %p514 = scmp.eq.s32.totalorder %s28, 0
    %p515 = por %p513, %p514
    %p516 = scmp.ne.s32.totalorder %s505, %s508
    %p517 = scmp.eq.s32.totalorder %s33, 1
    %p518 = por %p516, %p517
    %p519 = scmp.ne.s32.totalorder %s508, %s509
    %p520 = scmp.eq.s32.totalorder %s33, 0
    %p521 = por %p519, %p520
    %p522 = scmp.ne.s32.totalorder %s508, %s509
    %p523 = scmp.eq.s32.totalorder %s34, 1
    %p524 = por %p522, %p523
    %p526 = scmp.ne.s32.totalorder %s509, %s525
    %p527 = scmp.eq.s32.totalorder %s34, 0
    %p528 = por %p526, %p527
    %p529 = scmp.le.s32.totalorder 1, %s28
    %p530 = scmp.lt.s32.totalorder %s28, 3
    %p531 = pnand %p529, %p530
    %p532 = pneg %p531
    // Predicated region
    $region9: #{danet_forward.1} parent=5 // pred_check
      _
    $region10: #{danet_forward.1} parent=5 // pred_check_branch
      %534 = sbr.rel (%p531) target = $region12
    $region11: #{danet_forward.1} parent=5 // pred_region
      %s535 = ssub.s32 %s28, 1
      // Predicated region
      $region13: #{danet_forward.1} parent=11 // pred_check
        %p536 = pneg %p49
      $region14: #{danet_forward.1} parent=11 // pred_check_branch
        %538 = sbr.rel (%p536) target = $region16
      $region15: #{danet_forward.1} parent=11 // pred_region
        _
      $region16: #{danet_forward.1} parent=11 // pred_fallthru
        _
      // Predicated region
      $region17: #{danet_forward.1} parent=11 // pred_check
        %p539 = pneg %p70
      $region18: #{danet_forward.1} parent=11 // pred_check_branch
        %541 = sbr.rel (%p539) target = $region20
      $region19: #{danet_forward.1} parent=11 // pred_region
        _
      $region20: #{danet_forward.1} parent=11 // pred_fallthru
        _
      // Predicated region
      $region21: #{danet_forward.1} parent=11 // pred_check
        %p542 = pneg %p117
      $region22: #{danet_forward.1} parent=11 // pred_check_branch
        %544 = sbr.rel (%p542) target = $region24
      $region23: #{danet_forward.1} parent=11 // pred_region
        _
      $region24: #{danet_forward.1} parent=11 // pred_fallthru
        _
      // Predicated region
      $region25: #{danet_forward.1} parent=11 // pred_check
        %p545 = pneg %p138
      $region26: #{danet_forward.1} parent=11 // pred_check_branch
        %547 = sbr.rel (%p545) target = $region28
      $region27: #{danet_forward.1} parent=11 // pred_region
        _
      $region28: #{danet_forward.1} parent=11 // pred_fallthru
        _
      // Predicated region
      $region29: #{danet_forward.1} parent=11 // pred_check
        %p548 = pneg %p159
      $region30: #{danet_forward.1} parent=11 // pred_check_branch
        %550 = sbr.rel (%p548) target = $region32
      $region31: #{danet_forward.1} parent=11 // pred_region
        _
      $region32: #{danet_forward.1} parent=11 // pred_fallthru
        _
      // Predicated region
      $region33: #{danet_forward.1} parent=11 // pred_check
        %p551 = pneg %p180
      $region34: #{danet_forward.1} parent=11 // pred_check_branch
        %553 = sbr.rel (%p551) target = $region36
      $region35: #{danet_forward.1} parent=11 // pred_region
        _
      $region36: #{danet_forward.1} parent=11 // pred_fallthru
        _
      // Predicated region
      $region37: #{danet_forward.1} parent=11 // pred_check
        %p554 = pneg %p201
      $region38: #{danet_forward.1} parent=11 // pred_check_branch
        %556 = sbr.rel (%p554) target = $region40
      $region39: #{danet_forward.1} parent=11 // pred_region
        _
      $region40: #{danet_forward.1} parent=11 // pred_fallthru
        _
      // Predicated region
      $region41: #{danet_forward.1} parent=11 // pred_check
        %p557 = pneg %p222
      $region42: #{danet_forward.1} parent=11 // pred_check_branch
        %559 = sbr.rel (%p557) target = $region44
      $region43: #{danet_forward.1} parent=11 // pred_region
        _
      $region44: #{danet_forward.1} parent=11 // pred_fallthru
        _
      // Predicated region
      $region45: #{danet_forward.1} parent=11 // pred_check
        %p560 = pneg %p243
      $region46: #{danet_forward.1} parent=11 // pred_check_branch
        %562 = sbr.rel (%p560) target = $region48
      $region47: #{danet_forward.1} parent=11 // pred_region
        _
      $region48: #{danet_forward.1} parent=11 // pred_fallthru
        _
      // Predicated region
      $region49: #{danet_forward.1} parent=11 // pred_check
        %p563 = pneg %p264
      $region50: #{danet_forward.1} parent=11 // pred_check_branch
        %565 = sbr.rel (%p563) target = $region52
      $region51: #{danet_forward.1} parent=11 // pred_region
        _
      $region52: #{danet_forward.1} parent=11 // pred_fallthru
        _
      // Predicated region
      $region53: #{danet_forward.1} parent=11 // pred_check
        %p566 = pneg %p285
      $region54: #{danet_forward.1} parent=11 // pred_check_branch
        %568 = sbr.rel (%p566) target = $region56
      $region55: #{danet_forward.1} parent=11 // pred_region
        _
      $region56: #{danet_forward.1} parent=11 // pred_fallthru
        _
      // Predicated region
      $region57: #{danet_forward.1} parent=11 // pred_check
        %p569 = pneg %p306
      $region58: #{danet_forward.1} parent=11 // pred_check_branch
        %571 = sbr.rel (%p569) target = $region60
      $region59: #{danet_forward.1} parent=11 // pred_region
        _
      $region60: #{danet_forward.1} parent=11 // pred_fallthru
        _
      // Predicated region
      $region61: #{danet_forward.1} parent=11 // pred_check
        %p572 = pneg %p327
      $region62: #{danet_forward.1} parent=11 // pred_check_branch
        %574 = sbr.rel (%p572) target = $region64
      $region63: #{danet_forward.1} parent=11 // pred_region
        _
      $region64: #{danet_forward.1} parent=11 // pred_fallthru
        _
      // Predicated region
      $region65: #{danet_forward.1} parent=11 // pred_check
        %p575 = pneg %p348
      $region66: #{danet_forward.1} parent=11 // pred_check_branch
        %577 = sbr.rel (%p575) target = $region68
      $region67: #{danet_forward.1} parent=11 // pred_region
        _
      $region68: #{danet_forward.1} parent=11 // pred_fallthru
        _
      // Predicated region
      $region69: #{danet_forward.1} parent=11 // pred_check
        %p578 = pneg %p369
      $region70: #{danet_forward.1} parent=11 // pred_check_branch
        %580 = sbr.rel (%p578) target = $region72
      $region71: #{danet_forward.1} parent=11 // pred_region
        _
      $region72: #{danet_forward.1} parent=11 // pred_fallthru
        _
      // Predicated region
      $region73: #{danet_forward.1} parent=11 // pred_check
        %p581 = pneg %p390
      $region74: #{danet_forward.1} parent=11 // pred_check_branch
        %583 = sbr.rel (%p581) target = $region76
      $region75: #{danet_forward.1} parent=11 // pred_region
        _
      $region76: #{danet_forward.1} parent=11 // pred_fallthru
        _
      // Predicated region
      $region77: #{danet_forward.1} parent=11 // pred_check
        %p584 = pneg %p411
      $region78: #{danet_forward.1} parent=11 // pred_check_branch
        %586 = sbr.rel (%p584) target = $region80
      $region79: #{danet_forward.1} parent=11 // pred_region
        _
      $region80: #{danet_forward.1} parent=11 // pred_fallthru
        _
      // Predicated region
      $region81: #{danet_forward.1} parent=11 // pred_check
        %p587 = pneg %p432
      $region82: #{danet_forward.1} parent=11 // pred_check_branch
        %589 = sbr.rel (%p587) target = $region84
      $region83: #{danet_forward.1} parent=11 // pred_region
        _
      $region84: #{danet_forward.1} parent=11 // pred_fallthru
        _
      // Predicated region
      $region85: #{danet_forward.1} parent=11 // pred_check
        %p590 = pneg %p453
      $region86: #{danet_forward.1} parent=11 // pred_check_branch
        %592 = sbr.rel (%p590) target = $region88
      $region87: #{danet_forward.1} parent=11 // pred_region
        _
      $region88: #{danet_forward.1} parent=11 // pred_fallthru
        _
      // Predicated region
      $region89: #{danet_forward.1} parent=11 // pred_check
        %p593 = pneg %p474
      $region90: #{danet_forward.1} parent=11 // pred_check_branch
        %595 = sbr.rel (%p593) target = $region92
      $region91: #{danet_forward.1} parent=11 // pred_region
        _
      $region92: #{danet_forward.1} parent=11 // pred_fallthru
        _
      // Predicated region
      $region93: #{danet_forward.1} parent=11 // pred_check
        %p596 = pneg %p495
      $region94: #{danet_forward.1} parent=11 // pred_check_branch
        %598 = sbr.rel (%p596) target = $region96
      $region95: #{danet_forward.1} parent=11 // pred_region
        _
      $region96: #{danet_forward.1} parent=11 // pred_fallthru
        _
    $region12: #{danet_forward.1} parent=5 // pred_fallthru
      _
    %p599 = scmp.lt.s32.totalorder %s28, 2
    // Predicated region
    $region97: #{danet_forward.1} parent=5 // pred_check
      %p600 = pneg %p599
    $region98: #{danet_forward.1} parent=5 // pred_check_branch
      %602 = sbr.rel (%p600) target = $region100
    $region99: #{danet_forward.1} parent=5 // pred_region
      // Predicated region
      $region101: #{danet_forward.1} parent=99 // pred_check
        %p603 = pneg %p90
      $region102: #{danet_forward.1} parent=99 // pred_check_branch
        %605 = sbr.rel (%p603) target = $region104
      $region103: #{danet_forward.1} parent=99 // pred_region
        %p606 = scmp.lt.s32.totalorder %s28, 1
        %s607 = scalar_select %p606, %s28, 1
        %s608 = smul.addr %s607, 32
        %s609 = smul.addr %s608, 8
        %s610 = scalar_lea.vmem %s2, %s609
      $region104: #{danet_forward.1} parent=99 // pred_fallthru
        _
    $region100: #{danet_forward.1} parent=5 // pred_fallthru
      _
    %p611 = scmp.le.s32.totalorder 1, %s28
    %p612 = scmp.lt.s32.totalorder %s28, 3
    %p613 = pnand %p611, %p612
    %p614 = pneg %p613
    // Predicated region
    $region105: #{danet_forward.1} parent=5 // pred_check
      _
    $region106: #{danet_forward.1} parent=5 // pred_check_branch
      %616 = sbr.rel (%p613) target = $region108
    $region107: #{danet_forward.1} parent=5 // pred_region
      %s617 = ssub.s32 %s28, 1
      %p618 = pneg %p49
      %p619 = pneg %p46
      %p620 = pneg %p70
      %p621 = pneg %p67
      %p622 = scmp.lt.s32.totalorder %s33, 1
      %s623 = scalar_select %p622, %s33, 1
      %s624 = smul.addr %s623, 32
      %s625 = smul.addr %s624, 8
      %s626 = scalar_lea.vmem %s2, %s625
      %p627 = pneg %p96
      %p628 = pneg %p93
      %p629 = pneg %p117
      %p630 = pneg %p114
      %p631 = pneg %p138
      %p632 = pneg %p135
      %p633 = pneg %p159
      %p634 = pneg %p156
      %p635 = pneg %p180
      %p636 = pneg %p177
      %p637 = pneg %p201
      %p638 = pneg %p198
      %p639 = pneg %p222
      %p640 = pneg %p219
      %p641 = pneg %p243
      %p642 = pneg %p240
      %p643 = pneg %p264
      %p644 = pneg %p261
      %p645 = pneg %p285
      %p646 = pneg %p282
      %p647 = pneg %p306
      %p648 = pneg %p303
      %p649 = pneg %p327
      %p650 = pneg %p324
      %p651 = pneg %p348
      %p652 = pneg %p345
      %p653 = pneg %p369
      %p654 = pneg %p366
      %p655 = pneg %p390
      %p656 = pneg %p387
      %p657 = pneg %p411
      %p658 = pneg %p408
      %p659 = pneg %p432
      %p660 = pneg %p429
      %p661 = pneg %p453
      %p662 = pneg %p450
      %p663 = pneg %p474
      %p664 = pneg %p471
      %p665 = pneg %p495
      %p666 = pneg %p492
      %p667 = pneg %p521
      %p668 = pneg %p518
      %p669 = scmp.lt.s32.totalorder %s33, 1
      %s670 = scalar_select %p669, %s33, 1
      %s671 = smul.addr %s670, 2
      %s672 = smul.addr %s671, 8
      %s673 = scalar_lea.vmem %s22, %s672
      %p674 = scmp.lt.s32.totalorder %s33, 1
      %s675 = scalar_select %p674, %s33, 1
      %s676 = smul.addr %s675, 32
      %s677 = smul.addr %s676, 8
      %s678 = scalar_lea.vmem %s2, %s677
      %p679 = scmp.lt.s32.totalorder %s33, 1
      %s680 = scalar_select %p679, %s33, 1
      %s681 = smul.addr %s680, 2
      %s682 = smul.addr %s681, 8
      %s683 = scalar_lea.vmem %s22, %s682
      %v684 = vld [vmem:[%s0] sm:$0x3]
      %v685 = vld [vmem:[%s1] sm:$0x3]
      %v686 = vld [vmem:[%s678] sm:$0xff]
      %v687 = vld [vmem:[%s678 + $0x8] sm:$0xff]
      %v688 = vld [vmem:[%s678 + $0x10] sm:$0xff]
      %v689 = vld [vmem:[%s678 + $0x18] sm:$0xff]
      %v690 = vld [vmem:[%s678 + $0x20] sm:$0xff]
      %v691 = vld [vmem:[%s678 + $0x28] sm:$0xff]
      %v692 = vld [vmem:[%s678 + $0x30] sm:$0xff]
      %v693 = vld [vmem:[%s678 + $0x38] sm:$0xff]
      %v694 = vld [vmem:[%s678 + $0x40] sm:$0xff]
      %v695 = vld [vmem:[%s678 + $0x48] sm:$0xff]
      %v696 = vld [vmem:[%s678 + $0x50] sm:$0xff]
      %v697 = vld [vmem:[%s678 + $0x58] sm:$0xff]
      %v698 = vld [vmem:[%s678 + $0x60] sm:$0xff]
      %v699 = vld [vmem:[%s678 + $0x68] sm:$0xff]
      %v700 = vld [vmem:[%s678 + $0x70] sm:$0xff]
      %v701 = vld [vmem:[%s678 + $0x78] sm:$0xff]
      %v702 = vld [vmem:[%s678 + $0x80] sm:$0xff]
      %v703 = vld [vmem:[%s678 + $0x88] sm:$0xff]
      %v704 = vld [vmem:[%s678 + $0x90] sm:$0xff]
      %v705 = vld [vmem:[%s678 + $0x98] sm:$0xff]
      %v706 = vld [vmem:[%s678 + $0xa0] sm:$0xff]
      %v707 = vld [vmem:[%s678 + $0xa8] sm:$0xff]
      %v708 = vld [vmem:[%s678 + $0xb0] sm:$0xff]
      %v709 = vld [vmem:[%s678 + $0xb8] sm:$0xff]
      %v710 = vld [vmem:[%s678 + $0xc0] sm:$0xff]
      %v711 = vld [vmem:[%s678 + $0xc8] sm:$0xff]
      %v712 = vld [vmem:[%s678 + $0xd0] sm:$0xff]
      %v713 = vld [vmem:[%s678 + $0xd8] sm:$0xff]
      %v714 = vld [vmem:[%s678 + $0xe0] sm:$0xff]
      %v715 = vld [vmem:[%s678 + $0xe8] sm:$0xff]
      %v716 = vld [vmem:[%s678 + $0xf0] sm:$0xff]
      %v717 = vld [vmem:[%s678 + $0xf8] sm:$0xff]
      %718 = vst [vmem:[#allocation2] sm:$0xff] 0.0
      %719 = vst [vmem:[#allocation2 + $0x20] sm:$0xff] 0.0
      %720 = vst [vmem:[#allocation2 + $0x40] sm:$0xff] 0.0
      %721 = vst [vmem:[#allocation2 + $0x60] sm:$0xff] 0.0
      %722 = vst [vmem:[#allocation2 + $0x80] sm:$0xff] 0.0
      %723 = vst [vmem:[#allocation2 + $0xa0] sm:$0xff] 0.0
      %724 = vst [vmem:[#allocation2 + $0xc0] sm:$0xff] 0.0
      %725 = vst [vmem:[#allocation2 + $0xe0] sm:$0xff] 0.0
      %726 = vst [vmem:[#allocation2 + $0x100] sm:$0xff] 0.0
      %727 = vst [vmem:[#allocation2 + $0x120] sm:$0xff] 0.0
      %728 = vst [vmem:[#allocation2 + $0x140] sm:$0xff] 0.0
      %729 = vst [vmem:[#allocation2 + $0x160] sm:$0xff] 0.0
      %730 = vst [vmem:[#allocation2 + $0x180] sm:$0xff] 0.0
      %731 = vst [vmem:[#allocation2 + $0x1a0] sm:$0xff] 0.0
      %732 = vst [vmem:[#allocation2 + $0x1c0] sm:$0xff] 0.0
      %733 = vst [vmem:[#allocation2 + $0x1e0] sm:$0xff] 0.0
      %734 = vst [vmem:[#allocation2 + $0x18] sm:$0xff] 0.0
      %735 = vst [vmem:[#allocation2 + $0x38] sm:$0xff] 0.0
      %736 = vst [vmem:[#allocation2 + $0x58] sm:$0xff] 0.0
      %737 = vst [vmem:[#allocation2 + $0x78] sm:$0xff] 0.0
      %738 = vst [vmem:[#allocation2 + $0x98] sm:$0xff] 0.0
      %739 = vst [vmem:[#allocation2 + $0xb8] sm:$0xff] 0.0
      %740 = vst [vmem:[#allocation2 + $0xd8] sm:$0xff] 0.0
      %741 = vst [vmem:[#allocation2 + $0xf8] sm:$0xff] 0.0
      %742 = vst [vmem:[#allocation2 + $0x118] sm:$0xff] 0.0
      %743 = vst [vmem:[#allocation2 + $0x138] sm:$0xff] 0.0
      %744 = vst [vmem:[#allocation2 + $0x158] sm:$0xff] 0.0
      %745 = vst [vmem:[#allocation2 + $0x178] sm:$0xff] 0.0
      %746 = vst [vmem:[#allocation2 + $0x198] sm:$0xff] 0.0
      %747 = vst [vmem:[#allocation2 + $0x1b8] sm:$0xff] 0.0
      %748 = vst [vmem:[#allocation2 + $0x1d8] sm:$0xff] 0.0
      %749 = vst [vmem:[#allocation2 + $0x1f8] sm:$0xff] 0.0
      %750 = vst [vmem:[#allocation2 + $0x8] sm:$0xff] %v686
      %751 = vst [vmem:[#allocation2 + $0x10] sm:$0xff] %v687
      %752 = vst [vmem:[#allocation2 + $0x28] sm:$0xff] %v688
      %753 = vst [vmem:[#allocation2 + $0x30] sm:$0xff] %v689
      %754 = vst [vmem:[#allocation2 + $0x48] sm:$0xff] %v690
      %755 = vst [vmem:[#allocation2 + $0x50] sm:$0xff] %v691
      %756 = vst [vmem:[#allocation2 + $0x68] sm:$0xff] %v692
      %757 = vst [vmem:[#allocation2 + $0x70] sm:$0xff] %v693
      %758 = vst [vmem:[#allocation2 + $0x88] sm:$0xff] %v694
      %759 = vst [vmem:[#allocation2 + $0x90] sm:$0xff] %v695
      %760 = vst [vmem:[#allocation2 + $0xa8] sm:$0xff] %v696
      %761 = vst [vmem:[#allocation2 + $0xb0] sm:$0xff] %v697
      %762 = vst [vmem:[#allocation2 + $0xc8] sm:$0xff] %v698
      %763 = vst [vmem:[#allocation2 + $0xd0] sm:$0xff] %v699
      %764 = vst [vmem:[#allocation2 + $0xe8] sm:$0xff] %v700
      %765 = vst [vmem:[#allocation2 + $0xf0] sm:$0xff] %v701
      %766 = vst [vmem:[#allocation2 + $0x108] sm:$0xff] %v702
      %767 = vst [vmem:[#allocation2 + $0x110] sm:$0xff] %v703
      %768 = vst [vmem:[#allocation2 + $0x128] sm:$0xff] %v704
      %769 = vst [vmem:[#allocation2 + $0x130] sm:$0xff] %v705
      %770 = vst [vmem:[#allocation2 + $0x148] sm:$0xff] %v706
      %771 = vst [vmem:[#allocation2 + $0x150] sm:$0xff] %v707
      %772 = vst [vmem:[#allocation2 + $0x168] sm:$0xff] %v708
      %773 = vst [vmem:[#allocation2 + $0x170] sm:$0xff] %v709
      %774 = vst [vmem:[#allocation2 + $0x188] sm:$0xff] %v710
      %775 = vst [vmem:[#allocation2 + $0x190] sm:$0xff] %v711
      %776 = vst [vmem:[#allocation2 + $0x1a8] sm:$0xff] %v712
      %777 = vst [vmem:[#allocation2 + $0x1b0] sm:$0xff] %v713
      %778 = vst [vmem:[#allocation2 + $0x1c8] sm:$0xff] %v714
      %779 = vst [vmem:[#allocation2 + $0x1d0] sm:$0xff] %v715
      %780 = vst [vmem:[#allocation2 + $0x1e8] sm:$0xff] %v716
      %781 = vst [vmem:[#allocation2 + $0x1f0] sm:$0xff] %v717
      %v782 = vld [vmem:[#allocation2] sm:$0xff]
      %v783 = vld [vmem:[#allocation2 + $0x8] sm:$0xff]
      %v784 = vld [vmem:[#allocation2 + $0x10] sm:$0xff]
      %v785 = vld [vmem:[#allocation2 + $0x20] sm:$0xff]
      %v786 = vld [vmem:[#allocation2 + $0x28] sm:$0xff]
      %v787 = vld [vmem:[#allocation2 + $0x30] sm:$0xff]
      %v788 = vld [vmem:[#allocation2 + $0x40] sm:$0xff]
      %v789 = vld [vmem:[#allocation2 + $0x48] sm:$0xff]
      %v790 = vld [vmem:[#allocation2 + $0x50] sm:$0xff]
      %v791 = vld [vmem:[#allocation2 + $0x60] sm:$0xff]
      %v792 = vld [vmem:[#allocation2 + $0x68] sm:$0xff]
      %v793 = vld [vmem:[#allocation2 + $0x70] sm:$0xff]
      %v794 = vld [vmem:[#allocation2 + $0x80] sm:$0xff]
      %v795 = vld [vmem:[#allocation2 + $0x88] sm:$0xff]
      %v796 = vld [vmem:[#allocation2 + $0x90] sm:$0xff]
      %v797 = vld [vmem:[#allocation2 + $0xa0] sm:$0xff]
      %v798 = vld [vmem:[#allocation2 + $0xa8] sm:$0xff]
      %v799 = vld [vmem:[#allocation2 + $0xb0] sm:$0xff]
      %v800 = vld [vmem:[#allocation2 + $0xc0] sm:$0xff]
      %v801 = vld [vmem:[#allocation2 + $0xc8] sm:$0xff]
      %v802 = vld [vmem:[#allocation2 + $0xd0] sm:$0xff]
      %v803 = vld [vmem:[#allocation2 + $0xe0] sm:$0xff]
      %v804 = vld [vmem:[#allocation2 + $0xe8] sm:$0xff]
      %v805 = vld [vmem:[#allocation2 + $0xf0] sm:$0xff]
      %v806 = vld [vmem:[#allocation2 + $0x100] sm:$0xff]
      %v807 = vld [vmem:[#allocation2 + $0x108] sm:$0xff]
      %v808 = vld [vmem:[#allocation2 + $0x110] sm:$0xff]
      %v809 = vld [vmem:[#allocation2 + $0x120] sm:$0xff]
      %v810 = vld [vmem:[#allocation2 + $0x128] sm:$0xff]
      %v811 = vld [vmem:[#allocation2 + $0x130] sm:$0xff]
      %v812 = vld [vmem:[#allocation2 + $0x140] sm:$0xff]
      %v813 = vld [vmem:[#allocation2 + $0x148] sm:$0xff]
      %v814 = vld [vmem:[#allocation2 + $0x150] sm:$0xff]
      %v815 = vld [vmem:[#allocation2 + $0x160] sm:$0xff]
      %v816 = vld [vmem:[#allocation2 + $0x168] sm:$0xff]
      %v817 = vld [vmem:[#allocation2 + $0x170] sm:$0xff]
      %v818 = vld [vmem:[#allocation2 + $0x180] sm:$0xff]
      %v819 = vld [vmem:[#allocation2 + $0x188] sm:$0xff]
      %v820 = vld [vmem:[#allocation2 + $0x190] sm:$0xff]
      %v821 = vld [vmem:[#allocation2 + $0x1a0] sm:$0xff]
      %v822 = vld [vmem:[#allocation2 + $0x1a8] sm:$0xff]
      %v823 = vld [vmem:[#allocation2 + $0x1b0] sm:$0xff]
      %v824 = vld [vmem:[#allocation2 + $0x1c0] sm:$0xff]
      %v825 = vld [vmem:[#allocation2 + $0x1c8] sm:$0xff]
      %v826 = vld [vmem:[#allocation2 + $0x1d0] sm:$0xff]
      %v827 = vld [vmem:[#allocation2 + $0x1e0] sm:$0xff]
      %v828 = vld [vmem:[#allocation2 + $0x1e8] sm:$0xff]
      %v829 = vld [vmem:[#allocation2 + $0x1f0] sm:$0xff]
      %v830 = vld [vmem:[%s3] sm:$0xff]
      %v831 = vld [vmem:[%s3 + $0x8] sm:$0xff]
      %880 = vrot.lane.b32.xlu0 %v782, 17
      %v881 = vpop.permute.xlu0 %880
      %882 = vrot.lane.b32.xlu0 %v783, 17
      %v883 = vpop.permute.xlu0 %882
      %884 = vrot.lane.b32.xlu0 %v784, 17
      %v885 = vpop.permute.xlu0 %884
      %886 = vrot.lane.b32.xlu0 %v785, 17
      %v887 = vpop.permute.xlu0 %886
      %888 = vrot.lane.b32.xlu0 %v786, 17
      %v889 = vpop.permute.xlu0 %888
      %890 = vrot.lane.b32.xlu0 %v787, 17
      %v891 = vpop.permute.xlu0 %890
      %892 = vrot.lane.b32.xlu0 %v788, 17
      %v893 = vpop.permute.xlu0 %892
      %894 = vrot.lane.b32.xlu0 %v789, 17
      %v895 = vpop.permute.xlu0 %894
      %896 = vrot.lane.b32.xlu0 %v790, 17
      %v897 = vpop.permute.xlu0 %896
      %898 = vrot.lane.b32.xlu0 %v791, 17
      %v899 = vpop.permute.xlu0 %898
      %900 = vrot.lane.b32.xlu0 %v792, 17
      %v901 = vpop.permute.xlu0 %900
      %902 = vrot.lane.b32.xlu0 %v793, 17
      %v903 = vpop.permute.xlu0 %902
      %904 = vrot.lane.b32.xlu0 %v794, 17
      %v905 = vpop.permute.xlu0 %904
      %906 = vrot.lane.b32.xlu0 %v795, 17
      %v907 = vpop.permute.xlu0 %906
      %908 = vrot.lane.b32.xlu0 %v796, 17
      %v909 = vpop.permute.xlu0 %908
      %910 = vrot.lane.b32.xlu0 %v797, 17
      %v911 = vpop.permute.xlu0 %910
      %912 = vrot.lane.b32.xlu0 %v798, 17
      %v913 = vpop.permute.xlu0 %912
      %914 = vrot.lane.b32.xlu0 %v799, 17
      %v915 = vpop.permute.xlu0 %914
      %916 = vrot.lane.b32.xlu0 %v800, 17
      %v917 = vpop.permute.xlu0 %916
      %918 = vrot.lane.b32.xlu0 %v801, 17
      %v919 = vpop.permute.xlu0 %918
      %920 = vrot.lane.b32.xlu0 %v802, 17
      %v921 = vpop.permute.xlu0 %920
      %922 = vrot.lane.b32.xlu0 %v803, 17
      %v923 = vpop.permute.xlu0 %922
      %924 = vrot.lane.b32.xlu0 %v804, 17
      %v925 = vpop.permute.xlu0 %924
      %926 = vrot.lane.b32.xlu0 %v805, 17
      %v927 = vpop.permute.xlu0 %926
      %928 = vrot.lane.b32.xlu0 %v806, 17
      %v929 = vpop.permute.xlu0 %928
      %930 = vrot.lane.b32.xlu0 %v807, 17
      %v931 = vpop.permute.xlu0 %930
      %932 = vrot.lane.b32.xlu0 %v808, 17
      %v933 = vpop.permute.xlu0 %932
      %934 = vrot.lane.b32.xlu0 %v809, 17
      %v935 = vpop.permute.xlu0 %934
      %936 = vrot.lane.b32.xlu0 %v810, 17
      %v937 = vpop.permute.xlu0 %936
      %938 = vrot.lane.b32.xlu0 %v811, 17
      %v939 = vpop.permute.xlu0 %938
      %940 = vrot.lane.b32.xlu0 %v812, 17
      %v941 = vpop.permute.xlu0 %940
      %942 = vrot.lane.b32.xlu0 %v813, 17
      %v943 = vpop.permute.xlu0 %942
      %944 = vrot.lane.b32.xlu0 %v814, 17
      %v945 = vpop.permute.xlu0 %944
      %946 = vrot.lane.b32.xlu0 %v815, 17
      %v947 = vpop.permute.xlu0 %946
      %948 = vrot.lane.b32.xlu0 %v816, 17
      %v949 = vpop.permute.xlu0 %948
      %950 = vrot.lane.b32.xlu0 %v817, 17
      %v951 = vpop.permute.xlu0 %950
      %952 = vrot.lane.b32.xlu0 %v818, 17
      %v953 = vpop.permute.xlu0 %952
      %954 = vrot.lane.b32.xlu0 %v819, 17
      %v955 = vpop.permute.xlu0 %954
      %956 = vrot.lane.b32.xlu0 %v820, 17
      %v957 = vpop.permute.xlu0 %956
      %958 = vrot.lane.b32.xlu0 %v821, 17
      %v959 = vpop.permute.xlu0 %958
      %960 = vrot.lane.b32.xlu0 %v822, 17
      %v961 = vpop.permute.xlu0 %960
      %962 = vrot.lane.b32.xlu0 %v823, 17
      %v963 = vpop.permute.xlu0 %962
      %964 = vrot.lane.b32.xlu0 %v824, 17
      %v965 = vpop.permute.xlu0 %964
      %966 = vrot.lane.b32.xlu0 %v825, 17
      %v967 = vpop.permute.xlu0 %966
      %968 = vrot.lane.b32.xlu0 %v826, 17
      %v969 = vpop.permute.xlu0 %968
      %970 = vrot.lane.b32.xlu0 %v827, 17
      %v971 = vpop.permute.xlu0 %970
      %972 = vrot.lane.b32.xlu0 %v828, 17
      %v973 = vpop.permute.xlu0 %972
      %974 = vrot.lane.b32.xlu0 %v829, 17
      %v975 = vpop.permute.xlu0 %974
      %vm976 = vcmask 138240
      %v977 = vsel %vm976, %v881, %v883
      %v978 = vsel %vm976, %v883, %v885
      %v979 = vsel %vm976, %v887, %v889
      %v980 = vsel %vm976, %v889, %v891
      %v981 = vsel %vm976, %v893, %v895
      %v982 = vsel %vm976, %v895, %v897
      %v983 = vsel %vm976, %v899, %v901
      %v984 = vsel %vm976, %v901, %v903
      %v985 = vsel %vm976, %v905, %v907
      %v986 = vsel %vm976, %v907, %v909
      %v987 = vsel %vm976, %v911, %v913
      %v988 = vsel %vm976, %v913, %v915
      %v989 = vsel %vm976, %v917, %v919
      %v990 = vsel %vm976, %v919, %v921
      %v991 = vsel %vm976, %v923, %v925
      %v992 = vsel %vm976, %v925, %v927
      %v993 = vsel %vm976, %v929, %v931
      %v994 = vsel %vm976, %v931, %v933
      %v995 = vsel %vm976, %v935, %v937
      %v996 = vsel %vm976, %v937, %v939
      %v997 = vsel %vm976, %v941, %v943
      %v998 = vsel %vm976, %v943, %v945
      %v999 = vsel %vm976, %v947, %v949
      %v1000 = vsel %vm976, %v949, %v951
      %v1001 = vsel %vm976, %v953, %v955
      %v1002 = vsel %vm976, %v955, %v957
      %v1003 = vsel %vm976, %v959, %v961
      %v1004 = vsel %vm976, %v961, %v963
      %v1005 = vsel %vm976, %v965, %v967
      %v1006 = vsel %vm976, %v967, %v969
      %v1007 = vsel %vm976, %v971, %v973
      %v1008 = vsel %vm976, %v973, %v975
      %1041 = vmatprep.subr.mxu0 %v978
      %1042 = vmatpush1.msra.mxu0 %v977
      %1043 = vmatprep.subr.mxu0 %v980
      %1044 = vmatpush1.msra.mxu0 %v979
      %1045 = vmatprep.subr.mxu0 %v982
      %1046 = vmatpush1.msra.mxu0 %v981
      %1047 = vmatprep.subr.mxu0 %v984
      %1048 = vmatpush1.msra.mxu0 %v983
      %1049 = vmatprep.subr.mxu0 %v986
      %1050 = vmatpush1.msra.mxu0 %v985
      %1051 = vmatprep.subr.mxu0 %v988
      %1052 = vmatpush1.msra.mxu0 %v987
      %1053 = vmatprep.subr.mxu0 %v990
      %1054 = vmatpush1.msra.mxu0 %v989
      %1055 = vmatprep.subr.mxu0 %v992
      %1056 = vmatpush1.msra.mxu0 %v991
      %1057 = vmatprep.subr.mxu0 %v994
      %1058 = vmatpush1.msra.mxu0 %v993
      %1059 = vmatprep.subr.mxu0 %v996
      %1060 = vmatpush1.msra.mxu0 %v995
      %1061 = vmatprep.subr.mxu0 %v998
      %1062 = vmatpush1.msra.mxu0 %v997
      %1063 = vmatprep.subr.mxu0 %v1000
      %1064 = vmatpush1.msra.mxu0 %v999
      %1065 = vmatprep.subr.mxu0 %v1002
      %1066 = vmatpush1.msra.mxu0 %v1001
      %1067 = vmatprep.subr.mxu0 %v1004
      %1068 = vmatpush1.msra.mxu0 %v1003
      %1069 = vmatprep.subr.mxu0 %v1006
      %1070 = vmatpush1.msra.mxu0 %v1005
      %1071 = vmatprep.subr.mxu0 %v1008
      %1072 = vmatpush1.msra.mxu0 %v1007
      %1073 = vmatprep.subr.mxu0 0.0
      %1074 = vmatpush1.msra.mxu0 0.0
      %1075 = vmatprep.subr.mxu0 0.0
      %1076 = vmatpush1.msra.mxu0 0.0
      %1077 = vmatprep.subr.mxu0 0.0
      %1078 = vmatpush1.msra.mxu0 0.0
      %1079 = vmatprep.subr.mxu0 0.0
      %1080 = vmatpush1.msra.mxu0 0.0
      %1081 = vmatprep.subr.mxu0 0.0
      %1082 = vmatpush1.msra.mxu0 0.0
      %1083 = vmatprep.subr.mxu0 0.0
      %1084 = vmatpush1.msra.mxu0 0.0
      %1085 = vmatprep.subr.mxu0 0.0
      %1086 = vmatpush1.msra.mxu0 0.0
      %1087 = vmatprep.subr.mxu0 0.0
      %1088 = vmatpush1.msra.mxu0 0.0
      %1089 = vmatprep.subr.mxu0 0.0
      %1090 = vmatpush1.msra.mxu0 0.0
      %1091 = vmatprep.subr.mxu0 0.0
      %1092 = vmatpush1.msra.mxu0 0.0
      %1093 = vmatprep.subr.mxu0 0.0
      %1094 = vmatpush1.msra.mxu0 0.0
      %1095 = vmatprep.subr.mxu0 0.0
      %1096 = vmatpush1.msra.mxu0 0.0
      %1097 = vmatprep.subr.mxu0 0.0
      %1098 = vmatpush1.msra.mxu0 0.0
      %1099 = vmatprep.subr.mxu0 0.0
      %1100 = vmatpush1.msra.mxu0 0.0
      %1101 = vmatprep.subr.mxu0 0.0
      %1102 = vmatpush1.msra.mxu0 0.0
      %1103 = vmatprep.subr.mxu0 0.0
      %1104 = vmatpush1.msra.mxu0 0.0
      %1105 = vmatprep.mubr.f32.mxu0 0.0
      %1106 = vmatmul.mubr.f32.gmra.mrb[0].mxu0 %v830
      %v1107 = vpop.f32.mrb[0].mxu0
      %v1108 = vadd.f32 0.0, %v1107
      %v1109 = vpop.f32.mrb[0].mxu0
      %v1110 = vadd.f32 0.0, %v1109
      %1111 = vmatprep.mubr.f32.mxu0 0.0
      %1112 = vmatmul.mubr.f32.gmra.mrb[0].mxu0 %v831
      %v1113 = vpop.f32.mrb[0].mxu0
      %v1114 = vadd.f32 0.0, %v1113
      %v1115 = vpop.f32.mrb[0].mxu0
      %v1116 = vadd.f32 0.0, %v1115
      %1117 = vdwg.mxu0
      %v1119 = vlaneseq
      %v1120 = vshrl.u32 %v1119, 7
      %v1121 = vsub.s32 0, %v1120
      %v1122 = vrot.slane %v684, %v1121
      %v1123 = vlaneseq
      %v1124 = vshrl.u32 %v1123, 7
      %v1125 = vsub.s32 1, %v1124
      %v1126 = vrot.slane %v684, %v1125
      %v1129 = vmul.f32 %v1108, %v1122
      %v1130 = vmul.f32 %v1110, %v1126
      %v1131 = vmul.f32 %v1114, %v1122
      %v1132 = vmul.f32 %v1116, %v1126
      %v1133 = vadd.f32 %v1129, 0.0
      %v1134 = vadd.f32 %v1130, 0.0
      %v1135 = vadd.f32 %v1131, 0.0
      %v1136 = vadd.f32 %v1132, 0.0
      %s1137 = scalar_lea.vmem %s3, 16
      %v1138 = vld [vmem:[%s1137] sm:$0xff]
      %v1139 = vld [vmem:[%s1137 + $0x8] sm:$0xff]
      %1140 = vrot.lane.b32.xlu0 %v782, 16
      %v1141 = vpop.permute.xlu0 %1140
      %1142 = vrot.lane.b32.xlu0 %v783, 16
      %v1143 = vpop.permute.xlu0 %1142
      %1144 = vrot.lane.b32.xlu0 %v784, 16
      %v1145 = vpop.permute.xlu0 %1144
      %1146 = vrot.lane.b32.xlu0 %v785, 16
      %v1147 = vpop.permute.xlu0 %1146
      %1148 = vrot.lane.b32.xlu0 %v786, 16
      %v1149 = vpop.permute.xlu0 %1148
      %1150 = vrot.lane.b32.xlu0 %v787, 16
      %v1151 = vpop.permute.xlu0 %1150
      %1152 = vrot.lane.b32.xlu0 %v788, 16
      %v1153 = vpop.permute.xlu0 %1152
      %1154 = vrot.lane.b32.xlu0 %v789, 16
      %v1155 = vpop.permute.xlu0 %1154
      %1156 = vrot.lane.b32.xlu0 %v790, 16
      %v1157 = vpop.permute.xlu0 %1156
      %1158 = vrot.lane.b32.xlu0 %v791, 16
      %v1159 = vpop.permute.xlu0 %1158
      %1160 = vrot.lane.b32.xlu0 %v792, 16
      %v1161 = vpop.permute.xlu0 %1160
      %1162 = vrot.lane.b32.xlu0 %v793, 16
      %v1163 = vpop.permute.xlu0 %1162
      %1164 = vrot.lane.b32.xlu0 %v794, 16
      %v1165 = vpop.permute.xlu0 %1164
      %1166 = vrot.lane.b32.xlu0 %v795, 16
      %v1167 = vpop.permute.xlu0 %1166
      %1168 = vrot.lane.b32.xlu0 %v796, 16
      %v1169 = vpop.permute.xlu0 %1168
      %1170 = vrot.lane.b32.xlu0 %v797, 16
      %v1171 = vpop.permute.xlu0 %1170
      %1172 = vrot.lane.b32.xlu0 %v798, 16
      %v1173 = vpop.permute.xlu0 %1172
      %1174 = vrot.lane.b32.xlu0 %v799, 16
      %v1175 = vpop.permute.xlu0 %1174
      %1176 = vrot.lane.b32.xlu0 %v800, 16
      %v1177 = vpop.permute.xlu0 %1176
      %1178 = vrot.lane.b32.xlu0 %v801, 16
      %v1179 = vpop.permute.xlu0 %1178
      %1180 = vrot.lane.b32.xlu0 %v802, 16
      %v1181 = vpop.permute.xlu0 %1180
      %1182 = vrot.lane.b32.xlu0 %v803, 16
      %v1183 = vpop.permute.xlu0 %1182
      %1184 = vrot.lane.b32.xlu0 %v804, 16
      %v1185 = vpop.permute.xlu0 %1184
      %1186 = vrot.lane.b32.xlu0 %v805, 16
      %v1187 = vpop.permute.xlu0 %1186
      %1188 = vrot.lane.b32.xlu0 %v806, 16
      %v1189 = vpop.permute.xlu0 %1188
      %1190 = vrot.lane.b32.xlu0 %v807, 16
      %v1191 = vpop.permute.xlu0 %1190
      %1192 = vrot.lane.b32.xlu0 %v808, 16
      %v1193 = vpop.permute.xlu0 %1192
      %1194 = vrot.lane.b32.xlu0 %v809, 16
      %v1195 = vpop.permute.xlu0 %1194
      %1196 = vrot.lane.b32.xlu0 %v810, 16
      %v1197 = vpop.permute.xlu0 %1196
      %1198 = vrot.lane.b32.xlu0 %v811, 16
      %v1199 = vpop.permute.xlu0 %1198
      %1200 = vrot.lane.b32.xlu0 %v812, 16
      %v1201 = vpop.permute.xlu0 %1200
      %1202 = vrot.lane.b32.xlu0 %v813, 16
      %v1203 = vpop.permute.xlu0 %1202
      %1204 = vrot.lane.b32.xlu0 %v814, 16
      %v1205 = vpop.permute.xlu0 %1204
      %1206 = vrot.lane.b32.xlu0 %v815, 16
      %v1207 = vpop.permute.xlu0 %1206
      %1208 = vrot.lane.b32.xlu0 %v816, 16
      %v1209 = vpop.permute.xlu0 %1208
      %1210 = vrot.lane.b32.xlu0 %v817, 16
      %v1211 = vpop.permute.xlu0 %1210
      %1212 = vrot.lane.b32.xlu0 %v818, 16
      %v1213 = vpop.permute.xlu0 %1212
      %1214 = vrot.lane.b32.xlu0 %v819, 16
      %v1215 = vpop.permute.xlu0 %1214
      %1216 = vrot.lane.b32.xlu0 %v820, 16
      %v1217 = vpop.permute.xlu0 %1216
      %1218 = vrot.lane.b32.xlu0 %v821, 16
      %v1219 = vpop.permute.xlu0 %1218
      %1220 = vrot.lane.b32.xlu0 %v822, 16
      %v1221 = vpop.permute.xlu0 %1220
      %1222 = vrot.lane.b32.xlu0 %v823, 16
      %v1223 = vpop.permute.xlu0 %1222
      %1224 = vrot.lane.b32.xlu0 %v824, 16
      %v1225 = vpop.permute.xlu0 %1224
      %1226 = vrot.lane.b32.xlu0 %v825, 16
      %v1227 = vpop.permute.xlu0 %1226
      %1228 = vrot.lane.b32.xlu0 %v826, 16
      %v1229 = vpop.permute.xlu0 %1228
      %1230 = vrot.lane.b32.xlu0 %v827, 16
      %v1231 = vpop.permute.xlu0 %1230
      %1232 = vrot.lane.b32.xlu0 %v828, 16
      %v1233 = vpop.permute.xlu0 %1232
      %1234 = vrot.lane.b32.xlu0 %v829, 16
      %v1235 = vpop.permute.xlu0 %1234
      %vm1236 = vcmask 130048
      %v1237 = vsel %vm1236, %v1141, %v1143
      %v1238 = vsel %vm1236, %v1143, %v1145
      %v1239 = vsel %vm1236, %v1147, %v1149
      %v1240 = vsel %vm1236, %v1149, %v1151
      %v1241 = vsel %vm1236, %v1153, %v1155
      %v1242 = vsel %vm1236, %v1155, %v1157
      %v1243 = vsel %vm1236, %v1159, %v1161
      %v1244 = vsel %vm1236, %v1161, %v1163
      %v1245 = vsel %vm1236, %v1165, %v1167
      %v1246 = vsel %vm1236, %v1167, %v1169
      %v1247 = vsel %vm1236, %v1171, %v1173
      %v1248 = vsel %vm1236, %v1173, %v1175
      %v1249 = vsel %vm1236, %v1177, %v1179
      %v1250 = vsel %vm1236, %v1179, %v1181
      %v1251 = vsel %vm1236, %v1183, %v1185
      %v1252 = vsel %vm1236, %v1185, %v1187
      %v1253 = vsel %vm1236, %v1189, %v1191
      %v1254 = vsel %vm1236, %v1191, %v1193
      %v1255 = vsel %vm1236, %v1195, %v1197
      %v1256 = vsel %vm1236, %v1197, %v1199
      %v1257 = vsel %vm1236, %v1201, %v1203
      %v1258 = vsel %vm1236, %v1203, %v1205
      %v1259 = vsel %vm1236, %v1207, %v1209
      %v1260 = vsel %vm1236, %v1209, %v1211
      %v1261 = vsel %vm1236, %v1213, %v1215
      %v1262 = vsel %vm1236, %v1215, %v1217
      %v1263 = vsel %vm1236, %v1219, %v1221
      %v1264 = vsel %vm1236, %v1221, %v1223
      %v1265 = vsel %vm1236, %v1225, %v1227
      %v1266 = vsel %vm1236, %v1227, %v1229
      %v1267 = vsel %vm1236, %v1231, %v1233
      %v1268 = vsel %vm1236, %v1233, %v1235
      %1301 = vmatprep.subr.mxu0 %v1238
      %1302 = vmatpush1.msra.mxu0 %v1237
      %1303 = vmatprep.subr.mxu0 %v1240
      %1304 = vmatpush1.msra.mxu0 %v1239
      %1305 = vmatprep.subr.mxu0 %v1242
      %1306 = vmatpush1.msra.mxu0 %v1241
      %1307 = vmatprep.subr.mxu0 %v1244
      %1308 = vmatpush1.msra.mxu0 %v1243
      %1309 = vmatprep.subr.mxu0 %v1246
      %1310 = vmatpush1.msra.mxu0 %v1245
      %1311 = vmatprep.subr.mxu0 %v1248
      %1312 = vmatpush1.msra.mxu0 %v1247
      %1313 = vmatprep.subr.mxu0 %v1250
      %1314 = vmatpush1.msra.mxu0 %v1249
      %1315 = vmatprep.subr.mxu0 %v1252
      %1316 = vmatpush1.msra.mxu0 %v1251
      %1317 = vmatprep.subr.mxu0 %v1254
      %1318 = vmatpush1.msra.mxu0 %v1253
      %1319 = vmatprep.subr.mxu0 %v1256
      %1320 = vmatpush1.msra.mxu0 %v1255
      %1321 = vmatprep.subr.mxu0 %v1258
      %1322 = vmatpush1.msra.mxu0 %v1257
      %1323 = vmatprep.subr.mxu0 %v1260
      %1324 = vmatpush1.msra.mxu0 %v1259
      %1325 = vmatprep.subr.mxu0 %v1262
      %1326 = vmatpush1.msra.mxu0 %v1261
      %1327 = vmatprep.subr.mxu0 %v1264
      %1328 = vmatpush1.msra.mxu0 %v1263
      %1329 = vmatprep.subr.mxu0 %v1266
      %1330 = vmatpush1.msra.mxu0 %v1265
      %1331 = vmatprep.subr.mxu0 %v1268
      %1332 = vmatpush1.msra.mxu0 %v1267
      %1333 = vmatprep.subr.mxu0 0.0
      %1334 = vmatpush1.msra.mxu0 0.0
      %1335 = vmatprep.subr.mxu0 0.0
      %1336 = vmatpush1.msra.mxu0 0.0
      %1337 = vmatprep.subr.mxu0 0.0
      %1338 = vmatpush1.msra.mxu0 0.0
      %1339 = vmatprep.subr.mxu0 0.0
      %1340 = vmatpush1.msra.mxu0 0.0
      %1341 = vmatprep.subr.mxu0 0.0
      %1342 = vmatpush1.msra.mxu0 0.0
      %1343 = vmatprep.subr.mxu0 0.0
      %1344 = vmatpush1.msra.mxu0 0.0
      %1345 = vmatprep.subr.mxu0 0.0
      %1346 = vmatpush1.msra.mxu0 0.0
      %1347 = vmatprep.subr.mxu0 0.0
      %1348 = vmatpush1.msra.mxu0 0.0
      %1349 = vmatprep.subr.mxu0 0.0
      %1350 = vmatpush1.msra.mxu0 0.0
      %1351 = vmatprep.subr.mxu0 0.0
      %1352 = vmatpush1.msra.mxu0 0.0
      %1353 = vmatprep.subr.mxu0 0.0
      %1354 = vmatpush1.msra.mxu0 0.0
      %1355 = vmatprep.subr.mxu0 0.0
      %1356 = vmatpush1.msra.mxu0 0.0
      %1357 = vmatprep.subr.mxu0 0.0
      %1358 = vmatpush1.msra.mxu0 0.0
      %1359 = vmatprep.subr.mxu0 0.0
      %1360 = vmatpush1.msra.mxu0 0.0
      %1361 = vmatprep.subr.mxu0 0.0
      %1362 = vmatpush1.msra.mxu0 0.0
      %1363 = vmatprep.subr.mxu0 0.0
      %1364 = vmatpush1.msra.mxu0 0.0
      %1365 = vmatprep.mubr.f32.mxu0 0.0
      %1366 = vmatmul.mubr.f32.gmra.mrb[0].mxu0 %v1138
      %v1367 = vpop.f32.mrb[0].mxu0
      %v1368 = vadd.f32 0.0, %v1367
      %v1369 = vpop.f32.mrb[0].mxu0
      %v1370 = vadd.f32 0.0, %v1369
      %1371 = vmatprep.mubr.f32.mxu0 0.0
      %1372 = vmatmul.mubr.f32.gmra.mrb[0].mxu0 %v1139
      %v1373 = vpop.f32.mrb[0].mxu0
      %v1374 = vadd.f32 0.0, %v1373
      %v1375 = vpop.f32.mrb[0].mxu0
      %v1376 = vadd.f32 0.0, %v1375
      %1377 = vdwg.mxu0
      %v1378 = vadd.f32 %v1133, %v1368
      %v1379 = vadd.f32 %v1134, %v1370
      %v1380 = vadd.f32 %v1135, %v1374
      %v1381 = vadd.f32 %v1136, %v1376
      %s1382 = scalar_lea.vmem %s3, 32
      %v1383 = vld [vmem:[%s1382] sm:$0xff]
      %v1384 = vld [vmem:[%s1382 + $0x8] sm:$0xff]
      %1385 = vrot.lane.b32.xlu0 %v782, 15
      %v1386 = vpop.permute.xlu0 %1385
      %1387 = vrot.lane.b32.xlu0 %v783, 15
      %v1388 = vpop.permute.xlu0 %1387
      %1389 = vrot.lane.b32.xlu0 %v784, 15
      %v1390 = vpop.permute.xlu0 %1389
      %1391 = vrot.lane.b32.xlu0 %v785, 15
      %v1392 = vpop.permute.xlu0 %1391
      %1393 = vrot.lane.b32.xlu0 %v786, 15
      %v1394 = vpop.permute.xlu0 %1393
      %1395 = vrot.lane.b32.xlu0 %v787, 15
      %v1396 = vpop.permute.xlu0 %1395
      %1397 = vrot.lane.b32.xlu0 %v788, 15
      %v1398 = vpop.permute.xlu0 %1397
      %1399 = vrot.lane.b32.xlu0 %v789, 15
      %v1400 = vpop.permute.xlu0 %1399
      %1401 = vrot.lane.b32.xlu0 %v790, 15
      %v1402 = vpop.permute.xlu0 %1401
      %1403 = vrot.lane.b32.xlu0 %v791, 15
      %v1404 = vpop.permute.xlu0 %1403
      %1405 = vrot.lane.b32.xlu0 %v792, 15
      %v1406 = vpop.permute.xlu0 %1405
      %1407 = vrot.lane.b32.xlu0 %v793, 15
      %v1408 = vpop.permute.xlu0 %1407
      %1409 = vrot.lane.b32.xlu0 %v794, 15
      %v1410 = vpop.permute.xlu0 %1409
      %1411 = vrot.lane.b32.xlu0 %v795, 15
      %v1412 = vpop.permute.xlu0 %1411
      %1413 = vrot.lane.b32.xlu0 %v796, 15
      %v1414 = vpop.permute.xlu0 %1413
      %1415 = vrot.lane.b32.xlu0 %v797, 15
      %v1416 = vpop.permute.xlu0 %1415
      %1417 = vrot.lane.b32.xlu0 %v798, 15
      %v1418 = vpop.permute.xlu0 %1417
      %1419 = vrot.lane.b32.xlu0 %v799, 15
      %v1420 = vpop.permute.xlu0 %1419
      %1421 = vrot.lane.b32.xlu0 %v800, 15
      %v1422 = vpop.permute.xlu0 %1421
      %1423 = vrot.lane.b32.xlu0 %v801, 15
      %v1424 = vpop.permute.xlu0 %1423
      %1425 = vrot.lane.b32.xlu0 %v802, 15
      %v1426 = vpop.permute.xlu0 %1425
      %1427 = vrot.lane.b32.xlu0 %v803, 15
      %v1428 = vpop.permute.xlu0 %1427
      %1429 = vrot.lane.b32.xlu0 %v804, 15
      %v1430 = vpop.permute.xlu0 %1429
      %1431 = vrot.lane.b32.xlu0 %v805, 15
      %v1432 = vpop.permute.xlu0 %1431
      %1433 = vrot.lane.b32.xlu0 %v806, 15
      %v1434 = vpop.permute.xlu0 %1433
      %1435 = vrot.lane.b32.xlu0 %v807, 15
      %v1436 = vpop.permute.xlu0 %1435
      %1437 = vrot.lane.b32.xlu0 %v808, 15
      %v1438 = vpop.permute.xlu0 %1437
      %1439 = vrot.lane.b32.xlu0 %v809, 15
      %v1440 = vpop.permute.xlu0 %1439
      %1441 = vrot.lane.b32.xlu0 %v810, 15
      %v1442 = vpop.permute.xlu0 %1441
      %1443 = vrot.lane.b32.xlu0 %v811, 15
      %v1444 = vpop.permute.xlu0 %1443
      %1445 = vrot.lane.b32.xlu0 %v812, 15
      %v1446 = vpop.permute.xlu0 %1445
      %1447 = vrot.lane.b32.xlu0 %v813, 15
      %v1448 = vpop.permute.xlu0 %1447
      %1449 = vrot.lane.b32.xlu0 %v814, 15
      %v1450 = vpop.permute.xlu0 %1449
      %1451 = vrot.lane.b32.xlu0 %v815, 15
      %v1452 = vpop.permute.xlu0 %1451
      %1453 = vrot.lane.b32.xlu0 %v816, 15
      %v1454 = vpop.permute.xlu0 %1453
      %1455 = vrot.lane.b32.xlu0 %v817, 15
      %v1456 = vpop.permute.xlu0 %1455
      %1457 = vrot.lane.b32.xlu0 %v818, 15
      %v1458 = vpop.permute.xlu0 %1457
      %1459 = vrot.lane.b32.xlu0 %v819, 15
      %v1460 = vpop.permute.xlu0 %1459
      %1461 = vrot.lane.b32.xlu0 %v820, 15
      %v1462 = vpop.permute.xlu0 %1461
      %1463 = vrot.lane.b32.xlu0 %v821, 15
      %v1464 = vpop.permute.xlu0 %1463
      %1465 = vrot.lane.b32.xlu0 %v822, 15
      %v1466 = vpop.permute.xlu0 %1465
      %1467 = vrot.lane.b32.xlu0 %v823, 15
      %v1468 = vpop.permute.xlu0 %1467
      %1469 = vrot.lane.b32.xlu0 %v824, 15
      %v1470 = vpop.permute.xlu0 %1469
      %1471 = vrot.lane.b32.xlu0 %v825, 15
      %v1472 = vpop.permute.xlu0 %1471
      %1473 = vrot.lane.b32.xlu0 %v826, 15
      %v1474 = vpop.permute.xlu0 %1473
      %1475 = vrot.lane.b32.xlu0 %v827, 15
      %v1476 = vpop.permute.xlu0 %1475
      %1477 = vrot.lane.b32.xlu0 %v828, 15
      %v1478 = vpop.permute.xlu0 %1477
      %1479 = vrot.lane.b32.xlu0 %v829, 15
      %v1480 = vpop.permute.xlu0 %1479
      %vm1481 = vcmask 121856
      %v1482 = vsel %vm1481, %v1386, %v1388
      %v1483 = vsel %vm1481, %v1388, %v1390
      %v1484 = vsel %vm1481, %v1392, %v1394
      %v1485 = vsel %vm1481, %v1394, %v1396
      %v1486 = vsel %vm1481, %v1398, %v1400
      %v1487 = vsel %vm1481, %v1400, %v1402
      %v1488 = vsel %vm1481, %v1404, %v1406
      %v1489 = vsel %vm1481, %v1406, %v1408
      %v1490 = vsel %vm1481, %v1410, %v1412
      %v1491 = vsel %vm1481, %v1412, %v1414
      %v1492 = vsel %vm1481, %v1416, %v1418
      %v1493 = vsel %vm1481, %v1418, %v1420
      %v1494 = vsel %vm1481, %v1422, %v1424
      %v1495 = vsel %vm1481, %v1424, %v1426
      %v1496 = vsel %vm1481, %v1428, %v1430
      %v1497 = vsel %vm1481, %v1430, %v1432
      %v1498 = vsel %vm1481, %v1434, %v1436
      %v1499 = vsel %vm1481, %v1436, %v1438
      %v1500 = vsel %vm1481, %v1440, %v1442
      %v1501 = vsel %vm1481, %v1442, %v1444
      %v1502 = vsel %vm1481, %v1446, %v1448
      %v1503 = vsel %vm1481, %v1448, %v1450
      %v1504 = vsel %vm1481, %v1452, %v1454
      %v1505 = vsel %vm1481, %v1454, %v1456
      %v1506 = vsel %vm1481, %v1458, %v1460
      %v1507 = vsel %vm1481, %v1460, %v1462
      %v1508 = vsel %vm1481, %v1464, %v1466
      %v1509 = vsel %vm1481, %v1466, %v1468
      %v1510 = vsel %vm1481, %v1470, %v1472
      %v1511 = vsel %vm1481, %v1472, %v1474
      %v1512 = vsel %vm1481, %v1476, %v1478
      %v1513 = vsel %vm1481, %v1478, %v1480
      %1546 = vmatprep.subr.mxu0 %v1483
      %1547 = vmatpush1.msra.mxu0 %v1482
      %1548 = vmatprep.subr.mxu0 %v1485
      %1549 = vmatpush1.msra.mxu0 %v1484
      %1550 = vmatprep.subr.mxu0 %v1487
      %1551 = vmatpush1.msra.mxu0 %v1486
      %1552 = vmatprep.subr.mxu0 %v1489
      %1553 = vmatpush1.msra.mxu0 %v1488
      %1554 = vmatprep.subr.mxu0 %v1491
      %1555 = vmatpush1.msra.mxu0 %v1490
      %1556 = vmatprep.subr.mxu0 %v1493
      %1557 = vmatpush1.msra.mxu0 %v1492
      %1558 = vmatprep.subr.mxu0 %v1495
      %1559 = vmatpush1.msra.mxu0 %v1494
      %1560 = vmatprep.subr.mxu0 %v1497
      %1561 = vmatpush1.msra.mxu0 %v1496
      %1562 = vmatprep.subr.mxu0 %v1499
      %1563 = vmatpush1.msra.mxu0 %v1498
      %1564 = vmatprep.subr.mxu0 %v1501
      %1565 = vmatpush1.msra.mxu0 %v1500
      %1566 = vmatprep.subr.mxu0 %v1503
      %1567 = vmatpush1.msra.mxu0 %v1502
      %1568 = vmatprep.subr.mxu0 %v1505
      %1569 = vmatpush1.msra.mxu0 %v1504
      %1570 = vmatprep.subr.mxu0 %v1507
      %1571 = vmatpush1.msra.mxu0 %v1506
      %1572 = vmatprep.subr.mxu0 %v1509
      %1573 = vmatpush1.msra.mxu0 %v1508
      %1574 = vmatprep.subr.mxu0 %v1511
      %1575 = vmatpush1.msra.mxu0 %v1510
      %1576 = vmatprep.subr.mxu0 %v1513
      %1577 = vmatpush1.msra.mxu0 %v1512
      %1578 = vmatprep.subr.mxu0 0.0
      %1579 = vmatpush1.msra.mxu0 0.0
      %1580 = vmatprep.subr.mxu0 0.0
      %1581 = vmatpush1.msra.mxu0 0.0
      %1582 = vmatprep.subr.mxu0 0.0
      %1583 = vmatpush1.msra.mxu0 0.0
      %1584 = vmatprep.subr.mxu0 0.0
      %1585 = vmatpush1.msra.mxu0 0.0
      %1586 = vmatprep.subr.mxu0 0.0
      %1587 = vmatpush1.msra.mxu0 0.0
      %1588 = vmatprep.subr.mxu0 0.0
      %1589 = vmatpush1.msra.mxu0 0.0
      %1590 = vmatprep.subr.mxu0 0.0
      %1591 = vmatpush1.msra.mxu0 0.0
      %1592 = vmatprep.subr.mxu0 0.0
      %1593 = vmatpush1.msra.mxu0 0.0
      %1594 = vmatprep.subr.mxu0 0.0
      %1595 = vmatpush1.msra.mxu0 0.0
      %1596 = vmatprep.subr.mxu0 0.0
      %1597 = vmatpush1.msra.mxu0 0.0
      %1598 = vmatprep.subr.mxu0 0.0
      %1599 = vmatpush1.msra.mxu0 0.0
      %1600 = vmatprep.subr.mxu0 0.0
      %1601 = vmatpush1.msra.mxu0 0.0
      %1602 = vmatprep.subr.mxu0 0.0
      %1603 = vmatpush1.msra.mxu0 0.0
      %1604 = vmatprep.subr.mxu0 0.0
      %1605 = vmatpush1.msra.mxu0 0.0
      %1606 = vmatprep.subr.mxu0 0.0
      %1607 = vmatpush1.msra.mxu0 0.0
      %1608 = vmatprep.subr.mxu0 0.0
      %1609 = vmatpush1.msra.mxu0 0.0
      %1610 = vmatprep.mubr.f32.mxu0 0.0
      %1611 = vmatmul.mubr.f32.gmra.mrb[0].mxu0 %v1383
      %v1612 = vpop.f32.mrb[0].mxu0
      %v1613 = vadd.f32 0.0, %v1612
      %v1614 = vpop.f32.mrb[0].mxu0
      %v1615 = vadd.f32 0.0, %v1614
      %1616 = vmatprep.mubr.f32.mxu0 0.0
      %1617 = vmatmul.mubr.f32.gmra.mrb[0].mxu0 %v1384
      %v1618 = vpop.f32.mrb[0].mxu0
      %v1619 = vadd.f32 0.0, %v1618
      %v1620 = vpop.f32.mrb[0].mxu0
      %v1621 = vadd.f32 0.0, %v1620
      %1622 = vdwg.mxu0
      %v1624 = vlaneseq
      %v1625 = vshrl.u32 %v1624, 7
      %v1626 = vsub.s32 0, %v1625
      %v1627 = vrot.slane %v685, %v1626
      %v1628 = vlaneseq
      %v1629 = vshrl.u32 %v1628, 7
      %v1630 = vsub.s32 1, %v1629
      %v1631 = vrot.slane %v685, %v1630
      %v1634 = vmul.f32 %v1613, %v1627
      %v1635 = vmul.f32 %v1615, %v1631
      %v1636 = vmul.f32 %v1619, %v1627
      %v1637 = vmul.f32 %v1621, %v1631
      %v1638 = vadd.f32 %v1378, %v1634
      %v1639 = vadd.f32 %v1379, %v1635
      %v1640 = vadd.f32 %v1380, %v1636
      %v1641 = vadd.f32 %v1381, %v1637
      %s1642 = scalar_lea.vmem %s3, 48
      %v1643 = vld [vmem:[%s1642] sm:$0xff]
      %v1644 = vld [vmem:[%s1642 + $0x8] sm:$0xff]
      %1645 = vrot.lane.b32.xlu0 %v782, 1
      %v1646 = vpop.permute.xlu0 %1645
      %1647 = vrot.lane.b32.xlu0 %v783, 1
      %v1648 = vpop.permute.xlu0 %1647
      %1649 = vrot.lane.b32.xlu0 %v784, 1
      %v1650 = vpop.permute.xlu0 %1649
      %1651 = vrot.lane.b32.xlu0 %v785, 1
      %v1652 = vpop.permute.xlu0 %1651
      %1653 = vrot.lane.b32.xlu0 %v786, 1
      %v1654 = vpop.permute.xlu0 %1653
      %1655 = vrot.lane.b32.xlu0 %v787, 1
      %v1656 = vpop.permute.xlu0 %1655
      %1657 = vrot.lane.b32.xlu0 %v788, 1
      %v1658 = vpop.permute.xlu0 %1657
      %1659 = vrot.lane.b32.xlu0 %v789, 1
      %v1660 = vpop.permute.xlu0 %1659
      %1661 = vrot.lane.b32.xlu0 %v790, 1
      %v1662 = vpop.permute.xlu0 %1661
      %1663 = vrot.lane.b32.xlu0 %v791, 1
      %v1664 = vpop.permute.xlu0 %1663
      %1665 = vrot.lane.b32.xlu0 %v792, 1
      %v1666 = vpop.permute.xlu0 %1665
      %1667 = vrot.lane.b32.xlu0 %v793, 1
      %v1668 = vpop.permute.xlu0 %1667
      %1669 = vrot.lane.b32.xlu0 %v794, 1
      %v1670 = vpop.permute.xlu0 %1669
      %1671 = vrot.lane.b32.xlu0 %v795, 1
      %v1672 = vpop.permute.xlu0 %1671
      %1673 = vrot.lane.b32.xlu0 %v796, 1
      %v1674 = vpop.permute.xlu0 %1673
      %1675 = vrot.lane.b32.xlu0 %v797, 1
      %v1676 = vpop.permute.xlu0 %1675
      %1677 = vrot.lane.b32.xlu0 %v798, 1
      %v1678 = vpop.permute.xlu0 %1677
      %1679 = vrot.lane.b32.xlu0 %v799, 1
      %v1680 = vpop.permute.xlu0 %1679
      %1681 = vrot.lane.b32.xlu0 %v800, 1
      %v1682 = vpop.permute.xlu0 %1681
      %1683 = vrot.lane.b32.xlu0 %v801, 1
      %v1684 = vpop.permute.xlu0 %1683
      %1685 = vrot.lane.b32.xlu0 %v802, 1
      %v1686 = vpop.permute.xlu0 %1685
      %1687 = vrot.lane.b32.xlu0 %v803, 1
      %v1688 = vpop.permute.xlu0 %1687
      %1689 = vrot.lane.b32.xlu0 %v804, 1
      %v1690 = vpop.permute.xlu0 %1689
      %1691 = vrot.lane.b32.xlu0 %v805, 1
      %v1692 = vpop.permute.xlu0 %1691
      %1693 = vrot.lane.b32.xlu0 %v806, 1
      %v1694 = vpop.permute.xlu0 %1693
      %1695 = vrot.lane.b32.xlu0 %v807, 1
      %v1696 = vpop.permute.xlu0 %1695
      %1697 = vrot.lane.b32.xlu0 %v808, 1
      %v1698 = vpop.permute.xlu0 %1697
      %1699 = vrot.lane.b32.xlu0 %v809, 1
      %v1700 = vpop.permute.xlu0 %1699
      %1701 = vrot.lane.b32.xlu0 %v810, 1
      %v1702 = vpop.permute.xlu0 %1701
      %1703 = vrot.lane.b32.xlu0 %v811, 1
      %v1704 = vpop.permute.xlu0 %1703
      %1705 = vrot.lane.b32.xlu0 %v812, 1
      %v1706 = vpop.permute.xlu0 %1705
      %1707 = vrot.lane.b32.xlu0 %v813, 1
      %v1708 = vpop.permute.xlu0 %1707
      %1709 = vrot.lane.b32.xlu0 %v814, 1
      %v1710 = vpop.permute.xlu0 %1709
      %1711 = vrot.lane.b32.xlu0 %v815, 1
      %v1712 = vpop.permute.xlu0 %1711
      %1713 = vrot.lane.b32.xlu0 %v816, 1
      %v1714 = vpop.permute.xlu0 %1713
      %1715 = vrot.lane.b32.xlu0 %v817, 1
      %v1716 = vpop.permute.xlu0 %1715
      %1717 = vrot.lane.b32.xlu0 %v818, 1
      %v1718 = vpop.permute.xlu0 %1717
      %1719 = vrot.lane.b32.xlu0 %v819, 1
      %v1720 = vpop.permute.xlu0 %1719
      %1721 = vrot.lane.b32.xlu0 %v820, 1
      %v1722 = vpop.permute.xlu0 %1721
      %1723 = vrot.lane.b32.xlu0 %v821, 1
      %v1724 = vpop.permute.xlu0 %1723
      %1725 = vrot.lane.b32.xlu0 %v822, 1
      %v1726 = vpop.permute.xlu0 %1725
      %1727 = vrot.lane.b32.xlu0 %v823, 1
      %v1728 = vpop.permute.xlu0 %1727
      %1729 = vrot.lane.b32.xlu0 %v824, 1
      %v1730 = vpop.permute.xlu0 %1729
      %1731 = vrot.lane.b32.xlu0 %v825, 1
      %v1732 = vpop.permute.xlu0 %1731
      %1733 = vrot.lane.b32.xlu0 %v826, 1
      %v1734 = vpop.permute.xlu0 %1733
      %1735 = vrot.lane.b32.xlu0 %v827, 1
      %v1736 = vpop.permute.xlu0 %1735
      %1737 = vrot.lane.b32.xlu0 %v828, 1
      %v1738 = vpop.permute.xlu0 %1737
      %1739 = vrot.lane.b32.xlu0 %v829, 1
      %v1740 = vpop.permute.xlu0 %1739
      %vm1741 = vcmask 7168
      %v1742 = vsel %vm1741, %v1646, %v1648
      %v1743 = vsel %vm1741, %v1648, %v1650
      %v1744 = vsel %vm1741, %v1652, %v1654
      %v1745 = vsel %vm1741, %v1654, %v1656
      %v1746 = vsel %vm1741, %v1658, %v1660
      %v1747 = vsel %vm1741, %v1660, %v1662
      %v1748 = vsel %vm1741, %v1664, %v1666
      %v1749 = vsel %vm1741, %v1666, %v1668
      %v1750 = vsel %vm1741, %v1670, %v1672
      %v1751 = vsel %vm1741, %v1672, %v1674
      %v1752 = vsel %vm1741, %v1676, %v1678
      %v1753 = vsel %vm1741, %v1678, %v1680
      %v1754 = vsel %vm1741, %v1682, %v1684
      %v1755 = vsel %vm1741, %v1684, %v1686
      %v1756 = vsel %vm1741, %v1688, %v1690
      %v1757 = vsel %vm1741, %v1690, %v1692
      %v1758 = vsel %vm1741, %v1694, %v1696
      %v1759 = vsel %vm1741, %v1696, %v1698
      %v1760 = vsel %vm1741, %v1700, %v1702
      %v1761 = vsel %vm1741, %v1702, %v1704
      %v1762 = vsel %vm1741, %v1706, %v1708
      %v1763 = vsel %vm1741, %v1708, %v1710
      %v1764 = vsel %vm1741, %v1712, %v1714
      %v1765 = vsel %vm1741, %v1714, %v1716
      %v1766 = vsel %vm1741, %v1718, %v1720
      %v1767 = vsel %vm1741, %v1720, %v1722
      %v1768 = vsel %vm1741, %v1724, %v1726
      %v1769 = vsel %vm1741, %v1726, %v1728
      %v1770 = vsel %vm1741, %v1730, %v1732
      %v1771 = vsel %vm1741, %v1732, %v1734
      %v1772 = vsel %vm1741, %v1736, %v1738
      %v1773 = vsel %vm1741, %v1738, %v1740
      %1806 = vmatprep.subr.mxu0 %v1743
      %1807 = vmatpush1.msra.mxu0 %v1742
      %1808 = vmatprep.subr.mxu0 %v1745
      %1809 = vmatpush1.msra.mxu0 %v1744
      %1810 = vmatprep.subr.mxu0 %v1747
      %1811 = vmatpush1.msra.mxu0 %v1746
      %1812 = vmatprep.subr.mxu0 %v1749
      %1813 = vmatpush1.msra.mxu0 %v1748
      %1814 = vmatprep.subr.mxu0 %v1751
      %1815 = vmatpush1.msra.mxu0 %v1750
      %1816 = vmatprep.subr.mxu0 %v1753
      %1817 = vmatpush1.msra.mxu0 %v1752
      %1818 = vmatprep.subr.mxu0 %v1755
      %1819 = vmatpush1.msra.mxu0 %v1754
      %1820 = vmatprep.subr.mxu0 %v1757
      %1821 = vmatpush1.msra.mxu0 %v1756
      %1822 = vmatprep.subr.mxu0 %v1759
      %1823 = vmatpush1.msra.mxu0 %v1758
      %1824 = vmatprep.subr.mxu0 %v1761
      %1825 = vmatpush1.msra.mxu0 %v1760
      %1826 = vmatprep.subr.mxu0 %v1763
      %1827 = vmatpush1.msra.mxu0 %v1762
      %1828 = vmatprep.subr.mxu0 %v1765
      %1829 = vmatpush1.msra.mxu0 %v1764
      %1830 = vmatprep.subr.mxu0 %v1767
      %1831 = vmatpush1.msra.mxu0 %v1766
      %1832 = vmatprep.subr.mxu0 %v1769
      %1833 = vmatpush1.msra.mxu0 %v1768
      %1834 = vmatprep.subr.mxu0 %v1771
      %1835 = vmatpush1.msra.mxu0 %v1770
      %1836 = vmatprep.subr.mxu0 %v1773
      %1837 = vmatpush1.msra.mxu0 %v1772
      %1838 = vmatprep.subr.mxu0 0.0
      %1839 = vmatpush1.msra.mxu0 0.0
      %1840 = vmatprep.subr.mxu0 0.0
      %1841 = vmatpush1.msra.mxu0 0.0
      %1842 = vmatprep.subr.mxu0 0.0
      %1843 = vmatpush1.msra.mxu0 0.0
      %1844 = vmatprep.subr.mxu0 0.0
      %1845 = vmatpush1.msra.mxu0 0.0
      %1846 = vmatprep.subr.mxu0 0.0
      %1847 = vmatpush1.msra.mxu0 0.0
      %1848 = vmatprep.subr.mxu0 0.0
      %1849 = vmatpush1.msra.mxu0 0.0
      %1850 = vmatprep.subr.mxu0 0.0
      %1851 = vmatpush1.msra.mxu0 0.0
      %1852 = vmatprep.subr.mxu0 0.0
      %1853 = vmatpush1.msra.mxu0 0.0
      %1854 = vmatprep.subr.mxu0 0.0
      %1855 = vmatpush1.msra.mxu0 0.0
      %1856 = vmatprep.subr.mxu0 0.0
      %1857 = vmatpush1.msra.mxu0 0.0
      %1858 = vmatprep.subr.mxu0 0.0
      %1859 = vmatpush1.msra.mxu0 0.0
      %1860 = vmatprep.subr.mxu0 0.0
      %1861 = vmatpush1.msra.mxu0 0.0
      %1862 = vmatprep.subr.mxu0 0.0
      %1863 = vmatpush1.msra.mxu0 0.0
      %1864 = vmatprep.subr.mxu0 0.0
      %1865 = vmatpush1.msra.mxu0 0.0
      %1866 = vmatprep.subr.mxu0 0.0
      %1867 = vmatpush1.msra.mxu0 0.0
      %1868 = vmatprep.subr.mxu0 0.0
      %1869 = vmatpush1.msra.mxu0 0.0
      %1870 = vmatprep.mubr.f32.mxu0 0.0
      %1871 = vmatmul.mubr.f32.gmra.mrb[0].mxu0 %v1643
      %v1872 = vpop.f32.mrb[0].mxu0
      %v1873 = vadd.f32 0.0, %v1872
      %v1874 = vpop.f32.mrb[0].mxu0
      %v1875 = vadd.f32 0.0, %v1874
      %1876 = vmatprep.mubr.f32.mxu0 0.0
      %1877 = vmatmul.mubr.f32.gmra.mrb[0].mxu0 %v1644
      %v1878 = vpop.f32.mrb[0].mxu0
      %v1879 = vadd.f32 0.0, %v1878
      %v1880 = vpop.f32.mrb[0].mxu0
      %v1881 = vadd.f32 0.0, %v1880
      %1882 = vdwg.mxu0
      %v1883 = vmul.f32 %v1873, %v1122
      %v1884 = vmul.f32 %v1875, %v1126
      %v1885 = vmul.f32 %v1879, %v1122
      %v1886 = vmul.f32 %v1881, %v1126
      %v1887 = vadd.f32 %v1638, %v1883
      %v1888 = vadd.f32 %v1639, %v1884
      %v1889 = vadd.f32 %v1640, %v1885
      %v1890 = vadd.f32 %v1641, %v1886
      %s1891 = scalar_lea.vmem %s3, 64
      %v1892 = vld [vmem:[%s1891] sm:$0xff]
      %v1893 = vld [vmem:[%s1891 + $0x8] sm:$0xff]
      %1894 = vmatprep.subr.mxu0 %v784
      %1895 = vmatpush1.msra.mxu0 %v783
      %1896 = vmatprep.subr.mxu0 %v787
      %1897 = vmatpush1.msra.mxu0 %v786
      %1898 = vmatprep.subr.mxu0 %v790
      %1899 = vmatpush1.msra.mxu0 %v789
      %1900 = vmatprep.subr.mxu0 %v793
      %1901 = vmatpush1.msra.mxu0 %v792
      %1902 = vmatprep.subr.mxu0 %v796
      %1903 = vmatpush1.msra.mxu0 %v795
      %1904 = vmatprep.subr.mxu0 %v799
      %1905 = vmatpush1.msra.mxu0 %v798
      %1906 = vmatprep.subr.mxu0 %v802
      %1907 = vmatpush1.msra.mxu0 %v801
      %1908 = vmatprep.subr.mxu0 %v805
      %1909 = vmatpush1.msra.mxu0 %v804
      %1910 = vmatprep.subr.mxu0 %v808
      %1911 = vmatpush1.msra.mxu0 %v807
      %1912 = vmatprep.subr.mxu0 %v811
      %1913 = vmatpush1.msra.mxu0 %v810
      %1914 = vmatprep.subr.mxu0 %v814
      %1915 = vmatpush1.msra.mxu0 %v813
      %1916 = vmatprep.subr.mxu0 %v817
      %1917 = vmatpush1.msra.mxu0 %v816
      %1918 = vmatprep.subr.mxu0 %v820
      %1919 = vmatpush1.msra.mxu0 %v819
      %1920 = vmatprep.subr.mxu0 %v823
      %1921 = vmatpush1.msra.mxu0 %v822
      %1922 = vmatprep.subr.mxu0 %v826
      %1923 = vmatpush1.msra.mxu0 %v825
      %1924 = vmatprep.subr.mxu0 %v829
      %1925 = vmatpush1.msra.mxu0 %v828
      %1926 = vmatprep.subr.mxu0 0.0
      %1927 = vmatpush1.msra.mxu0 0.0
      %1928 = vmatprep.subr.mxu0 0.0
      %1929 = vmatpush1.msra.mxu0 0.0
      %1930 = vmatprep.subr.mxu0 0.0
      %1931 = vmatpush1.msra.mxu0 0.0
      %1932 = vmatprep.subr.mxu0 0.0
      %1933 = vmatpush1.msra.mxu0 0.0
      %1934 = vmatprep.subr.mxu0 0.0
      %1935 = vmatpush1.msra.mxu0 0.0
      %1936 = vmatprep.subr.mxu0 0.0
      %1937 = vmatpush1.msra.mxu0 0.0
      %1938 = vmatprep.subr.mxu0 0.0
      %1939 = vmatpush1.msra.mxu0 0.0
      %1940 = vmatprep.subr.mxu0 0.0
      %1941 = vmatpush1.msra.mxu0 0.0
      %1942 = vmatprep.subr.mxu0 0.0
      %1943 = vmatpush1.msra.mxu0 0.0
      %1944 = vmatprep.subr.mxu0 0.0
      %1945 = vmatpush1.msra.mxu0 0.0
      %1946 = vmatprep.subr.mxu0 0.0
      %1947 = vmatpush1.msra.mxu0 0.0
      %1948 = vmatprep.subr.mxu0 0.0
      %1949 = vmatpush1.msra.mxu0 0.0
      %1950 = vmatprep.subr.mxu0 0.0
      %1951 = vmatpush1.msra.mxu0 0.0
      %1952 = vmatprep.subr.mxu0 0.0
      %1953 = vmatpush1.msra.mxu0 0.0
      %1954 = vmatprep.subr.mxu0 0.0
      %1955 = vmatpush1.msra.mxu0 0.0
      %1956 = vmatprep.subr.mxu0 0.0
      %1957 = vmatpush1.msra.mxu0 0.0
      %1958 = vmatprep.mubr.f32.mxu0 0.0
      %1959 = vmatmul.mubr.f32.gmra.mrb[0].mxu0 %v1892
      %v1960 = vpop.f32.mrb[0].mxu0
      %v1961 = vadd.f32 0.0, %v1960
      %v1962 = vpop.f32.mrb[0].mxu0
      %v1963 = vadd.f32 0.0, %v1962
      %1964 = vmatprep.mubr.f32.mxu0 0.0
      %1965 = vmatmul.mubr.f32.gmra.mrb[0].mxu0 %v1893
      %v1966 = vpop.f32.mrb[0].mxu0
      %v1967 = vadd.f32 0.0, %v1966
      %v1968 = vpop.f32.mrb[0].mxu0
      %v1969 = vadd.f32 0.0, %v1968
      %1970 = vdwg.mxu0
      %v1971 = vadd.f32 %v1887, %v1961
      %v1972 = vadd.f32 %v1888, %v1963
      %v1973 = vadd.f32 %v1889, %v1967
      %v1974 = vadd.f32 %v1890, %v1969
      %v1975 = vld [vmem:[#allocation2 + $0x8] sm:$0xff]
      %v1976 = vld [vmem:[#allocation2 + $0x10] sm:$0xff]
      %v1977 = vld [vmem:[#allocation2 + $0x18] sm:$0xff]
      %v1978 = vld [vmem:[#allocation2 + $0x28] sm:$0xff]
      %v1979 = vld [vmem:[#allocation2 + $0x30] sm:$0xff]
      %v1980 = vld [vmem:[#allocation2 + $0x38] sm:$0xff]
      %v1981 = vld [vmem:[#allocation2 + $0x48] sm:$0xff]
      %v1982 = vld [vmem:[#allocation2 + $0x50] sm:$0xff]
      %v1983 = vld [vmem:[#allocation2 + $0x58] sm:$0xff]
      %v1984 = vld [vmem:[#allocation2 + $0x68] sm:$0xff]
      %v1985 = vld [vmem:[#allocation2 + $0x70] sm:$0xff]
      %v1986 = vld [vmem:[#allocation2 + $0x78] sm:$0xff]
      %v1987 = vld [vmem:[#allocation2 + $0x88] sm:$0xff]
      %v1988 = vld [vmem:[#allocation2 + $0x90] sm:$0xff]
      %v1989 = vld [vmem:[#allocation2 + $0x98] sm:$0xff]
      %v1990 = vld [vmem:[#allocation2 + $0xa8] sm:$0xff]
      %v1991 = vld [vmem:[#allocation2 + $0xb0] sm:$0xff]
      %v1992 = vld [vmem:[#allocation2 + $0xb8] sm:$0xff]
      %v1993 = vld [vmem:[#allocation2 + $0xc8] sm:$0xff]
      %v1994 = vld [vmem:[#allocation2 + $0xd0] sm:$0xff]
      %v1995 = vld [vmem:[#allocation2 + $0xd8] sm:$0xff]
      %v1996 = vld [vmem:[#allocation2 + $0xe8] sm:$0xff]
      %v1997 = vld [vmem:[#allocation2 + $0xf0] sm:$0xff]
      %v1998 = vld [vmem:[#allocation2 + $0xf8] sm:$0xff]
      %v1999 = vld [vmem:[#allocation2 + $0x108] sm:$0xff]
      %v2000 = vld [vmem:[#allocation2 + $0x110] sm:$0xff]
      %v2001 = vld [vmem:[#allocation2 + $0x118] sm:$0xff]
      %v2002 = vld [vmem:[#allocation2 + $0x128] sm:$0xff]
      %v2003 = vld [vmem:[#allocation2 + $0x130] sm:$0xff]
      %v2004 = vld [vmem:[#allocation2 + $0x138] sm:$0xff]
      %v2005 = vld [vmem:[#allocation2 + $0x148] sm:$0xff]
      %v2006 = vld [vmem:[#allocation2 + $0x150] sm:$0xff]
      %v2007 = vld [vmem:[#allocation2 + $0x158] sm:$0xff]
      %v2008 = vld [vmem:[#allocation2 + $0x168] sm:$0xff]
      %v2009 = vld [vmem:[#allocation2 + $0x170] sm:$0xff]
      %v2010 = vld [vmem:[#allocation2 + $0x178] sm:$0xff]
      %v2011 = vld [vmem:[#allocation2 + $0x188] sm:$0xff]
      %v2012 = vld [vmem:[#allocation2 + $0x190] sm:$0xff]
      %v2013 = vld [vmem:[#allocation2 + $0x198] sm:$0xff]
      %v2014 = vld [vmem:[#allocation2 + $0x1a8] sm:$0xff]
      %v2015 = vld [vmem:[#allocation2 + $0x1b0] sm:$0xff]
      %v2016 = vld [vmem:[#allocation2 + $0x1b8] sm:$0xff]
      %v2017 = vld [vmem:[#allocation2 + $0x1c8] sm:$0xff]
      %v2018 = vld [vmem:[#allocation2 + $0x1d0] sm:$0xff]
      %v2019 = vld [vmem:[#allocation2 + $0x1d8] sm:$0xff]
      %v2020 = vld [vmem:[#allocation2 + $0x1e8] sm:$0xff]
      %v2021 = vld [vmem:[#allocation2 + $0x1f0] sm:$0xff]
      %v2022 = vld [vmem:[#allocation2 + $0x1f8] sm:$0xff]
      %s2023 = scalar_lea.vmem %s3, 80
      %v2024 = vld [vmem:[%s2023] sm:$0xff]
      %v2025 = vld [vmem:[%s2023 + $0x8] sm:$0xff]
      %2074 = vrot.lane.b32.xlu0 %v1975, 127
      %v2075 = vpop.permute.xlu0 %2074
      %2076 = vrot.lane.b32.xlu0 %v1976, 127
      %v2077 = vpop.permute.xlu0 %2076
      %2078 = vrot.lane.b32.xlu0 %v1977, 127
      %v2079 = vpop.permute.xlu0 %2078
      %2080 = vrot.lane.b32.xlu0 %v1978, 127
      %v2081 = vpop.permute.xlu0 %2080
      %2082 = vrot.lane.b32.xlu0 %v1979, 127
      %v2083 = vpop.permute.xlu0 %2082
      %2084 = vrot.lane.b32.xlu0 %v1980, 127
      %v2085 = vpop.permute.xlu0 %2084
      %2086 = vrot.lane.b32.xlu0 %v1981, 127
      %v2087 = vpop.permute.xlu0 %2086
      %2088 = vrot.lane.b32.xlu0 %v1982, 127
      %v2089 = vpop.permute.xlu0 %2088
      %2090 = vrot.lane.b32.xlu0 %v1983, 127
      %v2091 = vpop.permute.xlu0 %2090
      %2092 = vrot.lane.b32.xlu0 %v1984, 127
      %v2093 = vpop.permute.xlu0 %2092
      %2094 = vrot.lane.b32.xlu0 %v1985, 127
      %v2095 = vpop.permute.xlu0 %2094
      %2096 = vrot.lane.b32.xlu0 %v1986, 127
      %v2097 = vpop.permute.xlu0 %2096
      %2098 = vrot.lane.b32.xlu0 %v1987, 127
      %v2099 = vpop.permute.xlu0 %2098
      %2100 = vrot.lane.b32.xlu0 %v1988, 127
      %v2101 = vpop.permute.xlu0 %2100
      %2102 = vrot.lane.b32.xlu0 %v1989, 127
      %v2103 = vpop.permute.xlu0 %2102
      %2104 = vrot.lane.b32.xlu0 %v1990, 127
      %v2105 = vpop.permute.xlu0 %2104
      %2106 = vrot.lane.b32.xlu0 %v1991, 127
      %v2107 = vpop.permute.xlu0 %2106
      %2108 = vrot.lane.b32.xlu0 %v1992, 127
      %v2109 = vpop.permute.xlu0 %2108
      %2110 = vrot.lane.b32.xlu0 %v1993, 127
      %v2111 = vpop.permute.xlu0 %2110
      %2112 = vrot.lane.b32.xlu0 %v1994, 127
      %v2113 = vpop.permute.xlu0 %2112
      %2114 = vrot.lane.b32.xlu0 %v1995, 127
      %v2115 = vpop.permute.xlu0 %2114
      %2116 = vrot.lane.b32.xlu0 %v1996, 127
      %v2117 = vpop.permute.xlu0 %2116
      %2118 = vrot.lane.b32.xlu0 %v1997, 127
      %v2119 = vpop.permute.xlu0 %2118
      %2120 = vrot.lane.b32.xlu0 %v1998, 127
      %v2121 = vpop.permute.xlu0 %2120
      %2122 = vrot.lane.b32.xlu0 %v1999, 127
      %v2123 = vpop.permute.xlu0 %2122
      %2124 = vrot.lane.b32.xlu0 %v2000, 127
      %v2125 = vpop.permute.xlu0 %2124
      %2126 = vrot.lane.b32.xlu0 %v2001, 127
      %v2127 = vpop.permute.xlu0 %2126
      %2128 = vrot.lane.b32.xlu0 %v2002, 127
      %v2129 = vpop.permute.xlu0 %2128
      %2130 = vrot.lane.b32.xlu0 %v2003, 127
      %v2131 = vpop.permute.xlu0 %2130
      %2132 = vrot.lane.b32.xlu0 %v2004, 127
      %v2133 = vpop.permute.xlu0 %2132
      %2134 = vrot.lane.b32.xlu0 %v2005, 127
      %v2135 = vpop.permute.xlu0 %2134
      %2136 = vrot.lane.b32.xlu0 %v2006, 127
      %v2137 = vpop.permute.xlu0 %2136
      %2138 = vrot.lane.b32.xlu0 %v2007, 127
      %v2139 = vpop.permute.xlu0 %2138
      %2140 = vrot.lane.b32.xlu0 %v2008, 127
      %v2141 = vpop.permute.xlu0 %2140
      %2142 = vrot.lane.b32.xlu0 %v2009, 127
      %v2143 = vpop.permute.xlu0 %2142
      %2144 = vrot.lane.b32.xlu0 %v2010, 127
      %v2145 = vpop.permute.xlu0 %2144
      %2146 = vrot.lane.b32.xlu0 %v2011, 127
      %v2147 = vpop.permute.xlu0 %2146
      %2148 = vrot.lane.b32.xlu0 %v2012, 127
      %v2149 = vpop.permute.xlu0 %2148
      %2150 = vrot.lane.b32.xlu0 %v2013, 127
      %v2151 = vpop.permute.xlu0 %2150
      %2152 = vrot.lane.b32.xlu0 %v2014, 127
      %v2153 = vpop.permute.xlu0 %2152
      %2154 = vrot.lane.b32.xlu0 %v2015, 127
      %v2155 = vpop.permute.xlu0 %2154
      %2156 = vrot.lane.b32.xlu0 %v2016, 127
      %v2157 = vpop.permute.xlu0 %2156
      %2158 = vrot.lane.b32.xlu0 %v2017, 127
      %v2159 = vpop.permute.xlu0 %2158
      %2160 = vrot.lane.b32.xlu0 %v2018, 127
      %v2161 = vpop.permute.xlu0 %2160
      %2162 = vrot.lane.b32.xlu0 %v2019, 127
      %v2163 = vpop.permute.xlu0 %2162
      %2164 = vrot.lane.b32.xlu0 %v2020, 127
      %v2165 = vpop.permute.xlu0 %2164
      %2166 = vrot.lane.b32.xlu0 %v2021, 127
      %v2167 = vpop.permute.xlu0 %2166
      %2168 = vrot.lane.b32.xlu0 %v2022, 127
      %v2169 = vpop.permute.xlu0 %2168
      %vm2170 = vcmask 1039360
      %v2171 = vsel %vm2170, %v2075, %v2077
      %v2172 = vsel %vm2170, %v2077, %v2079
      %v2173 = vsel %vm2170, %v2081, %v2083
      %v2174 = vsel %vm2170, %v2083, %v2085
      %v2175 = vsel %vm2170, %v2087, %v2089
      %v2176 = vsel %vm2170, %v2089, %v2091
      %v2177 = vsel %vm2170, %v2093, %v2095
      %v2178 = vsel %vm2170, %v2095, %v2097
      %v2179 = vsel %vm2170, %v2099, %v2101
      %v2180 = vsel %vm2170, %v2101, %v2103
      %v2181 = vsel %vm2170, %v2105, %v2107
      %v2182 = vsel %vm2170, %v2107, %v2109
      %v2183 = vsel %vm2170, %v2111, %v2113
      %v2184 = vsel %vm2170, %v2113, %v2115
      %v2185 = vsel %vm2170, %v2117, %v2119
      %v2186 = vsel %vm2170, %v2119, %v2121
      %v2187 = vsel %vm2170, %v2123, %v2125
      %v2188 = vsel %vm2170, %v2125, %v2127
      %v2189 = vsel %vm2170, %v2129, %v2131
      %v2190 = vsel %vm2170, %v2131, %v2133
      %v2191 = vsel %vm2170, %v2135, %v2137
      %v2192 = vsel %vm2170, %v2137, %v2139
      %v2193 = vsel %vm2170, %v2141, %v2143
      %v2194 = vsel %vm2170, %v2143, %v2145
      %v2195 = vsel %vm2170, %v2147, %v2149
      %v2196 = vsel %vm2170, %v2149, %v2151
      %v2197 = vsel %vm2170, %v2153, %v2155
      %v2198 = vsel %vm2170, %v2155, %v2157
      %v2199 = vsel %vm2170, %v2159, %v2161
      %v2200 = vsel %vm2170, %v2161, %v2163
      %v2201 = vsel %vm2170, %v2165, %v2167
      %v2202 = vsel %vm2170, %v2167, %v2169
      %2235 = vmatprep.subr.mxu0 %v2172
      %2236 = vmatpush1.msra.mxu0 %v2171
      %2237 = vmatprep.subr.mxu0 %v2174
      %2238 = vmatpush1.msra.mxu0 %v2173
      %2239 = vmatprep.subr.mxu0 %v2176
      %2240 = vmatpush1.msra.mxu0 %v2175
      %2241 = vmatprep.subr.mxu0 %v2178
      %2242 = vmatpush1.msra.mxu0 %v2177
      %2243 = vmatprep.subr.mxu0 %v2180
      %2244 = vmatpush1.msra.mxu0 %v2179
      %2245 = vmatprep.subr.mxu0 %v2182
      %2246 = vmatpush1.msra.mxu0 %v2181
      %2247 = vmatprep.subr.mxu0 %v2184
      %2248 = vmatpush1.msra.mxu0 %v2183
      %2249 = vmatprep.subr.mxu0 %v2186
      %2250 = vmatpush1.msra.mxu0 %v2185
      %2251 = vmatprep.subr.mxu0 %v2188
      %2252 = vmatpush1.msra.mxu0 %v2187
      %2253 = vmatprep.subr.mxu0 %v2190
      %2254 = vmatpush1.msra.mxu0 %v2189
      %2255 = vmatprep.subr.mxu0 %v2192
      %2256 = vmatpush1.msra.mxu0 %v2191
      %2257 = vmatprep.subr.mxu0 %v2194
      %2258 = vmatpush1.msra.mxu0 %v2193
      %2259 = vmatprep.subr.mxu0 %v2196
      %2260 = vmatpush1.msra.mxu0 %v2195
      %2261 = vmatprep.subr.mxu0 %v2198
      %2262 = vmatpush1.msra.mxu0 %v2197
      %2263 = vmatprep.subr.mxu0 %v2200
      %2264 = vmatpush1.msra.mxu0 %v2199
      %2265 = vmatprep.subr.mxu0 %v2202
      %2266 = vmatpush1.msra.mxu0 %v2201
      %2267 = vmatprep.subr.mxu0 0.0
      %2268 = vmatpush1.msra.mxu0 0.0
      %2269 = vmatprep.subr.mxu0 0.0
      %2270 = vmatpush1.msra.mxu0 0.0
      %2271 = vmatprep.subr.mxu0 0.0
      %2272 = vmatpush1.msra.mxu0 0.0
      %2273 = vmatprep.subr.mxu0 0.0
      %2274 = vmatpush1.msra.mxu0 0.0
      %2275 = vmatprep.subr.mxu0 0.0
      %2276 = vmatpush1.msra.mxu0 0.0
      %2277 = vmatprep.subr.mxu0 0.0
      %2278 = vmatpush1.msra.mxu0 0.0
      %2279 = vmatprep.subr.mxu0 0.0
      %2280 = vmatpush1.msra.mxu0 0.0
      %2281 = vmatprep.subr.mxu0 0.0
      %2282 = vmatpush1.msra.mxu0 0.0
      %2283 = vmatprep.subr.mxu0 0.0
      %2284 = vmatpush1.msra.mxu0 0.0
      %2285 = vmatprep.subr.mxu0 0.0
      %2286 = vmatpush1.msra.mxu0 0.0
      %2287 = vmatprep.subr.mxu0 0.0
      %2288 = vmatpush1.msra.mxu0 0.0
      %2289 = vmatprep.subr.mxu0 0.0
      %2290 = vmatpush1.msra.mxu0 0.0
      %2291 = vmatprep.subr.mxu0 0.0
      %2292 = vmatpush1.msra.mxu0 0.0
      %2293 = vmatprep.subr.mxu0 0.0
      %2294 = vmatpush1.msra.mxu0 0.0
      %2295 = vmatprep.subr.mxu0 0.0
      %2296 = vmatpush1.msra.mxu0 0.0
      %2297 = vmatprep.subr.mxu0 0.0
      %2298 = vmatpush1.msra.mxu0 0.0
      %2299 = vmatprep.mubr.f32.mxu0 0.0
      %2300 = vmatmul.mubr.f32.gmra.mrb[0].mxu0 %v2024
      %v2301 = vpop.f32.mrb[0].mxu0
      %v2302 = vadd.f32 0.0, %v2301
      %v2303 = vpop.f32.mrb[0].mxu0
      %v2304 = vadd.f32 0.0, %v2303
      %2305 = vmatprep.mubr.f32.mxu0 0.0
      %2306 = vmatmul.mubr.f32.gmra.mrb[0].mxu0 %v2025
      %v2307 = vpop.f32.mrb[0].mxu0
      %v2308 = vadd.f32 0.0, %v2307
      %v2309 = vpop.f32.mrb[0].mxu0
      %v2310 = vadd.f32 0.0, %v2309
      %2311 = vdwg.mxu0
      %v2312 = vmul.f32 %v2302, %v1627
      %v2313 = vmul.f32 %v2304, %v1631
      %v2314 = vmul.f32 %v2308, %v1627
      %v2315 = vmul.f32 %v2310, %v1631
      %v2316 = vadd.f32 %v1971, %v2312
      %v2317 = vadd.f32 %v1972, %v2313
      %v2318 = vadd.f32 %v1973, %v2314
      %v2319 = vadd.f32 %v1974, %v2315
      %s2320 = scalar_lea.vmem %s3, 96
      %v2321 = vld [vmem:[%s2320] sm:$0xff]
      %v2322 = vld [vmem:[%s2320 + $0x8] sm:$0xff]
      %2323 = vrot.lane.b32.xlu0 %v1975, 113
      %v2324 = vpop.permute.xlu0 %2323
      %2325 = vrot.lane.b32.xlu0 %v1976, 113
      %v2326 = vpop.permute.xlu0 %2325
      %2327 = vrot.lane.b32.xlu0 %v1977, 113
      %v2328 = vpop.permute.xlu0 %2327
      %2329 = vrot.lane.b32.xlu0 %v1978, 113
      %v2330 = vpop.permute.xlu0 %2329
      %2331 = vrot.lane.b32.xlu0 %v1979, 113
      %v2332 = vpop.permute.xlu0 %2331
      %2333 = vrot.lane.b32.xlu0 %v1980, 113
      %v2334 = vpop.permute.xlu0 %2333
      %2335 = vrot.lane.b32.xlu0 %v1981, 113
      %v2336 = vpop.permute.xlu0 %2335
      %2337 = vrot.lane.b32.xlu0 %v1982, 113
      %v2338 = vpop.permute.xlu0 %2337
      %2339 = vrot.lane.b32.xlu0 %v1983, 113
      %v2340 = vpop.permute.xlu0 %2339
      %2341 = vrot.lane.b32.xlu0 %v1984, 113
      %v2342 = vpop.permute.xlu0 %2341
      %2343 = vrot.lane.b32.xlu0 %v1985, 113
      %v2344 = vpop.permute.xlu0 %2343
      %2345 = vrot.lane.b32.xlu0 %v1986, 113
      %v2346 = vpop.permute.xlu0 %2345
      %2347 = vrot.lane.b32.xlu0 %v1987, 113
      %v2348 = vpop.permute.xlu0 %2347
      %2349 = vrot.lane.b32.xlu0 %v1988, 113
      %v2350 = vpop.permute.xlu0 %2349
      %2351 = vrot.lane.b32.xlu0 %v1989, 113
      %v2352 = vpop.permute.xlu0 %2351
      %2353 = vrot.lane.b32.xlu0 %v1990, 113
      %v2354 = vpop.permute.xlu0 %2353
      %2355 = vrot.lane.b32.xlu0 %v1991, 113
      %v2356 = vpop.permute.xlu0 %2355
      %2357 = vrot.lane.b32.xlu0 %v1992, 113
      %v2358 = vpop.permute.xlu0 %2357
      %2359 = vrot.lane.b32.xlu0 %v1993, 113
      %v2360 = vpop.permute.xlu0 %2359
      %2361 = vrot.lane.b32.xlu0 %v1994, 113
      %v2362 = vpop.permute.xlu0 %2361
      %2363 = vrot.lane.b32.xlu0 %v1995, 113
      %v2364 = vpop.permute.xlu0 %2363
      %2365 = vrot.lane.b32.xlu0 %v1996, 113
      %v2366 = vpop.permute.xlu0 %2365
      %2367 = vrot.lane.b32.xlu0 %v1997, 113
      %v2368 = vpop.permute.xlu0 %2367
      %2369 = vrot.lane.b32.xlu0 %v1998, 113
      %v2370 = vpop.permute.xlu0 %2369
      %2371 = vrot.lane.b32.xlu0 %v1999, 113
      %v2372 = vpop.permute.xlu0 %2371
      %2373 = vrot.lane.b32.xlu0 %v2000, 113
      %v2374 = vpop.permute.xlu0 %2373
      %2375 = vrot.lane.b32.xlu0 %v2001, 113
      %v2376 = vpop.permute.xlu0 %2375
      %2377 = vrot.lane.b32.xlu0 %v2002, 113
      %v2378 = vpop.permute.xlu0 %2377
      %2379 = vrot.lane.b32.xlu0 %v2003, 113
      %v2380 = vpop.permute.xlu0 %2379
      %2381 = vrot.lane.b32.xlu0 %v2004, 113
      %v2382 = vpop.permute.xlu0 %2381
      %2383 = vrot.lane.b32.xlu0 %v2005, 113
      %v2384 = vpop.permute.xlu0 %2383
      %2385 = vrot.lane.b32.xlu0 %v2006, 113
      %v2386 = vpop.permute.xlu0 %2385
      %2387 = vrot.lane.b32.xlu0 %v2007, 113
      %v2388 = vpop.permute.xlu0 %2387
      %2389 = vrot.lane.b32.xlu0 %v2008, 113
      %v2390 = vpop.permute.xlu0 %2389
      %2391 = vrot.lane.b32.xlu0 %v2009, 113
      %v2392 = vpop.permute.xlu0 %2391
      %2393 = vrot.lane.b32.xlu0 %v2010, 113
      %v2394 = vpop.permute.xlu0 %2393
      %2395 = vrot.lane.b32.xlu0 %v2011, 113
      %v2396 = vpop.permute.xlu0 %2395
      %2397 = vrot.lane.b32.xlu0 %v2012, 113
      %v2398 = vpop.permute.xlu0 %2397
      %2399 = vrot.lane.b32.xlu0 %v2013, 113
      %v2400 = vpop.permute.xlu0 %2399
      %2401 = vrot.lane.b32.xlu0 %v2014, 113
      %v2402 = vpop.permute.xlu0 %2401
      %2403 = vrot.lane.b32.xlu0 %v2015, 113
      %v2404 = vpop.permute.xlu0 %2403
      %2405 = vrot.lane.b32.xlu0 %v2016, 113
      %v2406 = vpop.permute.xlu0 %2405
      %2407 = vrot.lane.b32.xlu0 %v2017, 113
      %v2408 = vpop.permute.xlu0 %2407
      %2409 = vrot.lane.b32.xlu0 %v2018, 113
      %v2410 = vpop.permute.xlu0 %2409
      %2411 = vrot.lane.b32.xlu0 %v2019, 113
      %v2412 = vpop.permute.xlu0 %2411
      %2413 = vrot.lane.b32.xlu0 %v2020, 113
      %v2414 = vpop.permute.xlu0 %2413
      %2415 = vrot.lane.b32.xlu0 %v2021, 113
      %v2416 = vpop.permute.xlu0 %2415
      %2417 = vrot.lane.b32.xlu0 %v2022, 113
      %v2418 = vpop.permute.xlu0 %2417
      %vm2419 = vcmask 924672
      %v2420 = vsel %vm2419, %v2324, %v2326
      %v2421 = vsel %vm2419, %v2326, %v2328
      %v2422 = vsel %vm2419, %v2330, %v2332
      %v2423 = vsel %vm2419, %v2332, %v2334
      %v2424 = vsel %vm2419, %v2336, %v2338
      %v2425 = vsel %vm2419, %v2338, %v2340
      %v2426 = vsel %vm2419, %v2342, %v2344
      %v2427 = vsel %vm2419, %v2344, %v2346
      %v2428 = vsel %vm2419, %v2348, %v2350
      %v2429 = vsel %vm2419, %v2350, %v2352
      %v2430 = vsel %vm2419, %v2354, %v2356
      %v2431 = vsel %vm2419, %v2356, %v2358
      %v2432 = vsel %vm2419, %v2360, %v2362
      %v2433 = vsel %vm2419, %v2362, %v2364
      %v2434 = vsel %vm2419, %v2366, %v2368
      %v2435 = vsel %vm2419, %v2368, %v2370
      %v2436 = vsel %vm2419, %v2372, %v2374
      %v2437 = vsel %vm2419, %v2374, %v2376
      %v2438 = vsel %vm2419, %v2378, %v2380
      %v2439 = vsel %vm2419, %v2380, %v2382
      %v2440 = vsel %vm2419, %v2384, %v2386
      %v2441 = vsel %vm2419, %v2386, %v2388
      %v2442 = vsel %vm2419, %v2390, %v2392
      %v2443 = vsel %vm2419, %v2392, %v2394
      %v2444 = vsel %vm2419, %v2396, %v2398
      %v2445 = vsel %vm2419, %v2398, %v2400
      %v2446 = vsel %vm2419, %v2402, %v2404
      %v2447 = vsel %vm2419, %v2404, %v2406
      %v2448 = vsel %vm2419, %v2408, %v2410
      %v2449 = vsel %vm2419, %v2410, %v2412
      %v2450 = vsel %vm2419, %v2414, %v2416
      %v2451 = vsel %vm2419, %v2416, %v2418
      %2484 = vmatprep.subr.mxu0 %v2421
      %2485 = vmatpush1.msra.mxu0 %v2420
      %2486 = vmatprep.subr.mxu0 %v2423
      %2487 = vmatpush1.msra.mxu0 %v2422
      %2488 = vmatprep.subr.mxu0 %v2425
      %2489 = vmatpush1.msra.mxu0 %v2424
      %2490 = vmatprep.subr.mxu0 %v2427
      %2491 = vmatpush1.msra.mxu0 %v2426
      %2492 = vmatprep.subr.mxu0 %v2429
      %2493 = vmatpush1.msra.mxu0 %v2428
      %2494 = vmatprep.subr.mxu0 %v2431
      %2495 = vmatpush1.msra.mxu0 %v2430
      %2496 = vmatprep.subr.mxu0 %v2433
      %2497 = vmatpush1.msra.mxu0 %v2432
      %2498 = vmatprep.subr.mxu0 %v2435
      %2499 = vmatpush1.msra.mxu0 %v2434
      %2500 = vmatprep.subr.mxu0 %v2437
      %2501 = vmatpush1.msra.mxu0 %v2436
      %2502 = vmatprep.subr.mxu0 %v2439
      %2503 = vmatpush1.msra.mxu0 %v2438
      %2504 = vmatprep.subr.mxu0 %v2441
      %2505 = vmatpush1.msra.mxu0 %v2440
      %2506 = vmatprep.subr.mxu0 %v2443
      %2507 = vmatpush1.msra.mxu0 %v2442
      %2508 = vmatprep.subr.mxu0 %v2445
      %2509 = vmatpush1.msra.mxu0 %v2444
      %2510 = vmatprep.subr.mxu0 %v2447
      %2511 = vmatpush1.msra.mxu0 %v2446
      %2512 = vmatprep.subr.mxu0 %v2449
      %2513 = vmatpush1.msra.mxu0 %v2448
      %2514 = vmatprep.subr.mxu0 %v2451
      %2515 = vmatpush1.msra.mxu0 %v2450
      %2516 = vmatprep.subr.mxu0 0.0
      %2517 = vmatpush1.msra.mxu0 0.0
      %2518 = vmatprep.subr.mxu0 0.0
      %2519 = vmatpush1.msra.mxu0 0.0
      %2520 = vmatprep.subr.mxu0 0.0
      %2521 = vmatpush1.msra.mxu0 0.0
      %2522 = vmatprep.subr.mxu0 0.0
      %2523 = vmatpush1.msra.mxu0 0.0
      %2524 = vmatprep.subr.mxu0 0.0
      %2525 = vmatpush1.msra.mxu0 0.0
      %2526 = vmatprep.subr.mxu0 0.0
      %2527 = vmatpush1.msra.mxu0 0.0
      %2528 = vmatprep.subr.mxu0 0.0
      %2529 = vmatpush1.msra.mxu0 0.0
      %2530 = vmatprep.subr.mxu0 0.0
      %2531 = vmatpush1.msra.mxu0 0.0
      %2532 = vmatprep.subr.mxu0 0.0
      %2533 = vmatpush1.msra.mxu0 0.0
      %2534 = vmatprep.subr.mxu0 0.0
      %2535 = vmatpush1.msra.mxu0 0.0
      %2536 = vmatprep.subr.mxu0 0.0
      %2537 = vmatpush1.msra.mxu0 0.0
      %2538 = vmatprep.subr.mxu0 0.0
      %2539 = vmatpush1.msra.mxu0 0.0
      %2540 = vmatprep.subr.mxu0 0.0
      %2541 = vmatpush1.msra.mxu0 0.0
      %2542 = vmatprep.subr.mxu0 0.0
      %2543 = vmatpush1.msra.mxu0 0.0
      %2544 = vmatprep.subr.mxu0 0.0
      %2545 = vmatpush1.msra.mxu0 0.0
      %2546 = vmatprep.subr.mxu0 0.0
      %2547 = vmatpush1.msra.mxu0 0.0
      %2548 = vmatprep.mubr.f32.mxu0 0.0
      %2549 = vmatmul.mubr.f32.gmra.mrb[0].mxu0 %v2321
      %v2550 = vpop.f32.mrb[0].mxu0
      %v2551 = vadd.f32 0.0, %v2550
      %v2552 = vpop.f32.mrb[0].mxu0
      %v2553 = vadd.f32 0.0, %v2552
      %2554 = vmatprep.mubr.f32.mxu0 0.0
      %2555 = vmatmul.mubr.f32.gmra.mrb[0].mxu0 %v2322
      %v2556 = vpop.f32.mrb[0].mxu0
      %v2557 = vadd.f32 0.0, %v2556
      %v2558 = vpop.f32.mrb[0].mxu0
      %v2559 = vadd.f32 0.0, %v2558
      %2560 = vdwg.mxu0
      %v2561 = vmul.f32 %v2551, %v1122
      %v2562 = vmul.f32 %v2553, %v1126
      %v2563 = vmul.f32 %v2557, %v1122
      %v2564 = vmul.f32 %v2559, %v1126
      %v2565 = vadd.f32 %v2316, %v2561
      %v2566 = vadd.f32 %v2317, %v2562
      %v2567 = vadd.f32 %v2318, %v2563
      %v2568 = vadd.f32 %v2319, %v2564
      %s2569 = scalar_lea.vmem %s3, 112
      %v2570 = vld [vmem:[%s2569] sm:$0xff]
      %v2571 = vld [vmem:[%s2569 + $0x8] sm:$0xff]
      %2572 = vrot.lane.b32.xlu0 %v1975, 112
      %v2573 = vpop.permute.xlu0 %2572
      %2574 = vrot.lane.b32.xlu0 %v1976, 112
      %v2575 = vpop.permute.xlu0 %2574
      %2576 = vrot.lane.b32.xlu0 %v1977, 112
      %v2577 = vpop.permute.xlu0 %2576
      %2578 = vrot.lane.b32.xlu0 %v1978, 112
      %v2579 = vpop.permute.xlu0 %2578
      %2580 = vrot.lane.b32.xlu0 %v1979, 112
      %v2581 = vpop.permute.xlu0 %2580
      %2582 = vrot.lane.b32.xlu0 %v1980, 112
      %v2583 = vpop.permute.xlu0 %2582
      %2584 = vrot.lane.b32.xlu0 %v1981, 112
      %v2585 = vpop.permute.xlu0 %2584
      %2586 = vrot.lane.b32.xlu0 %v1982, 112
      %v2587 = vpop.permute.xlu0 %2586
      %2588 = vrot.lane.b32.xlu0 %v1983, 112
      %v2589 = vpop.permute.xlu0 %2588
      %2590 = vrot.lane.b32.xlu0 %v1984, 112
      %v2591 = vpop.permute.xlu0 %2590
      %2592 = vrot.lane.b32.xlu0 %v1985, 112
      %v2593 = vpop.permute.xlu0 %2592
      %2594 = vrot.lane.b32.xlu0 %v1986, 112
      %v2595 = vpop.permute.xlu0 %2594
      %2596 = vrot.lane.b32.xlu0 %v1987, 112
      %v2597 = vpop.permute.xlu0 %2596
      %2598 = vrot.lane.b32.xlu0 %v1988, 112
      %v2599 = vpop.permute.xlu0 %2598
      %2600 = vrot.lane.b32.xlu0 %v1989, 112
      %v2601 = vpop.permute.xlu0 %2600
      %2602 = vrot.lane.b32.xlu0 %v1990, 112
      %v2603 = vpop.permute.xlu0 %2602
      %2604 = vrot.lane.b32.xlu0 %v1991, 112
      %v2605 = vpop.permute.xlu0 %2604
      %2606 = vrot.lane.b32.xlu0 %v1992, 112
      %v2607 = vpop.permute.xlu0 %2606
      %2608 = vrot.lane.b32.xlu0 %v1993, 112
      %v2609 = vpop.permute.xlu0 %2608
      %2610 = vrot.lane.b32.xlu0 %v1994, 112
      %v2611 = vpop.permute.xlu0 %2610
      %2612 = vrot.lane.b32.xlu0 %v1995, 112
      %v2613 = vpop.permute.xlu0 %2612
      %2614 = vrot.lane.b32.xlu0 %v1996, 112
      %v2615 = vpop.permute.xlu0 %2614
      %2616 = vrot.lane.b32.xlu0 %v1997, 112
      %v2617 = vpop.permute.xlu0 %2616
      %2618 = vrot.lane.b32.xlu0 %v1998, 112
      %v2619 = vpop.permute.xlu0 %2618
      %2620 = vrot.lane.b32.xlu0 %v1999, 112
      %v2621 = vpop.permute.xlu0 %2620
      %2622 = vrot.lane.b32.xlu0 %v2000, 112
      %v2623 = vpop.permute.xlu0 %2622
      %2624 = vrot.lane.b32.xlu0 %v2001, 112
      %v2625 = vpop.permute.xlu0 %2624
      %2626 = vrot.lane.b32.xlu0 %v2002, 112
      %v2627 = vpop.permute.xlu0 %2626
      %2628 = vrot.lane.b32.xlu0 %v2003, 112
      %v2629 = vpop.permute.xlu0 %2628
      %2630 = vrot.lane.b32.xlu0 %v2004, 112
      %v2631 = vpop.permute.xlu0 %2630
      %2632 = vrot.lane.b32.xlu0 %v2005, 112
      %v2633 = vpop.permute.xlu0 %2632
      %2634 = vrot.lane.b32.xlu0 %v2006, 112
      %v2635 = vpop.permute.xlu0 %2634
      %2636 = vrot.lane.b32.xlu0 %v2007, 112
      %v2637 = vpop.permute.xlu0 %2636
      %2638 = vrot.lane.b32.xlu0 %v2008, 112
      %v2639 = vpop.permute.xlu0 %2638
      %2640 = vrot.lane.b32.xlu0 %v2009, 112
      %v2641 = vpop.permute.xlu0 %2640
      %2642 = vrot.lane.b32.xlu0 %v2010, 112
      %v2643 = vpop.permute.xlu0 %2642
      %2644 = vrot.lane.b32.xlu0 %v2011, 112
      %v2645 = vpop.permute.xlu0 %2644
      %2646 = vrot.lane.b32.xlu0 %v2012, 112
      %v2647 = vpop.permute.xlu0 %2646
      %2648 = vrot.lane.b32.xlu0 %v2013, 112
      %v2649 = vpop.permute.xlu0 %2648
      %2650 = vrot.lane.b32.xlu0 %v2014, 112
      %v2651 = vpop.permute.xlu0 %2650
      %2652 = vrot.lane.b32.xlu0 %v2015, 112
      %v2653 = vpop.permute.xlu0 %2652
      %2654 = vrot.lane.b32.xlu0 %v2016, 112
      %v2655 = vpop.permute.xlu0 %2654
      %2656 = vrot.lane.b32.xlu0 %v2017, 112
      %v2657 = vpop.permute.xlu0 %2656
      %2658 = vrot.lane.b32.xlu0 %v2018, 112
      %v2659 = vpop.permute.xlu0 %2658
      %2660 = vrot.lane.b32.xlu0 %v2019, 112
      %v2661 = vpop.permute.xlu0 %2660
      %2662 = vrot.lane.b32.xlu0 %v2020, 112
      %v2663 = vpop.permute.xlu0 %2662
      %2664 = vrot.lane.b32.xlu0 %v2021, 112
      %v2665 = vpop.permute.xlu0 %2664
      %2666 = vrot.lane.b32.xlu0 %v2022, 112
      %v2667 = vpop.permute.xlu0 %2666
      %vm2668 = vcmask 916480
      %v2669 = vsel %vm2668, %v2573, %v2575
      %v2670 = vsel %vm2668, %v2575, %v2577
      %v2671 = vsel %vm2668, %v2579, %v2581
      %v2672 = vsel %vm2668, %v2581, %v2583
      %v2673 = vsel %vm2668, %v2585, %v2587
      %v2674 = vsel %vm2668, %v2587, %v2589
      %v2675 = vsel %vm2668, %v2591, %v2593
      %v2676 = vsel %vm2668, %v2593, %v2595
      %v2677 = vsel %vm2668, %v2597, %v2599
      %v2678 = vsel %vm2668, %v2599, %v2601
      %v2679 = vsel %vm2668, %v2603, %v2605
      %v2680 = vsel %vm2668, %v2605, %v2607
      %v2681 = vsel %vm2668, %v2609, %v2611
      %v2682 = vsel %vm2668, %v2611, %v2613
      %v2683 = vsel %vm2668, %v2615, %v2617
      %v2684 = vsel %vm2668, %v2617, %v2619
      %v2685 = vsel %vm2668, %v2621, %v2623
      %v2686 = vsel %vm2668, %v2623, %v2625
      %v2687 = vsel %vm2668, %v2627, %v2629
      %v2688 = vsel %vm2668, %v2629, %v2631
      %v2689 = vsel %vm2668, %v2633, %v2635
      %v2690 = vsel %vm2668, %v2635, %v2637
      %v2691 = vsel %vm2668, %v2639, %v2641
      %v2692 = vsel %vm2668, %v2641, %v2643
      %v2693 = vsel %vm2668, %v2645, %v2647
      %v2694 = vsel %vm2668, %v2647, %v2649
      %v2695 = vsel %vm2668, %v2651, %v2653
      %v2696 = vsel %vm2668, %v2653, %v2655
      %v2697 = vsel %vm2668, %v2657, %v2659
      %v2698 = vsel %vm2668, %v2659, %v2661
      %v2699 = vsel %vm2668, %v2663, %v2665
      %v2700 = vsel %vm2668, %v2665, %v2667
      %2733 = vmatprep.subr.mxu0 %v2670
      %2734 = vmatpush1.msra.mxu0 %v2669
      %2735 = vmatprep.subr.mxu0 %v2672
      %2736 = vmatpush1.msra.mxu0 %v2671
      %2737 = vmatprep.subr.mxu0 %v2674
      %2738 = vmatpush1.msra.mxu0 %v2673
      %2739 = vmatprep.subr.mxu0 %v2676
      %2740 = vmatpush1.msra.mxu0 %v2675
      %2741 = vmatprep.subr.mxu0 %v2678
      %2742 = vmatpush1.msra.mxu0 %v2677
      %2743 = vmatprep.subr.mxu0 %v2680
      %2744 = vmatpush1.msra.mxu0 %v2679
      %2745 = vmatprep.subr.mxu0 %v2682
      %2746 = vmatpush1.msra.mxu0 %v2681
      %2747 = vmatprep.subr.mxu0 %v2684
      %2748 = vmatpush1.msra.mxu0 %v2683
      %2749 = vmatprep.subr.mxu0 %v2686
      %2750 = vmatpush1.msra.mxu0 %v2685
      %2751 = vmatprep.subr.mxu0 %v2688
      %2752 = vmatpush1.msra.mxu0 %v2687
      %2753 = vmatprep.subr.mxu0 %v2690
      %2754 = vmatpush1.msra.mxu0 %v2689
      %2755 = vmatprep.subr.mxu0 %v2692
      %2756 = vmatpush1.msra.mxu0 %v2691
      %2757 = vmatprep.subr.mxu0 %v2694
      %2758 = vmatpush1.msra.mxu0 %v2693
      %2759 = vmatprep.subr.mxu0 %v2696
      %2760 = vmatpush1.msra.mxu0 %v2695
      %2761 = vmatprep.subr.mxu0 %v2698
      %2762 = vmatpush1.msra.mxu0 %v2697
      %2763 = vmatprep.subr.mxu0 %v2700
      %2764 = vmatpush1.msra.mxu0 %v2699
      %2765 = vmatprep.subr.mxu0 0.0
      %2766 = vmatpush1.msra.mxu0 0.0
      %2767 = vmatprep.subr.mxu0 0.0
      %2768 = vmatpush1.msra.mxu0 0.0
      %2769 = vmatprep.subr.mxu0 0.0
      %2770 = vmatpush1.msra.mxu0 0.0
      %2771 = vmatprep.subr.mxu0 0.0
      %2772 = vmatpush1.msra.mxu0 0.0
      %2773 = vmatprep.subr.mxu0 0.0
      %2774 = vmatpush1.msra.mxu0 0.0
      %2775 = vmatprep.subr.mxu0 0.0
      %2776 = vmatpush1.msra.mxu0 0.0
      %2777 = vmatprep.subr.mxu0 0.0
      %2778 = vmatpush1.msra.mxu0 0.0
      %2779 = vmatprep.subr.mxu0 0.0
      %2780 = vmatpush1.msra.mxu0 0.0
      %2781 = vmatprep.subr.mxu0 0.0
      %2782 = vmatpush1.msra.mxu0 0.0
      %2783 = vmatprep.subr.mxu0 0.0
      %2784 = vmatpush1.msra.mxu0 0.0
      %2785 = vmatprep.subr.mxu0 0.0
      %2786 = vmatpush1.msra.mxu0 0.0
      %2787 = vmatprep.subr.mxu0 0.0
      %2788 = vmatpush1.msra.mxu0 0.0
      %2789 = vmatprep.subr.mxu0 0.0
      %2790 = vmatpush1.msra.mxu0 0.0
      %2791 = vmatprep.subr.mxu0 0.0
      %2792 = vmatpush1.msra.mxu0 0.0
      %2793 = vmatprep.subr.mxu0 0.0
      %2794 = vmatpush1.msra.mxu0 0.0
      %2795 = vmatprep.subr.mxu0 0.0
      %2796 = vmatpush1.msra.mxu0 0.0
      %2797 = vmatprep.mubr.f32.mxu0 0.0
      %2798 = vmatmul.mubr.f32.gmra.mrb[0].mxu0 %v2570
      %v2799 = vpop.f32.mrb[0].mxu0
      %v2800 = vadd.f32 0.0, %v2799
      %v2801 = vpop.f32.mrb[0].mxu0
      %v2802 = vadd.f32 0.0, %v2801
      %2803 = vmatprep.mubr.f32.mxu0 0.0
      %2804 = vmatmul.mubr.f32.gmra.mrb[0].mxu0 %v2571
      %v2805 = vpop.f32.mrb[0].mxu0
      %v2806 = vadd.f32 0.0, %v2805
      %v2807 = vpop.f32.mrb[0].mxu0
      %v2808 = vadd.f32 0.0, %v2807
      %2809 = vdwg.mxu0
      %v2810 = vadd.f32 %v2565, %v2800
      %v2811 = vadd.f32 %v2566, %v2802
      %v2812 = vadd.f32 %v2567, %v2806
      %v2813 = vadd.f32 %v2568, %v2808
      %s2814 = scalar_lea.vmem %s3, 128
      %v2815 = vld [vmem:[%s2814] sm:$0xff]
      %v2816 = vld [vmem:[%s2814 + $0x8] sm:$0xff]
      %2817 = vrot.lane.b32.xlu0 %v1975, 111
      %v2818 = vpop.permute.xlu0 %2817
      %2819 = vrot.lane.b32.xlu0 %v1976, 111
      %v2820 = vpop.permute.xlu0 %2819
      %2821 = vrot.lane.b32.xlu0 %v1977, 111
      %v2822 = vpop.permute.xlu0 %2821
      %2823 = vrot.lane.b32.xlu0 %v1978, 111
      %v2824 = vpop.permute.xlu0 %2823
      %2825 = vrot.lane.b32.xlu0 %v1979, 111
      %v2826 = vpop.permute.xlu0 %2825
      %2827 = vrot.lane.b32.xlu0 %v1980, 111
      %v2828 = vpop.permute.xlu0 %2827
      %2829 = vrot.lane.b32.xlu0 %v1981, 111
      %v2830 = vpop.permute.xlu0 %2829
      %2831 = vrot.lane.b32.xlu0 %v1982, 111
      %v2832 = vpop.permute.xlu0 %2831
      %2833 = vrot.lane.b32.xlu0 %v1983, 111
      %v2834 = vpop.permute.xlu0 %2833
      %2835 = vrot.lane.b32.xlu0 %v1984, 111
      %v2836 = vpop.permute.xlu0 %2835
      %2837 = vrot.lane.b32.xlu0 %v1985, 111
      %v2838 = vpop.permute.xlu0 %2837
      %2839 = vrot.lane.b32.xlu0 %v1986, 111
      %v2840 = vpop.permute.xlu0 %2839
      %2841 = vrot.lane.b32.xlu0 %v1987, 111
      %v2842 = vpop.permute.xlu0 %2841
      %2843 = vrot.lane.b32.xlu0 %v1988, 111
      %v2844 = vpop.permute.xlu0 %2843
      %2845 = vrot.lane.b32.xlu0 %v1989, 111
      %v2846 = vpop.permute.xlu0 %2845
      %2847 = vrot.lane.b32.xlu0 %v1990, 111
      %v2848 = vpop.permute.xlu0 %2847
      %2849 = vrot.lane.b32.xlu0 %v1991, 111
      %v2850 = vpop.permute.xlu0 %2849
      %2851 = vrot.lane.b32.xlu0 %v1992, 111
      %v2852 = vpop.permute.xlu0 %2851
      %2853 = vrot.lane.b32.xlu0 %v1993, 111
      %v2854 = vpop.permute.xlu0 %2853
      %2855 = vrot.lane.b32.xlu0 %v1994, 111
      %v2856 = vpop.permute.xlu0 %2855
      %2857 = vrot.lane.b32.xlu0 %v1995, 111
      %v2858 = vpop.permute.xlu0 %2857
      %2859 = vrot.lane.b32.xlu0 %v1996, 111
      %v2860 = vpop.permute.xlu0 %2859
      %2861 = vrot.lane.b32.xlu0 %v1997, 111
      %v2862 = vpop.permute.xlu0 %2861
      %2863 = vrot.lane.b32.xlu0 %v1998, 111
      %v2864 = vpop.permute.xlu0 %2863
      %2865 = vrot.lane.b32.xlu0 %v1999, 111
      %v2866 = vpop.permute.xlu0 %2865
      %2867 = vrot.lane.b32.xlu0 %v2000, 111
      %v2868 = vpop.permute.xlu0 %2867
      %2869 = vrot.lane.b32.xlu0 %v2001, 111
      %v2870 = vpop.permute.xlu0 %2869
      %2871 = vrot.lane.b32.xlu0 %v2002, 111
      %v2872 = vpop.permute.xlu0 %2871
      %2873 = vrot.lane.b32.xlu0 %v2003, 111
      %v2874 = vpop.permute.xlu0 %2873
      %2875 = vrot.lane.b32.xlu0 %v2004, 111
      %v2876 = vpop.permute.xlu0 %2875
      %2877 = vrot.lane.b32.xlu0 %v2005, 111
      %v2878 = vpop.permute.xlu0 %2877
      %2879 = vrot.lane.b32.xlu0 %v2006, 111
      %v2880 = vpop.permute.xlu0 %2879
      %2881 = vrot.lane.b32.xlu0 %v2007, 111
      %v2882 = vpop.permute.xlu0 %2881
      %2883 = vrot.lane.b32.xlu0 %v2008, 111
      %v2884 = vpop.permute.xlu0 %2883
      %2885 = vrot.lane.b32.xlu0 %v2009, 111
      %v2886 = vpop.permute.xlu0 %2885
      %2887 = vrot.lane.b32.xlu0 %v2010, 111
      %v2888 = vpop.permute.xlu0 %2887
      %2889 = vrot.lane.b32.xlu0 %v2011, 111
      %v2890 = vpop.permute.xlu0 %2889
      %2891 = vrot.lane.b32.xlu0 %v2012, 111
      %v2892 = vpop.permute.xlu0 %2891
      %2893 = vrot.lane.b32.xlu0 %v2013, 111
      %v2894 = vpop.permute.xlu0 %2893
      %2895 = vrot.lane.b32.xlu0 %v2014, 111
      %v2896 = vpop.permute.xlu0 %2895
      %2897 = vrot.lane.b32.xlu0 %v2015, 111
      %v2898 = vpop.permute.xlu0 %2897
      %2899 = vrot.lane.b32.xlu0 %v2016, 111
      %v2900 = vpop.permute.xlu0 %2899
      %2901 = vrot.lane.b32.xlu0 %v2017, 111
      %v2902 = vpop.permute.xlu0 %2901
      %2903 = vrot.lane.b32.xlu0 %v2018, 111
      %v2904 = vpop.permute.xlu0 %2903
      %2905 = vrot.lane.b32.xlu0 %v2019, 111
      %v2906 = vpop.permute.xlu0 %2905
      %2907 = vrot.lane.b32.xlu0 %v2020, 111
      %v2908 = vpop.permute.xlu0 %2907
      %2909 = vrot.lane.b32.xlu0 %v2021, 111
      %v2910 = vpop.permute.xlu0 %2909
      %2911 = vrot.lane.b32.xlu0 %v2022, 111
      %v2912 = vpop.permute.xlu0 %2911
      %vm2913 = vcmask 908288
      %v2914 = vsel %vm2913, %v2818, %v2820
      %v2915 = vsel %vm2913, %v2820, %v2822
      %v2916 = vsel %vm2913, %v2824, %v2826
      %v2917 = vsel %vm2913, %v2826, %v2828
      %v2918 = vsel %vm2913, %v2830, %v2832
      %v2919 = vsel %vm2913, %v2832, %v2834
      %v2920 = vsel %vm2913, %v2836, %v2838
      %v2921 = vsel %vm2913, %v2838, %v2840
      %v2922 = vsel %vm2913, %v2842, %v2844
      %v2923 = vsel %vm2913, %v2844, %v2846
      %v2924 = vsel %vm2913, %v2848, %v2850
      %v2925 = vsel %vm2913, %v2850, %v2852
      %v2926 = vsel %vm2913, %v2854, %v2856
      %v2927 = vsel %vm2913, %v2856, %v2858
      %v2928 = vsel %vm2913, %v2860, %v2862
      %v2929 = vsel %vm2913, %v2862, %v2864
      %v2930 = vsel %vm2913, %v2866, %v2868
      %v2931 = vsel %vm2913, %v2868, %v2870
      %v2932 = vsel %vm2913, %v2872, %v2874
      %v2933 = vsel %vm2913, %v2874, %v2876
      %v2934 = vsel %vm2913, %v2878, %v2880
      %v2935 = vsel %vm2913, %v2880, %v2882
      %v2936 = vsel %vm2913, %v2884, %v2886
      %v2937 = vsel %vm2913, %v2886, %v2888
      %v2938 = vsel %vm2913, %v2890, %v2892
      %v2939 = vsel %vm2913, %v2892, %v2894
      %v2940 = vsel %vm2913, %v2896, %v2898
      %v2941 = vsel %vm2913, %v2898, %v2900
      %v2942 = vsel %vm2913, %v2902, %v2904
      %v2943 = vsel %vm2913, %v2904, %v2906
      %v2944 = vsel %vm2913, %v2908, %v2910
      %v2945 = vsel %vm2913, %v2910, %v2912
      %2978 = vmatprep.subr.mxu0 %v2915
      %2979 = vmatpush1.msra.mxu0 %v2914
      %2980 = vmatprep.subr.mxu0 %v2917
      %2981 = vmatpush1.msra.mxu0 %v2916
      %2982 = vmatprep.subr.mxu0 %v2919
      %2983 = vmatpush1.msra.mxu0 %v2918
      %2984 = vmatprep.subr.mxu0 %v2921
      %2985 = vmatpush1.msra.mxu0 %v2920
      %2986 = vmatprep.subr.mxu0 %v2923
      %2987 = vmatpush1.msra.mxu0 %v2922
      %2988 = vmatprep.subr.mxu0 %v2925
      %2989 = vmatpush1.msra.mxu0 %v2924
      %2990 = vmatprep.subr.mxu0 %v2927
      %2991 = vmatpush1.msra.mxu0 %v2926
      %2992 = vmatprep.subr.mxu0 %v2929
      %2993 = vmatpush1.msra.mxu0 %v2928
      %2994 = vmatprep.subr.mxu0 %v2931
      %2995 = vmatpush1.msra.mxu0 %v2930
      %2996 = vmatprep.subr.mxu0 %v2933
      %2997 = vmatpush1.msra.mxu0 %v2932
      %2998 = vmatprep.subr.mxu0 %v2935
      %2999 = vmatpush1.msra.mxu0 %v2934
      %3000 = vmatprep.subr.mxu0 %v2937
      %3001 = vmatpush1.msra.mxu0 %v2936
      %3002 = vmatprep.subr.mxu0 %v2939
      %3003 = vmatpush1.msra.mxu0 %v2938
      %3004 = vmatprep.subr.mxu0 %v2941
      %3005 = vmatpush1.msra.mxu0 %v2940
      %3006 = vmatprep.subr.mxu0 %v2943
      %3007 = vmatpush1.msra.mxu0 %v2942
      %3008 = vmatprep.subr.mxu0 %v2945
      %3009 = vmatpush1.msra.mxu0 %v2944
      %3010 = vmatprep.subr.mxu0 0.0
      %3011 = vmatpush1.msra.mxu0 0.0
      %3012 = vmatprep.subr.mxu0 0.0
      %3013 = vmatpush1.msra.mxu0 0.0
      %3014 = vmatprep.subr.mxu0 0.0
      %3015 = vmatpush1.msra.mxu0 0.0
      %3016 = vmatprep.subr.mxu0 0.0
      %3017 = vmatpush1.msra.mxu0 0.0
      %3018 = vmatprep.subr.mxu0 0.0
      %3019 = vmatpush1.msra.mxu0 0.0
      %3020 = vmatprep.subr.mxu0 0.0
      %3021 = vmatpush1.msra.mxu0 0.0
      %3022 = vmatprep.subr.mxu0 0.0
      %3023 = vmatpush1.msra.mxu0 0.0
      %3024 = vmatprep.subr.mxu0 0.0
      %3025 = vmatpush1.msra.mxu0 0.0
      %3026 = vmatprep.subr.mxu0 0.0
      %3027 = vmatpush1.msra.mxu0 0.0
      %3028 = vmatprep.subr.mxu0 0.0
      %3029 = vmatpush1.msra.mxu0 0.0
      %3030 = vmatprep.subr.mxu0 0.0
      %3031 = vmatpush1.msra.mxu0 0.0
      %3032 = vmatprep.subr.mxu0 0.0
      %3033 = vmatpush1.msra.mxu0 0.0
      %3034 = vmatprep.subr.mxu0 0.0
      %3035 = vmatpush1.msra.mxu0 0.0
      %3036 = vmatprep.subr.mxu0 0.0
      %3037 = vmatpush1.msra.mxu0 0.0
      %3038 = vmatprep.subr.mxu0 0.0
      %3039 = vmatpush1.msra.mxu0 0.0
      %3040 = vmatprep.subr.mxu0 0.0
      %3041 = vmatpush1.msra.mxu0 0.0
      %3042 = vmatprep.mubr.f32.mxu0 0.0
      %3043 = vmatmul.mubr.f32.gmra.mrb[0].mxu0 %v2815
      %v3044 = vpop.f32.mrb[0].mxu0
      %v3045 = vadd.f32 0.0, %v3044
      %v3046 = vpop.f32.mrb[0].mxu0
      %v3047 = vadd.f32 0.0, %v3046
      %3048 = vmatprep.mubr.f32.mxu0 0.0
      %3049 = vmatmul.mubr.f32.gmra.mrb[0].mxu0 %v2816
      %v3050 = vpop.f32.mrb[0].mxu0
      %v3051 = vadd.f32 0.0, %v3050
      %v3052 = vpop.f32.mrb[0].mxu0
      %v3053 = vadd.f32 0.0, %v3052
      %3054 = vdwg.mxu0
      %v3055 = vmul.f32 %v3045, %v1627
      %v3056 = vmul.f32 %v3047, %v1631
      %v3057 = vmul.f32 %v3051, %v1627
      %v3058 = vmul.f32 %v3053, %v1631
      %v3059 = vadd.f32 %v2810, %v3055
      %v3060 = vadd.f32 %v2811, %v3056
      %v3061 = vadd.f32 %v2812, %v3057
      %v3062 = vadd.f32 %v2813, %v3058
      %v3063 = vld [vmem:[%s4] sm:$0xff]
      %v3064 = vld [vmem:[%s4 + $0x8] sm:$0xff]
      %3066 = vset.pattern.permute.xlu0 0
      %3067 = vperm.xlu0 %3066, %v3063
      %v3068 = vpop.permute.xlu0 %3067
      %3071 = vset.pattern.permute.xlu0 0
      %3072 = vperm.xlu0 %3071, %v3064
      %v3073 = vpop.permute.xlu0 %3072
      %v3075 = vmul.f32 %v3059, %v3068
      %v3076 = vmul.f32 %v3060, %v3068
      %v3077 = vmul.f32 %v3061, %v3073
      %v3078 = vmul.f32 %v3062, %v3073
      %v3079 = vld [vmem:[%s5] sm:$0xff]
      %v3080 = vld [vmem:[%s5 + $0x8] sm:$0xff]
      %3082 = vset.pattern.permute.xlu0 0
      %3083 = vperm.xlu0 %3082, %v3079
      %v3084 = vpop.permute.xlu0 %3083
      %3087 = vset.pattern.permute.xlu0 0
      %3088 = vperm.xlu0 %3087, %v3080
      %v3089 = vpop.permute.xlu0 %3088
      %v3091 = vadd.f32 %v3075, %v3084
      %v3092 = vadd.f32 %v3076, %v3084
      %v3093 = vadd.f32 %v3077, %v3089
      %v3094 = vadd.f32 %v3078, %v3089
      %v3095 = vmax.f32 %v3091, 0.0
      %v3096 = vmax.f32 %v3092, 0.0
      %v3097 = vmax.f32 %v3093, 0.0
      %v3098 = vmax.f32 %v3094, 0.0
      %v3099 = vld [vmem:[%s6] sm:$0xff]
      %v3100 = vld [vmem:[%s6 + $0x8] sm:$0xff]
      %v3101 = vld [vmem:[%s6 + $0x10] sm:$0xff]
      %v3102 = vld [vmem:[%s7] sm:$0xff]
      %v3103 = vld [vmem:[%s7 + $0x8] sm:$0xff]
      %v3104 = vld [vmem:[%s7 + $0x10] sm:$0xff]
      %3106 = vset.pattern.permute.xlu0 0
      %3107 = vperm.xlu0 %3106, %v3102
      %v3108 = vpop.permute.xlu0 %3107
      %3111 = vset.pattern.permute.xlu0 0
      %3112 = vperm.xlu0 %3111, %v3103
      %v3113 = vpop.permute.xlu0 %3112
      %3116 = vset.pattern.permute.xlu0 0
      %3117 = vperm.xlu0 %3116, %v3104
      %v3118 = vpop.permute.xlu0 %3117
      %vm3120 = vcmask 64512
      %v3122 = vsel %vm3120, %v3099, 0
      %v3125 = vsel %vm3120, %v3100, 0
      %v3128 = vsel %vm3120, %v3101, 0
      %3130 = vmatprep.subr.mxu0 %v3098
      %3131 = vmatpush1.msra.mxu0 %v3097
      %3132 = vmatprep.subr.mxu0 0.0
      %3133 = vmatpush1.msra.mxu0 0.0
      %3134 = vmatprep.subr.mxu0 0.0
      %3135 = vmatpush1.msra.mxu0 0.0
      %3136 = vmatprep.subr.mxu0 0.0
      %3137 = vmatpush1.msra.mxu0 0.0
      %3138 = vmatprep.subr.mxu0 0.0
      %3139 = vmatpush1.msra.mxu0 0.0
      %3140 = vmatprep.subr.mxu0 0.0
      %3141 = vmatpush1.msra.mxu0 0.0
      %3142 = vmatprep.subr.mxu0 0.0
      %3143 = vmatpush1.msra.mxu0 0.0
      %3144 = vmatprep.subr.mxu0 0.0
      %3145 = vmatpush1.msra.mxu0 0.0
      %3146 = vmatprep.subr.mxu0 0.0
      %3147 = vmatpush1.msra.mxu0 0.0
      %3148 = vmatprep.subr.mxu0 0.0
      %3149 = vmatpush1.msra.mxu0 0.0
      %3150 = vmatprep.subr.mxu0 0.0
      %3151 = vmatpush1.msra.mxu0 0.0
      %3152 = vmatprep.subr.mxu0 0.0
      %3153 = vmatpush1.msra.mxu0 0.0
      %3154 = vmatprep.subr.mxu0 0.0
      %3155 = vmatpush1.msra.mxu0 0.0
      %3156 = vmatprep.subr.mxu0 0.0
      %3157 = vmatpush1.msra.mxu0 0.0
      %3158 = vmatprep.subr.mxu0 0.0
      %3159 = vmatpush1.msra.mxu0 0.0
      %3160 = vmatprep.subr.mxu0 0.0
      %3161 = vmatpush1.msra.mxu0 0.0
      %3162 = vmatprep.subr.mxu0 0.0
      %3163 = vmatpush1.msra.mxu0 0.0
      %3164 = vmatprep.subr.mxu0 0.0
      %3165 = vmatpush1.msra.mxu0 0.0
      %3166 = vmatprep.subr.mxu0 0.0
      %3167 = vmatpush1.msra.mxu0 0.0
      %3168 = vmatprep.subr.mxu0 0.0
      %3169 = vmatpush1.msra.mxu0 0.0
      %3170 = vmatprep.subr.mxu0 0.0
      %3171 = vmatpush1.msra.mxu0 0.0
      %3172 = vmatprep.subr.mxu0 0.0
      %3173 = vmatpush1.msra.mxu0 0.0
      %3174 = vmatprep.subr.mxu0 0.0
      %3175 = vmatpush1.msra.mxu0 0.0
      %3176 = vmatprep.subr.mxu0 0.0
      %3177 = vmatpush1.msra.mxu0 0.0
      %3178 = vmatprep.subr.mxu0 0.0
      %3179 = vmatpush1.msra.mxu0 0.0
      %3180 = vmatprep.subr.mxu0 0.0
      %3181 = vmatpush1.msra.mxu0 0.0
      %3182 = vmatprep.subr.mxu0 0.0
      %3183 = vmatpush1.msra.mxu0 0.0
      %3184 = vmatprep.subr.mxu0 0.0
      %3185 = vmatpush1.msra.mxu0 0.0
      %3186 = vmatprep.subr.mxu0 0.0
      %3187 = vmatpush1.msra.mxu0 0.0
      %3188 = vmatprep.subr.mxu0 0.0
      %3189 = vmatpush1.msra.mxu0 0.0
      %3190 = vmatprep.subr.mxu0 0.0
      %3191 = vmatpush1.msra.mxu0 0.0
      %3192 = vmatprep.subr.mxu0 0.0
      %3193 = vmatpush1.msra.mxu0 0.0
      %3194 = vmatprep.mubr.f32.mxu0 0.0
      %3195 = vmatmul.mubr.f32.gmra.mrb[0].mxu0 %v3122
      %v3196 = vpop.f32.mrb[0].mxu0
      %v3197 = vadd.f32 %v3108, %v3196
      %v3198 = vpop.f32.mrb[0].mxu0
      %v3199 = vadd.f32 %v3108, %v3198
      %3200 = vmatprep.mubr.f32.mxu0 0.0
      %3201 = vmatmul.mubr.f32.gmra.mrb[0].mxu0 %v3125
      %v3202 = vpop.f32.mrb[0].mxu0
      %v3203 = vadd.f32 %v3113, %v3202
      %v3204 = vpop.f32.mrb[0].mxu0
      %v3205 = vadd.f32 %v3113, %v3204
      %3206 = vmatprep.mubr.f32.mxu0 0.0
      %3207 = vmatmul.mubr.f32.gmra.mrb[0].mxu0 %v3128
      %v3208 = vpop.f32.mrb[0].mxu0
      %v3209 = vadd.f32 %v3118, %v3208
      %v3210 = vpop.f32.mrb[0].mxu0
      %v3211 = vadd.f32 %v3118, %v3210
      %3212 = vdwg.mxu0
      %3213 = vst [vmem:[#allocation3] sm:$0xff] 0.0
      %3214 = vst [vmem:[#allocation3 + $0x20] sm:$0xff] 0.0
      %3215 = vst [vmem:[#allocation3 + $0x40] sm:$0xff] 0.0
      %3216 = vst [vmem:[#allocation3 + $0x18] sm:$0xff] 0.0
      %3217 = vst [vmem:[#allocation3 + $0x38] sm:$0xff] 0.0
      %3218 = vst [vmem:[#allocation3 + $0x58] sm:$0xff] 0.0
      %3219 = vst [vmem:[#allocation3 + $0x8] sm:$0xff] %v3197
      %3220 = vst [vmem:[#allocation3 + $0x10] sm:$0xff] %v3199
      %3221 = vst [vmem:[#allocation3 + $0x28] sm:$0xff] %v3203
      %3222 = vst [vmem:[#allocation3 + $0x30] sm:$0xff] %v3205
      %3223 = vst [vmem:[#allocation3 + $0x48] sm:$0xff] %v3209
      %3224 = vst [vmem:[#allocation3 + $0x50] sm:$0xff] %v3211
      %v3225 = vld [vmem:[#allocation3] sm:$0xff]
      %v3226 = vld [vmem:[#allocation3 + $0x8] sm:$0xff]
      %v3227 = vld [vmem:[#allocation3 + $0x10] sm:$0xff]
      %v3228 = vld [vmem:[#allocation3 + $0x20] sm:$0xff]
      %v3229 = vld [vmem:[#allocation3 + $0x28] sm:$0xff]
      %v3230 = vld [vmem:[#allocation3 + $0x30] sm:$0xff]
      %v3231 = vld [vmem:[#allocation3 + $0x40] sm:$0xff]
      %v3232 = vld [vmem:[#allocation3 + $0x48] sm:$0xff]
      %v3233 = vld [vmem:[#allocation3 + $0x50] sm:$0xff]
      %v3234 = vld [vmem:[%s8] sm:$0xff]
      %v3235 = vld [vmem:[%s8 + $0x8] sm:$0xff]
      %v3236 = vld [vmem:[%s8 + $0x10] sm:$0xff]
      %3238 = vset.pattern.permute.xlu0 0
      %3239 = vperm.xlu0 %3238, %v3234
      %v3240 = vpop.permute.xlu0 %3239
      %3243 = vset.pattern.permute.xlu0 0
      %3244 = vperm.xlu0 %3243, %v3235
      %v3245 = vpop.permute.xlu0 %3244
      %3248 = vset.pattern.permute.xlu0 0
      %3249 = vperm.xlu0 %3248, %v3236
      %v3250 = vpop.permute.xlu0 %3249
      %v3252 = vmul.f32 %v3240, %v3225
      %v3253 = vmul.f32 %v3240, %v3226
      %v3254 = vmul.f32 %v3240, %v3227
      %v3255 = vmul.f32 %v3245, %v3228
      %v3256 = vmul.f32 %v3245, %v3229
      %v3257 = vmul.f32 %v3245, %v3230
      %v3258 = vmul.f32 %v3250, %v3231
      %v3259 = vmul.f32 %v3250, %v3232
      %v3260 = vmul.f32 %v3250, %v3233
      %3261 = vrot.lane.b32.xlu0 %v1122, 111
      %v3262 = vpop.permute.xlu0 %3261
      %3263 = vrot.lane.b32.xlu0 %v1126, 111
      %v3264 = vpop.permute.xlu0 %3263
      %v3265 = vsel %vm2913, %v3262, %v3264
      %v3269 = vmul.f32 %v3252, %v3262
      %v3270 = vmul.f32 %v3253, %v3265
      %v3271 = vmul.f32 %v3254, %v3264
      %v3272 = vmul.f32 %v3255, %v3262
      %v3273 = vmul.f32 %v3256, %v3265
      %v3274 = vmul.f32 %v3257, %v3264
      %v3275 = vmul.f32 %v3258, %v3262
      %v3276 = vmul.f32 %v3259, %v3265
      %v3277 = vmul.f32 %v3260, %v3264
      %v3278 = vadd.f32 %v3269, 0.0
      %v3279 = vadd.f32 %v3270, 0.0
      %v3280 = vadd.f32 %v3271, 0.0
      %v3281 = vadd.f32 %v3272, 0.0
      %v3282 = vadd.f32 %v3273, 0.0
      %v3283 = vadd.f32 %v3274, 0.0
      %v3284 = vadd.f32 %v3275, 0.0
      %v3285 = vadd.f32 %v3276, 0.0
      %v3286 = vadd.f32 %v3277, 0.0
      %s3287 = scalar_lea.vmem %s8, 24
      %v3288 = vld [vmem:[%s3287] sm:$0xff]
      %v3289 = vld [vmem:[%s3287 + $0x8] sm:$0xff]
      %v3290 = vld [vmem:[%s3287 + $0x10] sm:$0xff]
      %3292 = vset.pattern.permute.xlu0 0
      %3293 = vperm.xlu0 %3292, %v3288
      %v3294 = vpop.permute.xlu0 %3293
      %3297 = vset.pattern.permute.xlu0 0
      %3298 = vperm.xlu0 %3297, %v3289
      %v3299 = vpop.permute.xlu0 %3298
      %3302 = vset.pattern.permute.xlu0 0
      %3303 = vperm.xlu0 %3302, %v3290
      %v3304 = vpop.permute.xlu0 %3303
      %v3306 = vmul.f32 %v3294, %v3225
      %v3307 = vmul.f32 %v3294, %v3226
      %v3308 = vmul.f32 %v3294, %v3227
      %v3309 = vmul.f32 %v3299, %v3228
      %v3310 = vmul.f32 %v3299, %v3229
      %v3311 = vmul.f32 %v3299, %v3230
      %v3312 = vmul.f32 %v3304, %v3231
      %v3313 = vmul.f32 %v3304, %v3232
      %v3314 = vmul.f32 %v3304, %v3233
      %3324 = vrot.lane.b32.xlu0 %v3306, 127
      %v3325 = vpop.permute.xlu0 %3324
      %3326 = vrot.lane.b32.xlu0 %v3307, 127
      %v3327 = vpop.permute.xlu0 %3326
      %3328 = vrot.lane.b32.xlu0 %v3308, 127
      %v3329 = vpop.permute.xlu0 %3328
      %3330 = vrot.lane.b32.xlu0 %v3309, 127
      %v3331 = vpop.permute.xlu0 %3330
      %3332 = vrot.lane.b32.xlu0 %v3310, 127
      %v3333 = vpop.permute.xlu0 %3332
      %3334 = vrot.lane.b32.xlu0 %v3311, 127
      %v3335 = vpop.permute.xlu0 %3334
      %3336 = vrot.lane.b32.xlu0 %v3312, 127
      %v3337 = vpop.permute.xlu0 %3336
      %3338 = vrot.lane.b32.xlu0 %v3313, 127
      %v3339 = vpop.permute.xlu0 %3338
      %3340 = vrot.lane.b32.xlu0 %v3314, 127
      %v3341 = vpop.permute.xlu0 %3340
      %v3342 = vsel %vm2170, %v3325, %v3327
      %v3343 = vsel %vm2170, %v3327, %v3329
      %v3344 = vsel %vm2170, %v3331, %v3333
      %v3345 = vsel %vm2170, %v3333, %v3335
      %v3346 = vsel %vm2170, %v3337, %v3339
      %v3347 = vsel %vm2170, %v3339, %v3341
      %v3357 = vadd.f32 %v3278, %v3342
      %v3358 = vadd.f32 %v3279, %v3343
      %v3359 = vadd.f32 %v3280, %v3329
      %v3360 = vadd.f32 %v3281, %v3344
      %v3361 = vadd.f32 %v3282, %v3345
      %v3362 = vadd.f32 %v3283, %v3335
      %v3363 = vadd.f32 %v3284, %v3346
      %v3364 = vadd.f32 %v3285, %v3347
      %v3365 = vadd.f32 %v3286, %v3341
      %s3366 = scalar_lea.vmem %s8, 48
      %v3367 = vld [vmem:[%s3366] sm:$0xff]
      %v3368 = vld [vmem:[%s3366 + $0x8] sm:$0xff]
      %v3369 = vld [vmem:[%s3366 + $0x10] sm:$0xff]
      %3371 = vset.pattern.permute.xlu0 0
      %3372 = vperm.xlu0 %3371, %v3367
      %v3373 = vpop.permute.xlu0 %3372
      %3376 = vset.pattern.permute.xlu0 0
      %3377 = vperm.xlu0 %3376, %v3368
      %v3378 = vpop.permute.xlu0 %3377
      %3381 = vset.pattern.permute.xlu0 0
      %3382 = vperm.xlu0 %3381, %v3369
      %v3383 = vpop.permute.xlu0 %3382
      %v3385 = vmul.f32 %v3373, %v3225
      %v3386 = vmul.f32 %v3373, %v3226
      %v3387 = vmul.f32 %v3373, %v3227
      %v3388 = vmul.f32 %v3378, %v3228
      %v3389 = vmul.f32 %v3378, %v3229
      %v3390 = vmul.f32 %v3378, %v3230
      %v3391 = vmul.f32 %v3383, %v3231
      %v3392 = vmul.f32 %v3383, %v3232
      %v3393 = vmul.f32 %v3383, %v3233
      %3394 = vrot.lane.b32.xlu0 %v1627, 113
      %v3395 = vpop.permute.xlu0 %3394
      %3396 = vrot.lane.b32.xlu0 %v1631, 113
      %v3397 = vpop.permute.xlu0 %3396
      %v3398 = vsel %vm2419, %v3395, %v3397
      %v3402 = vmul.f32 %v3385, %v3395
      %v3403 = vmul.f32 %v3386, %v3398
      %v3404 = vmul.f32 %v3387, %v3397
      %v3405 = vmul.f32 %v3388, %v3395
      %v3406 = vmul.f32 %v3389, %v3398
      %v3407 = vmul.f32 %v3390, %v3397
      %v3408 = vmul.f32 %v3391, %v3395
      %v3409 = vmul.f32 %v3392, %v3398
      %v3410 = vmul.f32 %v3393, %v3397
      %3420 = vrot.lane.b32.xlu0 %v3402, 126
      %v3421 = vpop.permute.xlu0 %3420
      %3422 = vrot.lane.b32.xlu0 %v3403, 126
      %v3423 = vpop.permute.xlu0 %3422
      %3424 = vrot.lane.b32.xlu0 %v3404, 126
      %v3425 = vpop.permute.xlu0 %3424
      %3426 = vrot.lane.b32.xlu0 %v3405, 126
      %v3427 = vpop.permute.xlu0 %3426
      %3428 = vrot.lane.b32.xlu0 %v3406, 126
      %v3429 = vpop.permute.xlu0 %3428
      %3430 = vrot.lane.b32.xlu0 %v3407, 126
      %v3431 = vpop.permute.xlu0 %3430
      %3432 = vrot.lane.b32.xlu0 %v3408, 126
      %v3433 = vpop.permute.xlu0 %3432
      %3434 = vrot.lane.b32.xlu0 %v3409, 126
      %v3435 = vpop.permute.xlu0 %3434
      %3436 = vrot.lane.b32.xlu0 %v3410, 126
      %v3437 = vpop.permute.xlu0 %3436
      %vm3438 = vcmask 1031168
      %v3439 = vsel %vm3438, %v3421, %v3423
      %v3440 = vsel %vm3438, %v3423, %v3425
      %v3441 = vsel %vm3438, %v3427, %v3429
      %v3442 = vsel %vm3438, %v3429, %v3431
      %v3443 = vsel %vm3438, %v3433, %v3435
      %v3444 = vsel %vm3438, %v3435, %v3437
      %v3454 = vadd.f32 %v3357, %v3439
      %v3455 = vadd.f32 %v3358, %v3440
      %v3456 = vadd.f32 %v3359, %v3425
      %v3457 = vadd.f32 %v3360, %v3441
      %v3458 = vadd.f32 %v3361, %v3442
      %v3459 = vadd.f32 %v3362, %v3431
      %v3460 = vadd.f32 %v3363, %v3443
      %v3461 = vadd.f32 %v3364, %v3444
      %v3462 = vadd.f32 %v3365, %v3437
      %s3463 = scalar_lea.vmem %s8, 72
      %v3464 = vld [vmem:[%s3463] sm:$0xff]
      %v3465 = vld [vmem:[%s3463 + $0x8] sm:$0xff]
      %v3466 = vld [vmem:[%s3463 + $0x10] sm:$0xff]
      %3468 = vset.pattern.permute.xlu0 0
      %3469 = vperm.xlu0 %3468, %v3464
      %v3470 = vpop.permute.xlu0 %3469
      %3473 = vset.pattern.permute.xlu0 0
      %3474 = vperm.xlu0 %3473, %v3465
      %v3475 = vpop.permute.xlu0 %3474
      %3478 = vset.pattern.permute.xlu0 0
      %3479 = vperm.xlu0 %3478, %v3466
      %v3480 = vpop.permute.xlu0 %3479
      %v3482 = vmul.f32 %v3470, %v3225
      %v3483 = vmul.f32 %v3470, %v3226
      %v3484 = vmul.f32 %v3470, %v3227
      %v3485 = vmul.f32 %v3475, %v3228
      %v3486 = vmul.f32 %v3475, %v3229
      %v3487 = vmul.f32 %v3475, %v3230
      %v3488 = vmul.f32 %v3480, %v3231
      %v3489 = vmul.f32 %v3480, %v3232
      %v3490 = vmul.f32 %v3480, %v3233
      %3491 = vrot.lane.b32.xlu0 %v1122, 127
      %v3492 = vpop.permute.xlu0 %3491
      %3493 = vrot.lane.b32.xlu0 %v1126, 127
      %v3494 = vpop.permute.xlu0 %3493
      %v3495 = vsel %vm2170, %v3492, %v3494
      %v3499 = vmul.f32 %v3482, %v3492
      %v3500 = vmul.f32 %v3483, %v3495
      %v3501 = vmul.f32 %v3484, %v3494
      %v3502 = vmul.f32 %v3485, %v3492
      %v3503 = vmul.f32 %v3486, %v3495
      %v3504 = vmul.f32 %v3487, %v3494
      %v3505 = vmul.f32 %v3488, %v3492
      %v3506 = vmul.f32 %v3489, %v3495
      %v3507 = vmul.f32 %v3490, %v3494
      %3517 = vrot.lane.b32.xlu0 %v3499, 112
      %v3518 = vpop.permute.xlu0 %3517
      %3519 = vrot.lane.b32.xlu0 %v3500, 112
      %v3520 = vpop.permute.xlu0 %3519
      %3521 = vrot.lane.b32.xlu0 %v3501, 112
      %v3522 = vpop.permute.xlu0 %3521
      %3523 = vrot.lane.b32.xlu0 %v3502, 112
      %v3524 = vpop.permute.xlu0 %3523
      %3525 = vrot.lane.b32.xlu0 %v3503, 112
      %v3526 = vpop.permute.xlu0 %3525
      %3527 = vrot.lane.b32.xlu0 %v3504, 112
      %v3528 = vpop.permute.xlu0 %3527
      %3529 = vrot.lane.b32.xlu0 %v3505, 112
      %v3530 = vpop.permute.xlu0 %3529
      %3531 = vrot.lane.b32.xlu0 %v3506, 112
      %v3532 = vpop.permute.xlu0 %3531
      %3533 = vrot.lane.b32.xlu0 %v3507, 112
      %v3534 = vpop.permute.xlu0 %3533
      %v3535 = vsel %vm2668, %v3518, %v3520
      %v3536 = vsel %vm2668, %v3520, %v3522
      %v3537 = vsel %vm2668, %v3524, %v3526
      %v3538 = vsel %vm2668, %v3526, %v3528
      %v3539 = vsel %vm2668, %v3530, %v3532
      %v3540 = vsel %vm2668, %v3532, %v3534
      %v3550 = vadd.f32 %v3454, %v3535
      %v3551 = vadd.f32 %v3455, %v3536
      %v3552 = vadd.f32 %v3456, %v3522
      %v3553 = vadd.f32 %v3457, %v3537
      %v3554 = vadd.f32 %v3458, %v3538
      %v3555 = vadd.f32 %v3459, %v3528
      %v3556 = vadd.f32 %v3460, %v3539
      %v3557 = vadd.f32 %v3461, %v3540
      %v3558 = vadd.f32 %v3462, %v3534
      %s3559 = scalar_lea.vmem %s8, 96
      %v3560 = vld [vmem:[%s3559] sm:$0xff]
      %v3561 = vld [vmem:[%s3559 + $0x8] sm:$0xff]
      %v3562 = vld [vmem:[%s3559 + $0x10] sm:$0xff]
      %3564 = vset.pattern.permute.xlu0 0
      %3565 = vperm.xlu0 %3564, %v3560
      %v3566 = vpop.permute.xlu0 %3565
      %3569 = vset.pattern.permute.xlu0 0
      %3570 = vperm.xlu0 %3569, %v3561
      %v3571 = vpop.permute.xlu0 %3570
      %3574 = vset.pattern.permute.xlu0 0
      %3575 = vperm.xlu0 %3574, %v3562
      %v3576 = vpop.permute.xlu0 %3575
      %v3578 = vmul.f32 %v3566, %v3226
      %v3579 = vmul.f32 %v3566, %v3227
      %v3580 = vmul.f32 %v3571, %v3229
      %v3581 = vmul.f32 %v3571, %v3230
      %v3582 = vmul.f32 %v3576, %v3232
      %v3583 = vmul.f32 %v3576, %v3233
      %3590 = vrot.lane.b32.xlu0 %v3578, 111
      %v3591 = vpop.permute.xlu0 %3590
      %3592 = vrot.lane.b32.xlu0 %v3579, 111
      %v3593 = vpop.permute.xlu0 %3592
      %3594 = vrot.lane.b32.xlu0 %v3580, 111
      %v3595 = vpop.permute.xlu0 %3594
      %3596 = vrot.lane.b32.xlu0 %v3581, 111
      %v3597 = vpop.permute.xlu0 %3596
      %3598 = vrot.lane.b32.xlu0 %v3582, 111
      %v3599 = vpop.permute.xlu0 %3598
      %3600 = vrot.lane.b32.xlu0 %v3583, 111
      %v3601 = vpop.permute.xlu0 %3600
      %v3602 = vsel %vm2913, %v3591, %v3593
      %v3603 = vsel %vm2913, %v3595, %v3597
      %v3604 = vsel %vm2913, %v3599, %v3601
      %v3614 = vadd.f32 %v3550, %v3591
      %v3615 = vadd.f32 %v3551, %v3602
      %v3616 = vadd.f32 %v3552, %v3593
      %v3617 = vadd.f32 %v3553, %v3595
      %v3618 = vadd.f32 %v3554, %v3603
      %v3619 = vadd.f32 %v3555, %v3597
      %v3620 = vadd.f32 %v3556, %v3599
      %v3621 = vadd.f32 %v3557, %v3604
      %v3622 = vadd.f32 %v3558, %v3601
      %v3623 = vld [vmem:[#allocation3 + $0x8] sm:$0xff]
      %v3624 = vld [vmem:[#allocation3 + $0x10] sm:$0xff]
      %v3625 = vld [vmem:[#allocation3 + $0x18] sm:$0xff]
      %v3626 = vld [vmem:[#allocation3 + $0x28] sm:$0xff]
      %v3627 = vld [vmem:[#allocation3 + $0x30] sm:$0xff]
      %v3628 = vld [vmem:[#allocation3 + $0x38] sm:$0xff]
      %v3629 = vld [vmem:[#allocation3 + $0x48] sm:$0xff]
      %v3630 = vld [vmem:[#allocation3 + $0x50] sm:$0xff]
      %v3631 = vld [vmem:[#allocation3 + $0x58] sm:$0xff]
      %s3632 = scalar_lea.vmem %s8, 120
      %v3633 = vld [vmem:[%s3632] sm:$0xff]
      %v3634 = vld [vmem:[%s3632 + $0x8] sm:$0xff]
      %v3635 = vld [vmem:[%s3632 + $0x10] sm:$0xff]
      %3637 = vset.pattern.permute.xlu0 0
      %3638 = vperm.xlu0 %3637, %v3633
      %v3639 = vpop.permute.xlu0 %3638
      %3642 = vset.pattern.permute.xlu0 0
      %3643 = vperm.xlu0 %3642, %v3634
      %v3644 = vpop.permute.xlu0 %3643
      %3647 = vset.pattern.permute.xlu0 0
      %3648 = vperm.xlu0 %3647, %v3635
      %v3649 = vpop.permute.xlu0 %3648
      %v3651 = vmul.f32 %v3639, %v3623
      %v3652 = vmul.f32 %v3639, %v3624
      %v3653 = vmul.f32 %v3639, %v3625
      %v3654 = vmul.f32 %v3644, %v3626
      %v3655 = vmul.f32 %v3644, %v3627
      %v3656 = vmul.f32 %v3644, %v3628
      %v3657 = vmul.f32 %v3649, %v3629
      %v3658 = vmul.f32 %v3649, %v3630
      %v3659 = vmul.f32 %v3649, %v3631
      %3660 = vrot.lane.b32.xlu0 %v1627, 1
      %v3661 = vpop.permute.xlu0 %3660
      %3662 = vrot.lane.b32.xlu0 %v1631, 1
      %v3663 = vpop.permute.xlu0 %3662
      %v3664 = vsel %vm1741, %v3661, %v3663
      %v3668 = vmul.f32 %v3651, %v3661
      %v3669 = vmul.f32 %v3652, %v3664
      %v3670 = vmul.f32 %v3653, %v3663
      %v3671 = vmul.f32 %v3654, %v3661
      %v3672 = vmul.f32 %v3655, %v3664
      %v3673 = vmul.f32 %v3656, %v3663
      %v3674 = vmul.f32 %v3657, %v3661
      %v3675 = vmul.f32 %v3658, %v3664
      %v3676 = vmul.f32 %v3659, %v3663
      %3686 = vrot.lane.b32.xlu0 %v3668, 110
      %v3687 = vpop.permute.xlu0 %3686
      %3688 = vrot.lane.b32.xlu0 %v3669, 110
      %v3689 = vpop.permute.xlu0 %3688
      %3690 = vrot.lane.b32.xlu0 %v3670, 110
      %v3691 = vpop.permute.xlu0 %3690
      %3692 = vrot.lane.b32.xlu0 %v3671, 110
      %v3693 = vpop.permute.xlu0 %3692
      %3694 = vrot.lane.b32.xlu0 %v3672, 110
      %v3695 = vpop.permute.xlu0 %3694
      %3696 = vrot.lane.b32.xlu0 %v3673, 110
      %v3697 = vpop.permute.xlu0 %3696
      %3698 = vrot.lane.b32.xlu0 %v3674, 110
      %v3699 = vpop.permute.xlu0 %3698
      %3700 = vrot.lane.b32.xlu0 %v3675, 110
      %v3701 = vpop.permute.xlu0 %3700
      %3702 = vrot.lane.b32.xlu0 %v3676, 110
      %v3703 = vpop.permute.xlu0 %3702
      %vm3704 = vcmask 900096
      %v3705 = vsel %vm3704, %v3687, %v3689
      %v3706 = vsel %vm3704, %v3689, %v3691
      %v3707 = vsel %vm3704, %v3693, %v3695
      %v3708 = vsel %vm3704, %v3695, %v3697
      %v3709 = vsel %vm3704, %v3699, %v3701
      %v3710 = vsel %vm3704, %v3701, %v3703
      %v3720 = vadd.f32 %v3614, %v3687
      %v3721 = vadd.f32 %v3615, %v3705
      %v3722 = vadd.f32 %v3616, %v3706
      %v3723 = vadd.f32 %v3617, %v3693
      %v3724 = vadd.f32 %v3618, %v3707
      %v3725 = vadd.f32 %v3619, %v3708
      %v3726 = vadd.f32 %v3620, %v3699
      %v3727 = vadd.f32 %v3621, %v3709
      %v3728 = vadd.f32 %v3622, %v3710
      %s3729 = scalar_lea.vmem %s8, 144
      %v3730 = vld [vmem:[%s3729] sm:$0xff]
      %v3731 = vld [vmem:[%s3729 + $0x8] sm:$0xff]
      %v3732 = vld [vmem:[%s3729 + $0x10] sm:$0xff]
      %3734 = vset.pattern.permute.xlu0 0
      %3735 = vperm.xlu0 %3734, %v3730
      %v3736 = vpop.permute.xlu0 %3735
      %3739 = vset.pattern.permute.xlu0 0
      %3740 = vperm.xlu0 %3739, %v3731
      %v3741 = vpop.permute.xlu0 %3740
      %3744 = vset.pattern.permute.xlu0 0
      %3745 = vperm.xlu0 %3744, %v3732
      %v3746 = vpop.permute.xlu0 %3745
      %v3748 = vmul.f32 %v3736, %v3623
      %v3749 = vmul.f32 %v3736, %v3624
      %v3750 = vmul.f32 %v3736, %v3625
      %v3751 = vmul.f32 %v3741, %v3626
      %v3752 = vmul.f32 %v3741, %v3627
      %v3753 = vmul.f32 %v3741, %v3628
      %v3754 = vmul.f32 %v3746, %v3629
      %v3755 = vmul.f32 %v3746, %v3630
      %v3756 = vmul.f32 %v3746, %v3631
      %3757 = vrot.lane.b32.xlu0 %v1122, 15
      %v3758 = vpop.permute.xlu0 %3757
      %3759 = vrot.lane.b32.xlu0 %v1126, 15
      %v3760 = vpop.permute.xlu0 %3759
      %v3761 = vsel %vm1481, %v3758, %v3760
      %v3765 = vmul.f32 %v3748, %v3758
      %v3766 = vmul.f32 %v3749, %v3761
      %v3767 = vmul.f32 %v3750, %v3760
      %v3768 = vmul.f32 %v3751, %v3758
      %v3769 = vmul.f32 %v3752, %v3761
      %v3770 = vmul.f32 %v3753, %v3760
      %v3771 = vmul.f32 %v3754, %v3758
      %v3772 = vmul.f32 %v3755, %v3761
      %v3773 = vmul.f32 %v3756, %v3760
      %3783 = vrot.lane.b32.xlu0 %v3765, 96
      %v3784 = vpop.permute.xlu0 %3783
      %3785 = vrot.lane.b32.xlu0 %v3766, 96
      %v3786 = vpop.permute.xlu0 %3785
      %3787 = vrot.lane.b32.xlu0 %v3767, 96
      %v3788 = vpop.permute.xlu0 %3787
      %3789 = vrot.lane.b32.xlu0 %v3768, 96
      %v3790 = vpop.permute.xlu0 %3789
      %3791 = vrot.lane.b32.xlu0 %v3769, 96
      %v3792 = vpop.permute.xlu0 %3791
      %3793 = vrot.lane.b32.xlu0 %v3770, 96
      %v3794 = vpop.permute.xlu0 %3793
      %3795 = vrot.lane.b32.xlu0 %v3771, 96
      %v3796 = vpop.permute.xlu0 %3795
      %3797 = vrot.lane.b32.xlu0 %v3772, 96
      %v3798 = vpop.permute.xlu0 %3797
      %3799 = vrot.lane.b32.xlu0 %v3773, 96
      %v3800 = vpop.permute.xlu0 %3799
      %vm3801 = vcmask 785408
      %v3802 = vsel %vm3801, %v3784, %v3786
      %v3803 = vsel %vm3801, %v3786, %v3788
      %v3804 = vsel %vm3801, %v3790, %v3792
      %v3805 = vsel %vm3801, %v3792, %v3794
      %v3806 = vsel %vm3801, %v3796, %v3798
      %v3807 = vsel %vm3801, %v3798, %v3800
      %v3817 = vadd.f32 %v3720, %v3784
      %v3818 = vadd.f32 %v3721, %v3802
      %v3819 = vadd.f32 %v3722, %v3803
      %v3820 = vadd.f32 %v3723, %v3790
      %v3821 = vadd.f32 %v3724, %v3804
      %v3822 = vadd.f32 %v3725, %v3805
      %v3823 = vadd.f32 %v3726, %v3796
      %v3824 = vadd.f32 %v3727, %v3806
      %v3825 = vadd.f32 %v3728, %v3807
      %s3826 = scalar_lea.vmem %s8, 168
      %v3827 = vld [vmem:[%s3826] sm:$0xff]
      %v3828 = vld [vmem:[%s3826 + $0x8] sm:$0xff]
      %v3829 = vld [vmem:[%s3826 + $0x10] sm:$0xff]
      %3831 = vset.pattern.permute.xlu0 0
      %3832 = vperm.xlu0 %3831, %v3827
      %v3833 = vpop.permute.xlu0 %3832
      %3836 = vset.pattern.permute.xlu0 0
      %3837 = vperm.xlu0 %3836, %v3828
      %v3838 = vpop.permute.xlu0 %3837
      %3841 = vset.pattern.permute.xlu0 0
      %3842 = vperm.xlu0 %3841, %v3829
      %v3843 = vpop.permute.xlu0 %3842
      %v3845 = vmul.f32 %v3833, %v3623
      %v3846 = vmul.f32 %v3833, %v3624
      %v3847 = vmul.f32 %v3833, %v3625
      %v3848 = vmul.f32 %v3838, %v3626
      %v3849 = vmul.f32 %v3838, %v3627
      %v3850 = vmul.f32 %v3838, %v3628
      %v3851 = vmul.f32 %v3843, %v3629
      %v3852 = vmul.f32 %v3843, %v3630
      %v3853 = vmul.f32 %v3843, %v3631
      %3863 = vrot.lane.b32.xlu0 %v3845, 95
      %v3864 = vpop.permute.xlu0 %3863
      %3865 = vrot.lane.b32.xlu0 %v3846, 95
      %v3866 = vpop.permute.xlu0 %3865
      %3867 = vrot.lane.b32.xlu0 %v3847, 95
      %v3868 = vpop.permute.xlu0 %3867
      %3869 = vrot.lane.b32.xlu0 %v3848, 95
      %v3870 = vpop.permute.xlu0 %3869
      %3871 = vrot.lane.b32.xlu0 %v3849, 95
      %v3872 = vpop.permute.xlu0 %3871
      %3873 = vrot.lane.b32.xlu0 %v3850, 95
      %v3874 = vpop.permute.xlu0 %3873
      %3875 = vrot.lane.b32.xlu0 %v3851, 95
      %v3876 = vpop.permute.xlu0 %3875
      %3877 = vrot.lane.b32.xlu0 %v3852, 95
      %v3878 = vpop.permute.xlu0 %3877
      %3879 = vrot.lane.b32.xlu0 %v3853, 95
      %v3880 = vpop.permute.xlu0 %3879
      %vm3881 = vcmask 777216
      %v3882 = vsel %vm3881, %v3864, %v3866
      %v3883 = vsel %vm3881, %v3866, %v3868
      %v3884 = vsel %vm3881, %v3870, %v3872
      %v3885 = vsel %vm3881, %v3872, %v3874
      %v3886 = vsel %vm3881, %v3876, %v3878
      %v3887 = vsel %vm3881, %v3878, %v3880
      %v3897 = vadd.f32 %v3817, %v3864
      %v3898 = vadd.f32 %v3818, %v3882
      %v3899 = vadd.f32 %v3819, %v3883
      %v3900 = vadd.f32 %v3820, %v3870
      %v3901 = vadd.f32 %v3821, %v3884
      %v3902 = vadd.f32 %v3822, %v3885
      %v3903 = vadd.f32 %v3823, %v3876
      %v3904 = vadd.f32 %v3824, %v3886
      %v3905 = vadd.f32 %v3825, %v3887
      %s3906 = scalar_lea.vmem %s8, 192
      %v3907 = vld [vmem:[%s3906] sm:$0xff]
      %v3908 = vld [vmem:[%s3906 + $0x8] sm:$0xff]
      %v3909 = vld [vmem:[%s3906 + $0x10] sm:$0xff]
      %3911 = vset.pattern.permute.xlu0 0
      %3912 = vperm.xlu0 %3911, %v3907
      %v3913 = vpop.permute.xlu0 %3912
      %3916 = vset.pattern.permute.xlu0 0
      %3917 = vperm.xlu0 %3916, %v3908
      %v3918 = vpop.permute.xlu0 %3917
      %3921 = vset.pattern.permute.xlu0 0
      %3922 = vperm.xlu0 %3921, %v3909
      %v3923 = vpop.permute.xlu0 %3922
      %v3925 = vmul.f32 %v3913, %v3623
      %v3926 = vmul.f32 %v3913, %v3624
      %v3927 = vmul.f32 %v3913, %v3625
      %v3928 = vmul.f32 %v3918, %v3626
      %v3929 = vmul.f32 %v3918, %v3627
      %v3930 = vmul.f32 %v3918, %v3628
      %v3931 = vmul.f32 %v3923, %v3629
      %v3932 = vmul.f32 %v3923, %v3630
      %v3933 = vmul.f32 %v3923, %v3631
      %3934 = vrot.lane.b32.xlu0 %v1627, 17
      %v3935 = vpop.permute.xlu0 %3934
      %3936 = vrot.lane.b32.xlu0 %v1631, 17
      %v3937 = vpop.permute.xlu0 %3936
      %v3938 = vsel %vm976, %v3935, %v3937
      %v3942 = vmul.f32 %v3925, %v3935
      %v3943 = vmul.f32 %v3926, %v3938
      %v3944 = vmul.f32 %v3927, %v3937
      %v3945 = vmul.f32 %v3928, %v3935
      %v3946 = vmul.f32 %v3929, %v3938
      %v3947 = vmul.f32 %v3930, %v3937
      %v3948 = vmul.f32 %v3931, %v3935
      %v3949 = vmul.f32 %v3932, %v3938
      %v3950 = vmul.f32 %v3933, %v3937
      %3960 = vrot.lane.b32.xlu0 %v3942, 94
      %v3961 = vpop.permute.xlu0 %3960
      %3962 = vrot.lane.b32.xlu0 %v3943, 94
      %v3963 = vpop.permute.xlu0 %3962
      %3964 = vrot.lane.b32.xlu0 %v3944, 94
      %v3965 = vpop.permute.xlu0 %3964
      %3966 = vrot.lane.b32.xlu0 %v3945, 94
      %v3967 = vpop.permute.xlu0 %3966
      %3968 = vrot.lane.b32.xlu0 %v3946, 94
      %v3969 = vpop.permute.xlu0 %3968
      %3970 = vrot.lane.b32.xlu0 %v3947, 94
      %v3971 = vpop.permute.xlu0 %3970
      %3972 = vrot.lane.b32.xlu0 %v3948, 94
      %v3973 = vpop.permute.xlu0 %3972
      %3974 = vrot.lane.b32.xlu0 %v3949, 94
      %v3975 = vpop.permute.xlu0 %3974
      %3976 = vrot.lane.b32.xlu0 %v3950, 94
      %v3977 = vpop.permute.xlu0 %3976
      %vm3978 = vcmask 769024
      %v3979 = vsel %vm3978, %v3961, %v3963
      %v3980 = vsel %vm3978, %v3963, %v3965
      %v3981 = vsel %vm3978, %v3967, %v3969
      %v3982 = vsel %vm3978, %v3969, %v3971
      %v3983 = vsel %vm3978, %v3973, %v3975
      %v3984 = vsel %vm3978, %v3975, %v3977
      %v3994 = vadd.f32 %v3897, %v3961
      %v3995 = vadd.f32 %v3898, %v3979
      %v3996 = vadd.f32 %v3899, %v3980
      %v3997 = vadd.f32 %v3900, %v3967
      %v3998 = vadd.f32 %v3901, %v3981
      %v3999 = vadd.f32 %v3902, %v3982
      %v4000 = vadd.f32 %v3903, %v3973
      %v4001 = vadd.f32 %v3904, %v3983
      %v4002 = vadd.f32 %v3905, %v3984
      %v4003 = vld [vmem:[%s9] sm:$0xff]
      %v4004 = vld [vmem:[%s9 + $0x8] sm:$0xff]
      %v4005 = vld [vmem:[%s9 + $0x10] sm:$0xff]
      %4007 = vset.pattern.permute.xlu0 0
      %4008 = vperm.xlu0 %4007, %v4003
      %v4009 = vpop.permute.xlu0 %4008
      %4012 = vset.pattern.permute.xlu0 0
      %4013 = vperm.xlu0 %4012, %v4004
      %v4014 = vpop.permute.xlu0 %4013
      %4017 = vset.pattern.permute.xlu0 0
      %4018 = vperm.xlu0 %4017, %v4005
      %v4019 = vpop.permute.xlu0 %4018
      %v4021 = vadd.f32 %v3994, %v4009
      %v4022 = vadd.f32 %v3995, %v4009
      %v4023 = vadd.f32 %v3996, %v4009
      %v4024 = vadd.f32 %v3997, %v4014
      %v4025 = vadd.f32 %v3998, %v4014
      %v4026 = vadd.f32 %v3999, %v4014
      %v4027 = vadd.f32 %v4000, %v4019
      %v4028 = vadd.f32 %v4001, %v4019
      %v4029 = vadd.f32 %v4002, %v4019
      %v4030 = vmul.f32 %v4021, %v4021
      %v4031 = vmul.f32 %v4022, %v4022
      %v4032 = vmul.f32 %v4023, %v4023
      %4036 = vrot.lane.b32.xlu0 %v4030, 17
      %v4037 = vpop.permute.xlu0 %4036
      %4038 = vrot.lane.b32.xlu0 %v4031, 17
      %v4039 = vpop.permute.xlu0 %4038
      %4040 = vrot.lane.b32.xlu0 %v4032, 17
      %v4041 = vpop.permute.xlu0 %4040
      %v4042 = vsel %vm976, %v4037, %v4039
      %v4043 = vsel %vm976, %v4039, %v4041
      %v4046 = vadd.f32 %v4042, %v4043
      %4047 = vadd.xlane.f32.xlu0 %v4046
      %v4048 = vpop.xlane.xlu0 %4047
      %v4049 = vmax.f32 %v4048, 1e-24
      %v4050 = vrsqrt.pop %v4049
      %v4051 = vmul.f32 %v4021, %v4050
      %v4052 = vmul.f32 %v4022, %v4050
      %v4053 = vmul.f32 %v4023, %v4050
      %v4054 = vmul.f32 %v4024, %v4024
      %v4055 = vmul.f32 %v4025, %v4025
      %v4056 = vmul.f32 %v4026, %v4026
      %4060 = vrot.lane.b32.xlu0 %v4054, 17
      %v4061 = vpop.permute.xlu0 %4060
      %4062 = vrot.lane.b32.xlu0 %v4055, 17
      %v4063 = vpop.permute.xlu0 %4062
      %4064 = vrot.lane.b32.xlu0 %v4056, 17
      %v4065 = vpop.permute.xlu0 %4064
      %v4066 = vsel %vm976, %v4061, %v4063
      %v4067 = vsel %vm976, %v4063, %v4065
      %v4070 = vadd.f32 %v4066, %v4067
      %4071 = vadd.xlane.f32.xlu0 %v4070
      %v4072 = vpop.xlane.xlu0 %4071
      %v4073 = vmax.f32 %v4072, 1e-24
      %v4074 = vrsqrt.pop %v4073
      %v4075 = vmul.f32 %v4024, %v4074
      %v4076 = vmul.f32 %v4025, %v4074
      %v4077 = vmul.f32 %v4026, %v4074
      %4081 = vrot.lane.b32.xlu0 %v4051, 17
      %v4082 = vpop.permute.xlu0 %4081
      %4083 = vrot.lane.b32.xlu0 %v4052, 17
      %v4084 = vpop.permute.xlu0 %4083
      %4085 = vrot.lane.b32.xlu0 %v4053, 17
      %v4086 = vpop.permute.xlu0 %4085
      %v4087 = vsel %vm976, %v4082, %v4084
      %v4088 = vsel %vm976, %v4084, %v4086
      %4094 = vrot.lane.b32.xlu0 %v4075, 17
      %v4095 = vpop.permute.xlu0 %4094
      %4096 = vrot.lane.b32.xlu0 %v4076, 17
      %v4097 = vpop.permute.xlu0 %4096
      %4098 = vrot.lane.b32.xlu0 %v4077, 17
      %v4099 = vpop.permute.xlu0 %4098
      %v4100 = vsel %vm976, %v4095, %v4097
      %v4101 = vsel %vm976, %v4097, %v4099
      %4104 = vmatprep.subr.mxu0 %v4101
      %4105 = vmatpush1.xpose.msra.mxu0 %v4100
      %4106 = vmatprep.subr.mxu0 0.0
      %4107 = vmatpush1.xpose.msra.mxu0 0.0
      %4108 = vmatprep.subr.mxu0 0.0
      %4109 = vmatpush1.xpose.msra.mxu0 0.0
      %4110 = vmatprep.subr.mxu0 0.0
      %4111 = vmatpush1.xpose.msra.mxu0 0.0
      %4112 = vmatprep.subr.mxu0 0.0
      %4113 = vmatpush1.xpose.msra.mxu0 0.0
      %4114 = vmatprep.subr.mxu0 0.0
      %4115 = vmatpush1.xpose.msra.mxu0 0.0
      %4116 = vmatprep.subr.mxu0 0.0
      %4117 = vmatpush1.xpose.msra.mxu0 0.0
      %4118 = vmatprep.subr.mxu0 0.0
      %4119 = vmatpush1.xpose.msra.mxu0 0.0
      %4120 = vmatprep.subr.mxu0 0.0
      %4121 = vmatpush1.xpose.msra.mxu0 0.0
      %4122 = vmatprep.subr.mxu0 0.0
      %4123 = vmatpush1.xpose.msra.mxu0 0.0
      %4124 = vmatprep.subr.mxu0 0.0
      %4125 = vmatpush1.xpose.msra.mxu0 0.0
      %4126 = vmatprep.subr.mxu0 0.0
      %4127 = vmatpush1.xpose.msra.mxu0 0.0
      %4128 = vmatprep.subr.mxu0 0.0
      %4129 = vmatpush1.xpose.msra.mxu0 0.0
      %4130 = vmatprep.subr.mxu0 0.0
      %4131 = vmatpush1.xpose.msra.mxu0 0.0
      %4132 = vmatprep.subr.mxu0 0.0
      %4133 = vmatpush1.xpose.msra.mxu0 0.0
      %4134 = vmatprep.subr.mxu0 0.0
      %4135 = vmatpush1.xpose.msra.mxu0 0.0
      %4136 = vmatprep.subr.mxu0 0.0
      %4137 = vmatpush1.xpose.msra.mxu0 0.0
      %4138 = vmatprep.subr.mxu0 0.0
      %4139 = vmatpush1.xpose.msra.mxu0 0.0
      %4140 = vmatprep.subr.mxu0 0.0
      %4141 = vmatpush1.xpose.msra.mxu0 0.0
      %4142 = vmatprep.subr.mxu0 0.0
      %4143 = vmatpush1.xpose.msra.mxu0 0.0
      %4144 = vmatprep.subr.mxu0 0.0
      %4145 = vmatpush1.xpose.msra.mxu0 0.0
      %4146 = vmatprep.subr.mxu0 0.0
      %4147 = vmatpush1.xpose.msra.mxu0 0.0
      %4148 = vmatprep.subr.mxu0 0.0
      %4149 = vmatpush1.xpose.msra.mxu0 0.0
      %4150 = vmatprep.subr.mxu0 0.0
      %4151 = vmatpush1.xpose.msra.mxu0 0.0
      %4152 = vmatprep.subr.mxu0 0.0
      %4153 = vmatpush1.xpose.msra.mxu0 0.0
      %4154 = vmatprep.subr.mxu0 0.0
      %4155 = vmatpush1.xpose.msra.mxu0 0.0
      %4156 = vmatprep.subr.mxu0 0.0
      %4157 = vmatpush1.xpose.msra.mxu0 0.0
      %4158 = vmatprep.subr.mxu0 0.0
      %4159 = vmatpush1.xpose.msra.mxu0 0.0
      %4160 = vmatprep.subr.mxu0 0.0
      %4161 = vmatpush1.xpose.msra.mxu0 0.0
      %4162 = vmatprep.subr.mxu0 0.0
      %4163 = vmatpush1.xpose.msra.mxu0 0.0
      %4164 = vmatprep.subr.mxu0 0.0
      %4165 = vmatpush1.xpose.msra.mxu0 0.0
      %4166 = vmatprep.subr.mxu0 0.0
      %4167 = vmatpush1.xpose.msra.mxu0 0.0
      %4168 = vmatprep.mubr.f32.mxu0 %v4088
      %4169 = vmatmul.mubr.f32.gmra.mrb[0].mxu0 %v4087
      %v4170 = vpop.f32.mrb[0].mxu0
      %v4171 = vadd.f32 0.0, %v4170
      %v4172 = vpop.f32.mrb[0].mxu0
      %4173 = vdwg.mxu0
      %v4174 = vld [vmem:[%s10] sm:$0xff]
      %4176 = vset.pattern.permute.xlu0 0
      %4177 = vperm.xlu0 %4176, %v4174
      %v4178 = vpop.permute.xlu0 %4177
      %v4180 = vmul.f32 %v4171, %v4178
      %v4181 = vld [vmem:[%s11] sm:$0xff]
      %v4182 = vadd.f32 %v4180, %v4181
      %v4183 = vsel %vm3120, %v4182, -inf
      %4184 = vmax.xlane.f32.xlu0 %v4183
      %v4185 = vpop.xlane.xlu0 %4184
      %v4186 = vsub.f32 %v4182, %v4185
      %v4187 = vmul.f32 %v4186, 1.442695
      %v4188 = vpow.pop %v4187
      %v4189 = vsel %vm3120, %v4188, 0.0
      %4190 = vadd.xlane.f32.xlu0 %v4189
      %v4191 = vpop.xlane.xlu0 %4190
      %v4192 = vrcp.pop %v4191
      %v4193 = vmul.f32 %v4188, %v4192
      %4197 = vrot.lane.b32.xlu0 %v4027, 17
      %v4198 = vpop.permute.xlu0 %4197
      %4199 = vrot.lane.b32.xlu0 %v4028, 17
      %v4200 = vpop.permute.xlu0 %4199
      %4201 = vrot.lane.b32.xlu0 %v4029, 17
      %v4202 = vpop.permute.xlu0 %4201
      %v4203 = vsel %vm976, %v4198, %v4200
      %v4204 = vsel %vm976, %v4200, %v4202
      %v4208 = vsel %vm3120, %v4193, 0
      %4210 = vmatprep.subr.mxu0 %v4204
      %4211 = vmatpush1.msra.mxu0 %v4203
      %4212 = vmatprep.subr.mxu0 0.0
      %4213 = vmatpush1.msra.mxu0 0.0
      %4214 = vmatprep.subr.mxu0 0.0
      %4215 = vmatpush1.msra.mxu0 0.0
      %4216 = vmatprep.subr.mxu0 0.0
      %4217 = vmatpush1.msra.mxu0 0.0
      %4218 = vmatprep.subr.mxu0 0.0
      %4219 = vmatpush1.msra.mxu0 0.0
      %4220 = vmatprep.subr.mxu0 0.0
      %4221 = vmatpush1.msra.mxu0 0.0
      %4222 = vmatprep.subr.mxu0 0.0
      %4223 = vmatpush1.msra.mxu0 0.0
      %4224 = vmatprep.subr.mxu0 0.0
      %4225 = vmatpush1.msra.mxu0 0.0
      %4226 = vmatprep.subr.mxu0 0.0
      %4227 = vmatpush1.msra.mxu0 0.0
      %4228 = vmatprep.subr.mxu0 0.0
      %4229 = vmatpush1.msra.mxu0 0.0
      %4230 = vmatprep.subr.mxu0 0.0
      %4231 = vmatpush1.msra.mxu0 0.0
      %4232 = vmatprep.subr.mxu0 0.0
      %4233 = vmatpush1.msra.mxu0 0.0
      %4234 = vmatprep.subr.mxu0 0.0
      %4235 = vmatpush1.msra.mxu0 0.0
      %4236 = vmatprep.subr.mxu0 0.0
      %4237 = vmatpush1.msra.mxu0 0.0
      %4238 = vmatprep.subr.mxu0 0.0
      %4239 = vmatpush1.msra.mxu0 0.0
      %4240 = vmatprep.subr.mxu0 0.0
      %4241 = vmatpush1.msra.mxu0 0.0
      %4242 = vmatprep.subr.mxu0 0.0
      %4243 = vmatpush1.msra.mxu0 0.0
      %4244 = vmatprep.subr.mxu0 0.0
      %4245 = vmatpush1.msra.mxu0 0.0
      %4246 = vmatprep.subr.mxu0 0.0
      %4247 = vmatpush1.msra.mxu0 0.0
      %4248 = vmatprep.subr.mxu0 0.0
      %4249 = vmatpush1.msra.mxu0 0.0
      %4250 = vmatprep.subr.mxu0 0.0
      %4251 = vmatpush1.msra.mxu0 0.0
      %4252 = vmatprep.subr.mxu0 0.0
      %4253 = vmatpush1.msra.mxu0 0.0
      %4254 = vmatprep.subr.mxu0 0.0
      %4255 = vmatpush1.msra.mxu0 0.0
      %4256 = vmatprep.subr.mxu0 0.0
      %4257 = vmatpush1.msra.mxu0 0.0
      %4258 = vmatprep.subr.mxu0 0.0
      %4259 = vmatpush1.msra.mxu0 0.0
      %4260 = vmatprep.subr.mxu0 0.0
      %4261 = vmatpush1.msra.mxu0 0.0
      %4262 = vmatprep.subr.mxu0 0.0
      %4263 = vmatpush1.msra.mxu0 0.0
      %4264 = vmatprep.subr.mxu0 0.0
      %4265 = vmatpush1.msra.mxu0 0.0
      %4266 = vmatprep.subr.mxu0 0.0
      %4267 = vmatpush1.msra.mxu0 0.0
      %4268 = vmatprep.subr.mxu0 0.0
      %4269 = vmatpush1.msra.mxu0 0.0
      %4270 = vmatprep.subr.mxu0 0.0
      %4271 = vmatpush1.msra.mxu0 0.0
      %4272 = vmatprep.subr.mxu0 0.0
      %4273 = vmatpush1.msra.mxu0 0.0
      %4274 = vmatprep.mubr.f32.mxu0 0.0
      %4275 = vmatmul.mubr.f32.gmra.mrb[0].mxu0 %v4208
      %v4276 = vpop.f32.mrb[0].mxu0
      %v4277 = vadd.f32 0.0, %v4276
      %v4278 = vpop.f32.mrb[0].mxu0
      %v4279 = vadd.f32 0.0, %v4278
      %4280 = vdwg.mxu0
      %v4281 = vld [vmem:[%s12] sm:$0xff]
      %v4282 = vld [vmem:[%s13] sm:$0xff]
      %4284 = vset.pattern.permute.xlu0 0
      %4285 = vperm.xlu0 %4284, %v4282
      %v4286 = vpop.permute.xlu0 %4285
      %v4289 = vsel %vm3120, %v4281, 0
      %4291 = vmatprep.subr.mxu0 %v4279
      %4292 = vmatpush1.msra.mxu0 %v4277
      %4293 = vmatprep.subr.mxu0 0.0
      %4294 = vmatpush1.msra.mxu0 0.0
      %4295 = vmatprep.subr.mxu0 0.0
      %4296 = vmatpush1.msra.mxu0 0.0
      %4297 = vmatprep.subr.mxu0 0.0
      %4298 = vmatpush1.msra.mxu0 0.0
      %4299 = vmatprep.subr.mxu0 0.0
      %4300 = vmatpush1.msra.mxu0 0.0
      %4301 = vmatprep.subr.mxu0 0.0
      %4302 = vmatpush1.msra.mxu0 0.0
      %4303 = vmatprep.subr.mxu0 0.0
      %4304 = vmatpush1.msra.mxu0 0.0
      %4305 = vmatprep.subr.mxu0 0.0
      %4306 = vmatpush1.msra.mxu0 0.0
      %4307 = vmatprep.subr.mxu0 0.0
      %4308 = vmatpush1.msra.mxu0 0.0
      %4309 = vmatprep.subr.mxu0 0.0
      %4310 = vmatpush1.msra.mxu0 0.0
      %4311 = vmatprep.subr.mxu0 0.0
      %4312 = vmatpush1.msra.mxu0 0.0
      %4313 = vmatprep.subr.mxu0 0.0
      %4314 = vmatpush1.msra.mxu0 0.0
      %4315 = vmatprep.subr.mxu0 0.0
      %4316 = vmatpush1.msra.mxu0 0.0
      %4317 = vmatprep.subr.mxu0 0.0
      %4318 = vmatpush1.msra.mxu0 0.0
      %4319 = vmatprep.subr.mxu0 0.0
      %4320 = vmatpush1.msra.mxu0 0.0
      %4321 = vmatprep.subr.mxu0 0.0
      %4322 = vmatpush1.msra.mxu0 0.0
      %4323 = vmatprep.subr.mxu0 0.0
      %4324 = vmatpush1.msra.mxu0 0.0
      %4325 = vmatprep.subr.mxu0 0.0
      %4326 = vmatpush1.msra.mxu0 0.0
      %4327 = vmatprep.subr.mxu0 0.0
      %4328 = vmatpush1.msra.mxu0 0.0
      %4329 = vmatprep.subr.mxu0 0.0
      %4330 = vmatpush1.msra.mxu0 0.0
      %4331 = vmatprep.subr.mxu0 0.0
      %4332 = vmatpush1.msra.mxu0 0.0
      %4333 = vmatprep.subr.mxu0 0.0
      %4334 = vmatpush1.msra.mxu0 0.0
      %4335 = vmatprep.subr.mxu0 0.0
      %4336 = vmatpush1.msra.mxu0 0.0
      %4337 = vmatprep.subr.mxu0 0.0
      %4338 = vmatpush1.msra.mxu0 0.0
      %4339 = vmatprep.subr.mxu0 0.0
      %4340 = vmatpush1.msra.mxu0 0.0
      %4341 = vmatprep.subr.mxu0 0.0
      %4342 = vmatpush1.msra.mxu0 0.0
      %4343 = vmatprep.subr.mxu0 0.0
      %4344 = vmatpush1.msra.mxu0 0.0
      %4345 = vmatprep.subr.mxu0 0.0
      %4346 = vmatpush1.msra.mxu0 0.0
      %4347 = vmatprep.subr.mxu0 0.0
      %4348 = vmatpush1.msra.mxu0 0.0
      %4349 = vmatprep.subr.mxu0 0.0
      %4350 = vmatpush1.msra.mxu0 0.0
      %4351 = vmatprep.subr.mxu0 0.0
      %4352 = vmatpush1.msra.mxu0 0.0
      %4353 = vmatprep.subr.mxu0 0.0
      %4354 = vmatpush1.msra.mxu0 0.0
      %4355 = vmatprep.mubr.f32.mxu0 0.0
      %4356 = vmatmul.mubr.f32.gmra.mrb[0].mxu0 %v4289
      %v4357 = vpop.f32.mrb[0].mxu0
      %v4358 = vadd.f32 %v4286, %v4357
      %v4359 = vpop.f32.mrb[0].mxu0
      %v4360 = vadd.f32 %v4286, %v4359
      %4361 = vdwg.mxu0
      %v4362 = vadd.f32 %v4358, %v3097
      %v4363 = vadd.f32 %v4360, %v3098
      %4364 = vst [vmem:[#allocation4] sm:$0xff] 0.0
      %4365 = vst [vmem:[#allocation4 + $0x18] sm:$0xff] 0.0
      %4366 = vst [vmem:[#allocation4 + $0x8] sm:$0xff] %v3095
      %4367 = vst [vmem:[#allocation4 + $0x10] sm:$0xff] %v3096
      %v4368 = vld [vmem:[#allocation4] sm:$0xff]
      %v4369 = vld [vmem:[#allocation4 + $0x8] sm:$0xff]
      %v4370 = vld [vmem:[#allocation4 + $0x10] sm:$0xff]
      %v4371 = vld [vmem:[%s14] sm:$0xff]
      %4375 = vrot.lane.b32.xlu0 %v4368, 17
      %v4376 = vpop.permute.xlu0 %4375
      %4377 = vrot.lane.b32.xlu0 %v4369, 17
      %v4378 = vpop.permute.xlu0 %4377
      %4379 = vrot.lane.b32.xlu0 %v4370, 17
      %v4380 = vpop.permute.xlu0 %4379
      %v4381 = vsel %vm976, %v4376, %v4378
      %v4382 = vsel %vm976, %v4378, %v4380
      %v4386 = vsel %vm3120, %v4371, 0
      %4388 = vmatprep.subr.mxu0 %v4382
      %4389 = vmatpush1.msra.mxu0 %v4381
      %4390 = vmatprep.subr.mxu0 0.0
      %4391 = vmatpush1.msra.mxu0 0.0
      %4392 = vmatprep.subr.mxu0 0.0
      %4393 = vmatpush1.msra.mxu0 0.0
      %4394 = vmatprep.subr.mxu0 0.0
      %4395 = vmatpush1.msra.mxu0 0.0
      %4396 = vmatprep.subr.mxu0 0.0
      %4397 = vmatpush1.msra.mxu0 0.0
      %4398 = vmatprep.subr.mxu0 0.0
      %4399 = vmatpush1.msra.mxu0 0.0
      %4400 = vmatprep.subr.mxu0 0.0
      %4401 = vmatpush1.msra.mxu0 0.0
      %4402 = vmatprep.subr.mxu0 0.0
      %4403 = vmatpush1.msra.mxu0 0.0
      %4404 = vmatprep.subr.mxu0 0.0
      %4405 = vmatpush1.msra.mxu0 0.0
      %4406 = vmatprep.subr.mxu0 0.0
      %4407 = vmatpush1.msra.mxu0 0.0
      %4408 = vmatprep.subr.mxu0 0.0
      %4409 = vmatpush1.msra.mxu0 0.0
      %4410 = vmatprep.subr.mxu0 0.0
      %4411 = vmatpush1.msra.mxu0 0.0
      %4412 = vmatprep.subr.mxu0 0.0
      %4413 = vmatpush1.msra.mxu0 0.0
      %4414 = vmatprep.subr.mxu0 0.0
      %4415 = vmatpush1.msra.mxu0 0.0
      %4416 = vmatprep.subr.mxu0 0.0
      %4417 = vmatpush1.msra.mxu0 0.0
      %4418 = vmatprep.subr.mxu0 0.0
      %4419 = vmatpush1.msra.mxu0 0.0
      %4420 = vmatprep.subr.mxu0 0.0
      %4421 = vmatpush1.msra.mxu0 0.0
      %4422 = vmatprep.subr.mxu0 0.0
      %4423 = vmatpush1.msra.mxu0 0.0
      %4424 = vmatprep.subr.mxu0 0.0
      %4425 = vmatpush1.msra.mxu0 0.0
      %4426 = vmatprep.subr.mxu0 0.0
      %4427 = vmatpush1.msra.mxu0 0.0
      %4428 = vmatprep.subr.mxu0 0.0
      %4429 = vmatpush1.msra.mxu0 0.0
      %4430 = vmatprep.subr.mxu0 0.0
      %4431 = vmatpush1.msra.mxu0 0.0
      %4432 = vmatprep.subr.mxu0 0.0
      %4433 = vmatpush1.msra.mxu0 0.0
      %4434 = vmatprep.subr.mxu0 0.0
      %4435 = vmatpush1.msra.mxu0 0.0
      %4436 = vmatprep.subr.mxu0 0.0
      %4437 = vmatpush1.msra.mxu0 0.0
      %4438 = vmatprep.subr.mxu0 0.0
      %4439 = vmatpush1.msra.mxu0 0.0
      %4440 = vmatprep.subr.mxu0 0.0
      %4441 = vmatpush1.msra.mxu0 0.0
      %4442 = vmatprep.subr.mxu0 0.0
      %4443 = vmatpush1.msra.mxu0 0.0
      %4444 = vmatprep.subr.mxu0 0.0
      %4445 = vmatpush1.msra.mxu0 0.0
      %4446 = vmatprep.subr.mxu0 0.0
      %4447 = vmatpush1.msra.mxu0 0.0
      %4448 = vmatprep.subr.mxu0 0.0
      %4449 = vmatpush1.msra.mxu0 0.0
      %4450 = vmatprep.subr.mxu0 0.0
      %4451 = vmatpush1.msra.mxu0 0.0
      %4452 = vmatprep.mubr.f32.mxu0 0.0
      %4453 = vmatmul.mubr.f32.gmra.mrb[0].mxu0 %v4386
      %v4454 = vpop.f32.mrb[0].mxu0
      %v4455 = vadd.f32 0.0, %v4454
      %v4456 = vpop.f32.mrb[0].mxu0
      %v4457 = vadd.f32 0.0, %v4456
      %4458 = vdwg.mxu0
      %v4459 = vmul.f32 %v4455, %v1122
      %v4460 = vmul.f32 %v4457, %v1126
      %v4461 = vadd.f32 %v4459, 0.0
      %v4462 = vadd.f32 %v4460, 0.0
      %s4463 = scalar_lea.vmem %s14, 8
      %v4464 = vld [vmem:[%s4463] sm:$0xff]
      %4465 = vrot.lane.b32.xlu0 %v4368, 16
      %v4466 = vpop.permute.xlu0 %4465
      %4467 = vrot.lane.b32.xlu0 %v4369, 16
      %v4468 = vpop.permute.xlu0 %4467
      %4469 = vrot.lane.b32.xlu0 %v4370, 16
      %v4470 = vpop.permute.xlu0 %4469
      %v4471 = vsel %vm1236, %v4466, %v4468
      %v4472 = vsel %vm1236, %v4468, %v4470
      %v4476 = vsel %vm3120, %v4464, 0
      %4478 = vmatprep.subr.mxu0 %v4472
      %4479 = vmatpush1.msra.mxu0 %v4471
      %4480 = vmatprep.subr.mxu0 0.0
      %4481 = vmatpush1.msra.mxu0 0.0
      %4482 = vmatprep.subr.mxu0 0.0
      %4483 = vmatpush1.msra.mxu0 0.0
      %4484 = vmatprep.subr.mxu0 0.0
      %4485 = vmatpush1.msra.mxu0 0.0
      %4486 = vmatprep.subr.mxu0 0.0
      %4487 = vmatpush1.msra.mxu0 0.0
      %4488 = vmatprep.subr.mxu0 0.0
      %4489 = vmatpush1.msra.mxu0 0.0
      %4490 = vmatprep.subr.mxu0 0.0
      %4491 = vmatpush1.msra.mxu0 0.0
      %4492 = vmatprep.subr.mxu0 0.0
      %4493 = vmatpush1.msra.mxu0 0.0
      %4494 = vmatprep.subr.mxu0 0.0
      %4495 = vmatpush1.msra.mxu0 0.0
      %4496 = vmatprep.subr.mxu0 0.0
      %4497 = vmatpush1.msra.mxu0 0.0
      %4498 = vmatprep.subr.mxu0 0.0
      %4499 = vmatpush1.msra.mxu0 0.0
      %4500 = vmatprep.subr.mxu0 0.0
      %4501 = vmatpush1.msra.mxu0 0.0
      %4502 = vmatprep.subr.mxu0 0.0
      %4503 = vmatpush1.msra.mxu0 0.0
      %4504 = vmatprep.subr.mxu0 0.0
      %4505 = vmatpush1.msra.mxu0 0.0
      %4506 = vmatprep.subr.mxu0 0.0
      %4507 = vmatpush1.msra.mxu0 0.0
      %4508 = vmatprep.subr.mxu0 0.0
      %4509 = vmatpush1.msra.mxu0 0.0
      %4510 = vmatprep.subr.mxu0 0.0
      %4511 = vmatpush1.msra.mxu0 0.0
      %4512 = vmatprep.subr.mxu0 0.0
      %4513 = vmatpush1.msra.mxu0 0.0
      %4514 = vmatprep.subr.mxu0 0.0
      %4515 = vmatpush1.msra.mxu0 0.0
      %4516 = vmatprep.subr.mxu0 0.0
      %4517 = vmatpush1.msra.mxu0 0.0
      %4518 = vmatprep.subr.mxu0 0.0
      %4519 = vmatpush1.msra.mxu0 0.0
      %4520 = vmatprep.subr.mxu0 0.0
      %4521 = vmatpush1.msra.mxu0 0.0
      %4522 = vmatprep.subr.mxu0 0.0
      %4523 = vmatpush1.msra.mxu0 0.0
      %4524 = vmatprep.subr.mxu0 0.0
      %4525 = vmatpush1.msra.mxu0 0.0
      %4526 = vmatprep.subr.mxu0 0.0
      %4527 = vmatpush1.msra.mxu0 0.0
      %4528 = vmatprep.subr.mxu0 0.0
      %4529 = vmatpush1.msra.mxu0 0.0
      %4530 = vmatprep.subr.mxu0 0.0
      %4531 = vmatpush1.msra.mxu0 0.0
      %4532 = vmatprep.subr.mxu0 0.0
      %4533 = vmatpush1.msra.mxu0 0.0
      %4534 = vmatprep.subr.mxu0 0.0
      %4535 = vmatpush1.msra.mxu0 0.0
      %4536 = vmatprep.subr.mxu0 0.0
      %4537 = vmatpush1.msra.mxu0 0.0
      %4538 = vmatprep.subr.mxu0 0.0
      %4539 = vmatpush1.msra.mxu0 0.0
      %4540 = vmatprep.subr.mxu0 0.0
      %4541 = vmatpush1.msra.mxu0 0.0
      %4542 = vmatprep.mubr.f32.mxu0 0.0
      %4543 = vmatmul.mubr.f32.gmra.mrb[0].mxu0 %v4476
      %v4544 = vpop.f32.mrb[0].mxu0
      %v4545 = vadd.f32 0.0, %v4544
      %v4546 = vpop.f32.mrb[0].mxu0
      %v4547 = vadd.f32 0.0, %v4546
      %4548 = vdwg.mxu0
      %v4549 = vadd.f32 %v4461, %v4545
      %v4550 = vadd.f32 %v4462, %v4547
      %s4551 = scalar_lea.vmem %s14, 16
      %v4552 = vld [vmem:[%s4551] sm:$0xff]
      %4553 = vrot.lane.b32.xlu0 %v4368, 15
      %v4554 = vpop.permute.xlu0 %4553
      %4555 = vrot.lane.b32.xlu0 %v4369, 15
      %v4556 = vpop.permute.xlu0 %4555
      %4557 = vrot.lane.b32.xlu0 %v4370, 15
      %v4558 = vpop.permute.xlu0 %4557
      %v4559 = vsel %vm1481, %v4554, %v4556
      %v4560 = vsel %vm1481, %v4556, %v4558
      %v4564 = vsel %vm3120, %v4552, 0
      %4566 = vmatprep.subr.mxu0 %v4560
      %4567 = vmatpush1.msra.mxu0 %v4559
      %4568 = vmatprep.subr.mxu0 0.0
      %4569 = vmatpush1.msra.mxu0 0.0
      %4570 = vmatprep.subr.mxu0 0.0
      %4571 = vmatpush1.msra.mxu0 0.0
      %4572 = vmatprep.subr.mxu0 0.0
      %4573 = vmatpush1.msra.mxu0 0.0
      %4574 = vmatprep.subr.mxu0 0.0
      %4575 = vmatpush1.msra.mxu0 0.0
      %4576 = vmatprep.subr.mxu0 0.0
      %4577 = vmatpush1.msra.mxu0 0.0
      %4578 = vmatprep.subr.mxu0 0.0
      %4579 = vmatpush1.msra.mxu0 0.0
      %4580 = vmatprep.subr.mxu0 0.0
      %4581 = vmatpush1.msra.mxu0 0.0
      %4582 = vmatprep.subr.mxu0 0.0
      %4583 = vmatpush1.msra.mxu0 0.0
      %4584 = vmatprep.subr.mxu0 0.0
      %4585 = vmatpush1.msra.mxu0 0.0
      %4586 = vmatprep.subr.mxu0 0.0
      %4587 = vmatpush1.msra.mxu0 0.0
      %4588 = vmatprep.subr.mxu0 0.0
      %4589 = vmatpush1.msra.mxu0 0.0
      %4590 = vmatprep.subr.mxu0 0.0
      %4591 = vmatpush1.msra.mxu0 0.0
      %4592 = vmatprep.subr.mxu0 0.0
      %4593 = vmatpush1.msra.mxu0 0.0
      %4594 = vmatprep.subr.mxu0 0.0
      %4595 = vmatpush1.msra.mxu0 0.0
      %4596 = vmatprep.subr.mxu0 0.0
      %4597 = vmatpush1.msra.mxu0 0.0
      %4598 = vmatprep.subr.mxu0 0.0
      %4599 = vmatpush1.msra.mxu0 0.0
      %4600 = vmatprep.subr.mxu0 0.0
      %4601 = vmatpush1.msra.mxu0 0.0
      %4602 = vmatprep.subr.mxu0 0.0
      %4603 = vmatpush1.msra.mxu0 0.0
      %4604 = vmatprep.subr.mxu0 0.0
      %4605 = vmatpush1.msra.mxu0 0.0
      %4606 = vmatprep.subr.mxu0 0.0
      %4607 = vmatpush1.msra.mxu0 0.0
      %4608 = vmatprep.subr.mxu0 0.0
      %4609 = vmatpush1.msra.mxu0 0.0
      %4610 = vmatprep.subr.mxu0 0.0
      %4611 = vmatpush1.msra.mxu0 0.0
      %4612 = vmatprep.subr.mxu0 0.0
      %4613 = vmatpush1.msra.mxu0 0.0
      %4614 = vmatprep.subr.mxu0 0.0
      %4615 = vmatpush1.msra.mxu0 0.0
      %4616 = vmatprep.subr.mxu0 0.0
      %4617 = vmatpush1.msra.mxu0 0.0
      %4618 = vmatprep.subr.mxu0 0.0
      %4619 = vmatpush1.msra.mxu0 0.0
      %4620 = vmatprep.subr.mxu0 0.0
      %4621 = vmatpush1.msra.mxu0 0.0
      %4622 = vmatprep.subr.mxu0 0.0
      %4623 = vmatpush1.msra.mxu0 0.0
      %4624 = vmatprep.subr.mxu0 0.0
      %4625 = vmatpush1.msra.mxu0 0.0
      %4626 = vmatprep.subr.mxu0 0.0
      %4627 = vmatpush1.msra.mxu0 0.0
      %4628 = vmatprep.subr.mxu0 0.0
      %4629 = vmatpush1.msra.mxu0 0.0
      %4630 = vmatprep.mubr.f32.mxu0 0.0
      %4631 = vmatmul.mubr.f32.gmra.mrb[0].mxu0 %v4564
      %v4632 = vpop.f32.mrb[0].mxu0
      %v4633 = vadd.f32 0.0, %v4632
      %v4634 = vpop.f32.mrb[0].mxu0
      %v4635 = vadd.f32 0.0, %v4634
      %4636 = vdwg.mxu0
      %v4637 = vmul.f32 %v4633, %v1627
      %v4638 = vmul.f32 %v4635, %v1631
      %v4639 = vadd.f32 %v4549, %v4637
      %v4640 = vadd.f32 %v4550, %v4638
      %s4641 = scalar_lea.vmem %s14, 24
      %v4642 = vld [vmem:[%s4641] sm:$0xff]
      %4643 = vrot.lane.b32.xlu0 %v4368, 1
      %v4644 = vpop.permute.xlu0 %4643
      %4645 = vrot.lane.b32.xlu0 %v4369, 1
      %v4646 = vpop.permute.xlu0 %4645
      %4647 = vrot.lane.b32.xlu0 %v4370, 1
      %v4648 = vpop.permute.xlu0 %4647
      %v4649 = vsel %vm1741, %v4644, %v4646
      %v4650 = vsel %vm1741, %v4646, %v4648
      %v4654 = vsel %vm3120, %v4642, 0
      %4656 = vmatprep.subr.mxu0 %v4650
      %4657 = vmatpush1.msra.mxu0 %v4649
      %4658 = vmatprep.subr.mxu0 0.0
      %4659 = vmatpush1.msra.mxu0 0.0
      %4660 = vmatprep.subr.mxu0 0.0
      %4661 = vmatpush1.msra.mxu0 0.0
      %4662 = vmatprep.subr.mxu0 0.0
      %4663 = vmatpush1.msra.mxu0 0.0
      %4664 = vmatprep.subr.mxu0 0.0
      %4665 = vmatpush1.msra.mxu0 0.0
      %4666 = vmatprep.subr.mxu0 0.0
      %4667 = vmatpush1.msra.mxu0 0.0
      %4668 = vmatprep.subr.mxu0 0.0
      %4669 = vmatpush1.msra.mxu0 0.0
      %4670 = vmatprep.subr.mxu0 0.0
      %4671 = vmatpush1.msra.mxu0 0.0
      %4672 = vmatprep.subr.mxu0 0.0
      %4673 = vmatpush1.msra.mxu0 0.0
      %4674 = vmatprep.subr.mxu0 0.0
      %4675 = vmatpush1.msra.mxu0 0.0
      %4676 = vmatprep.subr.mxu0 0.0
      %4677 = vmatpush1.msra.mxu0 0.0
      %4678 = vmatprep.subr.mxu0 0.0
      %4679 = vmatpush1.msra.mxu0 0.0
      %4680 = vmatprep.subr.mxu0 0.0
      %4681 = vmatpush1.msra.mxu0 0.0
      %4682 = vmatprep.subr.mxu0 0.0
      %4683 = vmatpush1.msra.mxu0 0.0
      %4684 = vmatprep.subr.mxu0 0.0
      %4685 = vmatpush1.msra.mxu0 0.0
      %4686 = vmatprep.subr.mxu0 0.0
      %4687 = vmatpush1.msra.mxu0 0.0
      %4688 = vmatprep.subr.mxu0 0.0
      %4689 = vmatpush1.msra.mxu0 0.0
      %4690 = vmatprep.subr.mxu0 0.0
      %4691 = vmatpush1.msra.mxu0 0.0
      %4692 = vmatprep.subr.mxu0 0.0
      %4693 = vmatpush1.msra.mxu0 0.0
      %4694 = vmatprep.subr.mxu0 0.0
      %4695 = vmatpush1.msra.mxu0 0.0
      %4696 = vmatprep.subr.mxu0 0.0
      %4697 = vmatpush1.msra.mxu0 0.0
      %4698 = vmatprep.subr.mxu0 0.0
      %4699 = vmatpush1.msra.mxu0 0.0
      %4700 = vmatprep.subr.mxu0 0.0
      %4701 = vmatpush1.msra.mxu0 0.0
      %4702 = vmatprep.subr.mxu0 0.0
      %4703 = vmatpush1.msra.mxu0 0.0
      %4704 = vmatprep.subr.mxu0 0.0
      %4705 = vmatpush1.msra.mxu0 0.0
      %4706 = vmatprep.subr.mxu0 0.0
      %4707 = vmatpush1.msra.mxu0 0.0
      %4708 = vmatprep.subr.mxu0 0.0
      %4709 = vmatpush1.msra.mxu0 0.0
      %4710 = vmatprep.subr.mxu0 0.0
      %4711 = vmatpush1.msra.mxu0 0.0
      %4712 = vmatprep.subr.mxu0 0.0
      %4713 = vmatpush1.msra.mxu0 0.0
      %4714 = vmatprep.subr.mxu0 0.0
      %4715 = vmatpush1.msra.mxu0 0.0
      %4716 = vmatprep.subr.mxu0 0.0
      %4717 = vmatpush1.msra.mxu0 0.0
      %4718 = vmatprep.subr.mxu0 0.0
      %4719 = vmatpush1.msra.mxu0 0.0
      %4720 = vmatprep.mubr.f32.mxu0 0.0
      %4721 = vmatmul.mubr.f32.gmra.mrb[0].mxu0 %v4654
      %v4722 = vpop.f32.mrb[0].mxu0
      %v4723 = vadd.f32 0.0, %v4722
      %v4724 = vpop.f32.mrb[0].mxu0
      %v4725 = vadd.f32 0.0, %v4724
      %4726 = vdwg.mxu0
      %v4727 = vmul.f32 %v4723, %v1122
      %v4728 = vmul.f32 %v4725, %v1126
      %v4729 = vadd.f32 %v4639, %v4727
      %v4730 = vadd.f32 %v4640, %v4728
      %s4731 = scalar_lea.vmem %s14, 32
      %v4732 = vld [vmem:[%s4731] sm:$0xff]
      %v4734 = vsel %vm3120, %v4732, 0
      %4736 = vmatprep.subr.mxu0 %v4370
      %4737 = vmatpush1.msra.mxu0 %v4369
      %4738 = vmatprep.subr.mxu0 0.0
      %4739 = vmatpush1.msra.mxu0 0.0
      %4740 = vmatprep.subr.mxu0 0.0
      %4741 = vmatpush1.msra.mxu0 0.0
      %4742 = vmatprep.subr.mxu0 0.0
      %4743 = vmatpush1.msra.mxu0 0.0
      %4744 = vmatprep.subr.mxu0 0.0
      %4745 = vmatpush1.msra.mxu0 0.0
      %4746 = vmatprep.subr.mxu0 0.0
      %4747 = vmatpush1.msra.mxu0 0.0
      %4748 = vmatprep.subr.mxu0 0.0
      %4749 = vmatpush1.msra.mxu0 0.0
      %4750 = vmatprep.subr.mxu0 0.0
      %4751 = vmatpush1.msra.mxu0 0.0
      %4752 = vmatprep.subr.mxu0 0.0
      %4753 = vmatpush1.msra.mxu0 0.0
      %4754 = vmatprep.subr.mxu0 0.0
      %4755 = vmatpush1.msra.mxu0 0.0
      %4756 = vmatprep.subr.mxu0 0.0
      %4757 = vmatpush1.msra.mxu0 0.0
      %4758 = vmatprep.subr.mxu0 0.0
      %4759 = vmatpush1.msra.mxu0 0.0
      %4760 = vmatprep.subr.mxu0 0.0
      %4761 = vmatpush1.msra.mxu0 0.0
      %4762 = vmatprep.subr.mxu0 0.0
      %4763 = vmatpush1.msra.mxu0 0.0
      %4764 = vmatprep.subr.mxu0 0.0
      %4765 = vmatpush1.msra.mxu0 0.0
      %4766 = vmatprep.subr.mxu0 0.0
      %4767 = vmatpush1.msra.mxu0 0.0
      %4768 = vmatprep.subr.mxu0 0.0
      %4769 = vmatpush1.msra.mxu0 0.0
      %4770 = vmatprep.subr.mxu0 0.0
      %4771 = vmatpush1.msra.mxu0 0.0
      %4772 = vmatprep.subr.mxu0 0.0
      %4773 = vmatpush1.msra.mxu0 0.0
      %4774 = vmatprep.subr.mxu0 0.0
      %4775 = vmatpush1.msra.mxu0 0.0
      %4776 = vmatprep.subr.mxu0 0.0
      %4777 = vmatpush1.msra.mxu0 0.0
      %4778 = vmatprep.subr.mxu0 0.0
      %4779 = vmatpush1.msra.mxu0 0.0
      %4780 = vmatprep.subr.mxu0 0.0
      %4781 = vmatpush1.msra.mxu0 0.0
      %4782 = vmatprep.subr.mxu0 0.0
      %4783 = vmatpush1.msra.mxu0 0.0
      %4784 = vmatprep.subr.mxu0 0.0
      %4785 = vmatpush1.msra.mxu0 0.0
      %4786 = vmatprep.subr.mxu0 0.0
      %4787 = vmatpush1.msra.mxu0 0.0
      %4788 = vmatprep.subr.mxu0 0.0
      %4789 = vmatpush1.msra.mxu0 0.0
      %4790 = vmatprep.subr.mxu0 0.0
      %4791 = vmatpush1.msra.mxu0 0.0
      %4792 = vmatprep.subr.mxu0 0.0
      %4793 = vmatpush1.msra.mxu0 0.0
      %4794 = vmatprep.subr.mxu0 0.0
      %4795 = vmatpush1.msra.mxu0 0.0
      %4796 = vmatprep.subr.mxu0 0.0
      %4797 = vmatpush1.msra.mxu0 0.0
      %4798 = vmatprep.subr.mxu0 0.0
      %4799 = vmatpush1.msra.mxu0 0.0
      %4800 = vmatprep.mubr.f32.mxu0 0.0
      %4801 = vmatmul.mubr.f32.gmra.mrb[0].mxu0 %v4734
      %v4802 = vpop.f32.mrb[0].mxu0
      %v4803 = vadd.f32 0.0, %v4802
      %v4804 = vpop.f32.mrb[0].mxu0
      %v4805 = vadd.f32 0.0, %v4804
      %4806 = vdwg.mxu0
      %v4807 = vadd.f32 %v4729, %v4803
      %v4808 = vadd.f32 %v4730, %v4805
      %v4809 = vld [vmem:[#allocation4 + $0x8] sm:$0xff]
      %v4810 = vld [vmem:[#allocation4 + $0x10] sm:$0xff]
      %v4811 = vld [vmem:[#allocation4 + $0x18] sm:$0xff]
      %s4812 = scalar_lea.vmem %s14, 40
      %v4813 = vld [vmem:[%s4812] sm:$0xff]
      %4817 = vrot.lane.b32.xlu0 %v4809, 127
      %v4818 = vpop.permute.xlu0 %4817
      %4819 = vrot.lane.b32.xlu0 %v4810, 127
      %v4820 = vpop.permute.xlu0 %4819
      %4821 = vrot.lane.b32.xlu0 %v4811, 127
      %v4822 = vpop.permute.xlu0 %4821
      %v4823 = vsel %vm2170, %v4818, %v4820
      %v4824 = vsel %vm2170, %v4820, %v4822
      %v4828 = vsel %vm3120, %v4813, 0
      %4830 = vmatprep.subr.mxu0 %v4824
      %4831 = vmatpush1.msra.mxu0 %v4823
      %4832 = vmatprep.subr.mxu0 0.0
      %4833 = vmatpush1.msra.mxu0 0.0
      %4834 = vmatprep.subr.mxu0 0.0
      %4835 = vmatpush1.msra.mxu0 0.0
      %4836 = vmatprep.subr.mxu0 0.0
      %4837 = vmatpush1.msra.mxu0 0.0
      %4838 = vmatprep.subr.mxu0 0.0
      %4839 = vmatpush1.msra.mxu0 0.0
      %4840 = vmatprep.subr.mxu0 0.0
      %4841 = vmatpush1.msra.mxu0 0.0
      %4842 = vmatprep.subr.mxu0 0.0
      %4843 = vmatpush1.msra.mxu0 0.0
      %4844 = vmatprep.subr.mxu0 0.0
      %4845 = vmatpush1.msra.mxu0 0.0
      %4846 = vmatprep.subr.mxu0 0.0
      %4847 = vmatpush1.msra.mxu0 0.0
      %4848 = vmatprep.subr.mxu0 0.0
      %4849 = vmatpush1.msra.mxu0 0.0
      %4850 = vmatprep.subr.mxu0 0.0
      %4851 = vmatpush1.msra.mxu0 0.0
      %4852 = vmatprep.subr.mxu0 0.0
      %4853 = vmatpush1.msra.mxu0 0.0
      %4854 = vmatprep.subr.mxu0 0.0
      %4855 = vmatpush1.msra.mxu0 0.0
      %4856 = vmatprep.subr.mxu0 0.0
      %4857 = vmatpush1.msra.mxu0 0.0
      %4858 = vmatprep.subr.mxu0 0.0
      %4859 = vmatpush1.msra.mxu0 0.0
      %4860 = vmatprep.subr.mxu0 0.0
      %4861 = vmatpush1.msra.mxu0 0.0
      %4862 = vmatprep.subr.mxu0 0.0
      %4863 = vmatpush1.msra.mxu0 0.0
      %4864 = vmatprep.subr.mxu0 0.0
      %4865 = vmatpush1.msra.mxu0 0.0
      %4866 = vmatprep.subr.mxu0 0.0
      %4867 = vmatpush1.msra.mxu0 0.0
      %4868 = vmatprep.subr.mxu0 0.0
      %4869 = vmatpush1.msra.mxu0 0.0
      %4870 = vmatprep.subr.mxu0 0.0
      %4871 = vmatpush1.msra.mxu0 0.0
      %4872 = vmatprep.subr.mxu0 0.0
      %4873 = vmatpush1.msra.mxu0 0.0
      %4874 = vmatprep.subr.mxu0 0.0
      %4875 = vmatpush1.msra.mxu0 0.0
      %4876 = vmatprep.subr.mxu0 0.0
      %4877 = vmatpush1.msra.mxu0 0.0
      %4878 = vmatprep.subr.mxu0 0.0
      %4879 = vmatpush1.msra.mxu0 0.0
      %4880 = vmatprep.subr.mxu0 0.0
      %4881 = vmatpush1.msra.mxu0 0.0
      %4882 = vmatprep.subr.mxu0 0.0
      %4883 = vmatpush1.msra.mxu0 0.0
      %4884 = vmatprep.subr.mxu0 0.0
      %4885 = vmatpush1.msra.mxu0 0.0
      %4886 = vmatprep.subr.mxu0 0.0
      %4887 = vmatpush1.msra.mxu0 0.0
      %4888 = vmatprep.subr.mxu0 0.0
      %4889 = vmatpush1.msra.mxu0 0.0
      %4890 = vmatprep.subr.mxu0 0.0
      %4891 = vmatpush1.msra.mxu0 0.0
      %4892 = vmatprep.subr.mxu0 0.0
      %4893 = vmatpush1.msra.mxu0 0.0
      %4894 = vmatprep.mubr.f32.mxu0 0.0
      %4895 = vmatmul.mubr.f32.gmra.mrb[0].mxu0 %v4828
      %v4896 = vpop.f32.mrb[0].mxu0
      %v4897 = vadd.f32 0.0, %v4896
      %v4898 = vpop.f32.mrb[0].mxu0
      %v4899 = vadd.f32 0.0, %v4898
      %4900 = vdwg.mxu0
      %v4901 = vmul.f32 %v4897, %v1627
      %v4902 = vmul.f32 %v4899, %v1631
      %v4903 = vadd.f32 %v4807, %v4901
      %v4904 = vadd.f32 %v4808, %v4902
      %s4905 = scalar_lea.vmem %s14, 48
      %v4906 = vld [vmem:[%s4905] sm:$0xff]
      %4907 = vrot.lane.b32.xlu0 %v4809, 113
      %v4908 = vpop.permute.xlu0 %4907
      %4909 = vrot.lane.b32.xlu0 %v4810, 113
      %v4910 = vpop.permute.xlu0 %4909
      %4911 = vrot.lane.b32.xlu0 %v4811, 113
      %v4912 = vpop.permute.xlu0 %4911
      %v4913 = vsel %vm2419, %v4908, %v4910
      %v4914 = vsel %vm2419, %v4910, %v4912
      %v4918 = vsel %vm3120, %v4906, 0
      %4920 = vmatprep.subr.mxu0 %v4914
      %4921 = vmatpush1.msra.mxu0 %v4913
      %4922 = vmatprep.subr.mxu0 0.0
      %4923 = vmatpush1.msra.mxu0 0.0
      %4924 = vmatprep.subr.mxu0 0.0
      %4925 = vmatpush1.msra.mxu0 0.0
      %4926 = vmatprep.subr.mxu0 0.0
      %4927 = vmatpush1.msra.mxu0 0.0
      %4928 = vmatprep.subr.mxu0 0.0
      %4929 = vmatpush1.msra.mxu0 0.0
      %4930 = vmatprep.subr.mxu0 0.0
      %4931 = vmatpush1.msra.mxu0 0.0
      %4932 = vmatprep.subr.mxu0 0.0
      %4933 = vmatpush1.msra.mxu0 0.0
      %4934 = vmatprep.subr.mxu0 0.0
      %4935 = vmatpush1.msra.mxu0 0.0
      %4936 = vmatprep.subr.mxu0 0.0
      %4937 = vmatpush1.msra.mxu0 0.0
      %4938 = vmatprep.subr.mxu0 0.0
      %4939 = vmatpush1.msra.mxu0 0.0
      %4940 = vmatprep.subr.mxu0 0.0
      %4941 = vmatpush1.msra.mxu0 0.0
      %4942 = vmatprep.subr.mxu0 0.0
      %4943 = vmatpush1.msra.mxu0 0.0
      %4944 = vmatprep.subr.mxu0 0.0
      %4945 = vmatpush1.msra.mxu0 0.0
      %4946 = vmatprep.subr.mxu0 0.0
      %4947 = vmatpush1.msra.mxu0 0.0
      %4948 = vmatprep.subr.mxu0 0.0
      %4949 = vmatpush1.msra.mxu0 0.0
      %4950 = vmatprep.subr.mxu0 0.0
      %4951 = vmatpush1.msra.mxu0 0.0
      %4952 = vmatprep.subr.mxu0 0.0
      %4953 = vmatpush1.msra.mxu0 0.0
      %4954 = vmatprep.subr.mxu0 0.0
      %4955 = vmatpush1.msra.mxu0 0.0
      %4956 = vmatprep.subr.mxu0 0.0
      %4957 = vmatpush1.msra.mxu0 0.0
      %4958 = vmatprep.subr.mxu0 0.0
      %4959 = vmatpush1.msra.mxu0 0.0
      %4960 = vmatprep.subr.mxu0 0.0
      %4961 = vmatpush1.msra.mxu0 0.0
      %4962 = vmatprep.subr.mxu0 0.0
      %4963 = vmatpush1.msra.mxu0 0.0
      %4964 = vmatprep.subr.mxu0 0.0
      %4965 = vmatpush1.msra.mxu0 0.0
      %4966 = vmatprep.subr.mxu0 0.0
      %4967 = vmatpush1.msra.mxu0 0.0
      %4968 = vmatprep.subr.mxu0 0.0
      %4969 = vmatpush1.msra.mxu0 0.0
      %4970 = vmatprep.subr.mxu0 0.0
      %4971 = vmatpush1.msra.mxu0 0.0
      %4972 = vmatprep.subr.mxu0 0.0
      %4973 = vmatpush1.msra.mxu0 0.0
      %4974 = vmatprep.subr.mxu0 0.0
      %4975 = vmatpush1.msra.mxu0 0.0
      %4976 = vmatprep.subr.mxu0 0.0
      %4977 = vmatpush1.msra.mxu0 0.0
      %4978 = vmatprep.subr.mxu0 0.0
      %4979 = vmatpush1.msra.mxu0 0.0
      %4980 = vmatprep.subr.mxu0 0.0
      %4981 = vmatpush1.msra.mxu0 0.0
      %4982 = vmatprep.subr.mxu0 0.0
      %4983 = vmatpush1.msra.mxu0 0.0
      %4984 = vmatprep.mubr.f32.mxu0 0.0
      %4985 = vmatmul.mubr.f32.gmra.mrb[0].mxu0 %v4918
      %v4986 = vpop.f32.mrb[0].mxu0
      %v4987 = vadd.f32 0.0, %v4986
      %v4988 = vpop.f32.mrb[0].mxu0
      %v4989 = vadd.f32 0.0, %v4988
      %4990 = vdwg.mxu0
      %v4991 = vmul.f32 %v4987, %v1122
      %v4992 = vmul.f32 %v4989, %v1126
      %v4993 = vadd.f32 %v4903, %v4991
      %v4994 = vadd.f32 %v4904, %v4992
      %s4995 = scalar_lea.vmem %s14, 56
      %v4996 = vld [vmem:[%s4995] sm:$0xff]
      %4997 = vrot.lane.b32.xlu0 %v4809, 112
      %v4998 = vpop.permute.xlu0 %4997
      %4999 = vrot.lane.b32.xlu0 %v4810, 112
      %v5000 = vpop.permute.xlu0 %4999
      %5001 = vrot.lane.b32.xlu0 %v4811, 112
      %v5002 = vpop.permute.xlu0 %5001
      %v5003 = vsel %vm2668, %v4998, %v5000
      %v5004 = vsel %vm2668, %v5000, %v5002
      %v5008 = vsel %vm3120, %v4996, 0
      %5010 = vmatprep.subr.mxu0 %v5004
      %5011 = vmatpush1.msra.mxu0 %v5003
      %5012 = vmatprep.subr.mxu0 0.0
      %5013 = vmatpush1.msra.mxu0 0.0
      %5014 = vmatprep.subr.mxu0 0.0
      %5015 = vmatpush1.msra.mxu0 0.0
      %5016 = vmatprep.subr.mxu0 0.0
      %5017 = vmatpush1.msra.mxu0 0.0
      %5018 = vmatprep.subr.mxu0 0.0
      %5019 = vmatpush1.msra.mxu0 0.0
      %5020 = vmatprep.subr.mxu0 0.0
      %5021 = vmatpush1.msra.mxu0 0.0
      %5022 = vmatprep.subr.mxu0 0.0
      %5023 = vmatpush1.msra.mxu0 0.0
      %5024 = vmatprep.subr.mxu0 0.0
      %5025 = vmatpush1.msra.mxu0 0.0
      %5026 = vmatprep.subr.mxu0 0.0
      %5027 = vmatpush1.msra.mxu0 0.0
      %5028 = vmatprep.subr.mxu0 0.0
      %5029 = vmatpush1.msra.mxu0 0.0
      %5030 = vmatprep.subr.mxu0 0.0
      %5031 = vmatpush1.msra.mxu0 0.0
      %5032 = vmatprep.subr.mxu0 0.0
      %5033 = vmatpush1.msra.mxu0 0.0
      %5034 = vmatprep.subr.mxu0 0.0
      %5035 = vmatpush1.msra.mxu0 0.0
      %5036 = vmatprep.subr.mxu0 0.0
      %5037 = vmatpush1.msra.mxu0 0.0
      %5038 = vmatprep.subr.mxu0 0.0
      %5039 = vmatpush1.msra.mxu0 0.0
      %5040 = vmatprep.subr.mxu0 0.0
      %5041 = vmatpush1.msra.mxu0 0.0
      %5042 = vmatprep.subr.mxu0 0.0
      %5043 = vmatpush1.msra.mxu0 0.0
      %5044 = vmatprep.subr.mxu0 0.0
      %5045 = vmatpush1.msra.mxu0 0.0
      %5046 = vmatprep.subr.mxu0 0.0
      %5047 = vmatpush1.msra.mxu0 0.0
      %5048 = vmatprep.subr.mxu0 0.0
      %5049 = vmatpush1.msra.mxu0 0.0
      %5050 = vmatprep.subr.mxu0 0.0
      %5051 = vmatpush1.msra.mxu0 0.0
      %5052 = vmatprep.subr.mxu0 0.0
      %5053 = vmatpush1.msra.mxu0 0.0
      %5054 = vmatprep.subr.mxu0 0.0
      %5055 = vmatpush1.msra.mxu0 0.0
      %5056 = vmatprep.subr.mxu0 0.0
      %5057 = vmatpush1.msra.mxu0 0.0
      %5058 = vmatprep.subr.mxu0 0.0
      %5059 = vmatpush1.msra.mxu0 0.0
      %5060 = vmatprep.subr.mxu0 0.0
      %5061 = vmatpush1.msra.mxu0 0.0
      %5062 = vmatprep.subr.mxu0 0.0
      %5063 = vmatpush1.msra.mxu0 0.0
      %5064 = vmatprep.subr.mxu0 0.0
      %5065 = vmatpush1.msra.mxu0 0.0
      %5066 = vmatprep.subr.mxu0 0.0
      %5067 = vmatpush1.msra.mxu0 0.0
      %5068 = vmatprep.subr.mxu0 0.0
      %5069 = vmatpush1.msra.mxu0 0.0
      %5070 = vmatprep.subr.mxu0 0.0
      %5071 = vmatpush1.msra.mxu0 0.0
      %5072 = vmatprep.subr.mxu0 0.0
      %5073 = vmatpush1.msra.mxu0 0.0
      %5074 = vmatprep.mubr.f32.mxu0 0.0
      %5075 = vmatmul.mubr.f32.gmra.mrb[0].mxu0 %v5008
      %v5076 = vpop.f32.mrb[0].mxu0
      %v5077 = vadd.f32 0.0, %v5076
      %v5078 = vpop.f32.mrb[0].mxu0
      %v5079 = vadd.f32 0.0, %v5078
      %5080 = vdwg.mxu0
      %v5081 = vadd.f32 %v4993, %v5077
      %v5082 = vadd.f32 %v4994, %v5079
      %s5083 = scalar_lea.vmem %s14, 64
      %v5084 = vld [vmem:[%s5083] sm:$0xff]
      %5085 = vrot.lane.b32.xlu0 %v4809, 111
      %v5086 = vpop.permute.xlu0 %5085
      %5087 = vrot.lane.b32.xlu0 %v4810, 111
      %v5088 = vpop.permute.xlu0 %5087
      %5089 = vrot.lane.b32.xlu0 %v4811, 111
      %v5090 = vpop.permute.xlu0 %5089
      %v5091 = vsel %vm2913, %v5086, %v5088
      %v5092 = vsel %vm2913, %v5088, %v5090
      %v5096 = vsel %vm3120, %v5084, 0
      %5098 = vmatprep.subr.mxu0 %v5092
      %5099 = vmatpush1.msra.mxu0 %v5091
      %5100 = vmatprep.subr.mxu0 0.0
      %5101 = vmatpush1.msra.mxu0 0.0
      %5102 = vmatprep.subr.mxu0 0.0
      %5103 = vmatpush1.msra.mxu0 0.0
      %5104 = vmatprep.subr.mxu0 0.0
      %5105 = vmatpush1.msra.mxu0 0.0
      %5106 = vmatprep.subr.mxu0 0.0
      %5107 = vmatpush1.msra.mxu0 0.0
      %5108 = vmatprep.subr.mxu0 0.0
      %5109 = vmatpush1.msra.mxu0 0.0
      %5110 = vmatprep.subr.mxu0 0.0
      %5111 = vmatpush1.msra.mxu0 0.0
      %5112 = vmatprep.subr.mxu0 0.0
      %5113 = vmatpush1.msra.mxu0 0.0
      %5114 = vmatprep.subr.mxu0 0.0
      %5115 = vmatpush1.msra.mxu0 0.0
      %5116 = vmatprep.subr.mxu0 0.0
      %5117 = vmatpush1.msra.mxu0 0.0
      %5118 = vmatprep.subr.mxu0 0.0
      %5119 = vmatpush1.msra.mxu0 0.0
      %5120 = vmatprep.subr.mxu0 0.0
      %5121 = vmatpush1.msra.mxu0 0.0
      %5122 = vmatprep.subr.mxu0 0.0
      %5123 = vmatpush1.msra.mxu0 0.0
      %5124 = vmatprep.subr.mxu0 0.0
      %5125 = vmatpush1.msra.mxu0 0.0
      %5126 = vmatprep.subr.mxu0 0.0
      %5127 = vmatpush1.msra.mxu0 0.0
      %5128 = vmatprep.subr.mxu0 0.0
      %5129 = vmatpush1.msra.mxu0 0.0
      %5130 = vmatprep.subr.mxu0 0.0
      %5131 = vmatpush1.msra.mxu0 0.0
      %5132 = vmatprep.subr.mxu0 0.0
      %5133 = vmatpush1.msra.mxu0 0.0
      %5134 = vmatprep.subr.mxu0 0.0
      %5135 = vmatpush1.msra.mxu0 0.0
      %5136 = vmatprep.subr.mxu0 0.0
      %5137 = vmatpush1.msra.mxu0 0.0
      %5138 = vmatprep.subr.mxu0 0.0
      %5139 = vmatpush1.msra.mxu0 0.0
      %5140 = vmatprep.subr.mxu0 0.0
      %5141 = vmatpush1.msra.mxu0 0.0
      %5142 = vmatprep.subr.mxu0 0.0
      %5143 = vmatpush1.msra.mxu0 0.0
      %5144 = vmatprep.subr.mxu0 0.0
      %5145 = vmatpush1.msra.mxu0 0.0
      %5146 = vmatprep.subr.mxu0 0.0
      %5147 = vmatpush1.msra.mxu0 0.0
      %5148 = vmatprep.subr.mxu0 0.0
      %5149 = vmatpush1.msra.mxu0 0.0
      %5150 = vmatprep.subr.mxu0 0.0
      %5151 = vmatpush1.msra.mxu0 0.0
      %5152 = vmatprep.subr.mxu0 0.0
      %5153 = vmatpush1.msra.mxu0 0.0
      %5154 = vmatprep.subr.mxu0 0.0
      %5155 = vmatpush1.msra.mxu0 0.0
      %5156 = vmatprep.subr.mxu0 0.0
      %5157 = vmatpush1.msra.mxu0 0.0
      %5158 = vmatprep.subr.mxu0 0.0
      %5159 = vmatpush1.msra.mxu0 0.0
      %5160 = vmatprep.subr.mxu0 0.0
      %5161 = vmatpush1.msra.mxu0 0.0
      %5162 = vmatprep.mubr.f32.mxu0 0.0
      %5163 = vmatmul.mubr.f32.gmra.mrb[0].mxu0 %v5096
      %v5164 = vpop.f32.mrb[0].mxu0
      %v5165 = vadd.f32 0.0, %v5164
      %v5166 = vpop.f32.mrb[0].mxu0
      %v5167 = vadd.f32 0.0, %v5166
      %5168 = vdwg.mxu0
      %v5169 = vmul.f32 %v5165, %v1627
      %v5170 = vmul.f32 %v5167, %v1631
      %v5171 = vadd.f32 %v5081, %v5169
      %v5172 = vadd.f32 %v5082, %v5170
      %v5173 = vld [vmem:[%s15] sm:$0xff]
      %5175 = vset.pattern.permute.xlu0 0
      %5176 = vperm.xlu0 %5175, %v5173
      %v5177 = vpop.permute.xlu0 %5176
      %v5179 = vmul.f32 %v5171, %v5177
      %v5180 = vmul.f32 %v5172, %v5177
      %v5181 = vld [vmem:[%s16] sm:$0xff]
      %5183 = vset.pattern.permute.xlu0 0
      %5184 = vperm.xlu0 %5183, %v5181
      %v5185 = vpop.permute.xlu0 %5184
      %v5187 = vadd.f32 %v5179, %v5185
      %v5188 = vadd.f32 %v5180, %v5185
      %v5189 = vmax.f32 %v5187, 0.0
      %v5190 = vmax.f32 %v5188, 0.0
      %5191 = vst [vmem:[#allocation4] sm:$0xff] 0.0
      %5192 = vst [vmem:[#allocation4 + $0x18] sm:$0xff] 0.0
      %5193 = vst [vmem:[#allocation4 + $0x8] sm:$0xff] %v4362
      %5194 = vst [vmem:[#allocation4 + $0x10] sm:$0xff] %v4363
      %v5195 = vld [vmem:[#allocation4] sm:$0xff]
      %v5196 = vld [vmem:[#allocation4 + $0x8] sm:$0xff]
      %v5197 = vld [vmem:[#allocation4 + $0x10] sm:$0xff]
      %v5198 = vld [vmem:[%s17] sm:$0xff]
      %5202 = vrot.lane.b32.xlu0 %v5195, 17
      %v5203 = vpop.permute.xlu0 %5202
      %5204 = vrot.lane.b32.xlu0 %v5196, 17
      %v5205 = vpop.permute.xlu0 %5204
      %5206 = vrot.lane.b32.xlu0 %v5197, 17
      %v5207 = vpop.permute.xlu0 %5206
      %v5208 = vsel %vm976, %v5203, %v5205
      %v5209 = vsel %vm976, %v5205, %v5207
      %v5213 = vsel %vm3120, %v5198, 0
      %5215 = vmatprep.subr.mxu0 %v5209
      %5216 = vmatpush1.msra.mxu0 %v5208
      %5217 = vmatprep.subr.mxu0 0.0
      %5218 = vmatpush1.msra.mxu0 0.0
      %5219 = vmatprep.subr.mxu0 0.0
      %5220 = vmatpush1.msra.mxu0 0.0
      %5221 = vmatprep.subr.mxu0 0.0
      %5222 = vmatpush1.msra.mxu0 0.0
      %5223 = vmatprep.subr.mxu0 0.0
      %5224 = vmatpush1.msra.mxu0 0.0
      %5225 = vmatprep.subr.mxu0 0.0
      %5226 = vmatpush1.msra.mxu0 0.0
      %5227 = vmatprep.subr.mxu0 0.0
      %5228 = vmatpush1.msra.mxu0 0.0
      %5229 = vmatprep.subr.mxu0 0.0
      %5230 = vmatpush1.msra.mxu0 0.0
      %5231 = vmatprep.subr.mxu0 0.0
      %5232 = vmatpush1.msra.mxu0 0.0
      %5233 = vmatprep.subr.mxu0 0.0
      %5234 = vmatpush1.msra.mxu0 0.0
      %5235 = vmatprep.subr.mxu0 0.0
      %5236 = vmatpush1.msra.mxu0 0.0
      %5237 = vmatprep.subr.mxu0 0.0
      %5238 = vmatpush1.msra.mxu0 0.0
      %5239 = vmatprep.subr.mxu0 0.0
      %5240 = vmatpush1.msra.mxu0 0.0
      %5241 = vmatprep.subr.mxu0 0.0
      %5242 = vmatpush1.msra.mxu0 0.0
      %5243 = vmatprep.subr.mxu0 0.0
      %5244 = vmatpush1.msra.mxu0 0.0
      %5245 = vmatprep.subr.mxu0 0.0
      %5246 = vmatpush1.msra.mxu0 0.0
      %5247 = vmatprep.subr.mxu0 0.0
      %5248 = vmatpush1.msra.mxu0 0.0
      %5249 = vmatprep.subr.mxu0 0.0
      %5250 = vmatpush1.msra.mxu0 0.0
      %5251 = vmatprep.subr.mxu0 0.0
      %5252 = vmatpush1.msra.mxu0 0.0
      %5253 = vmatprep.subr.mxu0 0.0
      %5254 = vmatpush1.msra.mxu0 0.0
      %5255 = vmatprep.subr.mxu0 0.0
      %5256 = vmatpush1.msra.mxu0 0.0
      %5257 = vmatprep.subr.mxu0 0.0
      %5258 = vmatpush1.msra.mxu0 0.0
      %5259 = vmatprep.subr.mxu0 0.0
      %5260 = vmatpush1.msra.mxu0 0.0
      %5261 = vmatprep.subr.mxu0 0.0
      %5262 = vmatpush1.msra.mxu0 0.0
      %5263 = vmatprep.subr.mxu0 0.0
      %5264 = vmatpush1.msra.mxu0 0.0
      %5265 = vmatprep.subr.mxu0 0.0
      %5266 = vmatpush1.msra.mxu0 0.0
      %5267 = vmatprep.subr.mxu0 0.0
      %5268 = vmatpush1.msra.mxu0 0.0
      %5269 = vmatprep.subr.mxu0 0.0
      %5270 = vmatpush1.msra.mxu0 0.0
      %5271 = vmatprep.subr.mxu0 0.0
      %5272 = vmatpush1.msra.mxu0 0.0
      %5273 = vmatprep.subr.mxu0 0.0
      %5274 = vmatpush1.msra.mxu0 0.0
      %5275 = vmatprep.subr.mxu0 0.0
      %5276 = vmatpush1.msra.mxu0 0.0
      %5277 = vmatprep.subr.mxu0 0.0
      %5278 = vmatpush1.msra.mxu0 0.0
      %5279 = vmatprep.mubr.f32.mxu0 0.0
      %5280 = vmatmul.mubr.f32.gmra.mrb[0].mxu0 %v5213
      %v5281 = vpop.f32.mrb[0].mxu0
      %v5282 = vadd.f32 0.0, %v5281
      %v5283 = vpop.f32.mrb[0].mxu0
      %v5284 = vadd.f32 0.0, %v5283
      %5285 = vdwg.mxu0
      %v5286 = vmul.f32 %v5282, %v1122
      %v5287 = vmul.f32 %v5284, %v1126
      %v5288 = vadd.f32 %v5286, 0.0
      %v5289 = vadd.f32 %v5287, 0.0
      %s5290 = scalar_lea.vmem %s17, 8
      %v5291 = vld [vmem:[%s5290] sm:$0xff]
      %5292 = vrot.lane.b32.xlu0 %v5195, 16
      %v5293 = vpop.permute.xlu0 %5292
      %5294 = vrot.lane.b32.xlu0 %v5196, 16
      %v5295 = vpop.permute.xlu0 %5294
      %5296 = vrot.lane.b32.xlu0 %v5197, 16
      %v5297 = vpop.permute.xlu0 %5296
      %v5298 = vsel %vm1236, %v5293, %v5295
      %v5299 = vsel %vm1236, %v5295, %v5297
      %v5303 = vsel %vm3120, %v5291, 0
      %5305 = vmatprep.subr.mxu0 %v5299
      %5306 = vmatpush1.msra.mxu0 %v5298
      %5307 = vmatprep.subr.mxu0 0.0
      %5308 = vmatpush1.msra.mxu0 0.0
      %5309 = vmatprep.subr.mxu0 0.0
      %5310 = vmatpush1.msra.mxu0 0.0
      %5311 = vmatprep.subr.mxu0 0.0
      %5312 = vmatpush1.msra.mxu0 0.0
      %5313 = vmatprep.subr.mxu0 0.0
      %5314 = vmatpush1.msra.mxu0 0.0
      %5315 = vmatprep.subr.mxu0 0.0
      %5316 = vmatpush1.msra.mxu0 0.0
      %5317 = vmatprep.subr.mxu0 0.0
      %5318 = vmatpush1.msra.mxu0 0.0
      %5319 = vmatprep.subr.mxu0 0.0
      %5320 = vmatpush1.msra.mxu0 0.0
      %5321 = vmatprep.subr.mxu0 0.0
      %5322 = vmatpush1.msra.mxu0 0.0
      %5323 = vmatprep.subr.mxu0 0.0
      %5324 = vmatpush1.msra.mxu0 0.0
      %5325 = vmatprep.subr.mxu0 0.0
      %5326 = vmatpush1.msra.mxu0 0.0
      %5327 = vmatprep.subr.mxu0 0.0
      %5328 = vmatpush1.msra.mxu0 0.0
      %5329 = vmatprep.subr.mxu0 0.0
      %5330 = vmatpush1.msra.mxu0 0.0
      %5331 = vmatprep.subr.mxu0 0.0
      %5332 = vmatpush1.msra.mxu0 0.0
      %5333 = vmatprep.subr.mxu0 0.0
      %5334 = vmatpush1.msra.mxu0 0.0
      %5335 = vmatprep.subr.mxu0 0.0
      %5336 = vmatpush1.msra.mxu0 0.0
      %5337 = vmatprep.subr.mxu0 0.0
      %5338 = vmatpush1.msra.mxu0 0.0
      %5339 = vmatprep.subr.mxu0 0.0
      %5340 = vmatpush1.msra.mxu0 0.0
      %5341 = vmatprep.subr.mxu0 0.0
      %5342 = vmatpush1.msra.mxu0 0.0
      %5343 = vmatprep.subr.mxu0 0.0
      %5344 = vmatpush1.msra.mxu0 0.0
      %5345 = vmatprep.subr.mxu0 0.0
      %5346 = vmatpush1.msra.mxu0 0.0
      %5347 = vmatprep.subr.mxu0 0.0
      %5348 = vmatpush1.msra.mxu0 0.0
      %5349 = vmatprep.subr.mxu0 0.0
      %5350 = vmatpush1.msra.mxu0 0.0
      %5351 = vmatprep.subr.mxu0 0.0
      %5352 = vmatpush1.msra.mxu0 0.0
      %5353 = vmatprep.subr.mxu0 0.0
      %5354 = vmatpush1.msra.mxu0 0.0
      %5355 = vmatprep.subr.mxu0 0.0
      %5356 = vmatpush1.msra.mxu0 0.0
      %5357 = vmatprep.subr.mxu0 0.0
      %5358 = vmatpush1.msra.mxu0 0.0
      %5359 = vmatprep.subr.mxu0 0.0
      %5360 = vmatpush1.msra.mxu0 0.0
      %5361 = vmatprep.subr.mxu0 0.0
      %5362 = vmatpush1.msra.mxu0 0.0
      %5363 = vmatprep.subr.mxu0 0.0
      %5364 = vmatpush1.msra.mxu0 0.0
      %5365 = vmatprep.subr.mxu0 0.0
      %5366 = vmatpush1.msra.mxu0 0.0
      %5367 = vmatprep.subr.mxu0 0.0
      %5368 = vmatpush1.msra.mxu0 0.0
      %5369 = vmatprep.mubr.f32.mxu0 0.0
      %5370 = vmatmul.mubr.f32.gmra.mrb[0].mxu0 %v5303
      %v5371 = vpop.f32.mrb[0].mxu0
      %v5372 = vadd.f32 0.0, %v5371
      %v5373 = vpop.f32.mrb[0].mxu0
      %v5374 = vadd.f32 0.0, %v5373
      %5375 = vdwg.mxu0
      %v5376 = vadd.f32 %v5288, %v5372
      %v5377 = vadd.f32 %v5289, %v5374
      %s5378 = scalar_lea.vmem %s17, 16
      %v5379 = vld [vmem:[%s5378] sm:$0xff]
      %5380 = vrot.lane.b32.xlu0 %v5195, 15
      %v5381 = vpop.permute.xlu0 %5380
      %5382 = vrot.lane.b32.xlu0 %v5196, 15
      %v5383 = vpop.permute.xlu0 %5382
      %5384 = vrot.lane.b32.xlu0 %v5197, 15
      %v5385 = vpop.permute.xlu0 %5384
      %v5386 = vsel %vm1481, %v5381, %v5383
      %v5387 = vsel %vm1481, %v5383, %v5385
      %v5391 = vsel %vm3120, %v5379, 0
      %5393 = vmatprep.subr.mxu0 %v5387
      %5394 = vmatpush1.msra.mxu0 %v5386
      %5395 = vmatprep.subr.mxu0 0.0
      %5396 = vmatpush1.msra.mxu0 0.0
      %5397 = vmatprep.subr.mxu0 0.0
      %5398 = vmatpush1.msra.mxu0 0.0
      %5399 = vmatprep.subr.mxu0 0.0
      %5400 = vmatpush1.msra.mxu0 0.0
      %5401 = vmatprep.subr.mxu0 0.0
      %5402 = vmatpush1.msra.mxu0 0.0
      %5403 = vmatprep.subr.mxu0 0.0
      %5404 = vmatpush1.msra.mxu0 0.0
      %5405 = vmatprep.subr.mxu0 0.0
      %5406 = vmatpush1.msra.mxu0 0.0
      %5407 = vmatprep.subr.mxu0 0.0
      %5408 = vmatpush1.msra.mxu0 0.0
      %5409 = vmatprep.subr.mxu0 0.0
      %5410 = vmatpush1.msra.mxu0 0.0
      %5411 = vmatprep.subr.mxu0 0.0
      %5412 = vmatpush1.msra.mxu0 0.0
      %5413 = vmatprep.subr.mxu0 0.0
      %5414 = vmatpush1.msra.mxu0 0.0
      %5415 = vmatprep.subr.mxu0 0.0
      %5416 = vmatpush1.msra.mxu0 0.0
      %5417 = vmatprep.subr.mxu0 0.0
      %5418 = vmatpush1.msra.mxu0 0.0
      %5419 = vmatprep.subr.mxu0 0.0
      %5420 = vmatpush1.msra.mxu0 0.0
      %5421 = vmatprep.subr.mxu0 0.0
      %5422 = vmatpush1.msra.mxu0 0.0
      %5423 = vmatprep.subr.mxu0 0.0
      %5424 = vmatpush1.msra.mxu0 0.0
      %5425 = vmatprep.subr.mxu0 0.0
      %5426 = vmatpush1.msra.mxu0 0.0
      %5427 = vmatprep.subr.mxu0 0.0
      %5428 = vmatpush1.msra.mxu0 0.0
      %5429 = vmatprep.subr.mxu0 0.0
      %5430 = vmatpush1.msra.mxu0 0.0
      %5431 = vmatprep.subr.mxu0 0.0
      %5432 = vmatpush1.msra.mxu0 0.0
      %5433 = vmatprep.subr.mxu0 0.0
      %5434 = vmatpush1.msra.mxu0 0.0
      %5435 = vmatprep.subr.mxu0 0.0
      %5436 = vmatpush1.msra.mxu0 0.0
      %5437 = vmatprep.subr.mxu0 0.0
      %5438 = vmatpush1.msra.mxu0 0.0
      %5439 = vmatprep.subr.mxu0 0.0
      %5440 = vmatpush1.msra.mxu0 0.0
      %5441 = vmatprep.subr.mxu0 0.0
      %5442 = vmatpush1.msra.mxu0 0.0
      %5443 = vmatprep.subr.mxu0 0.0
      %5444 = vmatpush1.msra.mxu0 0.0
      %5445 = vmatprep.subr.mxu0 0.0
      %5446 = vmatpush1.msra.mxu0 0.0
      %5447 = vmatprep.subr.mxu0 0.0
      %5448 = vmatpush1.msra.mxu0 0.0
      %5449 = vmatprep.subr.mxu0 0.0
      %5450 = vmatpush1.msra.mxu0 0.0
      %5451 = vmatprep.subr.mxu0 0.0
      %5452 = vmatpush1.msra.mxu0 0.0
      %5453 = vmatprep.subr.mxu0 0.0
      %5454 = vmatpush1.msra.mxu0 0.0
      %5455 = vmatprep.subr.mxu0 0.0
      %5456 = vmatpush1.msra.mxu0 0.0
      %5457 = vmatprep.mubr.f32.mxu0 0.0
      %5458 = vmatmul.mubr.f32.gmra.mrb[0].mxu0 %v5391
      %v5459 = vpop.f32.mrb[0].mxu0
      %v5460 = vadd.f32 0.0, %v5459
      %v5461 = vpop.f32.mrb[0].mxu0
      %v5462 = vadd.f32 0.0, %v5461
      %5463 = vdwg.mxu0
      %v5464 = vmul.f32 %v5460, %v1627
      %v5465 = vmul.f32 %v5462, %v1631
      %v5466 = vadd.f32 %v5376, %v5464
      %v5467 = vadd.f32 %v5377, %v5465
      %s5468 = scalar_lea.vmem %s17, 24
      %v5469 = vld [vmem:[%s5468] sm:$0xff]
      %5470 = vrot.lane.b32.xlu0 %v5195, 1
      %v5471 = vpop.permute.xlu0 %5470
      %5472 = vrot.lane.b32.xlu0 %v5196, 1
      %v5473 = vpop.permute.xlu0 %5472
      %5474 = vrot.lane.b32.xlu0 %v5197, 1
      %v5475 = vpop.permute.xlu0 %5474
      %v5476 = vsel %vm1741, %v5471, %v5473
      %v5477 = vsel %vm1741, %v5473, %v5475
      %v5481 = vsel %vm3120, %v5469, 0
      %5483 = vmatprep.subr.mxu0 %v5477
      %5484 = vmatpush1.msra.mxu0 %v5476
      %5485 = vmatprep.subr.mxu0 0.0
      %5486 = vmatpush1.msra.mxu0 0.0
      %5487 = vmatprep.subr.mxu0 0.0
      %5488 = vmatpush1.msra.mxu0 0.0
      %5489 = vmatprep.subr.mxu0 0.0
      %5490 = vmatpush1.msra.mxu0 0.0
      %5491 = vmatprep.subr.mxu0 0.0
      %5492 = vmatpush1.msra.mxu0 0.0
      %5493 = vmatprep.subr.mxu0 0.0
      %5494 = vmatpush1.msra.mxu0 0.0
      %5495 = vmatprep.subr.mxu0 0.0
      %5496 = vmatpush1.msra.mxu0 0.0
      %5497 = vmatprep.subr.mxu0 0.0
      %5498 = vmatpush1.msra.mxu0 0.0
      %5499 = vmatprep.subr.mxu0 0.0
      %5500 = vmatpush1.msra.mxu0 0.0
      %5501 = vmatprep.subr.mxu0 0.0
      %5502 = vmatpush1.msra.mxu0 0.0
      %5503 = vmatprep.subr.mxu0 0.0
      %5504 = vmatpush1.msra.mxu0 0.0
      %5505 = vmatprep.subr.mxu0 0.0
      %5506 = vmatpush1.msra.mxu0 0.0
      %5507 = vmatprep.subr.mxu0 0.0
      %5508 = vmatpush1.msra.mxu0 0.0
      %5509 = vmatprep.subr.mxu0 0.0
      %5510 = vmatpush1.msra.mxu0 0.0
      %5511 = vmatprep.subr.mxu0 0.0
      %5512 = vmatpush1.msra.mxu0 0.0
      %5513 = vmatprep.subr.mxu0 0.0
      %5514 = vmatpush1.msra.mxu0 0.0
      %5515 = vmatprep.subr.mxu0 0.0
      %5516 = vmatpush1.msra.mxu0 0.0
      %5517 = vmatprep.subr.mxu0 0.0
      %5518 = vmatpush1.msra.mxu0 0.0
      %5519 = vmatprep.subr.mxu0 0.0
      %5520 = vmatpush1.msra.mxu0 0.0
      %5521 = vmatprep.subr.mxu0 0.0
      %5522 = vmatpush1.msra.mxu0 0.0
      %5523 = vmatprep.subr.mxu0 0.0
      %5524 = vmatpush1.msra.mxu0 0.0
      %5525 = vmatprep.subr.mxu0 0.0
      %5526 = vmatpush1.msra.mxu0 0.0
      %5527 = vmatprep.subr.mxu0 0.0
      %5528 = vmatpush1.msra.mxu0 0.0
      %5529 = vmatprep.subr.mxu0 0.0
      %5530 = vmatpush1.msra.mxu0 0.0
      %5531 = vmatprep.subr.mxu0 0.0
      %5532 = vmatpush1.msra.mxu0 0.0
      %5533 = vmatprep.subr.mxu0 0.0
      %5534 = vmatpush1.msra.mxu0 0.0
      %5535 = vmatprep.subr.mxu0 0.0
      %5536 = vmatpush1.msra.mxu0 0.0
      %5537 = vmatprep.subr.mxu0 0.0
      %5538 = vmatpush1.msra.mxu0 0.0
      %5539 = vmatprep.subr.mxu0 0.0
      %5540 = vmatpush1.msra.mxu0 0.0
      %5541 = vmatprep.subr.mxu0 0.0
      %5542 = vmatpush1.msra.mxu0 0.0
      %5543 = vmatprep.subr.mxu0 0.0
      %5544 = vmatpush1.msra.mxu0 0.0
      %5545 = vmatprep.subr.mxu0 0.0
      %5546 = vmatpush1.msra.mxu0 0.0
      %5547 = vmatprep.mubr.f32.mxu0 0.0
      %5548 = vmatmul.mubr.f32.gmra.mrb[0].mxu0 %v5481
      %v5549 = vpop.f32.mrb[0].mxu0
      %v5550 = vadd.f32 0.0, %v5549
      %v5551 = vpop.f32.mrb[0].mxu0
      %v5552 = vadd.f32 0.0, %v5551
      %5553 = vdwg.mxu0
      %v5554 = vmul.f32 %v5550, %v1122
      %v5555 = vmul.f32 %v5552, %v1126
      %v5556 = vadd.f32 %v5466, %v5554
      %v5557 = vadd.f32 %v5467, %v5555
      %s5558 = scalar_lea.vmem %s17, 32
      %v5559 = vld [vmem:[%s5558] sm:$0xff]
      %v5561 = vsel %vm3120, %v5559, 0
      %5563 = vmatprep.subr.mxu0 %v5197
      %5564 = vmatpush1.msra.mxu0 %v5196
      %5565 = vmatprep.subr.mxu0 0.0
      %5566 = vmatpush1.msra.mxu0 0.0
      %5567 = vmatprep.subr.mxu0 0.0
      %5568 = vmatpush1.msra.mxu0 0.0
      %5569 = vmatprep.subr.mxu0 0.0
      %5570 = vmatpush1.msra.mxu0 0.0
      %5571 = vmatprep.subr.mxu0 0.0
      %5572 = vmatpush1.msra.mxu0 0.0
      %5573 = vmatprep.subr.mxu0 0.0
      %5574 = vmatpush1.msra.mxu0 0.0
      %5575 = vmatprep.subr.mxu0 0.0
      %5576 = vmatpush1.msra.mxu0 0.0
      %5577 = vmatprep.subr.mxu0 0.0
      %5578 = vmatpush1.msra.mxu0 0.0
      %5579 = vmatprep.subr.mxu0 0.0
      %5580 = vmatpush1.msra.mxu0 0.0
      %5581 = vmatprep.subr.mxu0 0.0
      %5582 = vmatpush1.msra.mxu0 0.0
      %5583 = vmatprep.subr.mxu0 0.0
      %5584 = vmatpush1.msra.mxu0 0.0
      %5585 = vmatprep.subr.mxu0 0.0
      %5586 = vmatpush1.msra.mxu0 0.0
      %5587 = vmatprep.subr.mxu0 0.0
      %5588 = vmatpush1.msra.mxu0 0.0
      %5589 = vmatprep.subr.mxu0 0.0
      %5590 = vmatpush1.msra.mxu0 0.0
      %5591 = vmatprep.subr.mxu0 0.0
      %5592 = vmatpush1.msra.mxu0 0.0
      %5593 = vmatprep.subr.mxu0 0.0
      %5594 = vmatpush1.msra.mxu0 0.0
      %5595 = vmatprep.subr.mxu0 0.0
      %5596 = vmatpush1.msra.mxu0 0.0
      %5597 = vmatprep.subr.mxu0 0.0
      %5598 = vmatpush1.msra.mxu0 0.0
      %5599 = vmatprep.subr.mxu0 0.0
      %5600 = vmatpush1.msra.mxu0 0.0
      %5601 = vmatprep.subr.mxu0 0.0
      %5602 = vmatpush1.msra.mxu0 0.0
      %5603 = vmatprep.subr.mxu0 0.0
      %5604 = vmatpush1.msra.mxu0 0.0
      %5605 = vmatprep.subr.mxu0 0.0
      %5606 = vmatpush1.msra.mxu0 0.0
      %5607 = vmatprep.subr.mxu0 0.0
      %5608 = vmatpush1.msra.mxu0 0.0
      %5609 = vmatprep.subr.mxu0 0.0
      %5610 = vmatpush1.msra.mxu0 0.0
      %5611 = vmatprep.subr.mxu0 0.0
      %5612 = vmatpush1.msra.mxu0 0.0
      %5613 = vmatprep.subr.mxu0 0.0
      %5614 = vmatpush1.msra.mxu0 0.0
      %5615 = vmatprep.subr.mxu0 0.0
      %5616 = vmatpush1.msra.mxu0 0.0
      %5617 = vmatprep.subr.mxu0 0.0
      %5618 = vmatpush1.msra.mxu0 0.0
      %5619 = vmatprep.subr.mxu0 0.0
      %5620 = vmatpush1.msra.mxu0 0.0
      %5621 = vmatprep.subr.mxu0 0.0
      %5622 = vmatpush1.msra.mxu0 0.0
      %5623 = vmatprep.subr.mxu0 0.0
      %5624 = vmatpush1.msra.mxu0 0.0
      %5625 = vmatprep.subr.mxu0 0.0
      %5626 = vmatpush1.msra.mxu0 0.0
      %5627 = vmatprep.mubr.f32.mxu0 0.0
      %5628 = vmatmul.mubr.f32.gmra.mrb[0].mxu0 %v5561
      %v5629 = vpop.f32.mrb[0].mxu0
      %v5630 = vadd.f32 0.0, %v5629
      %v5631 = vpop.f32.mrb[0].mxu0
      %v5632 = vadd.f32 0.0, %v5631
      %5633 = vdwg.mxu0
      %v5634 = vadd.f32 %v5556, %v5630
      %v5635 = vadd.f32 %v5557, %v5632
      %v5636 = vld [vmem:[#allocation4 + $0x8] sm:$0xff]
      %v5637 = vld [vmem:[#allocation4 + $0x10] sm:$0xff]
      %v5638 = vld [vmem:[#allocation4 + $0x18] sm:$0xff]
      %s5639 = scalar_lea.vmem %s17, 40
      %v5640 = vld [vmem:[%s5639] sm:$0xff]
      %5644 = vrot.lane.b32.xlu0 %v5636, 127
      %v5645 = vpop.permute.xlu0 %5644
      %5646 = vrot.lane.b32.xlu0 %v5637, 127
      %v5647 = vpop.permute.xlu0 %5646
      %5648 = vrot.lane.b32.xlu0 %v5638, 127
      %v5649 = vpop.permute.xlu0 %5648
      %v5650 = vsel %vm2170, %v5645, %v5647
      %v5651 = vsel %vm2170, %v5647, %v5649
      %v5655 = vsel %vm3120, %v5640, 0
      %5657 = vmatprep.subr.mxu0 %v5651
      %5658 = vmatpush1.msra.mxu0 %v5650
      %5659 = vmatprep.subr.mxu0 0.0
      %5660 = vmatpush1.msra.mxu0 0.0
      %5661 = vmatprep.subr.mxu0 0.0
      %5662 = vmatpush1.msra.mxu0 0.0
      %5663 = vmatprep.subr.mxu0 0.0
      %5664 = vmatpush1.msra.mxu0 0.0
      %5665 = vmatprep.subr.mxu0 0.0
      %5666 = vmatpush1.msra.mxu0 0.0
      %5667 = vmatprep.subr.mxu0 0.0
      %5668 = vmatpush1.msra.mxu0 0.0
      %5669 = vmatprep.subr.mxu0 0.0
      %5670 = vmatpush1.msra.mxu0 0.0
      %5671 = vmatprep.subr.mxu0 0.0
      %5672 = vmatpush1.msra.mxu0 0.0
      %5673 = vmatprep.subr.mxu0 0.0
      %5674 = vmatpush1.msra.mxu0 0.0
      %5675 = vmatprep.subr.mxu0 0.0
      %5676 = vmatpush1.msra.mxu0 0.0
      %5677 = vmatprep.subr.mxu0 0.0
      %5678 = vmatpush1.msra.mxu0 0.0
      %5679 = vmatprep.subr.mxu0 0.0
      %5680 = vmatpush1.msra.mxu0 0.0
      %5681 = vmatprep.subr.mxu0 0.0
      %5682 = vmatpush1.msra.mxu0 0.0
      %5683 = vmatprep.subr.mxu0 0.0
      %5684 = vmatpush1.msra.mxu0 0.0
      %5685 = vmatprep.subr.mxu0 0.0
      %5686 = vmatpush1.msra.mxu0 0.0
      %5687 = vmatprep.subr.mxu0 0.0
      %5688 = vmatpush1.msra.mxu0 0.0
      %5689 = vmatprep.subr.mxu0 0.0
      %5690 = vmatpush1.msra.mxu0 0.0
      %5691 = vmatprep.subr.mxu0 0.0
      %5692 = vmatpush1.msra.mxu0 0.0
      %5693 = vmatprep.subr.mxu0 0.0
      %5694 = vmatpush1.msra.mxu0 0.0
      %5695 = vmatprep.subr.mxu0 0.0
      %5696 = vmatpush1.msra.mxu0 0.0
      %5697 = vmatprep.subr.mxu0 0.0
      %5698 = vmatpush1.msra.mxu0 0.0
      %5699 = vmatprep.subr.mxu0 0.0
      %5700 = vmatpush1.msra.mxu0 0.0
      %5701 = vmatprep.subr.mxu0 0.0
      %5702 = vmatpush1.msra.mxu0 0.0
      %5703 = vmatprep.subr.mxu0 0.0
      %5704 = vmatpush1.msra.mxu0 0.0
      %5705 = vmatprep.subr.mxu0 0.0
      %5706 = vmatpush1.msra.mxu0 0.0
      %5707 = vmatprep.subr.mxu0 0.0
      %5708 = vmatpush1.msra.mxu0 0.0
      %5709 = vmatprep.subr.mxu0 0.0
      %5710 = vmatpush1.msra.mxu0 0.0
      %5711 = vmatprep.subr.mxu0 0.0
      %5712 = vmatpush1.msra.mxu0 0.0
      %5713 = vmatprep.subr.mxu0 0.0
      %5714 = vmatpush1.msra.mxu0 0.0
      %5715 = vmatprep.subr.mxu0 0.0
      %5716 = vmatpush1.msra.mxu0 0.0
      %5717 = vmatprep.subr.mxu0 0.0
      %5718 = vmatpush1.msra.mxu0 0.0
      %5719 = vmatprep.subr.mxu0 0.0
      %5720 = vmatpush1.msra.mxu0 0.0
      %5721 = vmatprep.mubr.f32.mxu0 0.0
      %5722 = vmatmul.mubr.f32.gmra.mrb[0].mxu0 %v5655
      %v5723 = vpop.f32.mrb[0].mxu0
      %v5724 = vadd.f32 0.0, %v5723
      %v5725 = vpop.f32.mrb[0].mxu0
      %v5726 = vadd.f32 0.0, %v5725
      %5727 = vdwg.mxu0
      %v5728 = vmul.f32 %v5724, %v1627
      %v5729 = vmul.f32 %v5726, %v1631
      %v5730 = vadd.f32 %v5634, %v5728
      %v5731 = vadd.f32 %v5635, %v5729
      %s5732 = scalar_lea.vmem %s17, 48
      %v5733 = vld [vmem:[%s5732] sm:$0xff]
      %5734 = vrot.lane.b32.xlu0 %v5636, 113
      %v5735 = vpop.permute.xlu0 %5734
      %5736 = vrot.lane.b32.xlu0 %v5637, 113
      %v5737 = vpop.permute.xlu0 %5736
      %5738 = vrot.lane.b32.xlu0 %v5638, 113
      %v5739 = vpop.permute.xlu0 %5738
      %v5740 = vsel %vm2419, %v5735, %v5737
      %v5741 = vsel %vm2419, %v5737, %v5739
      %v5745 = vsel %vm3120, %v5733, 0
      %5747 = vmatprep.subr.mxu0 %v5741
      %5748 = vmatpush1.msra.mxu0 %v5740
      %5749 = vmatprep.subr.mxu0 0.0
      %5750 = vmatpush1.msra.mxu0 0.0
      %5751 = vmatprep.subr.mxu0 0.0
      %5752 = vmatpush1.msra.mxu0 0.0
      %5753 = vmatprep.subr.mxu0 0.0
      %5754 = vmatpush1.msra.mxu0 0.0
      %5755 = vmatprep.subr.mxu0 0.0
      %5756 = vmatpush1.msra.mxu0 0.0
      %5757 = vmatprep.subr.mxu0 0.0
      %5758 = vmatpush1.msra.mxu0 0.0
      %5759 = vmatprep.subr.mxu0 0.0
      %5760 = vmatpush1.msra.mxu0 0.0
      %5761 = vmatprep.subr.mxu0 0.0
      %5762 = vmatpush1.msra.mxu0 0.0
      %5763 = vmatprep.subr.mxu0 0.0
      %5764 = vmatpush1.msra.mxu0 0.0
      %5765 = vmatprep.subr.mxu0 0.0
      %5766 = vmatpush1.msra.mxu0 0.0
      %5767 = vmatprep.subr.mxu0 0.0
      %5768 = vmatpush1.msra.mxu0 0.0
      %5769 = vmatprep.subr.mxu0 0.0
      %5770 = vmatpush1.msra.mxu0 0.0
      %5771 = vmatprep.subr.mxu0 0.0
      %5772 = vmatpush1.msra.mxu0 0.0
      %5773 = vmatprep.subr.mxu0 0.0
      %5774 = vmatpush1.msra.mxu0 0.0
      %5775 = vmatprep.subr.mxu0 0.0
      %5776 = vmatpush1.msra.mxu0 0.0
      %5777 = vmatprep.subr.mxu0 0.0
      %5778 = vmatpush1.msra.mxu0 0.0
      %5779 = vmatprep.subr.mxu0 0.0
      %5780 = vmatpush1.msra.mxu0 0.0
      %5781 = vmatprep.subr.mxu0 0.0
      %5782 = vmatpush1.msra.mxu0 0.0
      %5783 = vmatprep.subr.mxu0 0.0
      %5784 = vmatpush1.msra.mxu0 0.0
      %5785 = vmatprep.subr.mxu0 0.0
      %5786 = vmatpush1.msra.mxu0 0.0
      %5787 = vmatprep.subr.mxu0 0.0
      %5788 = vmatpush1.msra.mxu0 0.0
      %5789 = vmatprep.subr.mxu0 0.0
      %5790 = vmatpush1.msra.mxu0 0.0
      %5791 = vmatprep.subr.mxu0 0.0
      %5792 = vmatpush1.msra.mxu0 0.0
      %5793 = vmatprep.subr.mxu0 0.0
      %5794 = vmatpush1.msra.mxu0 0.0
      %5795 = vmatprep.subr.mxu0 0.0
      %5796 = vmatpush1.msra.mxu0 0.0
      %5797 = vmatprep.subr.mxu0 0.0
      %5798 = vmatpush1.msra.mxu0 0.0
      %5799 = vmatprep.subr.mxu0 0.0
      %5800 = vmatpush1.msra.mxu0 0.0
      %5801 = vmatprep.subr.mxu0 0.0
      %5802 = vmatpush1.msra.mxu0 0.0
      %5803 = vmatprep.subr.mxu0 0.0
      %5804 = vmatpush1.msra.mxu0 0.0
      %5805 = vmatprep.subr.mxu0 0.0
      %5806 = vmatpush1.msra.mxu0 0.0
      %5807 = vmatprep.subr.mxu0 0.0
      %5808 = vmatpush1.msra.mxu0 0.0
      %5809 = vmatprep.subr.mxu0 0.0
      %5810 = vmatpush1.msra.mxu0 0.0
      %5811 = vmatprep.mubr.f32.mxu0 0.0
      %5812 = vmatmul.mubr.f32.gmra.mrb[0].mxu0 %v5745
      %v5813 = vpop.f32.mrb[0].mxu0
      %v5814 = vadd.f32 0.0, %v5813
      %v5815 = vpop.f32.mrb[0].mxu0
      %v5816 = vadd.f32 0.0, %v5815
      %5817 = vdwg.mxu0
      %v5818 = vmul.f32 %v5814, %v1122
      %v5819 = vmul.f32 %v5816, %v1126
      %v5820 = vadd.f32 %v5730, %v5818
      %v5821 = vadd.f32 %v5731, %v5819
      %s5822 = scalar_lea.vmem %s17, 56
      %v5823 = vld [vmem:[%s5822] sm:$0xff]
      %5824 = vrot.lane.b32.xlu0 %v5636, 112
      %v5825 = vpop.permute.xlu0 %5824
      %5826 = vrot.lane.b32.xlu0 %v5637, 112
      %v5827 = vpop.permute.xlu0 %5826
      %5828 = vrot.lane.b32.xlu0 %v5638, 112
      %v5829 = vpop.permute.xlu0 %5828
      %v5830 = vsel %vm2668, %v5825, %v5827
      %v5831 = vsel %vm2668, %v5827, %v5829
      %v5835 = vsel %vm3120, %v5823, 0
      %5837 = vmatprep.subr.mxu0 %v5831
      %5838 = vmatpush1.msra.mxu0 %v5830
      %5839 = vmatprep.subr.mxu0 0.0
      %5840 = vmatpush1.msra.mxu0 0.0
      %5841 = vmatprep.subr.mxu0 0.0
      %5842 = vmatpush1.msra.mxu0 0.0
      %5843 = vmatprep.subr.mxu0 0.0
      %5844 = vmatpush1.msra.mxu0 0.0
      %5845 = vmatprep.subr.mxu0 0.0
      %5846 = vmatpush1.msra.mxu0 0.0
      %5847 = vmatprep.subr.mxu0 0.0
      %5848 = vmatpush1.msra.mxu0 0.0
      %5849 = vmatprep.subr.mxu0 0.0
      %5850 = vmatpush1.msra.mxu0 0.0
      %5851 = vmatprep.subr.mxu0 0.0
      %5852 = vmatpush1.msra.mxu0 0.0
      %5853 = vmatprep.subr.mxu0 0.0
      %5854 = vmatpush1.msra.mxu0 0.0
      %5855 = vmatprep.subr.mxu0 0.0
      %5856 = vmatpush1.msra.mxu0 0.0
      %5857 = vmatprep.subr.mxu0 0.0
      %5858 = vmatpush1.msra.mxu0 0.0
      %5859 = vmatprep.subr.mxu0 0.0
      %5860 = vmatpush1.msra.mxu0 0.0
      %5861 = vmatprep.subr.mxu0 0.0
      %5862 = vmatpush1.msra.mxu0 0.0
      %5863 = vmatprep.subr.mxu0 0.0
      %5864 = vmatpush1.msra.mxu0 0.0
      %5865 = vmatprep.subr.mxu0 0.0
      %5866 = vmatpush1.msra.mxu0 0.0
      %5867 = vmatprep.subr.mxu0 0.0
      %5868 = vmatpush1.msra.mxu0 0.0
      %5869 = vmatprep.subr.mxu0 0.0
      %5870 = vmatpush1.msra.mxu0 0.0
      %5871 = vmatprep.subr.mxu0 0.0
      %5872 = vmatpush1.msra.mxu0 0.0
      %5873 = vmatprep.subr.mxu0 0.0
      %5874 = vmatpush1.msra.mxu0 0.0
      %5875 = vmatprep.subr.mxu0 0.0
      %5876 = vmatpush1.msra.mxu0 0.0
      %5877 = vmatprep.subr.mxu0 0.0
      %5878 = vmatpush1.msra.mxu0 0.0
      %5879 = vmatprep.subr.mxu0 0.0
      %5880 = vmatpush1.msra.mxu0 0.0
      %5881 = vmatprep.subr.mxu0 0.0
      %5882 = vmatpush1.msra.mxu0 0.0
      %5883 = vmatprep.subr.mxu0 0.0
      %5884 = vmatpush1.msra.mxu0 0.0
      %5885 = vmatprep.subr.mxu0 0.0
      %5886 = vmatpush1.msra.mxu0 0.0
      %5887 = vmatprep.subr.mxu0 0.0
      %5888 = vmatpush1.msra.mxu0 0.0
      %5889 = vmatprep.subr.mxu0 0.0
      %5890 = vmatpush1.msra.mxu0 0.0
      %5891 = vmatprep.subr.mxu0 0.0
      %5892 = vmatpush1.msra.mxu0 0.0
      %5893 = vmatprep.subr.mxu0 0.0
      %5894 = vmatpush1.msra.mxu0 0.0
      %5895 = vmatprep.subr.mxu0 0.0
      %5896 = vmatpush1.msra.mxu0 0.0
      %5897 = vmatprep.subr.mxu0 0.0
      %5898 = vmatpush1.msra.mxu0 0.0
      %5899 = vmatprep.subr.mxu0 0.0
      %5900 = vmatpush1.msra.mxu0 0.0
      %5901 = vmatprep.mubr.f32.mxu0 0.0
      %5902 = vmatmul.mubr.f32.gmra.mrb[0].mxu0 %v5835
      %v5903 = vpop.f32.mrb[0].mxu0
      %v5904 = vadd.f32 0.0, %v5903
      %v5905 = vpop.f32.mrb[0].mxu0
      %v5906 = vadd.f32 0.0, %v5905
      %5907 = vdwg.mxu0
      %v5908 = vadd.f32 %v5820, %v5904
      %v5909 = vadd.f32 %v5821, %v5906
      %s5910 = scalar_lea.vmem %s17, 64
      %v5911 = vld [vmem:[%s5910] sm:$0xff]
      %5912 = vrot.lane.b32.xlu0 %v5636, 111
      %v5913 = vpop.permute.xlu0 %5912
      %5914 = vrot.lane.b32.xlu0 %v5637, 111
      %v5915 = vpop.permute.xlu0 %5914
      %5916 = vrot.lane.b32.xlu0 %v5638, 111
      %v5917 = vpop.permute.xlu0 %5916
      %v5918 = vsel %vm2913, %v5913, %v5915
      %v5919 = vsel %vm2913, %v5915, %v5917
      %v5923 = vsel %vm3120, %v5911, 0
      %5925 = vmatprep.subr.mxu0 %v5919
      %5926 = vmatpush1.msra.mxu0 %v5918
      %5927 = vmatprep.subr.mxu0 0.0
      %5928 = vmatpush1.msra.mxu0 0.0
      %5929 = vmatprep.subr.mxu0 0.0
      %5930 = vmatpush1.msra.mxu0 0.0
      %5931 = vmatprep.subr.mxu0 0.0
      %5932 = vmatpush1.msra.mxu0 0.0
      %5933 = vmatprep.subr.mxu0 0.0
      %5934 = vmatpush1.msra.mxu0 0.0
      %5935 = vmatprep.subr.mxu0 0.0
      %5936 = vmatpush1.msra.mxu0 0.0
      %5937 = vmatprep.subr.mxu0 0.0
      %5938 = vmatpush1.msra.mxu0 0.0
      %5939 = vmatprep.subr.mxu0 0.0
      %5940 = vmatpush1.msra.mxu0 0.0
      %5941 = vmatprep.subr.mxu0 0.0
      %5942 = vmatpush1.msra.mxu0 0.0
      %5943 = vmatprep.subr.mxu0 0.0
      %5944 = vmatpush1.msra.mxu0 0.0
      %5945 = vmatprep.subr.mxu0 0.0
      %5946 = vmatpush1.msra.mxu0 0.0
      %5947 = vmatprep.subr.mxu0 0.0
      %5948 = vmatpush1.msra.mxu0 0.0
      %5949 = vmatprep.subr.mxu0 0.0
      %5950 = vmatpush1.msra.mxu0 0.0
      %5951 = vmatprep.subr.mxu0 0.0
      %5952 = vmatpush1.msra.mxu0 0.0
      %5953 = vmatprep.subr.mxu0 0.0
      %5954 = vmatpush1.msra.mxu0 0.0
      %5955 = vmatprep.subr.mxu0 0.0
      %5956 = vmatpush1.msra.mxu0 0.0
      %5957 = vmatprep.subr.mxu0 0.0
      %5958 = vmatpush1.msra.mxu0 0.0
      %5959 = vmatprep.subr.mxu0 0.0
      %5960 = vmatpush1.msra.mxu0 0.0
      %5961 = vmatprep.subr.mxu0 0.0
      %5962 = vmatpush1.msra.mxu0 0.0
      %5963 = vmatprep.subr.mxu0 0.0
      %5964 = vmatpush1.msra.mxu0 0.0
      %5965 = vmatprep.subr.mxu0 0.0
      %5966 = vmatpush1.msra.mxu0 0.0
      %5967 = vmatprep.subr.mxu0 0.0
      %5968 = vmatpush1.msra.mxu0 0.0
      %5969 = vmatprep.subr.mxu0 0.0
      %5970 = vmatpush1.msra.mxu0 0.0
      %5971 = vmatprep.subr.mxu0 0.0
      %5972 = vmatpush1.msra.mxu0 0.0
      %5973 = vmatprep.subr.mxu0 0.0
      %5974 = vmatpush1.msra.mxu0 0.0
      %5975 = vmatprep.subr.mxu0 0.0
      %5976 = vmatpush1.msra.mxu0 0.0
      %5977 = vmatprep.subr.mxu0 0.0
      %5978 = vmatpush1.msra.mxu0 0.0
      %5979 = vmatprep.subr.mxu0 0.0
      %5980 = vmatpush1.msra.mxu0 0.0
      %5981 = vmatprep.subr.mxu0 0.0
      %5982 = vmatpush1.msra.mxu0 0.0
      %5983 = vmatprep.subr.mxu0 0.0
      %5984 = vmatpush1.msra.mxu0 0.0
      %5985 = vmatprep.subr.mxu0 0.0
      %5986 = vmatpush1.msra.mxu0 0.0
      %5987 = vmatprep.subr.mxu0 0.0
      %5988 = vmatpush1.msra.mxu0 0.0
      %5989 = vmatprep.mubr.f32.mxu0 0.0
      %5990 = vmatmul.mubr.f32.gmra.mrb[0].mxu0 %v5923
      %v5991 = vpop.f32.mrb[0].mxu0
      %v5992 = vadd.f32 0.0, %v5991
      %v5993 = vpop.f32.mrb[0].mxu0
      %v5994 = vadd.f32 0.0, %v5993
      %5995 = vdwg.mxu0
      %v5996 = vmul.f32 %v5992, %v1627
      %v5997 = vmul.f32 %v5994, %v1631
      %v5998 = vadd.f32 %v5908, %v5996
      %v5999 = vadd.f32 %v5909, %v5997
      %v6000 = vld [vmem:[%s18] sm:$0xff]
      %6002 = vset.pattern.permute.xlu0 0
      %6003 = vperm.xlu0 %6002, %v6000
      %v6004 = vpop.permute.xlu0 %6003
      %v6006 = vmul.f32 %v5998, %v6004
      %v6007 = vmul.f32 %v5999, %v6004
      %v6008 = vld [vmem:[%s19] sm:$0xff]
      %6010 = vset.pattern.permute.xlu0 0
      %6011 = vperm.xlu0 %6010, %v6008
      %v6012 = vpop.permute.xlu0 %6011
      %v6014 = vadd.f32 %v6006, %v6012
      %v6015 = vadd.f32 %v6007, %v6012
      %v6016 = vmax.f32 %v6014, 0.0
      %v6017 = vmax.f32 %v6015, 0.0
      %v6018 = vadd.f32 %v5189, %v6016
      %v6019 = vadd.f32 %v5190, %v6017
      %v6020 = vld [vmem:[%s20] sm:$0xff]
      %v6021 = vld [vmem:[%s21] sm:$0xff]
      %6023 = vset.pattern.permute.xlu0 0
      %6024 = vperm.xlu0 %6023, %v6021
      %v6025 = vpop.permute.xlu0 %6024
      %v6028 = vsel %vm3120, %v6020, 0
      %6030 = vmatprep.subr.mxu0 %v6019
      %6031 = vmatpush1.msra.mxu0 %v6018
      %6032 = vmatprep.subr.mxu0 0.0
      %6033 = vmatpush1.msra.mxu0 0.0
      %6034 = vmatprep.subr.mxu0 0.0
      %6035 = vmatpush1.msra.mxu0 0.0
      %6036 = vmatprep.subr.mxu0 0.0
      %6037 = vmatpush1.msra.mxu0 0.0
      %6038 = vmatprep.subr.mxu0 0.0
      %6039 = vmatpush1.msra.mxu0 0.0
      %6040 = vmatprep.subr.mxu0 0.0
      %6041 = vmatpush1.msra.mxu0 0.0
      %6042 = vmatprep.subr.mxu0 0.0
      %6043 = vmatpush1.msra.mxu0 0.0
      %6044 = vmatprep.subr.mxu0 0.0
      %6045 = vmatpush1.msra.mxu0 0.0
      %6046 = vmatprep.subr.mxu0 0.0
      %6047 = vmatpush1.msra.mxu0 0.0
      %6048 = vmatprep.subr.mxu0 0.0
      %6049 = vmatpush1.msra.mxu0 0.0
      %6050 = vmatprep.subr.mxu0 0.0
      %6051 = vmatpush1.msra.mxu0 0.0
      %6052 = vmatprep.subr.mxu0 0.0
      %6053 = vmatpush1.msra.mxu0 0.0
      %6054 = vmatprep.subr.mxu0 0.0
      %6055 = vmatpush1.msra.mxu0 0.0
      %6056 = vmatprep.subr.mxu0 0.0
      %6057 = vmatpush1.msra.mxu0 0.0
      %6058 = vmatprep.subr.mxu0 0.0
      %6059 = vmatpush1.msra.mxu0 0.0
      %6060 = vmatprep.subr.mxu0 0.0
      %6061 = vmatpush1.msra.mxu0 0.0
      %6062 = vmatprep.subr.mxu0 0.0
      %6063 = vmatpush1.msra.mxu0 0.0
      %6064 = vmatprep.subr.mxu0 0.0
      %6065 = vmatpush1.msra.mxu0 0.0
      %6066 = vmatprep.subr.mxu0 0.0
      %6067 = vmatpush1.msra.mxu0 0.0
      %6068 = vmatprep.subr.mxu0 0.0
      %6069 = vmatpush1.msra.mxu0 0.0
      %6070 = vmatprep.subr.mxu0 0.0
      %6071 = vmatpush1.msra.mxu0 0.0
      %6072 = vmatprep.subr.mxu0 0.0
      %6073 = vmatpush1.msra.mxu0 0.0
      %6074 = vmatprep.subr.mxu0 0.0
      %6075 = vmatpush1.msra.mxu0 0.0
      %6076 = vmatprep.subr.mxu0 0.0
      %6077 = vmatpush1.msra.mxu0 0.0
      %6078 = vmatprep.subr.mxu0 0.0
      %6079 = vmatpush1.msra.mxu0 0.0
      %6080 = vmatprep.subr.mxu0 0.0
      %6081 = vmatpush1.msra.mxu0 0.0
      %6082 = vmatprep.subr.mxu0 0.0
      %6083 = vmatpush1.msra.mxu0 0.0
      %6084 = vmatprep.subr.mxu0 0.0
      %6085 = vmatpush1.msra.mxu0 0.0
      %6086 = vmatprep.subr.mxu0 0.0
      %6087 = vmatpush1.msra.mxu0 0.0
      %6088 = vmatprep.subr.mxu0 0.0
      %6089 = vmatpush1.msra.mxu0 0.0
      %6090 = vmatprep.subr.mxu0 0.0
      %6091 = vmatpush1.msra.mxu0 0.0
      %6092 = vmatprep.subr.mxu0 0.0
      %6093 = vmatpush1.msra.mxu0 0.0
      %6094 = vmatprep.mubr.f32.mxu0 0.0
      %6095 = vmatmul.mubr.f32.gmra.mrb[0].mxu0 %v6028
      %v6096 = vpop.f32.mrb[0].mxu0
      %v6097 = vadd.f32 %v6025, %v6096
      %v6098 = vpop.f32.mrb[0].mxu0
      %v6099 = vadd.f32 %v6025, %v6098
      %6100 = vdwg.mxu0
      %v6101 = vmax.f32 %v6097, 0.0
      %v6102 = vmax.f32 %v6099, 0.0
      %6103 = vst [vmem:[%s683] sm:$0xff] %v6101
      %6104 = vst [vmem:[%s683 + $0x8] sm:$0xff] %v6102
      %p6105 = scmp.lt.s32.totalorder %s33, 1
      %s6106 = scalar_select %p6105, %s33, 1
      %s6107 = smul.addr %s6106, 2
      %s6108 = smul.addr %s6107, 8
      %s6109 = scalar_lea.vmem %s22, %s6108
      // Predicated region
      $region109: #{danet_forward.1} parent=107 // pred_check
        %p6110 = pneg %p518
      $region110: #{danet_forward.1} parent=107 // pred_check_branch
        %6112 = sbr.rel (%p6110) target = $region112
      $region111: #{danet_forward.1} parent=107 // pred_region
        _
      $region112: #{danet_forward.1} parent=107 // pred_fallthru
        _
    $region108: #{danet_forward.1} parent=5 // pred_fallthru
      _
    %p6113 = scmp.le.s32.totalorder 2, %s28
    // Predicated region
    $region113: #{danet_forward.1} parent=5 // pred_check
      %p6114 = pneg %p6113
    $region114: #{danet_forward.1} parent=5 // pred_check_branch
      %6116 = sbr.rel (%p6114) target = $region116
    $region115: #{danet_forward.1} parent=5 // pred_region
      %s6117 = ssub.s32 %s28, 2
      // Predicated region
      $region117: #{danet_forward.1} parent=115 // pred_check
        %p6118 = pneg %p524
      $region118: #{danet_forward.1} parent=115 // pred_check_branch
        %6120 = sbr.rel (%p6118) target = $region120
      $region119: #{danet_forward.1} parent=115 // pred_region
        %p6121 = scmp.lt.s32.totalorder %s34, 1
        %s6122 = scalar_select %p6121, %s34, 1
        %s6123 = smul.addr %s6122, 2
        %s6124 = smul.addr %s6123, 8
        %s6125 = scalar_lea.vmem %s22, %s6124
      $region120: #{danet_forward.1} parent=115 // pred_fallthru
        _
    $region116: #{danet_forward.1} parent=5 // pred_fallthru
      _
  $region6: #{danet_forward.1} parent=0 // loop_footer
    %s32 = sadd.s32 1, %s28
  $region7: #{danet_forward.1} parent=0 // loop_footer_branch
    %27 = sbr.rel target = $region3
  $region8: #{danet_forward.1} parent=0 // loop_exit
    _

</llo_original>
